<compile_context>
chip_gen: v7x
topology: tpu7x:2x2x1
jax: 0.10.0
libtpu: 0.0.40
codegen_flags: <defaults>
</compile_context>

<pallas_src>
import functools
import math

import jax
import jax.numpy as jnp
from jax import lax
from jax.experimental import pallas as pl
from jax.experimental.pallas import tpu as pltpu

# ----- mini-BERT config (small shapes, same structure as bert-base) -----------
HIDDEN = 32
HEADS = 2
HEAD_DIM = HIDDEN // HEADS
LAYERS = 2
INTERMEDIATE = 64
VOCAB = 100
MAX_POS = 16
TYPE_VOCAB = 2
NUM_CLASSES = 2
EPS = 1e-12
STREAMS = 2          # text encoder / knowledge encoder
VEC_W = 128          # lane width each packed per-layer vector row is padded to


# ----------------------------- shared math helpers -----------------------------
def _layernorm(x, gamma, beta):
    """BertLayerNorm: mean/var over last dim, epsilon inside the square root."""
    mu = jnp.mean(x, axis=-1, keepdims=True)
    var = jnp.mean(jnp.square(x - mu), axis=-1, keepdims=True)
    return (x - mu) * lax.rsqrt(var + EPS) * gamma + beta


def _gelu(x):
    # BERT uses the erf-based GELU (kept exact; tanh-approx is a v5e-only option).
    return 0.5 * x * (1.0 + lax.erf(x * (1.0 / math.sqrt(2.0))))


# ----------------------------- fused Pallas kernel ------------------------------
def _bert_concat_kernel(x_ref, mask_ref, emb_ln_ref,
                        qkv_w_ref, ao_w_ref, i_w_ref, o_w_ref, vec_ref,
                        pool_w_ref, pool_b_ref, cls_w_ref, cls_b_ref,
                        o_ref, *, B, S, nH, dh, n_layers, inter):
    """Entire Bert_concat forward for both streams, fully resident in VMEM."""
    H = nH * dh
    scale = 1.0 / math.sqrt(dh)

    cw = cls_w_ref[...]                  # [2H, C]
    logits = cls_b_ref[...]              # [1, C], broadcasts to [B, C]

    for s in range(STREAMS):             # static loop over the two encoders
        # ---- embedding LayerNorm (no residual) ----
        x = _layernorm(x_ref[s], emb_ln_ref[s, 0:1, :], emb_ln_ref[s, 1:2, :])
        mask = mask_ref[s]               # [B, 1, S] additive (-10000 on pad)

        for l in range(n_layers):        # static loop over layers
            # packed per-layer vectors: one DMA'd [8, 128] tile, static slices
            vec = vec_ref[s, l]
            qkv_b = vec[0:1, :3 * H]
            ao_b = vec[1:2, :H]
            ln1g = vec[2:3, :H]
            ln1b = vec[3:4, :H]
            i_b = vec[4:5, :inter]
            o_b = vec[5:6, :H]
            ln2g = vec[6:7, :H]
            ln2b = vec[7:8, :H]

            # ---- fused QKV projection; 1/sqrt(dh) folded into q ----
            qkv = jnp.dot(x, qkv_w_ref[s, l],
                          preferred_element_type=jnp.float32) + qkv_b
            q = qkv[:, :H] * scale
            k = qkv[:, H:2 * H]
            v = qkv[:, 2 * H:]

            # ---- attention: static per-head loop, batched over the batch ----
            wao = ao_w_ref[s, l]                         # [H, H]
            attn = ao_b                                  # [1, H] -> [B*S, H]
            for h in range(nH):                          # nH = 2 (unrolled)
                sl = slice(h * dh, (h + 1) * dh)
                qh = q[:, sl].reshape(B, S, dh)
                kh = k[:, sl].reshape(B, S, dh)
                vh = v[:, sl].reshape(B, S, dh)
                sc = jnp.einsum("bqd,bkd->bqk", qh, kh,
                                preferred_element_type=jnp.float32) + mask
                sc = sc - jnp.max(sc, axis=-1, keepdims=True)
                p = jnp.exp(sc)
                p = p * pl.reciprocal(jnp.sum(p, axis=-1, keepdims=True),
                                      approx=True)
                ch = jnp.einsum("bqk,bkd->bqd", p, vh,
                                preferred_element_type=jnp.float32
                                ).reshape(B * S, dh)
                # context @ W_out applied per-head row-slice of W_out
                attn = attn + jnp.dot(ch, wao[sl, :],
                                      preferred_element_type=jnp.float32)

            # ---- residual + LayerNorm, FFN, residual + LayerNorm ----
            x1 = _layernorm(attn + x, ln1g, ln1b)
            hdn = _gelu(jnp.dot(x1, i_w_ref[s, l],
                                preferred_element_type=jnp.float32) + i_b)
            out = jnp.dot(hdn, o_w_ref[s, l],
                          preferred_element_type=jnp.float32) + o_b
            x = _layernorm(out + x1, ln2g, ln2b)

        # ---- pooler on [CLS] + this stream's classifier contribution ----
        cls_rows = x.reshape(B, S, H)[:, 0, :]           # [B, H]
        pooled = jnp.tanh(jnp.dot(cls_rows, pool_w_ref[s],
                                  preferred_element_type=jnp.float32)
                          + pool_b_ref[s])
        # concat([p0, p1]) @ W == p0 @ W[:H] + p1 @ W[H:]
        logits = logits + jnp.dot(pooled, cw[s * H:(s + 1) * H, :],
                                  preferred_element_type=jnp.float32)

    o_ref[...] = logits


def _full_spec(shape):
    """Whole-array block for the single grid step."""
    return pl.BlockSpec(shape, lambda i, _n=len(shape): (0,) * _n)


# ----------------------------- forward wrapper ----------------------------------
def bert_concat_forward(params, text_ids, text_mask, know_ids, know_mask):
    B, S = text_ids.shape
    bp = params["berts"]

    # embedding gathers are glue (plain JAX); token_type_ids == 0 throughout.
    ids = [text_ids, know_ids]
    emb = []
    for s in range(STREAMS):
        e = (bp["word_emb"][s][ids[s]]
             + bp["pos_emb"][s][:S][None, :, :]
             + bp["type_emb"][s][0][None, None, :])
        emb.append(e.reshape(B * S, HIDDEN))
    x = jnp.stack(emb)                                               # [2, B*S, H]

    masks = jnp.stack([text_mask, know_mask]).astype(jnp.float32)    # [2, B, S]
    add_mask = ((1.0 - masks) * -10000.0)[:, :, None, :]             # [2, B, 1, S]

    cls_w = params["cls_w"]
    cls_b = params["cls_b"].reshape(1, NUM_CLASSES)

    inputs = [x, add_mask, bp["emb_ln"],
              bp["qkv_w"], bp["ao_w"], bp["i_w"], bp["o_w"], bp["vec"],
              bp["pool_w"], bp["pool_b"], cls_w, cls_b]

    # TODO(synk): nn.Dropout(0.1) on the concatenated pooled output is identity in eval mode.
    return pl.pallas_call(
        functools.partial(_bert_concat_kernel, B=B, S=S, nH=HEADS, dh=HEAD_DIM,
                          n_layers=LAYERS, inter=INTERMEDIATE),
        out_shape=jax.ShapeDtypeStruct((B, NUM_CLASSES), jnp.float32),
        grid=(1,),
        in_specs=[_full_spec(a.shape) for a in inputs],
        out_specs=pl.BlockSpec((B, NUM_CLASSES), lambda i: (0, 0)),
        compiler_params=pltpu.CompilerParams(
            dimension_semantics=("arbitrary",)),
    )(*inputs)


# ----------------------------- pure-JAX reference --------------------------------
def bert_concat_reference(params, text_ids, text_mask, know_ids, know_mask):
    """Exact (non-approximate) reference for tolerance checking the kernel."""
    B, S = text_ids.shape
    bp = params["berts"]
    ids = [text_ids, know_ids]
    masks = [text_mask, know_mask]
    pooled_all = []
    for s in range(STREAMS):
        e = (bp["word_emb"][s][ids[s]]
             + bp["pos_emb"][s][:S][None, :, :]
             + bp["type_emb"][s][0][None, None, :])
        x = e.reshape(B * S, HIDDEN)
        x = _layernorm(x, bp["emb_ln"][s, 0:1, :], bp["emb_ln"][s, 1:2, :])
        add_mask = ((1.0 - masks[s].astype(jnp.float32)) * -10000.0)[:, None, :]
        for l in range(LAYERS):
            vec = bp["vec"][s, l]
            qkv_b, ao_b = vec[0, :3 * HIDDEN], vec[1, :HIDDEN]
            ln1g, ln1b = vec[2, :HIDDEN], vec[3, :HIDDEN]
            i_b, o_b = vec[4, :INTERMEDIATE], vec[5, :HIDDEN]
            ln2g, ln2b = vec[6, :HIDDEN], vec[7, :HIDDEN]
            qkv = x @ bp["qkv_w"][s, l] + qkv_b
            q, k, v = qkv[:, :HIDDEN], qkv[:, HIDDEN:2 * HIDDEN], qkv[:, 2 * HIDDEN:]
            attn = ao_b
            for h in range(HEADS):
                sl = slice(h * HEAD_DIM, (h + 1) * HEAD_DIM)
                qh = q[:, sl].reshape(B, S, HEAD_DIM) / math.sqrt(HEAD_DIM)
                kh = k[:, sl].reshape(B, S, HEAD_DIM)
                vh = v[:, sl].reshape(B, S, HEAD_DIM)
                sc = jnp.einsum("bqd,bkd->bqk", qh, kh) + add_mask
                p = jax.nn.softmax(sc, axis=-1)
                ch = jnp.einsum("bqk,bkd->bqd", p, vh).reshape(B * S, HEAD_DIM)
                attn = attn + ch @ bp["ao_w"][s, l][sl, :]
            x1 = _layernorm(attn + x, ln1g, ln1b)
            hdn = _gelu(x1 @ bp["i_w"][s, l] + i_b)
            x = _layernorm(hdn @ bp["o_w"][s, l] + o_b + x1, ln2g, ln2b)
        cls = x.reshape(B, S, HIDDEN)[:, 0, :]
        pooled_all.append(jnp.tanh(cls @ bp["pool_w"][s] + bp["pool_b"][s]))
    cat = jnp.concatenate(pooled_all, axis=-1)
    return cat @ params["cls_w"] + params["cls_b"]


# ----------------------------- parameter init ------------------------------------
def _pack_vec_rows(vectors):
    """Pack small per-layer vectors as rows of an [8, 128] tile (single DMA)."""
    rows = [jnp.pad(v, (0, VEC_W - v.shape[0])) for v in vectors]
    return jnp.stack(rows)


def init_bert(key):
    keys = iter(jax.random.split(key, 4 + 6 * LAYERS))

    def nrm(shape):
        return 0.02 * jax.random.normal(next(keys), shape, jnp.float32)

    qkv_w, ao_w, i_w, o_w, vecs = [], [], [], [], []
    for _ in range(LAYERS):
        q_w, k_w, v_w = nrm((HIDDEN, HIDDEN)), nrm((HIDDEN, HIDDEN)), nrm((HIDDEN, HIDDEN))
        # fused QKV projection weights: one [H, 3H] matmul instead of three [H, H]
        qkv_w.append(jnp.concatenate([q_w, k_w, v_w], axis=1))
        ao_w.append(nrm((HIDDEN, HIDDEN)))
        i_w.append(nrm((HIDDEN, INTERMEDIATE)))
        o_w.append(nrm((INTERMEDIATE, HIDDEN)))
        vecs.append(_pack_vec_rows([
            jnp.zeros((3 * HIDDEN,), jnp.float32),    # qkv_b
            jnp.zeros((HIDDEN,), jnp.float32),        # ao_b
            jnp.ones((HIDDEN,), jnp.float32),         # attn_ln_gamma
            jnp.zeros((HIDDEN,), jnp.float32),        # attn_ln_beta
            jnp.zeros((INTERMEDIATE,), jnp.float32),  # i_b
            jnp.zeros((HIDDEN,), jnp.float32),        # o_b
            jnp.ones((HIDDEN,), jnp.float32),         # out_ln_gamma
            jnp.zeros((HIDDEN,), jnp.float32),        # out_ln_beta
        ]))
    return {
        "word_emb": nrm((VOCAB, HIDDEN)),
        "pos_emb": nrm((MAX_POS, HIDDEN)),
        "type_emb": nrm((TYPE_VOCAB, HIDDEN)),
        "emb_ln": jnp.stack([jnp.ones((HIDDEN,), jnp.float32),
                             jnp.zeros((HIDDEN,), jnp.float32)]),   # [2, H] gamma/beta
        "qkv_w": jnp.stack(qkv_w),      # [L, H, 3H]
        "ao_w": jnp.stack(ao_w),        # [L, H, H]
        "i_w": jnp.stack(i_w),          # [L, H, I]
        "o_w": jnp.stack(o_w),          # [L, I, H]
        "vec": jnp.stack(vecs),         # [L, 8, 128]
        "pool_w": nrm((HIDDEN, HIDDEN)),
        "pool_b": jnp.zeros((1, HIDDEN), jnp.float32),
    }


def init_params(key):
    k_text, k_know, k_cls = jax.random.split(key, 3)
    # stack text/know params along a leading 'stream' axis so both encoders ride
    # in the same (single) fused kernel launch.
    berts = jax.tree_util.tree_map(lambda a, b: jnp.stack([a, b]),
                                   init_bert(k_text), init_bert(k_know))
    return {
        "berts": berts,
        "cls_w": 0.02 * jax.random.normal(k_cls, (2 * HIDDEN, NUM_CLASSES), jnp.float32),
        "cls_b": jnp.zeros((NUM_CLASSES,), jnp.float32),
    }


# ----------------------------------- main -----------------------------------------
if __name__ == "__main__":
    key = jax.random.PRNGKey(0)
    k_params, k_tid, k_kid = jax.random.split(key, 3)

    B, S = 2, 8
    text_ids = jax.random.randint(k_tid, (B, S), 0, VOCAB)
    know_ids = jax.random.randint(k_kid, (B, S), 0, VOCAB)
    # mask out the last two "padding" tokens of the text input, know fully valid
    text_mask = jnp.ones((B, S), jnp.float32).at[:, 6:].set(0.0)
    know_mask = jnp.ones((B, S), jnp.float32)

    params = init_params(k_params)

    forward = jax.jit(bert_concat_forward)
    logits = jax.block_until_ready(
        forward(params, text_ids, text_mask, know_ids, know_mask))

    assert logits.shape == (B, NUM_CLASSES), logits.shape
    assert bool(jnp.all(jnp.isfinite(logits)))

    # Tolerance check vs. pure-JAX reference (lenient: kernel uses the approximate
    # EUP reciprocal for the softmax denominator).
    ref = jax.block_until_ready(
        jax.jit(bert_concat_reference)(params, text_ids, text_mask, know_ids, know_mask))
    assert bool(jnp.all(jnp.abs(logits - ref) < 2e-2)), (logits, ref)

    print("KERNEL_OK")
</pallas_src>

<mosaic_0001>
module attributes {stable_mosaic.version = 11 : i64} {
  func.func @_bert_concat_kernel(%arg0: i32, %arg1: memref<2x16x32xf32, #tpu.memory_space<vmem>>, %arg2: memref<2x2x1x8xf32, #tpu.memory_space<vmem>>, %arg3: memref<2x2x32xf32, #tpu.memory_space<vmem>>, %arg4: memref<2x2x32x96xf32, #tpu.memory_space<vmem>>, %arg5: memref<2x2x32x32xf32, #tpu.memory_space<vmem>>, %arg6: memref<2x2x32x64xf32, #tpu.memory_space<vmem>>, %arg7: memref<2x2x64x32xf32, #tpu.memory_space<vmem>>, %arg8: memref<2x2x8x128xf32, #tpu.memory_space<vmem>>, %arg9: memref<2x32x32xf32, #tpu.memory_space<vmem>>, %arg10: memref<2x1x32xf32, #tpu.memory_space<vmem>>, %arg11: memref<64x2xf32, #tpu.memory_space<vmem>>, %arg12: memref<1x2xf32, #tpu.memory_space<vmem>>, %arg13: memref<2x2xf32, #tpu.memory_space<vmem>>) attributes {dimension_semantics = [#tpu.dimension_semantics<arbitrary>], iteration_bounds = array<i64: 1>, scalar_prefetch = 0 : i64, scratch_operands = 0 : i64, tpu.core_type = #tpu.core_type<tc>, window_params = [{pipeline_mode = #tpu.pipeline_mode<synchronous>, transform_indices = @transform_0, window_bounds = array<i64: 2, 16, 32>}, {pipeline_mode = #tpu.pipeline_mode<synchronous>, transform_indices = @transform_1, window_bounds = array<i64: 2, 2, 1, 8>}, {pipeline_mode = #tpu.pipeline_mode<synchronous>, transform_indices = @transform_2, window_bounds = array<i64: 2, 2, 32>}, {pipeline_mode = #tpu.pipeline_mode<synchronous>, transform_indices = @transform_3, window_bounds = array<i64: 2, 2, 32, 96>}, {pipeline_mode = #tpu.pipeline_mode<synchronous>, transform_indices = @transform_4, window_bounds = array<i64: 2, 2, 32, 32>}, {pipeline_mode = #tpu.pipeline_mode<synchronous>, transform_indices = @transform_5, window_bounds = array<i64: 2, 2, 32, 64>}, {pipeline_mode = #tpu.pipeline_mode<synchronous>, transform_indices = @transform_6, window_bounds = array<i64: 2, 2, 64, 32>}, {pipeline_mode = #tpu.pipeline_mode<synchronous>, transform_indices = @transform_7, window_bounds = array<i64: 2, 2, 8, 128>}, {pipeline_mode = #tpu.pipeline_mode<synchronous>, transform_indices = @transform_8, window_bounds = array<i64: 2, 32, 32>}, {pipeline_mode = #tpu.pipeline_mode<synchronous>, transform_indices = @transform_9, window_bounds = array<i64: 2, 1, 32>}, {pipeline_mode = #tpu.pipeline_mode<synchronous>, transform_indices = @transform_10, window_bounds = array<i64: 64, 2>}, {pipeline_mode = #tpu.pipeline_mode<synchronous>, transform_indices = @transform_11, window_bounds = array<i64: 1, 2>}, {pipeline_mode = #tpu.pipeline_mode<synchronous>, transform_indices = @transform_12, window_bounds = array<i64: 2, 2>}]} {
    %c0 = arith.constant 0 : index
    %c0_0 = arith.constant 0 : index
    %0 = vector.load %arg11[%c0, %c0_0] : memref<64x2xf32, #tpu.memory_space<vmem>>, vector<64x2xf32>
    %c0_1 = arith.constant 0 : index
    %c0_2 = arith.constant 0 : index
    %1 = vector.load %arg12[%c0_1, %c0_2] : memref<1x2xf32, #tpu.memory_space<vmem>>, vector<1x2xf32>
    %c0_3 = arith.constant 0 : index
    %c0_4 = arith.constant 0 : index
    %c0_5 = arith.constant 0 : index
    %2 = vector.load %arg1[%c0_3, %c0_4, %c0_5] : memref<2x16x32xf32, #tpu.memory_space<vmem>>, vector<1x16x32xf32>
    %3 = vector.shape_cast %2 : vector<1x16x32xf32> to vector<16x32xf32>
    %c0_6 = arith.constant 0 : index
    %c0_7 = arith.constant 0 : index
    %c0_8 = arith.constant 0 : index
    %4 = vector.load %arg3[%c0_6, %c0_7, %c0_8] : memref<2x2x32xf32, #tpu.memory_space<vmem>>, vector<1x1x32xf32>
    %5 = vector.shape_cast %4 : vector<1x1x32xf32> to vector<1x32xf32>
    %c0_9 = arith.constant 0 : index
    %c1 = arith.constant 1 : index
    %c0_10 = arith.constant 0 : index
    %6 = vector.load %arg3[%c0_9, %c1, %c0_10] : memref<2x2x32xf32, #tpu.memory_space<vmem>>, vector<1x1x32xf32>
    %7 = vector.shape_cast %6 : vector<1x1x32xf32> to vector<1x32xf32>
    %cst = arith.constant dense<0.000000e+00> : vector<16xf32>
    %8 = vector.multi_reduction <add>, %3, %cst [1] : vector<16x32xf32> to vector<16xf32>
    %9 = vector.shape_cast %8 : vector<16xf32> to vector<16x1xf32>
    %cst_11 = arith.constant 3.200000e+01 : f32
    %10 = vector.broadcast %cst_11 : f32 to vector<16x1xf32>
    %11 = arith.divf %9, %10 : vector<16x1xf32>
    %12 = vector.broadcast %11 : vector<16x1xf32> to vector<16x32xf32>
    %13 = arith.subf %3, %12 : vector<16x32xf32>
    %14 = arith.mulf %13, %13 : vector<16x32xf32>
    %cst_12 = arith.constant dense<0.000000e+00> : vector<16xf32>
    %15 = vector.multi_reduction <add>, %14, %cst_12 [1] : vector<16x32xf32> to vector<16xf32>
    %16 = vector.shape_cast %15 : vector<16xf32> to vector<16x1xf32>
    %cst_13 = arith.constant 3.200000e+01 : f32
    %17 = vector.broadcast %cst_13 : f32 to vector<16x1xf32>
    %18 = arith.divf %16, %17 : vector<16x1xf32>
    %19 = vector.broadcast %11 : vector<16x1xf32> to vector<16x32xf32>
    %20 = arith.subf %3, %19 : vector<16x32xf32>
    %cst_14 = arith.constant 9.99999996E-13 : f32
    %21 = vector.broadcast %cst_14 : f32 to vector<16x1xf32>
    %22 = arith.addf %18, %21 : vector<16x1xf32>
    %23 = math.rsqrt %22 : vector<16x1xf32>
    %24 = vector.broadcast %23 : vector<16x1xf32> to vector<16x32xf32>
    %25 = arith.mulf %20, %24 : vector<16x32xf32>
    %26 = vector.broadcast %5 : vector<1x32xf32> to vector<16x32xf32>
    %27 = arith.mulf %25, %26 : vector<16x32xf32>
    %28 = vector.broadcast %7 : vector<1x32xf32> to vector<16x32xf32>
    %29 = arith.addf %27, %28 : vector<16x32xf32>
    %c0_15 = arith.constant 0 : index
    %c0_16 = arith.constant 0 : index
    %c0_17 = arith.constant 0 : index
    %c0_18 = arith.constant 0 : index
    %30 = vector.load %arg2[%c0_15, %c0_16, %c0_17, %c0_18] : memref<2x2x1x8xf32, #tpu.memory_space<vmem>>, vector<1x2x1x8xf32>
    %31 = vector.shape_cast %30 : vector<1x2x1x8xf32> to vector<2x1x8xf32>
    %c0_19 = arith.constant 0 : index
    %c0_20 = arith.constant 0 : index
    %c0_21 = arith.constant 0 : index
    %c0_22 = arith.constant 0 : index
    %32 = vector.load %arg8[%c0_19, %c0_20, %c0_21, %c0_22] : memref<2x2x8x128xf32, #tpu.memory_space<vmem>>, vector<1x1x8x128xf32>
    %33 = vector.shape_cast %32 : vector<1x1x8x128xf32> to vector<8x128xf32>
    %34 = vector.extract_strided_slice %33 {offsets = [0, 0], sizes = [1, 96], strides = [1, 1]} : vector<8x128xf32> to vector<1x96xf32>
    %35 = vector.extract_strided_slice %33 {offsets = [1, 0], sizes = [1, 32], strides = [1, 1]} : vector<8x128xf32> to vector<1x32xf32>
    %36 = vector.extract_strided_slice %33 {offsets = [2, 0], sizes = [1, 32], strides = [1, 1]} : vector<8x128xf32> to vector<1x32xf32>
    %37 = vector.extract_strided_slice %33 {offsets = [3, 0], sizes = [1, 32], strides = [1, 1]} : vector<8x128xf32> to vector<1x32xf32>
    %38 = vector.extract_strided_slice %33 {offsets = [4, 0], sizes = [1, 64], strides = [1, 1]} : vector<8x128xf32> to vector<1x64xf32>
    %39 = vector.extract_strided_slice %33 {offsets = [5, 0], sizes = [1, 32], strides = [1, 1]} : vector<8x128xf32> to vector<1x32xf32>
    %40 = vector.extract_strided_slice %33 {offsets = [6, 0], sizes = [1, 32], strides = [1, 1]} : vector<8x128xf32> to vector<1x32xf32>
    %41 = vector.extract_strided_slice %33 {offsets = [7, 0], sizes = [1, 32], strides = [1, 1]} : vector<8x128xf32> to vector<1x32xf32>
    %c0_23 = arith.constant 0 : index
    %c0_24 = arith.constant 0 : index
    %c0_25 = arith.constant 0 : index
    %c0_26 = arith.constant 0 : index
    %42 = vector.load %arg4[%c0_23, %c0_24, %c0_25, %c0_26] : memref<2x2x32x96xf32, #tpu.memory_space<vmem>>, vector<1x1x32x96xf32>
    %43 = vector.shape_cast %42 : vector<1x1x32x96xf32> to vector<32x96xf32>
    %cst_27 = arith.constant dense<0.000000e+00> : vector<16x96xf32>
    %44 = tpu.matmul %29, %43, %cst_27 {dimension_numbers = #tpu.dot_dimension_numbers<[1], [0], [0], [1], [0, 0, 1, 1], [], []>} : vector<16x32xf32>, vector<32x96xf32>, vector<16x96xf32> -> vector<16x96xf32>
    %45 = vector.broadcast %34 : vector<1x96xf32> to vector<16x96xf32>
    %46 = arith.addf %44, %45 : vector<16x96xf32>
    %47 = vector.extract_strided_slice %46 {offsets = [0, 0], sizes = [16, 32], strides = [1, 1]} : vector<16x96xf32> to vector<16x32xf32>
    %cst_28 = arith.constant 2.500000e-01 : f32
    %48 = vector.broadcast %cst_28 : f32 to vector<16x32xf32>
    %49 = arith.mulf %47, %48 : vector<16x32xf32>
    %50 = vector.extract_strided_slice %46 {offsets = [0, 32], sizes = [16, 32], strides = [1, 1]} : vector<16x96xf32> to vector<16x32xf32>
    %51 = vector.extract_strided_slice %46 {offsets = [0, 64], sizes = [16, 32], strides = [1, 1]} : vector<16x96xf32> to vector<16x32xf32>
    %c0_29 = arith.constant 0 : index
    %c0_30 = arith.constant 0 : index
    %c0_31 = arith.constant 0 : index
    %c0_32 = arith.constant 0 : index
    %52 = vector.load %arg5[%c0_29, %c0_30, %c0_31, %c0_32] : memref<2x2x32x32xf32, #tpu.memory_space<vmem>>, vector<1x1x32x32xf32>
    %53 = vector.shape_cast %52 : vector<1x1x32x32xf32> to vector<32x32xf32>
    %54 = vector.extract_strided_slice %49 {offsets = [0, 0], sizes = [16, 16], strides = [1, 1]} : vector<16x32xf32> to vector<16x16xf32>
    %55 = vector.shape_cast %54 : vector<16x16xf32> to vector<2x8x16xf32>
    %56 = vector.extract_strided_slice %50 {offsets = [0, 0], sizes = [16, 16], strides = [1, 1]} : vector<16x32xf32> to vector<16x16xf32>
    %57 = vector.shape_cast %56 : vector<16x16xf32> to vector<2x8x16xf32>
    %58 = vector.extract_strided_slice %51 {offsets = [0, 0], sizes = [16, 16], strides = [1, 1]} : vector<16x32xf32> to vector<16x16xf32>
    %59 = vector.shape_cast %58 : vector<16x16xf32> to vector<2x8x16xf32>
    "tpu.trace_start"() <{level = 10 : i32, message = "bqd,bkd->bqk"}> : () -> ()
    %cst_33 = arith.constant dense<0.000000e+00> : vector<2x8x8xf32>
    %60 = tpu.matmul %55, %57, %cst_33 {dimension_numbers = #tpu.dot_dimension_numbers<[2], [2], [1], [1], [0, 0, 0, 1, 1, 1], [0], [0]>} : vector<2x8x16xf32>, vector<2x8x16xf32>, vector<2x8x8xf32> -> vector<2x8x8xf32>
    "tpu.trace_stop"() : () -> ()
    %61 = vector.broadcast %31 : vector<2x1x8xf32> to vector<2x8x8xf32>
    %62 = arith.addf %60, %61 : vector<2x8x8xf32>
    %cst_34 = arith.constant dense<0xFF800000> : vector<2x8xf32>
    %63 = vector.multi_reduction <maximumf>, %62, %cst_34 [2] : vector<2x8x8xf32> to vector<2x8xf32>
    %64 = vector.shape_cast %63 : vector<2x8xf32> to vector<2x8x1xf32>
    %65 = vector.broadcast %64 : vector<2x8x1xf32> to vector<2x8x8xf32>
    %66 = arith.subf %62, %65 : vector<2x8x8xf32>
    %67 = math.exp %66 : vector<2x8x8xf32>
    %cst_35 = arith.constant dense<0.000000e+00> : vector<2x8xf32>
    %68 = vector.multi_reduction <add>, %67, %cst_35 [2] : vector<2x8x8xf32> to vector<2x8xf32>
    %69 = vector.shape_cast %68 : vector<2x8xf32> to vector<2x8x1xf32>
    %70 = tpu.reciprocal %69 {approx = true} : vector<2x8x1xf32> -> vector<2x8x1xf32>
    %71 = vector.broadcast %70 : vector<2x8x1xf32> to vector<2x8x8xf32>
    %72 = arith.mulf %67, %71 : vector<2x8x8xf32>
    "tpu.trace_start"() <{level = 10 : i32, message = "bqk,bkd->bqd"}> : () -> ()
    %cst_36 = arith.constant dense<0.000000e+00> : vector<2x8x16xf32>
    %73 = tpu.matmul %72, %59, %cst_36 {dimension_numbers = #tpu.dot_dimension_numbers<[2], [1], [1], [2], [0, 0, 0, 1, 1, 2], [0], [0]>} : vector<2x8x8xf32>, vector<2x8x16xf32>, vector<2x8x16xf32> -> vector<2x8x16xf32>
    "tpu.trace_stop"() : () -> ()
    %74 = vector.shape_cast %73 : vector<2x8x16xf32> to vector<16x16xf32>
    %75 = vector.extract_strided_slice %53 {offsets = [0, 0], sizes = [16, 32], strides = [1, 1]} : vector<32x32xf32> to vector<16x32xf32>
    %cst_37 = arith.constant dense<0.000000e+00> : vector<16x32xf32>
    %76 = tpu.matmul %74, %75, %cst_37 {dimension_numbers = #tpu.dot_dimension_numbers<[1], [0], [0], [1], [0, 0, 1, 1], [], []>} : vector<16x16xf32>, vector<16x32xf32>, vector<16x32xf32> -> vector<16x32xf32>
    %77 = vector.broadcast %35 : vector<1x32xf32> to vector<16x32xf32>
    %78 = arith.addf %77, %76 : vector<16x32xf32>
    %79 = vector.extract_strided_slice %49 {offsets = [0, 16], sizes = [16, 16], strides = [1, 1]} : vector<16x32xf32> to vector<16x16xf32>
    %80 = vector.shape_cast %79 : vector<16x16xf32> to vector<2x8x16xf32>
    %81 = vector.extract_strided_slice %50 {offsets = [0, 16], sizes = [16, 16], strides = [1, 1]} : vector<16x32xf32> to vector<16x16xf32>
    %82 = vector.shape_cast %81 : vector<16x16xf32> to vector<2x8x16xf32>
    %83 = vector.extract_strided_slice %51 {offsets = [0, 16], sizes = [16, 16], strides = [1, 1]} : vector<16x32xf32> to vector<16x16xf32>
    %84 = vector.shape_cast %83 : vector<16x16xf32> to vector<2x8x16xf32>
    "tpu.trace_start"() <{level = 10 : i32, message = "bqd,bkd->bqk"}> : () -> ()
    %cst_38 = arith.constant dense<0.000000e+00> : vector<2x8x8xf32>
    %85 = tpu.matmul %80, %82, %cst_38 {dimension_numbers = #tpu.dot_dimension_numbers<[2], [2], [1], [1], [0, 0, 0, 1, 1, 1], [0], [0]>} : vector<2x8x16xf32>, vector<2x8x16xf32>, vector<2x8x8xf32> -> vector<2x8x8xf32>
    "tpu.trace_stop"() : () -> ()
    %86 = vector.broadcast %31 : vector<2x1x8xf32> to vector<2x8x8xf32>
    %87 = arith.addf %85, %86 : vector<2x8x8xf32>
    %cst_39 = arith.constant dense<0xFF800000> : vector<2x8xf32>
    %88 = vector.multi_reduction <maximumf>, %87, %cst_39 [2] : vector<2x8x8xf32> to vector<2x8xf32>
    %89 = vector.shape_cast %88 : vector<2x8xf32> to vector<2x8x1xf32>
    %90 = vector.broadcast %89 : vector<2x8x1xf32> to vector<2x8x8xf32>
    %91 = arith.subf %87, %90 : vector<2x8x8xf32>
    %92 = math.exp %91 : vector<2x8x8xf32>
    %cst_40 = arith.constant dense<0.000000e+00> : vector<2x8xf32>
    %93 = vector.multi_reduction <add>, %92, %cst_40 [2] : vector<2x8x8xf32> to vector<2x8xf32>
    %94 = vector.shape_cast %93 : vector<2x8xf32> to vector<2x8x1xf32>
    %95 = tpu.reciprocal %94 {approx = true} : vector<2x8x1xf32> -> vector<2x8x1xf32>
    %96 = vector.broadcast %95 : vector<2x8x1xf32> to vector<2x8x8xf32>
    %97 = arith.mulf %92, %96 : vector<2x8x8xf32>
    "tpu.trace_start"() <{level = 10 : i32, message = "bqk,bkd->bqd"}> : () -> ()
    %cst_41 = arith.constant dense<0.000000e+00> : vector<2x8x16xf32>
    %98 = tpu.matmul %97, %84, %cst_41 {dimension_numbers = #tpu.dot_dimension_numbers<[2], [1], [1], [2], [0, 0, 0, 1, 1, 2], [0], [0]>} : vector<2x8x8xf32>, vector<2x8x16xf32>, vector<2x8x16xf32> -> vector<2x8x16xf32>
    "tpu.trace_stop"() : () -> ()
    %99 = vector.shape_cast %98 : vector<2x8x16xf32> to vector<16x16xf32>
    %100 = vector.extract_strided_slice %53 {offsets = [16, 0], sizes = [16, 32], strides = [1, 1]} : vector<32x32xf32> to vector<16x32xf32>
    %cst_42 = arith.constant dense<0.000000e+00> : vector<16x32xf32>
    %101 = tpu.matmul %99, %100, %cst_42 {dimension_numbers = #tpu.dot_dimension_numbers<[1], [0], [0], [1], [0, 0, 1, 1], [], []>} : vector<16x16xf32>, vector<16x32xf32>, vector<16x32xf32> -> vector<16x32xf32>
    %102 = arith.addf %78, %101 : vector<16x32xf32>
    %103 = arith.addf %102, %29 : vector<16x32xf32>
    %cst_43 = arith.constant dense<0.000000e+00> : vector<16xf32>
    %104 = vector.multi_reduction <add>, %103, %cst_43 [1] : vector<16x32xf32> to vector<16xf32>
    %105 = vector.shape_cast %104 : vector<16xf32> to vector<16x1xf32>
    %cst_44 = arith.constant 3.200000e+01 : f32
    %106 = vector.broadcast %cst_44 : f32 to vector<16x1xf32>
    %107 = arith.divf %105, %106 : vector<16x1xf32>
    %108 = vector.broadcast %107 : vector<16x1xf32> to vector<16x32xf32>
    %109 = arith.subf %103, %108 : vector<16x32xf32>
    %110 = arith.mulf %109, %109 : vector<16x32xf32>
    %cst_45 = arith.constant dense<0.000000e+00> : vector<16xf32>
    %111 = vector.multi_reduction <add>, %110, %cst_45 [1] : vector<16x32xf32> to vector<16xf32>
    %112 = vector.shape_cast %111 : vector<16xf32> to vector<16x1xf32>
    %cst_46 = arith.constant 3.200000e+01 : f32
    %113 = vector.broadcast %cst_46 : f32 to vector<16x1xf32>
    %114 = arith.divf %112, %113 : vector<16x1xf32>
    %115 = vector.broadcast %107 : vector<16x1xf32> to vector<16x32xf32>
    %116 = arith.subf %103, %115 : vector<16x32xf32>
    %cst_47 = arith.constant 9.99999996E-13 : f32
    %117 = vector.broadcast %cst_47 : f32 to vector<16x1xf32>
    %118 = arith.addf %114, %117 : vector<16x1xf32>
    %119 = math.rsqrt %118 : vector<16x1xf32>
    %120 = vector.broadcast %119 : vector<16x1xf32> to vector<16x32xf32>
    %121 = arith.mulf %116, %120 : vector<16x32xf32>
    %122 = vector.broadcast %36 : vector<1x32xf32> to vector<16x32xf32>
    %123 = arith.mulf %121, %122 : vector<16x32xf32>
    %124 = vector.broadcast %37 : vector<1x32xf32> to vector<16x32xf32>
    %125 = arith.addf %123, %124 : vector<16x32xf32>
    %c0_48 = arith.constant 0 : index
    %c0_49 = arith.constant 0 : index
    %c0_50 = arith.constant 0 : index
    %c0_51 = arith.constant 0 : index
    %126 = vector.load %arg6[%c0_48, %c0_49, %c0_50, %c0_51] : memref<2x2x32x64xf32, #tpu.memory_space<vmem>>, vector<1x1x32x64xf32>
    %127 = vector.shape_cast %126 : vector<1x1x32x64xf32> to vector<32x64xf32>
    %cst_52 = arith.constant dense<0.000000e+00> : vector<16x64xf32>
    %128 = tpu.matmul %125, %127, %cst_52 {dimension_numbers = #tpu.dot_dimension_numbers<[1], [0], [0], [1], [0, 0, 1, 1], [], []>} : vector<16x32xf32>, vector<32x64xf32>, vector<16x64xf32> -> vector<16x64xf32>
    %129 = vector.broadcast %38 : vector<1x64xf32> to vector<16x64xf32>
    %130 = arith.addf %128, %129 : vector<16x64xf32>
    %cst_53 = arith.constant 5.000000e-01 : f32
    %131 = vector.broadcast %cst_53 : f32 to vector<16x64xf32>
    %132 = arith.mulf %131, %130 : vector<16x64xf32>
    %cst_54 = arith.constant 0.707106769 : f32
    %133 = vector.broadcast %cst_54 : f32 to vector<16x64xf32>
    %134 = arith.mulf %130, %133 : vector<16x64xf32>
    %135 = math.erf %134 : vector<16x64xf32>
    %cst_55 = arith.constant 1.000000e+00 : f32
    %136 = vector.broadcast %cst_55 : f32 to vector<16x64xf32>
    %137 = arith.addf %136, %135 : vector<16x64xf32>
    %138 = arith.mulf %132, %137 : vector<16x64xf32>
    %c0_56 = arith.constant 0 : index
    %c0_57 = arith.constant 0 : index
    %c0_58 = arith.constant 0 : index
    %c0_59 = arith.constant 0 : index
    %139 = vector.load %arg7[%c0_56, %c0_57, %c0_58, %c0_59] : memref<2x2x64x32xf32, #tpu.memory_space<vmem>>, vector<1x1x64x32xf32>
    %140 = vector.shape_cast %139 : vector<1x1x64x32xf32> to vector<64x32xf32>
    %cst_60 = arith.constant dense<0.000000e+00> : vector<16x32xf32>
    %141 = tpu.matmul %138, %140, %cst_60 {dimension_numbers = #tpu.dot_dimension_numbers<[1], [0], [0], [1], [0, 0, 1, 1], [], []>} : vector<16x64xf32>, vector<64x32xf32>, vector<16x32xf32> -> vector<16x32xf32>
    %142 = vector.broadcast %39 : vector<1x32xf32> to vector<16x32xf32>
    %143 = arith.addf %141, %142 : vector<16x32xf32>
    %144 = arith.addf %143, %125 : vector<16x32xf32>
    %cst_61 = arith.constant dense<0.000000e+00> : vector<16xf32>
    %145 = vector.multi_reduction <add>, %144, %cst_61 [1] : vector<16x32xf32> to vector<16xf32>
    %146 = vector.shape_cast %145 : vector<16xf32> to vector<16x1xf32>
    %cst_62 = arith.constant 3.200000e+01 : f32
    %147 = vector.broadcast %cst_62 : f32 to vector<16x1xf32>
    %148 = arith.divf %146, %147 : vector<16x1xf32>
    %149 = vector.broadcast %148 : vector<16x1xf32> to vector<16x32xf32>
    %150 = arith.subf %144, %149 : vector<16x32xf32>
    %151 = arith.mulf %150, %150 : vector<16x32xf32>
    %cst_63 = arith.constant dense<0.000000e+00> : vector<16xf32>
    %152 = vector.multi_reduction <add>, %151, %cst_63 [1] : vector<16x32xf32> to vector<16xf32>
    %153 = vector.shape_cast %152 : vector<16xf32> to vector<16x1xf32>
    %cst_64 = arith.constant 3.200000e+01 : f32
    %154 = vector.broadcast %cst_64 : f32 to vector<16x1xf32>
    %155 = arith.divf %153, %154 : vector<16x1xf32>
    %156 = vector.broadcast %148 : vector<16x1xf32> to vector<16x32xf32>
    %157 = arith.subf %144, %156 : vector<16x32xf32>
    %cst_65 = arith.constant 9.99999996E-13 : f32
    %158 = vector.broadcast %cst_65 : f32 to vector<16x1xf32>
    %159 = arith.addf %155, %158 : vector<16x1xf32>
    %160 = math.rsqrt %159 : vector<16x1xf32>
    %161 = vector.broadcast %160 : vector<16x1xf32> to vector<16x32xf32>
    %162 = arith.mulf %157, %161 : vector<16x32xf32>
    %163 = vector.broadcast %40 : vector<1x32xf32> to vector<16x32xf32>
    %164 = arith.mulf %162, %163 : vector<16x32xf32>
    %165 = vector.broadcast %41 : vector<1x32xf32> to vector<16x32xf32>
    %166 = arith.addf %164, %165 : vector<16x32xf32>
    %c0_66 = arith.constant 0 : index
    %c1_67 = arith.constant 1 : index
    %c0_68 = arith.constant 0 : index
    %c0_69 = arith.constant 0 : index
    %167 = vector.load %arg8[%c0_66, %c1_67, %c0_68, %c0_69] : memref<2x2x8x128xf32, #tpu.memory_space<vmem>>, vector<1x1x8x128xf32>
    %168 = vector.shape_cast %167 : vector<1x1x8x128xf32> to vector<8x128xf32>
    %169 = vector.extract_strided_slice %168 {offsets = [0, 0], sizes = [1, 96], strides = [1, 1]} : vector<8x128xf32> to vector<1x96xf32>
    %170 = vector.extract_strided_slice %168 {offsets = [1, 0], sizes = [1, 32], strides = [1, 1]} : vector<8x128xf32> to vector<1x32xf32>
    %171 = vector.extract_strided_slice %168 {offsets = [2, 0], sizes = [1, 32], strides = [1, 1]} : vector<8x128xf32> to vector<1x32xf32>
    %172 = vector.extract_strided_slice %168 {offsets = [3, 0], sizes = [1, 32], strides = [1, 1]} : vector<8x128xf32> to vector<1x32xf32>
    %173 = vector.extract_strided_slice %168 {offsets = [4, 0], sizes = [1, 64], strides = [1, 1]} : vector<8x128xf32> to vector<1x64xf32>
    %174 = vector.extract_strided_slice %168 {offsets = [5, 0], sizes = [1, 32], strides = [1, 1]} : vector<8x128xf32> to vector<1x32xf32>
    %175 = vector.extract_strided_slice %168 {offsets = [6, 0], sizes = [1, 32], strides = [1, 1]} : vector<8x128xf32> to vector<1x32xf32>
    %176 = vector.extract_strided_slice %168 {offsets = [7, 0], sizes = [1, 32], strides = [1, 1]} : vector<8x128xf32> to vector<1x32xf32>
    %c0_70 = arith.constant 0 : index
    %c1_71 = arith.constant 1 : index
    %c0_72 = arith.constant 0 : index
    %c0_73 = arith.constant 0 : index
    %177 = vector.load %arg4[%c0_70, %c1_71, %c0_72, %c0_73] : memref<2x2x32x96xf32, #tpu.memory_space<vmem>>, vector<1x1x32x96xf32>
    %178 = vector.shape_cast %177 : vector<1x1x32x96xf32> to vector<32x96xf32>
    %cst_74 = arith.constant dense<0.000000e+00> : vector<16x96xf32>
    %179 = tpu.matmul %166, %178, %cst_74 {dimension_numbers = #tpu.dot_dimension_numbers<[1], [0], [0], [1], [0, 0, 1, 1], [], []>} : vector<16x32xf32>, vector<32x96xf32>, vector<16x96xf32> -> vector<16x96xf32>
    %180 = vector.broadcast %169 : vector<1x96xf32> to vector<16x96xf32>
    %181 = arith.addf %179, %180 : vector<16x96xf32>
    %182 = vector.extract_strided_slice %181 {offsets = [0, 0], sizes = [16, 32], strides = [1, 1]} : vector<16x96xf32> to vector<16x32xf32>
    %cst_75 = arith.constant 2.500000e-01 : f32
    %183 = vector.broadcast %cst_75 : f32 to vector<16x32xf32>
    %184 = arith.mulf %182, %183 : vector<16x32xf32>
    %185 = vector.extract_strided_slice %181 {offsets = [0, 32], sizes = [16, 32], strides = [1, 1]} : vector<16x96xf32> to vector<16x32xf32>
    %186 = vector.extract_strided_slice %181 {offsets = [0, 64], sizes = [16, 32], strides = [1, 1]} : vector<16x96xf32> to vector<16x32xf32>
    %c0_76 = arith.constant 0 : index
    %c1_77 = arith.constant 1 : index
    %c0_78 = arith.constant 0 : index
    %c0_79 = arith.constant 0 : index
    %187 = vector.load %arg5[%c0_76, %c1_77, %c0_78, %c0_79] : memref<2x2x32x32xf32, #tpu.memory_space<vmem>>, vector<1x1x32x32xf32>
    %188 = vector.shape_cast %187 : vector<1x1x32x32xf32> to vector<32x32xf32>
    %189 = vector.extract_strided_slice %184 {offsets = [0, 0], sizes = [16, 16], strides = [1, 1]} : vector<16x32xf32> to vector<16x16xf32>
    %190 = vector.shape_cast %189 : vector<16x16xf32> to vector<2x8x16xf32>
    %191 = vector.extract_strided_slice %185 {offsets = [0, 0], sizes = [16, 16], strides = [1, 1]} : vector<16x32xf32> to vector<16x16xf32>
    %192 = vector.shape_cast %191 : vector<16x16xf32> to vector<2x8x16xf32>
    %193 = vector.extract_strided_slice %186 {offsets = [0, 0], sizes = [16, 16], strides = [1, 1]} : vector<16x32xf32> to vector<16x16xf32>
    %194 = vector.shape_cast %193 : vector<16x16xf32> to vector<2x8x16xf32>
    "tpu.trace_start"() <{level = 10 : i32, message = "bqd,bkd->bqk"}> : () -> ()
    %cst_80 = arith.constant dense<0.000000e+00> : vector<2x8x8xf32>
    %195 = tpu.matmul %190, %192, %cst_80 {dimension_numbers = #tpu.dot_dimension_numbers<[2], [2], [1], [1], [0, 0, 0, 1, 1, 1], [0], [0]>} : vector<2x8x16xf32>, vector<2x8x16xf32>, vector<2x8x8xf32> -> vector<2x8x8xf32>
    "tpu.trace_stop"() : () -> ()
    %196 = vector.broadcast %31 : vector<2x1x8xf32> to vector<2x8x8xf32>
    %197 = arith.addf %195, %196 : vector<2x8x8xf32>
    %cst_81 = arith.constant dense<0xFF800000> : vector<2x8xf32>
    %198 = vector.multi_reduction <maximumf>, %197, %cst_81 [2] : vector<2x8x8xf32> to vector<2x8xf32>
    %199 = vector.shape_cast %198 : vector<2x8xf32> to vector<2x8x1xf32>
    %200 = vector.broadcast %199 : vector<2x8x1xf32> to vector<2x8x8xf32>
    %201 = arith.subf %197, %200 : vector<2x8x8xf32>
    %202 = math.exp %201 : vector<2x8x8xf32>
    %cst_82 = arith.constant dense<0.000000e+00> : vector<2x8xf32>
    %203 = vector.multi_reduction <add>, %202, %cst_82 [2] : vector<2x8x8xf32> to vector<2x8xf32>
    %204 = vector.shape_cast %203 : vector<2x8xf32> to vector<2x8x1xf32>
    %205 = tpu.reciprocal %204 {approx = true} : vector<2x8x1xf32> -> vector<2x8x1xf32>
    %206 = vector.broadcast %205 : vector<2x8x1xf32> to vector<2x8x8xf32>
    %207 = arith.mulf %202, %206 : vector<2x8x8xf32>
    "tpu.trace_start"() <{level = 10 : i32, message = "bqk,bkd->bqd"}> : () -> ()
    %cst_83 = arith.constant dense<0.000000e+00> : vector<2x8x16xf32>
    %208 = tpu.matmul %207, %194, %cst_83 {dimension_numbers = #tpu.dot_dimension_numbers<[2], [1], [1], [2], [0, 0, 0, 1, 1, 2], [0], [0]>} : vector<2x8x8xf32>, vector<2x8x16xf32>, vector<2x8x16xf32> -> vector<2x8x16xf32>
    "tpu.trace_stop"() : () -> ()
    %209 = vector.shape_cast %208 : vector<2x8x16xf32> to vector<16x16xf32>
    %210 = vector.extract_strided_slice %188 {offsets = [0, 0], sizes = [16, 32], strides = [1, 1]} : vector<32x32xf32> to vector<16x32xf32>
    %cst_84 = arith.constant dense<0.000000e+00> : vector<16x32xf32>
    %211 = tpu.matmul %209, %210, %cst_84 {dimension_numbers = #tpu.dot_dimension_numbers<[1], [0], [0], [1], [0, 0, 1, 1], [], []>} : vector<16x16xf32>, vector<16x32xf32>, vector<16x32xf32> -> vector<16x32xf32>
    %212 = vector.broadcast %170 : vector<1x32xf32> to vector<16x32xf32>
    %213 = arith.addf %212, %211 : vector<16x32xf32>
    %214 = vector.extract_strided_slice %184 {offsets = [0, 16], sizes = [16, 16], strides = [1, 1]} : vector<16x32xf32> to vector<16x16xf32>
    %215 = vector.shape_cast %214 : vector<16x16xf32> to vector<2x8x16xf32>
    %216 = vector.extract_strided_slice %185 {offsets = [0, 16], sizes = [16, 16], strides = [1, 1]} : vector<16x32xf32> to vector<16x16xf32>
    %217 = vector.shape_cast %216 : vector<16x16xf32> to vector<2x8x16xf32>
    %218 = vector.extract_strided_slice %186 {offsets = [0, 16], sizes = [16, 16], strides = [1, 1]} : vector<16x32xf32> to vector<16x16xf32>
    %219 = vector.shape_cast %218 : vector<16x16xf32> to vector<2x8x16xf32>
    "tpu.trace_start"() <{level = 10 : i32, message = "bqd,bkd->bqk"}> : () -> ()
    %cst_85 = arith.constant dense<0.000000e+00> : vector<2x8x8xf32>
    %220 = tpu.matmul %215, %217, %cst_85 {dimension_numbers = #tpu.dot_dimension_numbers<[2], [2], [1], [1], [0, 0, 0, 1, 1, 1], [0], [0]>} : vector<2x8x16xf32>, vector<2x8x16xf32>, vector<2x8x8xf32> -> vector<2x8x8xf32>
    "tpu.trace_stop"() : () -> ()
    %221 = vector.broadcast %31 : vector<2x1x8xf32> to vector<2x8x8xf32>
    %222 = arith.addf %220, %221 : vector<2x8x8xf32>
    %cst_86 = arith.constant dense<0xFF800000> : vector<2x8xf32>
    %223 = vector.multi_reduction <maximumf>, %222, %cst_86 [2] : vector<2x8x8xf32> to vector<2x8xf32>
    %224 = vector.shape_cast %223 : vector<2x8xf32> to vector<2x8x1xf32>
    %225 = vector.broadcast %224 : vector<2x8x1xf32> to vector<2x8x8xf32>
    %226 = arith.subf %222, %225 : vector<2x8x8xf32>
    %227 = math.exp %226 : vector<2x8x8xf32>
    %cst_87 = arith.constant dense<0.000000e+00> : vector<2x8xf32>
    %228 = vector.multi_reduction <add>, %227, %cst_87 [2] : vector<2x8x8xf32> to vector<2x8xf32>
    %229 = vector.shape_cast %228 : vector<2x8xf32> to vector<2x8x1xf32>
    %230 = tpu.reciprocal %229 {approx = true} : vector<2x8x1xf32> -> vector<2x8x1xf32>
    %231 = vector.broadcast %230 : vector<2x8x1xf32> to vector<2x8x8xf32>
    %232 = arith.mulf %227, %231 : vector<2x8x8xf32>
    "tpu.trace_start"() <{level = 10 : i32, message = "bqk,bkd->bqd"}> : () -> ()
    %cst_88 = arith.constant dense<0.000000e+00> : vector<2x8x16xf32>
    %233 = tpu.matmul %232, %219, %cst_88 {dimension_numbers = #tpu.dot_dimension_numbers<[2], [1], [1], [2], [0, 0, 0, 1, 1, 2], [0], [0]>} : vector<2x8x8xf32>, vector<2x8x16xf32>, vector<2x8x16xf32> -> vector<2x8x16xf32>
    "tpu.trace_stop"() : () -> ()
    %234 = vector.shape_cast %233 : vector<2x8x16xf32> to vector<16x16xf32>
    %235 = vector.extract_strided_slice %188 {offsets = [16, 0], sizes = [16, 32], strides = [1, 1]} : vector<32x32xf32> to vector<16x32xf32>
    %cst_89 = arith.constant dense<0.000000e+00> : vector<16x32xf32>
    %236 = tpu.matmul %234, %235, %cst_89 {dimension_numbers = #tpu.dot_dimension_numbers<[1], [0], [0], [1], [0, 0, 1, 1], [], []>} : vector<16x16xf32>, vector<16x32xf32>, vector<16x32xf32> -> vector<16x32xf32>
    %237 = arith.addf %213, %236 : vector<16x32xf32>
    %238 = arith.addf %237, %166 : vector<16x32xf32>
    %cst_90 = arith.constant dense<0.000000e+00> : vector<16xf32>
    %239 = vector.multi_reduction <add>, %238, %cst_90 [1] : vector<16x32xf32> to vector<16xf32>
    %240 = vector.shape_cast %239 : vector<16xf32> to vector<16x1xf32>
    %cst_91 = arith.constant 3.200000e+01 : f32
    %241 = vector.broadcast %cst_91 : f32 to vector<16x1xf32>
    %242 = arith.divf %240, %241 : vector<16x1xf32>
    %243 = vector.broadcast %242 : vector<16x1xf32> to vector<16x32xf32>
    %244 = arith.subf %238, %243 : vector<16x32xf32>
    %245 = arith.mulf %244, %244 : vector<16x32xf32>
    %cst_92 = arith.constant dense<0.000000e+00> : vector<16xf32>
    %246 = vector.multi_reduction <add>, %245, %cst_92 [1] : vector<16x32xf32> to vector<16xf32>
    %247 = vector.shape_cast %246 : vector<16xf32> to vector<16x1xf32>
    %cst_93 = arith.constant 3.200000e+01 : f32
    %248 = vector.broadcast %cst_93 : f32 to vector<16x1xf32>
    %249 = arith.divf %247, %248 : vector<16x1xf32>
    %250 = vector.broadcast %242 : vector<16x1xf32> to vector<16x32xf32>
    %251 = arith.subf %238, %250 : vector<16x32xf32>
    %cst_94 = arith.constant 9.99999996E-13 : f32
    %252 = vector.broadcast %cst_94 : f32 to vector<16x1xf32>
    %253 = arith.addf %249, %252 : vector<16x1xf32>
    %254 = math.rsqrt %253 : vector<16x1xf32>
    %255 = vector.broadcast %254 : vector<16x1xf32> to vector<16x32xf32>
    %256 = arith.mulf %251, %255 : vector<16x32xf32>
    %257 = vector.broadcast %171 : vector<1x32xf32> to vector<16x32xf32>
    %258 = arith.mulf %256, %257 : vector<16x32xf32>
    %259 = vector.broadcast %172 : vector<1x32xf32> to vector<16x32xf32>
    %260 = arith.addf %258, %259 : vector<16x32xf32>
    %c0_95 = arith.constant 0 : index
    %c1_96 = arith.constant 1 : index
    %c0_97 = arith.constant 0 : index
    %c0_98 = arith.constant 0 : index
    %261 = vector.load %arg6[%c0_95, %c1_96, %c0_97, %c0_98] : memref<2x2x32x64xf32, #tpu.memory_space<vmem>>, vector<1x1x32x64xf32>
    %262 = vector.shape_cast %261 : vector<1x1x32x64xf32> to vector<32x64xf32>
    %cst_99 = arith.constant dense<0.000000e+00> : vector<16x64xf32>
    %263 = tpu.matmul %260, %262, %cst_99 {dimension_numbers = #tpu.dot_dimension_numbers<[1], [0], [0], [1], [0, 0, 1, 1], [], []>} : vector<16x32xf32>, vector<32x64xf32>, vector<16x64xf32> -> vector<16x64xf32>
    %264 = vector.broadcast %173 : vector<1x64xf32> to vector<16x64xf32>
    %265 = arith.addf %263, %264 : vector<16x64xf32>
    %cst_100 = arith.constant 5.000000e-01 : f32
    %266 = vector.broadcast %cst_100 : f32 to vector<16x64xf32>
    %267 = arith.mulf %266, %265 : vector<16x64xf32>
    %cst_101 = arith.constant 0.707106769 : f32
    %268 = vector.broadcast %cst_101 : f32 to vector<16x64xf32>
    %269 = arith.mulf %265, %268 : vector<16x64xf32>
    %270 = math.erf %269 : vector<16x64xf32>
    %cst_102 = arith.constant 1.000000e+00 : f32
    %271 = vector.broadcast %cst_102 : f32 to vector<16x64xf32>
    %272 = arith.addf %271, %270 : vector<16x64xf32>
    %273 = arith.mulf %267, %272 : vector<16x64xf32>
    %c0_103 = arith.constant 0 : index
    %c1_104 = arith.constant 1 : index
    %c0_105 = arith.constant 0 : index
    %c0_106 = arith.constant 0 : index
    %274 = vector.load %arg7[%c0_103, %c1_104, %c0_105, %c0_106] : memref<2x2x64x32xf32, #tpu.memory_space<vmem>>, vector<1x1x64x32xf32>
    %275 = vector.shape_cast %274 : vector<1x1x64x32xf32> to vector<64x32xf32>
    %cst_107 = arith.constant dense<0.000000e+00> : vector<16x32xf32>
    %276 = tpu.matmul %273, %275, %cst_107 {dimension_numbers = #tpu.dot_dimension_numbers<[1], [0], [0], [1], [0, 0, 1, 1], [], []>} : vector<16x64xf32>, vector<64x32xf32>, vector<16x32xf32> -> vector<16x32xf32>
    %277 = vector.broadcast %174 : vector<1x32xf32> to vector<16x32xf32>
    %278 = arith.addf %276, %277 : vector<16x32xf32>
    %279 = arith.addf %278, %260 : vector<16x32xf32>
    %cst_108 = arith.constant dense<0.000000e+00> : vector<16xf32>
    %280 = vector.multi_reduction <add>, %279, %cst_108 [1] : vector<16x32xf32> to vector<16xf32>
    %281 = vector.shape_cast %280 : vector<16xf32> to vector<16x1xf32>
    %cst_109 = arith.constant 3.200000e+01 : f32
    %282 = vector.broadcast %cst_109 : f32 to vector<16x1xf32>
    %283 = arith.divf %281, %282 : vector<16x1xf32>
    %284 = vector.broadcast %283 : vector<16x1xf32> to vector<16x32xf32>
    %285 = arith.subf %279, %284 : vector<16x32xf32>
    %286 = arith.mulf %285, %285 : vector<16x32xf32>
    %cst_110 = arith.constant dense<0.000000e+00> : vector<16xf32>
    %287 = vector.multi_reduction <add>, %286, %cst_110 [1] : vector<16x32xf32> to vector<16xf32>
    %288 = vector.shape_cast %287 : vector<16xf32> to vector<16x1xf32>
    %cst_111 = arith.constant 3.200000e+01 : f32
    %289 = vector.broadcast %cst_111 : f32 to vector<16x1xf32>
    %290 = arith.divf %288, %289 : vector<16x1xf32>
    %291 = vector.broadcast %283 : vector<16x1xf32> to vector<16x32xf32>
    %292 = arith.subf %279, %291 : vector<16x32xf32>
    %cst_112 = arith.constant 9.99999996E-13 : f32
    %293 = vector.broadcast %cst_112 : f32 to vector<16x1xf32>
    %294 = arith.addf %290, %293 : vector<16x1xf32>
    %295 = math.rsqrt %294 : vector<16x1xf32>
    %296 = vector.broadcast %295 : vector<16x1xf32> to vector<16x32xf32>
    %297 = arith.mulf %292, %296 : vector<16x32xf32>
    %298 = vector.broadcast %175 : vector<1x32xf32> to vector<16x32xf32>
    %299 = arith.mulf %297, %298 : vector<16x32xf32>
    %300 = vector.broadcast %176 : vector<1x32xf32> to vector<16x32xf32>
    %301 = arith.addf %299, %300 : vector<16x32xf32>
    %302 = vector.shape_cast %301 : vector<16x32xf32> to vector<2x8x32xf32>
    %303 = vector.extract_strided_slice %302 {offsets = [0, 0, 0], sizes = [2, 1, 32], strides = [1, 1, 1]} : vector<2x8x32xf32> to vector<2x1x32xf32>
    %304 = vector.shape_cast %303 : vector<2x1x32xf32> to vector<2x32xf32>
    %c0_113 = arith.constant 0 : index
    %c0_114 = arith.constant 0 : index
    %c0_115 = arith.constant 0 : index
    %305 = vector.load %arg9[%c0_113, %c0_114, %c0_115] : memref<2x32x32xf32, #tpu.memory_space<vmem>>, vector<1x32x32xf32>
    %306 = vector.shape_cast %305 : vector<1x32x32xf32> to vector<32x32xf32>
    %cst_116 = arith.constant dense<0.000000e+00> : vector<2x32xf32>
    %307 = tpu.matmul %304, %306, %cst_116 {dimension_numbers = #tpu.dot_dimension_numbers<[1], [0], [0], [1], [0, 0, 1, 1], [], []>} : vector<2x32xf32>, vector<32x32xf32>, vector<2x32xf32> -> vector<2x32xf32>
    %c0_117 = arith.constant 0 : index
    %c0_118 = arith.constant 0 : index
    %c0_119 = arith.constant 0 : index
    %308 = vector.load %arg10[%c0_117, %c0_118, %c0_119] : memref<2x1x32xf32, #tpu.memory_space<vmem>>, vector<1x1x32xf32>
    %309 = vector.shape_cast %308 : vector<1x1x32xf32> to vector<1x32xf32>
    %310 = vector.broadcast %309 : vector<1x32xf32> to vector<2x32xf32>
    %311 = arith.addf %307, %310 : vector<2x32xf32>
    %312 = math.tanh %311 : vector<2x32xf32>
    %313 = vector.extract_strided_slice %0 {offsets = [0, 0], sizes = [32, 2], strides = [1, 1]} : vector<64x2xf32> to vector<32x2xf32>
    %cst_120 = arith.constant dense<0.000000e+00> : vector<2x2xf32>
    %314 = tpu.matmul %312, %313, %cst_120 {dimension_numbers = #tpu.dot_dimension_numbers<[1], [0], [0], [1], [0, 0, 1, 1], [], []>} : vector<2x32xf32>, vector<32x2xf32>, vector<2x2xf32> -> vector<2x2xf32>
    %315 = vector.broadcast %1 : vector<1x2xf32> to vector<2x2xf32>
    %316 = arith.addf %315, %314 : vector<2x2xf32>
    %c1_121 = arith.constant 1 : index
    %c0_122 = arith.constant 0 : index
    %c0_123 = arith.constant 0 : index
    %317 = vector.load %arg1[%c1_121, %c0_122, %c0_123] : memref<2x16x32xf32, #tpu.memory_space<vmem>>, vector<1x16x32xf32>
    %318 = vector.shape_cast %317 : vector<1x16x32xf32> to vector<16x32xf32>
    %c1_124 = arith.constant 1 : index
    %c0_125 = arith.constant 0 : index
    %c0_126 = arith.constant 0 : index
    %319 = vector.load %arg3[%c1_124, %c0_125, %c0_126] : memref<2x2x32xf32, #tpu.memory_space<vmem>>, vector<1x1x32xf32>
    %320 = vector.shape_cast %319 : vector<1x1x32xf32> to vector<1x32xf32>
    %c1_127 = arith.constant 1 : index
    %c1_128 = arith.constant 1 : index
    %c0_129 = arith.constant 0 : index
    %321 = vector.load %arg3[%c1_127, %c1_128, %c0_129] : memref<2x2x32xf32, #tpu.memory_space<vmem>>, vector<1x1x32xf32>
    %322 = vector.shape_cast %321 : vector<1x1x32xf32> to vector<1x32xf32>
    %cst_130 = arith.constant dense<0.000000e+00> : vector<16xf32>
    %323 = vector.multi_reduction <add>, %318, %cst_130 [1] : vector<16x32xf32> to vector<16xf32>
    %324 = vector.shape_cast %323 : vector<16xf32> to vector<16x1xf32>
    %cst_131 = arith.constant 3.200000e+01 : f32
    %325 = vector.broadcast %cst_131 : f32 to vector<16x1xf32>
    %326 = arith.divf %324, %325 : vector<16x1xf32>
    %327 = vector.broadcast %326 : vector<16x1xf32> to vector<16x32xf32>
    %328 = arith.subf %318, %327 : vector<16x32xf32>
    %329 = arith.mulf %328, %328 : vector<16x32xf32>
    %cst_132 = arith.constant dense<0.000000e+00> : vector<16xf32>
    %330 = vector.multi_reduction <add>, %329, %cst_132 [1] : vector<16x32xf32> to vector<16xf32>
    %331 = vector.shape_cast %330 : vector<16xf32> to vector<16x1xf32>
    %cst_133 = arith.constant 3.200000e+01 : f32
    %332 = vector.broadcast %cst_133 : f32 to vector<16x1xf32>
    %333 = arith.divf %331, %332 : vector<16x1xf32>
    %334 = vector.broadcast %326 : vector<16x1xf32> to vector<16x32xf32>
    %335 = arith.subf %318, %334 : vector<16x32xf32>
    %cst_134 = arith.constant 9.99999996E-13 : f32
    %336 = vector.broadcast %cst_134 : f32 to vector<16x1xf32>
    %337 = arith.addf %333, %336 : vector<16x1xf32>
    %338 = math.rsqrt %337 : vector<16x1xf32>
    %339 = vector.broadcast %338 : vector<16x1xf32> to vector<16x32xf32>
    %340 = arith.mulf %335, %339 : vector<16x32xf32>
    %341 = vector.broadcast %320 : vector<1x32xf32> to vector<16x32xf32>
    %342 = arith.mulf %340, %341 : vector<16x32xf32>
    %343 = vector.broadcast %322 : vector<1x32xf32> to vector<16x32xf32>
    %344 = arith.addf %342, %343 : vector<16x32xf32>
    %c1_135 = arith.constant 1 : index
    %c0_136 = arith.constant 0 : index
    %c0_137 = arith.constant 0 : index
    %c0_138 = arith.constant 0 : index
    %345 = vector.load %arg2[%c1_135, %c0_136, %c0_137, %c0_138] : memref<2x2x1x8xf32, #tpu.memory_space<vmem>>, vector<1x2x1x8xf32>
    %346 = vector.shape_cast %345 : vector<1x2x1x8xf32> to vector<2x1x8xf32>
    %c1_139 = arith.constant 1 : index
    %c0_140 = arith.constant 0 : index
    %c0_141 = arith.constant 0 : index
    %c0_142 = arith.constant 0 : index
    %347 = vector.load %arg8[%c1_139, %c0_140, %c0_141, %c0_142] : memref<2x2x8x128xf32, #tpu.memory_space<vmem>>, vector<1x1x8x128xf32>
    %348 = vector.shape_cast %347 : vector<1x1x8x128xf32> to vector<8x128xf32>
    %349 = vector.extract_strided_slice %348 {offsets = [0, 0], sizes = [1, 96], strides = [1, 1]} : vector<8x128xf32> to vector<1x96xf32>
    %350 = vector.extract_strided_slice %348 {offsets = [1, 0], sizes = [1, 32], strides = [1, 1]} : vector<8x128xf32> to vector<1x32xf32>
    %351 = vector.extract_strided_slice %348 {offsets = [2, 0], sizes = [1, 32], strides = [1, 1]} : vector<8x128xf32> to vector<1x32xf32>
    %352 = vector.extract_strided_slice %348 {offsets = [3, 0], sizes = [1, 32], strides = [1, 1]} : vector<8x128xf32> to vector<1x32xf32>
    %353 = vector.extract_strided_slice %348 {offsets = [4, 0], sizes = [1, 64], strides = [1, 1]} : vector<8x128xf32> to vector<1x64xf32>
    %354 = vector.extract_strided_slice %348 {offsets = [5, 0], sizes = [1, 32], strides = [1, 1]} : vector<8x128xf32> to vector<1x32xf32>
    %355 = vector.extract_strided_slice %348 {offsets = [6, 0], sizes = [1, 32], strides = [1, 1]} : vector<8x128xf32> to vector<1x32xf32>
    %356 = vector.extract_strided_slice %348 {offsets = [7, 0], sizes = [1, 32], strides = [1, 1]} : vector<8x128xf32> to vector<1x32xf32>
    %c1_143 = arith.constant 1 : index
    %c0_144 = arith.constant 0 : index
    %c0_145 = arith.constant 0 : index
    %c0_146 = arith.constant 0 : index
    %357 = vector.load %arg4[%c1_143, %c0_144, %c0_145, %c0_146] : memref<2x2x32x96xf32, #tpu.memory_space<vmem>>, vector<1x1x32x96xf32>
    %358 = vector.shape_cast %357 : vector<1x1x32x96xf32> to vector<32x96xf32>
    %cst_147 = arith.constant dense<0.000000e+00> : vector<16x96xf32>
    %359 = tpu.matmul %344, %358, %cst_147 {dimension_numbers = #tpu.dot_dimension_numbers<[1], [0], [0], [1], [0, 0, 1, 1], [], []>} : vector<16x32xf32>, vector<32x96xf32>, vector<16x96xf32> -> vector<16x96xf32>
    %360 = vector.broadcast %349 : vector<1x96xf32> to vector<16x96xf32>
    %361 = arith.addf %359, %360 : vector<16x96xf32>
    %362 = vector.extract_strided_slice %361 {offsets = [0, 0], sizes = [16, 32], strides = [1, 1]} : vector<16x96xf32> to vector<16x32xf32>
    %cst_148 = arith.constant 2.500000e-01 : f32
    %363 = vector.broadcast %cst_148 : f32 to vector<16x32xf32>
    %364 = arith.mulf %362, %363 : vector<16x32xf32>
    %365 = vector.extract_strided_slice %361 {offsets = [0, 32], sizes = [16, 32], strides = [1, 1]} : vector<16x96xf32> to vector<16x32xf32>
    %366 = vector.extract_strided_slice %361 {offsets = [0, 64], sizes = [16, 32], strides = [1, 1]} : vector<16x96xf32> to vector<16x32xf32>
    %c1_149 = arith.constant 1 : index
    %c0_150 = arith.constant 0 : index
    %c0_151 = arith.constant 0 : index
    %c0_152 = arith.constant 0 : index
    %367 = vector.load %arg5[%c1_149, %c0_150, %c0_151, %c0_152] : memref<2x2x32x32xf32, #tpu.memory_space<vmem>>, vector<1x1x32x32xf32>
    %368 = vector.shape_cast %367 : vector<1x1x32x32xf32> to vector<32x32xf32>
    %369 = vector.extract_strided_slice %364 {offsets = [0, 0], sizes = [16, 16], strides = [1, 1]} : vector<16x32xf32> to vector<16x16xf32>
    %370 = vector.shape_cast %369 : vector<16x16xf32> to vector<2x8x16xf32>
    %371 = vector.extract_strided_slice %365 {offsets = [0, 0], sizes = [16, 16], strides = [1, 1]} : vector<16x32xf32> to vector<16x16xf32>
    %372 = vector.shape_cast %371 : vector<16x16xf32> to vector<2x8x16xf32>
    %373 = vector.extract_strided_slice %366 {offsets = [0, 0], sizes = [16, 16], strides = [1, 1]} : vector<16x32xf32> to vector<16x16xf32>
    %374 = vector.shape_cast %373 : vector<16x16xf32> to vector<2x8x16xf32>
    "tpu.trace_start"() <{level = 10 : i32, message = "bqd,bkd->bqk"}> : () -> ()
    %cst_153 = arith.constant dense<0.000000e+00> : vector<2x8x8xf32>
    %375 = tpu.matmul %370, %372, %cst_153 {dimension_numbers = #tpu.dot_dimension_numbers<[2], [2], [1], [1], [0, 0, 0, 1, 1, 1], [0], [0]>} : vector<2x8x16xf32>, vector<2x8x16xf32>, vector<2x8x8xf32> -> vector<2x8x8xf32>
    "tpu.trace_stop"() : () -> ()
    %376 = vector.broadcast %346 : vector<2x1x8xf32> to vector<2x8x8xf32>
    %377 = arith.addf %375, %376 : vector<2x8x8xf32>
    %cst_154 = arith.constant dense<0xFF800000> : vector<2x8xf32>
    %378 = vector.multi_reduction <maximumf>, %377, %cst_154 [2] : vector<2x8x8xf32> to vector<2x8xf32>
    %379 = vector.shape_cast %378 : vector<2x8xf32> to vector<2x8x1xf32>
    %380 = vector.broadcast %379 : vector<2x8x1xf32> to vector<2x8x8xf32>
    %381 = arith.subf %377, %380 : vector<2x8x8xf32>
    %382 = math.exp %381 : vector<2x8x8xf32>
    %cst_155 = arith.constant dense<0.000000e+00> : vector<2x8xf32>
    %383 = vector.multi_reduction <add>, %382, %cst_155 [2] : vector<2x8x8xf32> to vector<2x8xf32>
    %384 = vector.shape_cast %383 : vector<2x8xf32> to vector<2x8x1xf32>
    %385 = tpu.reciprocal %384 {approx = true} : vector<2x8x1xf32> -> vector<2x8x1xf32>
    %386 = vector.broadcast %385 : vector<2x8x1xf32> to vector<2x8x8xf32>
    %387 = arith.mulf %382, %386 : vector<2x8x8xf32>
    "tpu.trace_start"() <{level = 10 : i32, message = "bqk,bkd->bqd"}> : () -> ()
    %cst_156 = arith.constant dense<0.000000e+00> : vector<2x8x16xf32>
    %388 = tpu.matmul %387, %374, %cst_156 {dimension_numbers = #tpu.dot_dimension_numbers<[2], [1], [1], [2], [0, 0, 0, 1, 1, 2], [0], [0]>} : vector<2x8x8xf32>, vector<2x8x16xf32>, vector<2x8x16xf32> -> vector<2x8x16xf32>
    "tpu.trace_stop"() : () -> ()
    %389 = vector.shape_cast %388 : vector<2x8x16xf32> to vector<16x16xf32>
    %390 = vector.extract_strided_slice %368 {offsets = [0, 0], sizes = [16, 32], strides = [1, 1]} : vector<32x32xf32> to vector<16x32xf32>
    %cst_157 = arith.constant dense<0.000000e+00> : vector<16x32xf32>
    %391 = tpu.matmul %389, %390, %cst_157 {dimension_numbers = #tpu.dot_dimension_numbers<[1], [0], [0], [1], [0, 0, 1, 1], [], []>} : vector<16x16xf32>, vector<16x32xf32>, vector<16x32xf32> -> vector<16x32xf32>
    %392 = vector.broadcast %350 : vector<1x32xf32> to vector<16x32xf32>
    %393 = arith.addf %392, %391 : vector<16x32xf32>
    %394 = vector.extract_strided_slice %364 {offsets = [0, 16], sizes = [16, 16], strides = [1, 1]} : vector<16x32xf32> to vector<16x16xf32>
    %395 = vector.shape_cast %394 : vector<16x16xf32> to vector<2x8x16xf32>
    %396 = vector.extract_strided_slice %365 {offsets = [0, 16], sizes = [16, 16], strides = [1, 1]} : vector<16x32xf32> to vector<16x16xf32>
    %397 = vector.shape_cast %396 : vector<16x16xf32> to vector<2x8x16xf32>
    %398 = vector.extract_strided_slice %366 {offsets = [0, 16], sizes = [16, 16], strides = [1, 1]} : vector<16x32xf32> to vector<16x16xf32>
    %399 = vector.shape_cast %398 : vector<16x16xf32> to vector<2x8x16xf32>
    "tpu.trace_start"() <{level = 10 : i32, message = "bqd,bkd->bqk"}> : () -> ()
    %cst_158 = arith.constant dense<0.000000e+00> : vector<2x8x8xf32>
    %400 = tpu.matmul %395, %397, %cst_158 {dimension_numbers = #tpu.dot_dimension_numbers<[2], [2], [1], [1], [0, 0, 0, 1, 1, 1], [0], [0]>} : vector<2x8x16xf32>, vector<2x8x16xf32>, vector<2x8x8xf32> -> vector<2x8x8xf32>
    "tpu.trace_stop"() : () -> ()
    %401 = vector.broadcast %346 : vector<2x1x8xf32> to vector<2x8x8xf32>
    %402 = arith.addf %400, %401 : vector<2x8x8xf32>
    %cst_159 = arith.constant dense<0xFF800000> : vector<2x8xf32>
    %403 = vector.multi_reduction <maximumf>, %402, %cst_159 [2] : vector<2x8x8xf32> to vector<2x8xf32>
    %404 = vector.shape_cast %403 : vector<2x8xf32> to vector<2x8x1xf32>
    %405 = vector.broadcast %404 : vector<2x8x1xf32> to vector<2x8x8xf32>
    %406 = arith.subf %402, %405 : vector<2x8x8xf32>
    %407 = math.exp %406 : vector<2x8x8xf32>
    %cst_160 = arith.constant dense<0.000000e+00> : vector<2x8xf32>
    %408 = vector.multi_reduction <add>, %407, %cst_160 [2] : vector<2x8x8xf32> to vector<2x8xf32>
    %409 = vector.shape_cast %408 : vector<2x8xf32> to vector<2x8x1xf32>
    %410 = tpu.reciprocal %409 {approx = true} : vector<2x8x1xf32> -> vector<2x8x1xf32>
    %411 = vector.broadcast %410 : vector<2x8x1xf32> to vector<2x8x8xf32>
    %412 = arith.mulf %407, %411 : vector<2x8x8xf32>
    "tpu.trace_start"() <{level = 10 : i32, message = "bqk,bkd->bqd"}> : () -> ()
    %cst_161 = arith.constant dense<0.000000e+00> : vector<2x8x16xf32>
    %413 = tpu.matmul %412, %399, %cst_161 {dimension_numbers = #tpu.dot_dimension_numbers<[2], [1], [1], [2], [0, 0, 0, 1, 1, 2], [0], [0]>} : vector<2x8x8xf32>, vector<2x8x16xf32>, vector<2x8x16xf32> -> vector<2x8x16xf32>
    "tpu.trace_stop"() : () -> ()
    %414 = vector.shape_cast %413 : vector<2x8x16xf32> to vector<16x16xf32>
    %415 = vector.extract_strided_slice %368 {offsets = [16, 0], sizes = [16, 32], strides = [1, 1]} : vector<32x32xf32> to vector<16x32xf32>
    %cst_162 = arith.constant dense<0.000000e+00> : vector<16x32xf32>
    %416 = tpu.matmul %414, %415, %cst_162 {dimension_numbers = #tpu.dot_dimension_numbers<[1], [0], [0], [1], [0, 0, 1, 1], [], []>} : vector<16x16xf32>, vector<16x32xf32>, vector<16x32xf32> -> vector<16x32xf32>
    %417 = arith.addf %393, %416 : vector<16x32xf32>
    %418 = arith.addf %417, %344 : vector<16x32xf32>
    %cst_163 = arith.constant dense<0.000000e+00> : vector<16xf32>
    %419 = vector.multi_reduction <add>, %418, %cst_163 [1] : vector<16x32xf32> to vector<16xf32>
    %420 = vector.shape_cast %419 : vector<16xf32> to vector<16x1xf32>
    %cst_164 = arith.constant 3.200000e+01 : f32
    %421 = vector.broadcast %cst_164 : f32 to vector<16x1xf32>
    %422 = arith.divf %420, %421 : vector<16x1xf32>
    %423 = vector.broadcast %422 : vector<16x1xf32> to vector<16x32xf32>
    %424 = arith.subf %418, %423 : vector<16x32xf32>
    %425 = arith.mulf %424, %424 : vector<16x32xf32>
    %cst_165 = arith.constant dense<0.000000e+00> : vector<16xf32>
    %426 = vector.multi_reduction <add>, %425, %cst_165 [1] : vector<16x32xf32> to vector<16xf32>
    %427 = vector.shape_cast %426 : vector<16xf32> to vector<16x1xf32>
    %cst_166 = arith.constant 3.200000e+01 : f32
    %428 = vector.broadcast %cst_166 : f32 to vector<16x1xf32>
    %429 = arith.divf %427, %428 : vector<16x1xf32>
    %430 = vector.broadcast %422 : vector<16x1xf32> to vector<16x32xf32>
    %431 = arith.subf %418, %430 : vector<16x32xf32>
    %cst_167 = arith.constant 9.99999996E-13 : f32
    %432 = vector.broadcast %cst_167 : f32 to vector<16x1xf32>
    %433 = arith.addf %429, %432 : vector<16x1xf32>
    %434 = math.rsqrt %433 : vector<16x1xf32>
    %435 = vector.broadcast %434 : vector<16x1xf32> to vector<16x32xf32>
    %436 = arith.mulf %431, %435 : vector<16x32xf32>
    %437 = vector.broadcast %351 : vector<1x32xf32> to vector<16x32xf32>
    %438 = arith.mulf %436, %437 : vector<16x32xf32>
    %439 = vector.broadcast %352 : vector<1x32xf32> to vector<16x32xf32>
    %440 = arith.addf %438, %439 : vector<16x32xf32>
    %c1_168 = arith.constant 1 : index
    %c0_169 = arith.constant 0 : index
    %c0_170 = arith.constant 0 : index
    %c0_171 = arith.constant 0 : index
    %441 = vector.load %arg6[%c1_168, %c0_169, %c0_170, %c0_171] : memref<2x2x32x64xf32, #tpu.memory_space<vmem>>, vector<1x1x32x64xf32>
    %442 = vector.shape_cast %441 : vector<1x1x32x64xf32> to vector<32x64xf32>
    %cst_172 = arith.constant dense<0.000000e+00> : vector<16x64xf32>
    %443 = tpu.matmul %440, %442, %cst_172 {dimension_numbers = #tpu.dot_dimension_numbers<[1], [0], [0], [1], [0, 0, 1, 1], [], []>} : vector<16x32xf32>, vector<32x64xf32>, vector<16x64xf32> -> vector<16x64xf32>
    %444 = vector.broadcast %353 : vector<1x64xf32> to vector<16x64xf32>
    %445 = arith.addf %443, %444 : vector<16x64xf32>
    %cst_173 = arith.constant 5.000000e-01 : f32
    %446 = vector.broadcast %cst_173 : f32 to vector<16x64xf32>
    %447 = arith.mulf %446, %445 : vector<16x64xf32>
    %cst_174 = arith.constant 0.707106769 : f32
    %448 = vector.broadcast %cst_174 : f32 to vector<16x64xf32>
    %449 = arith.mulf %445, %448 : vector<16x64xf32>
    %450 = math.erf %449 : vector<16x64xf32>
    %cst_175 = arith.constant 1.000000e+00 : f32
    %451 = vector.broadcast %cst_175 : f32 to vector<16x64xf32>
    %452 = arith.addf %451, %450 : vector<16x64xf32>
    %453 = arith.mulf %447, %452 : vector<16x64xf32>
    %c1_176 = arith.constant 1 : index
    %c0_177 = arith.constant 0 : index
    %c0_178 = arith.constant 0 : index
    %c0_179 = arith.constant 0 : index
    %454 = vector.load %arg7[%c1_176, %c0_177, %c0_178, %c0_179] : memref<2x2x64x32xf32, #tpu.memory_space<vmem>>, vector<1x1x64x32xf32>
    %455 = vector.shape_cast %454 : vector<1x1x64x32xf32> to vector<64x32xf32>
    %cst_180 = arith.constant dense<0.000000e+00> : vector<16x32xf32>
    %456 = tpu.matmul %453, %455, %cst_180 {dimension_numbers = #tpu.dot_dimension_numbers<[1], [0], [0], [1], [0, 0, 1, 1], [], []>} : vector<16x64xf32>, vector<64x32xf32>, vector<16x32xf32> -> vector<16x32xf32>
    %457 = vector.broadcast %354 : vector<1x32xf32> to vector<16x32xf32>
    %458 = arith.addf %456, %457 : vector<16x32xf32>
    %459 = arith.addf %458, %440 : vector<16x32xf32>
    %cst_181 = arith.constant dense<0.000000e+00> : vector<16xf32>
    %460 = vector.multi_reduction <add>, %459, %cst_181 [1] : vector<16x32xf32> to vector<16xf32>
    %461 = vector.shape_cast %460 : vector<16xf32> to vector<16x1xf32>
    %cst_182 = arith.constant 3.200000e+01 : f32
    %462 = vector.broadcast %cst_182 : f32 to vector<16x1xf32>
    %463 = arith.divf %461, %462 : vector<16x1xf32>
    %464 = vector.broadcast %463 : vector<16x1xf32> to vector<16x32xf32>
    %465 = arith.subf %459, %464 : vector<16x32xf32>
    %466 = arith.mulf %465, %465 : vector<16x32xf32>
    %cst_183 = arith.constant dense<0.000000e+00> : vector<16xf32>
    %467 = vector.multi_reduction <add>, %466, %cst_183 [1] : vector<16x32xf32> to vector<16xf32>
    %468 = vector.shape_cast %467 : vector<16xf32> to vector<16x1xf32>
    %cst_184 = arith.constant 3.200000e+01 : f32
    %469 = vector.broadcast %cst_184 : f32 to vector<16x1xf32>
    %470 = arith.divf %468, %469 : vector<16x1xf32>
    %471 = vector.broadcast %463 : vector<16x1xf32> to vector<16x32xf32>
    %472 = arith.subf %459, %471 : vector<16x32xf32>
    %cst_185 = arith.constant 9.99999996E-13 : f32
    %473 = vector.broadcast %cst_185 : f32 to vector<16x1xf32>
    %474 = arith.addf %470, %473 : vector<16x1xf32>
    %475 = math.rsqrt %474 : vector<16x1xf32>
    %476 = vector.broadcast %475 : vector<16x1xf32> to vector<16x32xf32>
    %477 = arith.mulf %472, %476 : vector<16x32xf32>
    %478 = vector.broadcast %355 : vector<1x32xf32> to vector<16x32xf32>
    %479 = arith.mulf %477, %478 : vector<16x32xf32>
    %480 = vector.broadcast %356 : vector<1x32xf32> to vector<16x32xf32>
    %481 = arith.addf %479, %480 : vector<16x32xf32>
    %c1_186 = arith.constant 1 : index
    %c1_187 = arith.constant 1 : index
    %c0_188 = arith.constant 0 : index
    %c0_189 = arith.constant 0 : index
    %482 = vector.load %arg8[%c1_186, %c1_187, %c0_188, %c0_189] : memref<2x2x8x128xf32, #tpu.memory_space<vmem>>, vector<1x1x8x128xf32>
    %483 = vector.shape_cast %482 : vector<1x1x8x128xf32> to vector<8x128xf32>
    %484 = vector.extract_strided_slice %483 {offsets = [0, 0], sizes = [1, 96], strides = [1, 1]} : vector<8x128xf32> to vector<1x96xf32>
    %485 = vector.extract_strided_slice %483 {offsets = [1, 0], sizes = [1, 32], strides = [1, 1]} : vector<8x128xf32> to vector<1x32xf32>
    %486 = vector.extract_strided_slice %483 {offsets = [2, 0], sizes = [1, 32], strides = [1, 1]} : vector<8x128xf32> to vector<1x32xf32>
    %487 = vector.extract_strided_slice %483 {offsets = [3, 0], sizes = [1, 32], strides = [1, 1]} : vector<8x128xf32> to vector<1x32xf32>
    %488 = vector.extract_strided_slice %483 {offsets = [4, 0], sizes = [1, 64], strides = [1, 1]} : vector<8x128xf32> to vector<1x64xf32>
    %489 = vector.extract_strided_slice %483 {offsets = [5, 0], sizes = [1, 32], strides = [1, 1]} : vector<8x128xf32> to vector<1x32xf32>
    %490 = vector.extract_strided_slice %483 {offsets = [6, 0], sizes = [1, 32], strides = [1, 1]} : vector<8x128xf32> to vector<1x32xf32>
    %491 = vector.extract_strided_slice %483 {offsets = [7, 0], sizes = [1, 32], strides = [1, 1]} : vector<8x128xf32> to vector<1x32xf32>
    %c1_190 = arith.constant 1 : index
    %c1_191 = arith.constant 1 : index
    %c0_192 = arith.constant 0 : index
    %c0_193 = arith.constant 0 : index
    %492 = vector.load %arg4[%c1_190, %c1_191, %c0_192, %c0_193] : memref<2x2x32x96xf32, #tpu.memory_space<vmem>>, vector<1x1x32x96xf32>
    %493 = vector.shape_cast %492 : vector<1x1x32x96xf32> to vector<32x96xf32>
    %cst_194 = arith.constant dense<0.000000e+00> : vector<16x96xf32>
    %494 = tpu.matmul %481, %493, %cst_194 {dimension_numbers = #tpu.dot_dimension_numbers<[1], [0], [0], [1], [0, 0, 1, 1], [], []>} : vector<16x32xf32>, vector<32x96xf32>, vector<16x96xf32> -> vector<16x96xf32>
    %495 = vector.broadcast %484 : vector<1x96xf32> to vector<16x96xf32>
    %496 = arith.addf %494, %495 : vector<16x96xf32>
    %497 = vector.extract_strided_slice %496 {offsets = [0, 0], sizes = [16, 32], strides = [1, 1]} : vector<16x96xf32> to vector<16x32xf32>
    %cst_195 = arith.constant 2.500000e-01 : f32
    %498 = vector.broadcast %cst_195 : f32 to vector<16x32xf32>
    %499 = arith.mulf %497, %498 : vector<16x32xf32>
    %500 = vector.extract_strided_slice %496 {offsets = [0, 32], sizes = [16, 32], strides = [1, 1]} : vector<16x96xf32> to vector<16x32xf32>
    %501 = vector.extract_strided_slice %496 {offsets = [0, 64], sizes = [16, 32], strides = [1, 1]} : vector<16x96xf32> to vector<16x32xf32>
    %c1_196 = arith.constant 1 : index
    %c1_197 = arith.constant 1 : index
    %c0_198 = arith.constant 0 : index
    %c0_199 = arith.constant 0 : index
    %502 = vector.load %arg5[%c1_196, %c1_197, %c0_198, %c0_199] : memref<2x2x32x32xf32, #tpu.memory_space<vmem>>, vector<1x1x32x32xf32>
    %503 = vector.shape_cast %502 : vector<1x1x32x32xf32> to vector<32x32xf32>
    %504 = vector.extract_strided_slice %499 {offsets = [0, 0], sizes = [16, 16], strides = [1, 1]} : vector<16x32xf32> to vector<16x16xf32>
    %505 = vector.shape_cast %504 : vector<16x16xf32> to vector<2x8x16xf32>
    %506 = vector.extract_strided_slice %500 {offsets = [0, 0], sizes = [16, 16], strides = [1, 1]} : vector<16x32xf32> to vector<16x16xf32>
    %507 = vector.shape_cast %506 : vector<16x16xf32> to vector<2x8x16xf32>
    %508 = vector.extract_strided_slice %501 {offsets = [0, 0], sizes = [16, 16], strides = [1, 1]} : vector<16x32xf32> to vector<16x16xf32>
    %509 = vector.shape_cast %508 : vector<16x16xf32> to vector<2x8x16xf32>
    "tpu.trace_start"() <{level = 10 : i32, message = "bqd,bkd->bqk"}> : () -> ()
    %cst_200 = arith.constant dense<0.000000e+00> : vector<2x8x8xf32>
    %510 = tpu.matmul %505, %507, %cst_200 {dimension_numbers = #tpu.dot_dimension_numbers<[2], [2], [1], [1], [0, 0, 0, 1, 1, 1], [0], [0]>} : vector<2x8x16xf32>, vector<2x8x16xf32>, vector<2x8x8xf32> -> vector<2x8x8xf32>
    "tpu.trace_stop"() : () -> ()
    %511 = vector.broadcast %346 : vector<2x1x8xf32> to vector<2x8x8xf32>
    %512 = arith.addf %510, %511 : vector<2x8x8xf32>
    %cst_201 = arith.constant dense<0xFF800000> : vector<2x8xf32>
    %513 = vector.multi_reduction <maximumf>, %512, %cst_201 [2] : vector<2x8x8xf32> to vector<2x8xf32>
    %514 = vector.shape_cast %513 : vector<2x8xf32> to vector<2x8x1xf32>
    %515 = vector.broadcast %514 : vector<2x8x1xf32> to vector<2x8x8xf32>
    %516 = arith.subf %512, %515 : vector<2x8x8xf32>
    %517 = math.exp %516 : vector<2x8x8xf32>
    %cst_202 = arith.constant dense<0.000000e+00> : vector<2x8xf32>
    %518 = vector.multi_reduction <add>, %517, %cst_202 [2] : vector<2x8x8xf32> to vector<2x8xf32>
    %519 = vector.shape_cast %518 : vector<2x8xf32> to vector<2x8x1xf32>
    %520 = tpu.reciprocal %519 {approx = true} : vector<2x8x1xf32> -> vector<2x8x1xf32>
    %521 = vector.broadcast %520 : vector<2x8x1xf32> to vector<2x8x8xf32>
    %522 = arith.mulf %517, %521 : vector<2x8x8xf32>
    "tpu.trace_start"() <{level = 10 : i32, message = "bqk,bkd->bqd"}> : () -> ()
    %cst_203 = arith.constant dense<0.000000e+00> : vector<2x8x16xf32>
    %523 = tpu.matmul %522, %509, %cst_203 {dimension_numbers = #tpu.dot_dimension_numbers<[2], [1], [1], [2], [0, 0, 0, 1, 1, 2], [0], [0]>} : vector<2x8x8xf32>, vector<2x8x16xf32>, vector<2x8x16xf32> -> vector<2x8x16xf32>
    "tpu.trace_stop"() : () -> ()
    %524 = vector.shape_cast %523 : vector<2x8x16xf32> to vector<16x16xf32>
    %525 = vector.extract_strided_slice %503 {offsets = [0, 0], sizes = [16, 32], strides = [1, 1]} : vector<32x32xf32> to vector<16x32xf32>
    %cst_204 = arith.constant dense<0.000000e+00> : vector<16x32xf32>
    %526 = tpu.matmul %524, %525, %cst_204 {dimension_numbers = #tpu.dot_dimension_numbers<[1], [0], [0], [1], [0, 0, 1, 1], [], []>} : vector<16x16xf32>, vector<16x32xf32>, vector<16x32xf32> -> vector<16x32xf32>
    %527 = vector.broadcast %485 : vector<1x32xf32> to vector<16x32xf32>
    %528 = arith.addf %527, %526 : vector<16x32xf32>
    %529 = vector.extract_strided_slice %499 {offsets = [0, 16], sizes = [16, 16], strides = [1, 1]} : vector<16x32xf32> to vector<16x16xf32>
    %530 = vector.shape_cast %529 : vector<16x16xf32> to vector<2x8x16xf32>
    %531 = vector.extract_strided_slice %500 {offsets = [0, 16], sizes = [16, 16], strides = [1, 1]} : vector<16x32xf32> to vector<16x16xf32>
    %532 = vector.shape_cast %531 : vector<16x16xf32> to vector<2x8x16xf32>
    %533 = vector.extract_strided_slice %501 {offsets = [0, 16], sizes = [16, 16], strides = [1, 1]} : vector<16x32xf32> to vector<16x16xf32>
    %534 = vector.shape_cast %533 : vector<16x16xf32> to vector<2x8x16xf32>
    "tpu.trace_start"() <{level = 10 : i32, message = "bqd,bkd->bqk"}> : () -> ()
    %cst_205 = arith.constant dense<0.000000e+00> : vector<2x8x8xf32>
    %535 = tpu.matmul %530, %532, %cst_205 {dimension_numbers = #tpu.dot_dimension_numbers<[2], [2], [1], [1], [0, 0, 0, 1, 1, 1], [0], [0]>} : vector<2x8x16xf32>, vector<2x8x16xf32>, vector<2x8x8xf32> -> vector<2x8x8xf32>
    "tpu.trace_stop"() : () -> ()
    %536 = vector.broadcast %346 : vector<2x1x8xf32> to vector<2x8x8xf32>
    %537 = arith.addf %535, %536 : vector<2x8x8xf32>
    %cst_206 = arith.constant dense<0xFF800000> : vector<2x8xf32>
    %538 = vector.multi_reduction <maximumf>, %537, %cst_206 [2] : vector<2x8x8xf32> to vector<2x8xf32>
    %539 = vector.shape_cast %538 : vector<2x8xf32> to vector<2x8x1xf32>
    %540 = vector.broadcast %539 : vector<2x8x1xf32> to vector<2x8x8xf32>
    %541 = arith.subf %537, %540 : vector<2x8x8xf32>
    %542 = math.exp %541 : vector<2x8x8xf32>
    %cst_207 = arith.constant dense<0.000000e+00> : vector<2x8xf32>
    %543 = vector.multi_reduction <add>, %542, %cst_207 [2] : vector<2x8x8xf32> to vector<2x8xf32>
    %544 = vector.shape_cast %543 : vector<2x8xf32> to vector<2x8x1xf32>
    %545 = tpu.reciprocal %544 {approx = true} : vector<2x8x1xf32> -> vector<2x8x1xf32>
    %546 = vector.broadcast %545 : vector<2x8x1xf32> to vector<2x8x8xf32>
    %547 = arith.mulf %542, %546 : vector<2x8x8xf32>
    "tpu.trace_start"() <{level = 10 : i32, message = "bqk,bkd->bqd"}> : () -> ()
    %cst_208 = arith.constant dense<0.000000e+00> : vector<2x8x16xf32>
    %548 = tpu.matmul %547, %534, %cst_208 {dimension_numbers = #tpu.dot_dimension_numbers<[2], [1], [1], [2], [0, 0, 0, 1, 1, 2], [0], [0]>} : vector<2x8x8xf32>, vector<2x8x16xf32>, vector<2x8x16xf32> -> vector<2x8x16xf32>
    "tpu.trace_stop"() : () -> ()
    %549 = vector.shape_cast %548 : vector<2x8x16xf32> to vector<16x16xf32>
    %550 = vector.extract_strided_slice %503 {offsets = [16, 0], sizes = [16, 32], strides = [1, 1]} : vector<32x32xf32> to vector<16x32xf32>
    %cst_209 = arith.constant dense<0.000000e+00> : vector<16x32xf32>
    %551 = tpu.matmul %549, %550, %cst_209 {dimension_numbers = #tpu.dot_dimension_numbers<[1], [0], [0], [1], [0, 0, 1, 1], [], []>} : vector<16x16xf32>, vector<16x32xf32>, vector<16x32xf32> -> vector<16x32xf32>
    %552 = arith.addf %528, %551 : vector<16x32xf32>
    %553 = arith.addf %552, %481 : vector<16x32xf32>
    %cst_210 = arith.constant dense<0.000000e+00> : vector<16xf32>
    %554 = vector.multi_reduction <add>, %553, %cst_210 [1] : vector<16x32xf32> to vector<16xf32>
    %555 = vector.shape_cast %554 : vector<16xf32> to vector<16x1xf32>
    %cst_211 = arith.constant 3.200000e+01 : f32
    %556 = vector.broadcast %cst_211 : f32 to vector<16x1xf32>
    %557 = arith.divf %555, %556 : vector<16x1xf32>
    %558 = vector.broadcast %557 : vector<16x1xf32> to vector<16x32xf32>
    %559 = arith.subf %553, %558 : vector<16x32xf32>
    %560 = arith.mulf %559, %559 : vector<16x32xf32>
    %cst_212 = arith.constant dense<0.000000e+00> : vector<16xf32>
    %561 = vector.multi_reduction <add>, %560, %cst_212 [1] : vector<16x32xf32> to vector<16xf32>
    %562 = vector.shape_cast %561 : vector<16xf32> to vector<16x1xf32>
    %cst_213 = arith.constant 3.200000e+01 : f32
    %563 = vector.broadcast %cst_213 : f32 to vector<16x1xf32>
    %564 = arith.divf %562, %563 : vector<16x1xf32>
    %565 = vector.broadcast %557 : vector<16x1xf32> to vector<16x32xf32>
    %566 = arith.subf %553, %565 : vector<16x32xf32>
    %cst_214 = arith.constant 9.99999996E-13 : f32
    %567 = vector.broadcast %cst_214 : f32 to vector<16x1xf32>
    %568 = arith.addf %564, %567 : vector<16x1xf32>
    %569 = math.rsqrt %568 : vector<16x1xf32>
    %570 = vector.broadcast %569 : vector<16x1xf32> to vector<16x32xf32>
    %571 = arith.mulf %566, %570 : vector<16x32xf32>
    %572 = vector.broadcast %486 : vector<1x32xf32> to vector<16x32xf32>
    %573 = arith.mulf %571, %572 : vector<16x32xf32>
    %574 = vector.broadcast %487 : vector<1x32xf32> to vector<16x32xf32>
    %575 = arith.addf %573, %574 : vector<16x32xf32>
    %c1_215 = arith.constant 1 : index
    %c1_216 = arith.constant 1 : index
    %c0_217 = arith.constant 0 : index
    %c0_218 = arith.constant 0 : index
    %576 = vector.load %arg6[%c1_215, %c1_216, %c0_217, %c0_218] : memref<2x2x32x64xf32, #tpu.memory_space<vmem>>, vector<1x1x32x64xf32>
    %577 = vector.shape_cast %576 : vector<1x1x32x64xf32> to vector<32x64xf32>
    %cst_219 = arith.constant dense<0.000000e+00> : vector<16x64xf32>
    %578 = tpu.matmul %575, %577, %cst_219 {dimension_numbers = #tpu.dot_dimension_numbers<[1], [0], [0], [1], [0, 0, 1, 1], [], []>} : vector<16x32xf32>, vector<32x64xf32>, vector<16x64xf32> -> vector<16x64xf32>
    %579 = vector.broadcast %488 : vector<1x64xf32> to vector<16x64xf32>
    %580 = arith.addf %578, %579 : vector<16x64xf32>
    %cst_220 = arith.constant 5.000000e-01 : f32
    %581 = vector.broadcast %cst_220 : f32 to vector<16x64xf32>
    %582 = arith.mulf %581, %580 : vector<16x64xf32>
    %cst_221 = arith.constant 0.707106769 : f32
    %583 = vector.broadcast %cst_221 : f32 to vector<16x64xf32>
    %584 = arith.mulf %580, %583 : vector<16x64xf32>
    %585 = math.erf %584 : vector<16x64xf32>
    %cst_222 = arith.constant 1.000000e+00 : f32
    %586 = vector.broadcast %cst_222 : f32 to vector<16x64xf32>
    %587 = arith.addf %586, %585 : vector<16x64xf32>
    %588 = arith.mulf %582, %587 : vector<16x64xf32>
    %c1_223 = arith.constant 1 : index
    %c1_224 = arith.constant 1 : index
    %c0_225 = arith.constant 0 : index
    %c0_226 = arith.constant 0 : index
    %589 = vector.load %arg7[%c1_223, %c1_224, %c0_225, %c0_226] : memref<2x2x64x32xf32, #tpu.memory_space<vmem>>, vector<1x1x64x32xf32>
    %590 = vector.shape_cast %589 : vector<1x1x64x32xf32> to vector<64x32xf32>
    %cst_227 = arith.constant dense<0.000000e+00> : vector<16x32xf32>
    %591 = tpu.matmul %588, %590, %cst_227 {dimension_numbers = #tpu.dot_dimension_numbers<[1], [0], [0], [1], [0, 0, 1, 1], [], []>} : vector<16x64xf32>, vector<64x32xf32>, vector<16x32xf32> -> vector<16x32xf32>
    %592 = vector.broadcast %489 : vector<1x32xf32> to vector<16x32xf32>
    %593 = arith.addf %591, %592 : vector<16x32xf32>
    %594 = arith.addf %593, %575 : vector<16x32xf32>
    %cst_228 = arith.constant dense<0.000000e+00> : vector<16xf32>
    %595 = vector.multi_reduction <add>, %594, %cst_228 [1] : vector<16x32xf32> to vector<16xf32>
    %596 = vector.shape_cast %595 : vector<16xf32> to vector<16x1xf32>
    %cst_229 = arith.constant 3.200000e+01 : f32
    %597 = vector.broadcast %cst_229 : f32 to vector<16x1xf32>
    %598 = arith.divf %596, %597 : vector<16x1xf32>
    %599 = vector.broadcast %598 : vector<16x1xf32> to vector<16x32xf32>
    %600 = arith.subf %594, %599 : vector<16x32xf32>
    %601 = arith.mulf %600, %600 : vector<16x32xf32>
    %cst_230 = arith.constant dense<0.000000e+00> : vector<16xf32>
    %602 = vector.multi_reduction <add>, %601, %cst_230 [1] : vector<16x32xf32> to vector<16xf32>
    %603 = vector.shape_cast %602 : vector<16xf32> to vector<16x1xf32>
    %cst_231 = arith.constant 3.200000e+01 : f32
    %604 = vector.broadcast %cst_231 : f32 to vector<16x1xf32>
    %605 = arith.divf %603, %604 : vector<16x1xf32>
    %606 = vector.broadcast %598 : vector<16x1xf32> to vector<16x32xf32>
    %607 = arith.subf %594, %606 : vector<16x32xf32>
    %cst_232 = arith.constant 9.99999996E-13 : f32
    %608 = vector.broadcast %cst_232 : f32 to vector<16x1xf32>
    %609 = arith.addf %605, %608 : vector<16x1xf32>
    %610 = math.rsqrt %609 : vector<16x1xf32>
    %611 = vector.broadcast %610 : vector<16x1xf32> to vector<16x32xf32>
    %612 = arith.mulf %607, %611 : vector<16x32xf32>
    %613 = vector.broadcast %490 : vector<1x32xf32> to vector<16x32xf32>
    %614 = arith.mulf %612, %613 : vector<16x32xf32>
    %615 = vector.broadcast %491 : vector<1x32xf32> to vector<16x32xf32>
    %616 = arith.addf %614, %615 : vector<16x32xf32>
    %617 = vector.shape_cast %616 : vector<16x32xf32> to vector<2x8x32xf32>
    %618 = vector.extract_strided_slice %617 {offsets = [0, 0, 0], sizes = [2, 1, 32], strides = [1, 1, 1]} : vector<2x8x32xf32> to vector<2x1x32xf32>
    %619 = vector.shape_cast %618 : vector<2x1x32xf32> to vector<2x32xf32>
    %c1_233 = arith.constant 1 : index
    %c0_234 = arith.constant 0 : index
    %c0_235 = arith.constant 0 : index
    %620 = vector.load %arg9[%c1_233, %c0_234, %c0_235] : memref<2x32x32xf32, #tpu.memory_space<vmem>>, vector<1x32x32xf32>
    %621 = vector.shape_cast %620 : vector<1x32x32xf32> to vector<32x32xf32>
    %cst_236 = arith.constant dense<0.000000e+00> : vector<2x32xf32>
    %622 = tpu.matmul %619, %621, %cst_236 {dimension_numbers = #tpu.dot_dimension_numbers<[1], [0], [0], [1], [0, 0, 1, 1], [], []>} : vector<2x32xf32>, vector<32x32xf32>, vector<2x32xf32> -> vector<2x32xf32>
    %c1_237 = arith.constant 1 : index
    %c0_238 = arith.constant 0 : index
    %c0_239 = arith.constant 0 : index
    %623 = vector.load %arg10[%c1_237, %c0_238, %c0_239] : memref<2x1x32xf32, #tpu.memory_space<vmem>>, vector<1x1x32xf32>
    %624 = vector.shape_cast %623 : vector<1x1x32xf32> to vector<1x32xf32>
    %625 = vector.broadcast %624 : vector<1x32xf32> to vector<2x32xf32>
    %626 = arith.addf %622, %625 : vector<2x32xf32>
    %627 = math.tanh %626 : vector<2x32xf32>
    %628 = vector.extract_strided_slice %0 {offsets = [32, 0], sizes = [32, 2], strides = [1, 1]} : vector<64x2xf32> to vector<32x2xf32>
    %cst_240 = arith.constant dense<0.000000e+00> : vector<2x2xf32>
    %629 = tpu.matmul %627, %628, %cst_240 {dimension_numbers = #tpu.dot_dimension_numbers<[1], [0], [0], [1], [0, 0, 1, 1], [], []>} : vector<2x32xf32>, vector<32x2xf32>, vector<2x2xf32> -> vector<2x2xf32>
    %630 = arith.addf %316, %629 : vector<2x2xf32>
    %c0_241 = arith.constant 0 : index
    %c0_242 = arith.constant 0 : index
    %631 = vector.load %arg13[%c0_241, %c0_242] : memref<2x2xf32, #tpu.memory_space<vmem>>, vector<2x2xf32>
    tpu.vector_store %arg13[%c0_241, %c0_242], %630 {strides = array<i32>} : memref<2x2xf32, #tpu.memory_space<vmem>>, vector<2x2xf32>,
    return
  }
  func.func @transform_0(%arg0: i32) -> (i32, i32, i32) {
    %c0_i32 = arith.constant 0 : i32
    %c0_i32_0 = arith.constant 0 : i32
    %c0_i32_1 = arith.constant 0 : i32
    %c0_i32_2 = arith.constant 0 : i32
    return %c0_i32, %c0_i32_0, %c0_i32_1 : i32, i32, i32
  }
  func.func @transform_1(%arg0: i32) -> (i32, i32, i32, i32) {
    %c0_i32 = arith.constant 0 : i32
    %c0_i32_0 = arith.constant 0 : i32
    %c0_i32_1 = arith.constant 0 : i32
    %c0_i32_2 = arith.constant 0 : i32
    %c0_i32_3 = arith.constant 0 : i32
    return %c0_i32, %c0_i32_0, %c0_i32_1, %c0_i32_2 : i32, i32, i32, i32
  }
  func.func @transform_2(%arg0: i32) -> (i32, i32, i32) {
    %c0_i32 = arith.constant 0 : i32
    %c0_i32_0 = arith.constant 0 : i32
    %c0_i32_1 = arith.constant 0 : i32
    %c0_i32_2 = arith.constant 0 : i32
    return %c0_i32, %c0_i32_0, %c0_i32_1 : i32, i32, i32
  }
  func.func @transform_3(%arg0: i32) -> (i32, i32, i32, i32) {
    %c0_i32 = arith.constant 0 : i32
    %c0_i32_0 = arith.constant 0 : i32
    %c0_i32_1 = arith.constant 0 : i32
    %c0_i32_2 = arith.constant 0 : i32
    %c0_i32_3 = arith.constant 0 : i32
    return %c0_i32, %c0_i32_0, %c0_i32_1, %c0_i32_2 : i32, i32, i32, i32
  }
  func.func @transform_4(%arg0: i32) -> (i32, i32, i32, i32) {
    %c0_i32 = arith.constant 0 : i32
    %c0_i32_0 = arith.constant 0 : i32
    %c0_i32_1 = arith.constant 0 : i32
    %c0_i32_2 = arith.constant 0 : i32
    %c0_i32_3 = arith.constant 0 : i32
    return %c0_i32, %c0_i32_0, %c0_i32_1, %c0_i32_2 : i32, i32, i32, i32
  }
  func.func @transform_5(%arg0: i32) -> (i32, i32, i32, i32) {
    %c0_i32 = arith.constant 0 : i32
    %c0_i32_0 = arith.constant 0 : i32
    %c0_i32_1 = arith.constant 0 : i32
    %c0_i32_2 = arith.constant 0 : i32
    %c0_i32_3 = arith.constant 0 : i32
    return %c0_i32, %c0_i32_0, %c0_i32_1, %c0_i32_2 : i32, i32, i32, i32
  }
  func.func @transform_6(%arg0: i32) -> (i32, i32, i32, i32) {
    %c0_i32 = arith.constant 0 : i32
    %c0_i32_0 = arith.constant 0 : i32
    %c0_i32_1 = arith.constant 0 : i32
    %c0_i32_2 = arith.constant 0 : i32
    %c0_i32_3 = arith.constant 0 : i32
    return %c0_i32, %c0_i32_0, %c0_i32_1, %c0_i32_2 : i32, i32, i32, i32
  }
  func.func @transform_7(%arg0: i32) -> (i32, i32, i32, i32) {
    %c0_i32 = arith.constant 0 : i32
    %c0_i32_0 = arith.constant 0 : i32
    %c0_i32_1 = arith.constant 0 : i32
    %c0_i32_2 = arith.constant 0 : i32
    %c0_i32_3 = arith.constant 0 : i32
    return %c0_i32, %c0_i32_0, %c0_i32_1, %c0_i32_2 : i32, i32, i32, i32
  }
  func.func @transform_8(%arg0: i32) -> (i32, i32, i32) {
    %c0_i32 = arith.constant 0 : i32
    %c0_i32_0 = arith.constant 0 : i32
    %c0_i32_1 = arith.constant 0 : i32
    %c0_i32_2 = arith.constant 0 : i32
    return %c0_i32, %c0_i32_0, %c0_i32_1 : i32, i32, i32
  }
  func.func @transform_9(%arg0: i32) -> (i32, i32, i32) {
    %c0_i32 = arith.constant 0 : i32
    %c0_i32_0 = arith.constant 0 : i32
    %c0_i32_1 = arith.constant 0 : i32
    %c0_i32_2 = arith.constant 0 : i32
    return %c0_i32, %c0_i32_0, %c0_i32_1 : i32, i32, i32
  }
  func.func @transform_10(%arg0: i32) -> (i32, i32) {
    %c0_i32 = arith.constant 0 : i32
    %c0_i32_0 = arith.constant 0 : i32
    %c0_i32_1 = arith.constant 0 : i32
    return %c0_i32, %c0_i32_0 : i32, i32
  }
  func.func @transform_11(%arg0: i32) -> (i32, i32) {
    %c0_i32 = arith.constant 0 : i32
    %c0_i32_0 = arith.constant 0 : i32
    %c0_i32_1 = arith.constant 0 : i32
    return %c0_i32, %c0_i32_0 : i32, i32
  }
  func.func @transform_12(%arg0: i32) -> (i32, i32) {
    %c0_i32 = arith.constant 0 : i32
    %c0_i32_0 = arith.constant 0 : i32
    %c0_i32_1 = arith.constant 0 : i32
    return %c0_i32, %c0_i32_0 : i32, i32
  }
}

</mosaic_0001>

<llo_original>
// kernel: bert_concat_forward.1
$region0: #{bert_concat_forward.1}
  #allocation0 [shape = 'u32[]', space=smem, size = 0x4, offset = 0x4, fixed_abs, tag = 'smem constant byte address 0x4 - core index']
  #allocation1 [shape = 'u32[144,128]{1,0:T(1,128)}', space=vmem, size = 0x12000, scoped, tag = 'internal scratch']
  %s0 = inlined_call_operand.vmem [shape: f32[2,16,32], index: 0, kind: input, shape index: {}]
  %s1 = inlined_call_operand.vmem [shape: f32[2,2,1,8], index: 1, kind: input, shape index: {}]
  %s2 = inlined_call_operand.vmem [shape: f32[2,2,32], index: 2, kind: input, shape index: {}]
  %s3 = inlined_call_operand.vmem [shape: f32[2,2,32,96], index: 3, kind: input, shape index: {}]
  %s4 = inlined_call_operand.vmem [shape: f32[2,2,32,32], index: 4, kind: input, shape index: {}]
  %s5 = inlined_call_operand.vmem [shape: f32[2,2,32,64], index: 5, kind: input, shape index: {}]
  %s6 = inlined_call_operand.vmem [shape: f32[2,2,64,32], index: 6, kind: input, shape index: {}]
  %s7 = inlined_call_operand.vmem [shape: f32[2,2,8,128], index: 7, kind: input, shape index: {}]
  %s8 = inlined_call_operand.vmem [shape: f32[2,32,32], index: 8, kind: input, shape index: {}]
  %s9 = inlined_call_operand.vmem [shape: f32[2,1,32], index: 9, kind: input, shape index: {}]
  %s10 = inlined_call_operand.vmem [shape: f32[64,2], index: 10, kind: input, shape index: {}]
  %s11 = inlined_call_operand.vmem [shape: f32[1,2], index: 11, kind: input, shape index: {}]
  %s12 = inlined_call_operand.hbm [shape: f32[2,2], index: 12, kind: output, shape index: {}]
  %s13 = sld [smem:[#allocation0]]
  $region58: #{bert_concat_forward.1} parent=0
    _
  %s15 = ssub.s32 1, %s13
  %s16 = scalar_select 0, %s15, %s13
  $region1: #{bert_concat_forward.1} parent=0
    #allocation2 [shape = 'u8[1024]{0}', space=vmem, size = 0x400, scoped, tag = 'output window, operand 0, single buffered']
    #allocation3 [shape = 's32[1]{0}', space=sflag, size = 0x4, scoped, tag = 'scoped memory for bert_concat_forward.1']
    %17 = vsyncpa [#allocation3], 0
    // Predicated region
    $region2: #{bert_concat_forward.1} parent=1 // pred_check
      _
    $region3: #{bert_concat_forward.1} parent=1 // pred_check_branch
      %19 = sbr.rel (0) target = $region5
    $region4: #{bert_concat_forward.1} parent=1 // pred_region
      _
    $region5: #{bert_concat_forward.1} parent=1 // pred_fallthru
      _
    // Predicated region
    $region6: #{bert_concat_forward.1} parent=1 // pred_check
      _
    $region7: #{bert_concat_forward.1} parent=1 // pred_check_branch
      %21 = sbr.rel (0) target = $region9
    $region8: #{bert_concat_forward.1} parent=1 // pred_region
      _
    $region9: #{bert_concat_forward.1} parent=1 // pred_fallthru
      _
    // Predicated region
    $region10: #{bert_concat_forward.1} parent=1 // pred_check
      _
    $region11: #{bert_concat_forward.1} parent=1 // pred_check_branch
      %23 = sbr.rel (0) target = $region13
    $region12: #{bert_concat_forward.1} parent=1 // pred_region
      _
    $region13: #{bert_concat_forward.1} parent=1 // pred_fallthru
      _
    // Predicated region
    $region14: #{bert_concat_forward.1} parent=1 // pred_check
      _
    $region15: #{bert_concat_forward.1} parent=1 // pred_check_branch
      %25 = sbr.rel (0) target = $region17
    $region16: #{bert_concat_forward.1} parent=1 // pred_region
      _
    $region17: #{bert_concat_forward.1} parent=1 // pred_fallthru
      _
    // Predicated region
    $region18: #{bert_concat_forward.1} parent=1 // pred_check
      _
    $region19: #{bert_concat_forward.1} parent=1 // pred_check_branch
      %27 = sbr.rel (0) target = $region21
    $region20: #{bert_concat_forward.1} parent=1 // pred_region
      _
    $region21: #{bert_concat_forward.1} parent=1 // pred_fallthru
      _
    // Predicated region
    $region22: #{bert_concat_forward.1} parent=1 // pred_check
      _
    $region23: #{bert_concat_forward.1} parent=1 // pred_check_branch
      %29 = sbr.rel (0) target = $region25
    $region24: #{bert_concat_forward.1} parent=1 // pred_region
      _
    $region25: #{bert_concat_forward.1} parent=1 // pred_fallthru
      _
    // Predicated region
    $region26: #{bert_concat_forward.1} parent=1 // pred_check
      _
    $region27: #{bert_concat_forward.1} parent=1 // pred_check_branch
      %31 = sbr.rel (0) target = $region29
    $region28: #{bert_concat_forward.1} parent=1 // pred_region
      _
    $region29: #{bert_concat_forward.1} parent=1 // pred_fallthru
      _
    // Predicated region
    $region30: #{bert_concat_forward.1} parent=1 // pred_check
      _
    $region31: #{bert_concat_forward.1} parent=1 // pred_check_branch
      %33 = sbr.rel (0) target = $region33
    $region32: #{bert_concat_forward.1} parent=1 // pred_region
      _
    $region33: #{bert_concat_forward.1} parent=1 // pred_fallthru
      _
    // Predicated region
    $region34: #{bert_concat_forward.1} parent=1 // pred_check
      _
    $region35: #{bert_concat_forward.1} parent=1 // pred_check_branch
      %35 = sbr.rel (0) target = $region37
    $region36: #{bert_concat_forward.1} parent=1 // pred_region
      _
    $region37: #{bert_concat_forward.1} parent=1 // pred_fallthru
      _
    // Predicated region
    $region38: #{bert_concat_forward.1} parent=1 // pred_check
      _
    $region39: #{bert_concat_forward.1} parent=1 // pred_check_branch
      %37 = sbr.rel (0) target = $region41
    $region40: #{bert_concat_forward.1} parent=1 // pred_region
      _
    $region41: #{bert_concat_forward.1} parent=1 // pred_fallthru
      _
    // Predicated region
    $region42: #{bert_concat_forward.1} parent=1 // pred_check
      _
    $region43: #{bert_concat_forward.1} parent=1 // pred_check_branch
      %39 = sbr.rel (0) target = $region45
    $region44: #{bert_concat_forward.1} parent=1 // pred_region
      _
    $region45: #{bert_concat_forward.1} parent=1 // pred_fallthru
      _
    // Predicated region
    $region46: #{bert_concat_forward.1} parent=1 // pred_check
      _
    $region47: #{bert_concat_forward.1} parent=1 // pred_check_branch
      %41 = sbr.rel (0) target = $region49
    $region48: #{bert_concat_forward.1} parent=1 // pred_region
      _
    $region49: #{bert_concat_forward.1} parent=1 // pred_fallthru
      _
    %v42 = vld [vmem:[%s10] sm:$0xff]
    %v43 = vld [vmem:[%s10 + $0x8] sm:$0xff]
    %v44 = vld [vmem:[%s10 + $0x10] sm:$0xff]
    %v45 = vld [vmem:[%s10 + $0x18] sm:$0xff]
    %v46 = vld [vmem:[%s10 + $0x20] sm:$0xff]
    %v47 = vld [vmem:[%s10 + $0x28] sm:$0xff]
    %v48 = vld [vmem:[%s10 + $0x30] sm:$0xff]
    %v49 = vld [vmem:[%s10 + $0x38] sm:$0xff]
    %v50 = vld [vmem:[%s11] sm:$0x1]
    %v51 = vld [vmem:[%s0] sm:$0xff]
    %v52 = vld [vmem:[%s0 + $0x8] sm:$0xff]
    %v53 = vld [vmem:[%s2] sm:$0x1]
    %v54 = vld [vmem:[%s2 + $0x1] sm:$0x1]
    %vm55 = vcmask 261120
    %v56 = vsel %vm55, %v51, 0.0
    %57 = vadd.xlane.f32.xlu0 %v56
    %v58 = vpop.xlane.xlu0 %57
    %v59 = vsel %vm55, %v52, 0.0
    %60 = vadd.xlane.f32.xlu0 %v59
    %v61 = vpop.xlane.xlu0 %60
    %v62 = vrcp.pop 32.0
    %v63 = vmul.f32 %v58, %v62
    %v64 = vmul.f32 %v61, %v62
    %v65 = vsub.f32 %v51, %v63
    %v66 = vsub.f32 %v52, %v64
    %v67 = vmul.f32 %v65, %v65
    %v68 = vmul.f32 %v66, %v66
    %v69 = vsel %vm55, %v67, 0.0
    %70 = vadd.xlane.f32.xlu0 %v69
    %v71 = vpop.xlane.xlu0 %70
    %v72 = vsel %vm55, %v68, 0.0
    %73 = vadd.xlane.f32.xlu0 %v72
    %v74 = vpop.xlane.xlu0 %73
    %v75 = vmul.f32 %v71, %v62
    %v76 = vmul.f32 %v74, %v62
    %v77 = vadd.f32 %v75, 1e-12
    %v78 = vadd.f32 %v76, 1e-12
    %v79 = vrsqrt.pop %v77
    %v80 = vrsqrt.pop %v78
    %v81 = vmul.f32 %v65, %v79
    %v82 = vmul.f32 %v66, %v80
    %v83 = vlaneseq
    %v84 = vshrl.u32 %v83, 7
    %v85 = vsub.s32 0, %v84
    %v86 = vrot.slane %v53, %v85
    %v87 = vmul.f32 %v81, %v86
    %v88 = vmul.f32 %v82, %v86
    %v89 = vlaneseq
    %v90 = vshrl.u32 %v89, 7
    %v91 = vsub.s32 0, %v90
    %v92 = vrot.slane %v54, %v91
    %v93 = vadd.f32 %v87, %v92
    %v94 = vadd.f32 %v88, %v92
    %v95 = vld [vmem:[%s1] sm:$0x1]
    %v96 = vld [vmem:[%s1 + $0x1] sm:$0x1]
    %v97 = vld [vmem:[%s7] sm:$0xff]
    %v98 = vld [vmem:[%s3] sm:$0xff]
    %v99 = vld [vmem:[%s3 + $0x8] sm:$0xff]
    %v100 = vld [vmem:[%s3 + $0x10] sm:$0xff]
    %v101 = vld [vmem:[%s3 + $0x18] sm:$0xff]
    %v102 = vlaneseq
    %v103 = vshrl.u32 %v102, 7
    %v104 = vsub.s32 0, %v103
    %v105 = vrot.slane %v97, %v104
    %v107 = vsel %vm55, %v93, 0
    %v110 = vsel %vm55, %v94, 0
    %112 = vmatprep.subr.mxu0 0.0
    %113 = vmatpush1.msra.mxu0 %v98
    %114 = vmatprep.subr.mxu0 0.0
    %115 = vmatpush1.msra.mxu0 %v99
    %116 = vmatprep.subr.mxu0 0.0
    %117 = vmatpush1.msra.mxu0 %v100
    %118 = vmatprep.subr.mxu0 0.0
    %119 = vmatpush1.msra.mxu0 %v101
    %120 = vmatprep.subr.mxu0 0.0
    %121 = vmatpush1.msra.mxu0 0.0
    %122 = vmatprep.subr.mxu0 0.0
    %123 = vmatpush1.msra.mxu0 0.0
    %124 = vmatprep.subr.mxu0 0.0
    %125 = vmatpush1.msra.mxu0 0.0
    %126 = vmatprep.subr.mxu0 0.0
    %127 = vmatpush1.msra.mxu0 0.0
    %128 = vmatprep.subr.mxu0 0.0
    %129 = vmatpush1.msra.mxu0 0.0
    %130 = vmatprep.subr.mxu0 0.0
    %131 = vmatpush1.msra.mxu0 0.0
    %132 = vmatprep.subr.mxu0 0.0
    %133 = vmatpush1.msra.mxu0 0.0
    %134 = vmatprep.subr.mxu0 0.0
    %135 = vmatpush1.msra.mxu0 0.0
    %136 = vmatprep.subr.mxu0 0.0
    %137 = vmatpush1.msra.mxu0 0.0
    %138 = vmatprep.subr.mxu0 0.0
    %139 = vmatpush1.msra.mxu0 0.0
    %140 = vmatprep.subr.mxu0 0.0
    %141 = vmatpush1.msra.mxu0 0.0
    %142 = vmatprep.subr.mxu0 0.0
    %143 = vmatpush1.msra.mxu0 0.0
    %144 = vmatprep.subr.mxu0 0.0
    %145 = vmatpush1.msra.mxu0 0.0
    %146 = vmatprep.subr.mxu0 0.0
    %147 = vmatpush1.msra.mxu0 0.0
    %148 = vmatprep.subr.mxu0 0.0
    %149 = vmatpush1.msra.mxu0 0.0
    %150 = vmatprep.subr.mxu0 0.0
    %151 = vmatpush1.msra.mxu0 0.0
    %152 = vmatprep.subr.mxu0 0.0
    %153 = vmatpush1.msra.mxu0 0.0
    %154 = vmatprep.subr.mxu0 0.0
    %155 = vmatpush1.msra.mxu0 0.0
    %156 = vmatprep.subr.mxu0 0.0
    %157 = vmatpush1.msra.mxu0 0.0
    %158 = vmatprep.subr.mxu0 0.0
    %159 = vmatpush1.msra.mxu0 0.0
    %160 = vmatprep.subr.mxu0 0.0
    %161 = vmatpush1.msra.mxu0 0.0
    %162 = vmatprep.subr.mxu0 0.0
    %163 = vmatpush1.msra.mxu0 0.0
    %164 = vmatprep.subr.mxu0 0.0
    %165 = vmatpush1.msra.mxu0 0.0
    %166 = vmatprep.subr.mxu0 0.0
    %167 = vmatpush1.msra.mxu0 0.0
    %168 = vmatprep.subr.mxu0 0.0
    %169 = vmatpush1.msra.mxu0 0.0
    %170 = vmatprep.subr.mxu0 0.0
    %171 = vmatpush1.msra.mxu0 0.0
    %172 = vmatprep.subr.mxu0 0.0
    %173 = vmatpush1.msra.mxu0 0.0
    %174 = vmatprep.subr.mxu0 0.0
    %175 = vmatpush1.msra.mxu0 0.0
    %176 = vmatprep.mubr.f32.mxu0 0.0
    %177 = vmatmul.mubr.f32.gmra.mrb[0].mxu0 %v107
    %v178 = vpop.f32.mrb[0].mxu0
    %v179 = vadd.f32 %v105, %v178
    %v180 = vpop.f32.mrb[0].mxu0
    %181 = vmatprep.mubr.f32.mxu0 0.0
    %182 = vmatmul.mubr.f32.gmra.mrb[0].mxu0 %v110
    %v183 = vpop.f32.mrb[0].mxu0
    %v184 = vadd.f32 %v105, %v183
    %v185 = vpop.f32.mrb[0].mxu0
    %186 = vdwg.mxu0
    %v187 = vmul.f32 %v179, 0.25
    %v188 = vmul.f32 %v184, 0.25
    %v189 = vld [vmem:[%s4] sm:$0xff]
    %v190 = vld [vmem:[%s4 + $0x8] sm:$0xff]
    %v191 = vld [vmem:[%s4 + $0x10] sm:$0xff]
    %v192 = vld [vmem:[%s4 + $0x18] sm:$0xff]
    %v195 = vlaneseq
    %v196 = vshrl.u32 %v195, 7
    %v197 = vsub.s32 0, %v196
    %v198 = vrot.slane %v95, %v197
    %v199 = vlaneseq
    %v200 = vshrl.u32 %v199, 7
    %v201 = vsub.s32 0, %v200
    %v202 = vrot.slane %v96, %v201
    %206 = vrot.lane.b32.xlu0 %v179, 96
    %v207 = vpop.permute.xlu0 %206
    %vm208 = vcmask 130048
    %v210 = vsel %vm208, %v187, 0
    %v212 = vsel %vm208, %v207, 0
    %214 = vmatprep.subr.mxu0 0.0
    %215 = vmatpush1.xpose.msra.mxu0 %v212
    %216 = vmatprep.subr.mxu0 0.0
    %217 = vmatpush1.xpose.msra.mxu0 0.0
    %218 = vmatprep.subr.mxu0 0.0
    %219 = vmatpush1.xpose.msra.mxu0 0.0
    %220 = vmatprep.subr.mxu0 0.0
    %221 = vmatpush1.xpose.msra.mxu0 0.0
    %222 = vmatprep.subr.mxu0 0.0
    %223 = vmatpush1.xpose.msra.mxu0 0.0
    %224 = vmatprep.subr.mxu0 0.0
    %225 = vmatpush1.xpose.msra.mxu0 0.0
    %226 = vmatprep.subr.mxu0 0.0
    %227 = vmatpush1.xpose.msra.mxu0 0.0
    %228 = vmatprep.subr.mxu0 0.0
    %229 = vmatpush1.xpose.msra.mxu0 0.0
    %230 = vmatprep.subr.mxu0 0.0
    %231 = vmatpush1.xpose.msra.mxu0 0.0
    %232 = vmatprep.subr.mxu0 0.0
    %233 = vmatpush1.xpose.msra.mxu0 0.0
    %234 = vmatprep.subr.mxu0 0.0
    %235 = vmatpush1.xpose.msra.mxu0 0.0
    %236 = vmatprep.subr.mxu0 0.0
    %237 = vmatpush1.xpose.msra.mxu0 0.0
    %238 = vmatprep.subr.mxu0 0.0
    %239 = vmatpush1.xpose.msra.mxu0 0.0
    %240 = vmatprep.subr.mxu0 0.0
    %241 = vmatpush1.xpose.msra.mxu0 0.0
    %242 = vmatprep.subr.mxu0 0.0
    %243 = vmatpush1.xpose.msra.mxu0 0.0
    %244 = vmatprep.subr.mxu0 0.0
    %245 = vmatpush1.xpose.msra.mxu0 0.0
    %246 = vmatprep.subr.mxu0 0.0
    %247 = vmatpush1.xpose.msra.mxu0 0.0
    %248 = vmatprep.subr.mxu0 0.0
    %249 = vmatpush1.xpose.msra.mxu0 0.0
    %250 = vmatprep.subr.mxu0 0.0
    %251 = vmatpush1.xpose.msra.mxu0 0.0
    %252 = vmatprep.subr.mxu0 0.0
    %253 = vmatpush1.xpose.msra.mxu0 0.0
    %254 = vmatprep.subr.mxu0 0.0
    %255 = vmatpush1.xpose.msra.mxu0 0.0
    %256 = vmatprep.subr.mxu0 0.0
    %257 = vmatpush1.xpose.msra.mxu0 0.0
    %258 = vmatprep.subr.mxu0 0.0
    %259 = vmatpush1.xpose.msra.mxu0 0.0
    %260 = vmatprep.subr.mxu0 0.0
    %261 = vmatpush1.xpose.msra.mxu0 0.0
    %262 = vmatprep.subr.mxu0 0.0
    %263 = vmatpush1.xpose.msra.mxu0 0.0
    %264 = vmatprep.subr.mxu0 0.0
    %265 = vmatpush1.xpose.msra.mxu0 0.0
    %266 = vmatprep.subr.mxu0 0.0
    %267 = vmatpush1.xpose.msra.mxu0 0.0
    %268 = vmatprep.subr.mxu0 0.0
    %269 = vmatpush1.xpose.msra.mxu0 0.0
    %270 = vmatprep.subr.mxu0 0.0
    %271 = vmatpush1.xpose.msra.mxu0 0.0
    %272 = vmatprep.subr.mxu0 0.0
    %273 = vmatpush1.xpose.msra.mxu0 0.0
    %274 = vmatprep.subr.mxu0 0.0
    %275 = vmatpush1.xpose.msra.mxu0 0.0
    %276 = vmatprep.subr.mxu0 0.0
    %277 = vmatpush1.xpose.msra.mxu0 0.0
    %278 = vmatprep.mubr.f32.mxu0 0.0
    %279 = vmatmul.mubr.f32.gmra.mrb[0].mxu0 %v210
    %v280 = vpop.f32.mrb[0].mxu0
    %v281 = vadd.f32 %v198, %v280
    %v282 = vpop.f32.mrb[0].mxu0
    %283 = vdwg.mxu0
    %285 = vrot.lane.b32.xlu0 %v184, 96
    %v286 = vpop.permute.xlu0 %285
    %v288 = vsel %vm208, %v188, 0
    %v290 = vsel %vm208, %v286, 0
    %292 = vmatprep.subr.mxu0 0.0
    %293 = vmatpush1.xpose.msra.mxu0 %v290
    %294 = vmatprep.subr.mxu0 0.0
    %295 = vmatpush1.xpose.msra.mxu0 0.0
    %296 = vmatprep.subr.mxu0 0.0
    %297 = vmatpush1.xpose.msra.mxu0 0.0
    %298 = vmatprep.subr.mxu0 0.0
    %299 = vmatpush1.xpose.msra.mxu0 0.0
    %300 = vmatprep.subr.mxu0 0.0
    %301 = vmatpush1.xpose.msra.mxu0 0.0
    %302 = vmatprep.subr.mxu0 0.0
    %303 = vmatpush1.xpose.msra.mxu0 0.0
    %304 = vmatprep.subr.mxu0 0.0
    %305 = vmatpush1.xpose.msra.mxu0 0.0
    %306 = vmatprep.subr.mxu0 0.0
    %307 = vmatpush1.xpose.msra.mxu0 0.0
    %308 = vmatprep.subr.mxu0 0.0
    %309 = vmatpush1.xpose.msra.mxu0 0.0
    %310 = vmatprep.subr.mxu0 0.0
    %311 = vmatpush1.xpose.msra.mxu0 0.0
    %312 = vmatprep.subr.mxu0 0.0
    %313 = vmatpush1.xpose.msra.mxu0 0.0
    %314 = vmatprep.subr.mxu0 0.0
    %315 = vmatpush1.xpose.msra.mxu0 0.0
    %316 = vmatprep.subr.mxu0 0.0
    %317 = vmatpush1.xpose.msra.mxu0 0.0
    %318 = vmatprep.subr.mxu0 0.0
    %319 = vmatpush1.xpose.msra.mxu0 0.0
    %320 = vmatprep.subr.mxu0 0.0
    %321 = vmatpush1.xpose.msra.mxu0 0.0
    %322 = vmatprep.subr.mxu0 0.0
    %323 = vmatpush1.xpose.msra.mxu0 0.0
    %324 = vmatprep.subr.mxu0 0.0
    %325 = vmatpush1.xpose.msra.mxu0 0.0
    %326 = vmatprep.subr.mxu0 0.0
    %327 = vmatpush1.xpose.msra.mxu0 0.0
    %328 = vmatprep.subr.mxu0 0.0
    %329 = vmatpush1.xpose.msra.mxu0 0.0
    %330 = vmatprep.subr.mxu0 0.0
    %331 = vmatpush1.xpose.msra.mxu0 0.0
    %332 = vmatprep.subr.mxu0 0.0
    %333 = vmatpush1.xpose.msra.mxu0 0.0
    %334 = vmatprep.subr.mxu0 0.0
    %335 = vmatpush1.xpose.msra.mxu0 0.0
    %336 = vmatprep.subr.mxu0 0.0
    %337 = vmatpush1.xpose.msra.mxu0 0.0
    %338 = vmatprep.subr.mxu0 0.0
    %339 = vmatpush1.xpose.msra.mxu0 0.0
    %340 = vmatprep.subr.mxu0 0.0
    %341 = vmatpush1.xpose.msra.mxu0 0.0
    %342 = vmatprep.subr.mxu0 0.0
    %343 = vmatpush1.xpose.msra.mxu0 0.0
    %344 = vmatprep.subr.mxu0 0.0
    %345 = vmatpush1.xpose.msra.mxu0 0.0
    %346 = vmatprep.subr.mxu0 0.0
    %347 = vmatpush1.xpose.msra.mxu0 0.0
    %348 = vmatprep.subr.mxu0 0.0
    %349 = vmatpush1.xpose.msra.mxu0 0.0
    %350 = vmatprep.subr.mxu0 0.0
    %351 = vmatpush1.xpose.msra.mxu0 0.0
    %352 = vmatprep.subr.mxu0 0.0
    %353 = vmatpush1.xpose.msra.mxu0 0.0
    %354 = vmatprep.subr.mxu0 0.0
    %355 = vmatpush1.xpose.msra.mxu0 0.0
    %356 = vmatprep.mubr.f32.mxu0 0.0
    %357 = vmatmul.mubr.f32.gmra.mrb[0].mxu0 %v288
    %v358 = vpop.f32.mrb[0].mxu0
    %v359 = vadd.f32 %v202, %v358
    %v360 = vpop.f32.mrb[0].mxu0
    %361 = vdwg.mxu0
    %vm362 = vcmask 64512
    %v363 = vsel %vm362, %v281, -inf
    %364 = vmax.xlane.f32.xlu0 %v363
    %v365 = vpop.xlane.xlu0 %364
    %v366 = vsel %vm362, %v359, -inf
    %367 = vmax.xlane.f32.xlu0 %v366
    %v368 = vpop.xlane.xlu0 %367
    %v369 = vsub.f32 %v281, %v365
    %v370 = vsub.f32 %v359, %v368
    %v371 = vmul.f32 %v369, 1.442695
    %v372 = vpow.pop %v371
    %v373 = vmul.f32 %v370, 1.442695
    %v374 = vpow.pop %v373
    %v375 = vsel %vm362, %v372, 0.0
    %376 = vadd.xlane.f32.xlu0 %v375
    %v377 = vpop.xlane.xlu0 %376
    %v378 = vsel %vm362, %v374, 0.0
    %379 = vadd.xlane.f32.xlu0 %v378
    %v380 = vpop.xlane.xlu0 %379
    %v381 = vrcp.pop %v377
    %v382 = vrcp.pop %v380
    %v383 = vmul.f32 %v372, %v381
    %v384 = vmul.f32 %v374, %v382
    %385 = vrot.lane.b32.xlu0 %v179, 64
    %v386 = vpop.permute.xlu0 %385
    %v389 = vsel %vm362, %v383, 0
    %391 = vmatprep.subr.mxu0 0.0
    %392 = vmatpush1.msra.mxu0 %v386
    %393 = vmatprep.subr.mxu0 0.0
    %394 = vmatpush1.msra.mxu0 0.0
    %395 = vmatprep.subr.mxu0 0.0
    %396 = vmatpush1.msra.mxu0 0.0
    %397 = vmatprep.subr.mxu0 0.0
    %398 = vmatpush1.msra.mxu0 0.0
    %399 = vmatprep.subr.mxu0 0.0
    %400 = vmatpush1.msra.mxu0 0.0
    %401 = vmatprep.subr.mxu0 0.0
    %402 = vmatpush1.msra.mxu0 0.0
    %403 = vmatprep.subr.mxu0 0.0
    %404 = vmatpush1.msra.mxu0 0.0
    %405 = vmatprep.subr.mxu0 0.0
    %406 = vmatpush1.msra.mxu0 0.0
    %407 = vmatprep.subr.mxu0 0.0
    %408 = vmatpush1.msra.mxu0 0.0
    %409 = vmatprep.subr.mxu0 0.0
    %410 = vmatpush1.msra.mxu0 0.0
    %411 = vmatprep.subr.mxu0 0.0
    %412 = vmatpush1.msra.mxu0 0.0
    %413 = vmatprep.subr.mxu0 0.0
    %414 = vmatpush1.msra.mxu0 0.0
    %415 = vmatprep.subr.mxu0 0.0
    %416 = vmatpush1.msra.mxu0 0.0
    %417 = vmatprep.subr.mxu0 0.0
    %418 = vmatpush1.msra.mxu0 0.0
    %419 = vmatprep.subr.mxu0 0.0
    %420 = vmatpush1.msra.mxu0 0.0
    %421 = vmatprep.subr.mxu0 0.0
    %422 = vmatpush1.msra.mxu0 0.0
    %423 = vmatprep.subr.mxu0 0.0
    %424 = vmatpush1.msra.mxu0 0.0
    %425 = vmatprep.subr.mxu0 0.0
    %426 = vmatpush1.msra.mxu0 0.0
    %427 = vmatprep.subr.mxu0 0.0
    %428 = vmatpush1.msra.mxu0 0.0
    %429 = vmatprep.subr.mxu0 0.0
    %430 = vmatpush1.msra.mxu0 0.0
    %431 = vmatprep.subr.mxu0 0.0
    %432 = vmatpush1.msra.mxu0 0.0
    %433 = vmatprep.subr.mxu0 0.0
    %434 = vmatpush1.msra.mxu0 0.0
    %435 = vmatprep.subr.mxu0 0.0
    %436 = vmatpush1.msra.mxu0 0.0
    %437 = vmatprep.subr.mxu0 0.0
    %438 = vmatpush1.msra.mxu0 0.0
    %439 = vmatprep.subr.mxu0 0.0
    %440 = vmatpush1.msra.mxu0 0.0
    %441 = vmatprep.subr.mxu0 0.0
    %442 = vmatpush1.msra.mxu0 0.0
    %443 = vmatprep.subr.mxu0 0.0
    %444 = vmatpush1.msra.mxu0 0.0
    %445 = vmatprep.subr.mxu0 0.0
    %446 = vmatpush1.msra.mxu0 0.0
    %447 = vmatprep.subr.mxu0 0.0
    %448 = vmatpush1.msra.mxu0 0.0
    %449 = vmatprep.subr.mxu0 0.0
    %450 = vmatpush1.msra.mxu0 0.0
    %451 = vmatprep.subr.mxu0 0.0
    %452 = vmatpush1.msra.mxu0 0.0
    %453 = vmatprep.subr.mxu0 0.0
    %454 = vmatpush1.msra.mxu0 0.0
    %455 = vmatprep.mubr.f32.mxu0 0.0
    %456 = vmatmul.mubr.f32.gmra.mrb[0].mxu0 %v389
    %v457 = vpop.f32.mrb[0].mxu0
    %v458 = vadd.f32 0.0, %v457
    %v459 = vpop.f32.mrb[0].mxu0
    %460 = vdwg.mxu0
    %461 = vrot.lane.b32.xlu0 %v184, 64
    %v462 = vpop.permute.xlu0 %461
    %v465 = vsel %vm362, %v384, 0
    %467 = vmatprep.subr.mxu0 0.0
    %468 = vmatpush1.msra.mxu0 %v462
    %469 = vmatprep.subr.mxu0 0.0
    %470 = vmatpush1.msra.mxu0 0.0
    %471 = vmatprep.subr.mxu0 0.0
    %472 = vmatpush1.msra.mxu0 0.0
    %473 = vmatprep.subr.mxu0 0.0
    %474 = vmatpush1.msra.mxu0 0.0
    %475 = vmatprep.subr.mxu0 0.0
    %476 = vmatpush1.msra.mxu0 0.0
    %477 = vmatprep.subr.mxu0 0.0
    %478 = vmatpush1.msra.mxu0 0.0
    %479 = vmatprep.subr.mxu0 0.0
    %480 = vmatpush1.msra.mxu0 0.0
    %481 = vmatprep.subr.mxu0 0.0
    %482 = vmatpush1.msra.mxu0 0.0
    %483 = vmatprep.subr.mxu0 0.0
    %484 = vmatpush1.msra.mxu0 0.0
    %485 = vmatprep.subr.mxu0 0.0
    %486 = vmatpush1.msra.mxu0 0.0
    %487 = vmatprep.subr.mxu0 0.0
    %488 = vmatpush1.msra.mxu0 0.0
    %489 = vmatprep.subr.mxu0 0.0
    %490 = vmatpush1.msra.mxu0 0.0
    %491 = vmatprep.subr.mxu0 0.0
    %492 = vmatpush1.msra.mxu0 0.0
    %493 = vmatprep.subr.mxu0 0.0
    %494 = vmatpush1.msra.mxu0 0.0
    %495 = vmatprep.subr.mxu0 0.0
    %496 = vmatpush1.msra.mxu0 0.0
    %497 = vmatprep.subr.mxu0 0.0
    %498 = vmatpush1.msra.mxu0 0.0
    %499 = vmatprep.subr.mxu0 0.0
    %500 = vmatpush1.msra.mxu0 0.0
    %501 = vmatprep.subr.mxu0 0.0
    %502 = vmatpush1.msra.mxu0 0.0
    %503 = vmatprep.subr.mxu0 0.0
    %504 = vmatpush1.msra.mxu0 0.0
    %505 = vmatprep.subr.mxu0 0.0
    %506 = vmatpush1.msra.mxu0 0.0
    %507 = vmatprep.subr.mxu0 0.0
    %508 = vmatpush1.msra.mxu0 0.0
    %509 = vmatprep.subr.mxu0 0.0
    %510 = vmatpush1.msra.mxu0 0.0
    %511 = vmatprep.subr.mxu0 0.0
    %512 = vmatpush1.msra.mxu0 0.0
    %513 = vmatprep.subr.mxu0 0.0
    %514 = vmatpush1.msra.mxu0 0.0
    %515 = vmatprep.subr.mxu0 0.0
    %516 = vmatpush1.msra.mxu0 0.0
    %517 = vmatprep.subr.mxu0 0.0
    %518 = vmatpush1.msra.mxu0 0.0
    %519 = vmatprep.subr.mxu0 0.0
    %520 = vmatpush1.msra.mxu0 0.0
    %521 = vmatprep.subr.mxu0 0.0
    %522 = vmatpush1.msra.mxu0 0.0
    %523 = vmatprep.subr.mxu0 0.0
    %524 = vmatpush1.msra.mxu0 0.0
    %525 = vmatprep.subr.mxu0 0.0
    %526 = vmatpush1.msra.mxu0 0.0
    %527 = vmatprep.subr.mxu0 0.0
    %528 = vmatpush1.msra.mxu0 0.0
    %529 = vmatprep.subr.mxu0 0.0
    %530 = vmatpush1.msra.mxu0 0.0
    %531 = vmatprep.mubr.f32.mxu0 0.0
    %532 = vmatmul.mubr.f32.gmra.mrb[0].mxu0 %v465
    %v533 = vpop.f32.mrb[0].mxu0
    %v534 = vadd.f32 0.0, %v533
    %v535 = vpop.f32.mrb[0].mxu0
    %536 = vdwg.mxu0
    %v538 = vsel %vm208, %v458, 0
    %v541 = vsel %vm208, %v534, 0
    %543 = vmatprep.subr.mxu0 0.0
    %544 = vmatpush1.msra.mxu0 %v189
    %545 = vmatprep.subr.mxu0 0.0
    %546 = vmatpush1.msra.mxu0 %v190
    %547 = vmatprep.subr.mxu0 0.0
    %548 = vmatpush1.msra.mxu0 0.0
    %549 = vmatprep.subr.mxu0 0.0
    %550 = vmatpush1.msra.mxu0 0.0
    %551 = vmatprep.subr.mxu0 0.0
    %552 = vmatpush1.msra.mxu0 0.0
    %553 = vmatprep.subr.mxu0 0.0
    %554 = vmatpush1.msra.mxu0 0.0
    %555 = vmatprep.subr.mxu0 0.0
    %556 = vmatpush1.msra.mxu0 0.0
    %557 = vmatprep.subr.mxu0 0.0
    %558 = vmatpush1.msra.mxu0 0.0
    %559 = vmatprep.subr.mxu0 0.0
    %560 = vmatpush1.msra.mxu0 0.0
    %561 = vmatprep.subr.mxu0 0.0
    %562 = vmatpush1.msra.mxu0 0.0
    %563 = vmatprep.subr.mxu0 0.0
    %564 = vmatpush1.msra.mxu0 0.0
    %565 = vmatprep.subr.mxu0 0.0
    %566 = vmatpush1.msra.mxu0 0.0
    %567 = vmatprep.subr.mxu0 0.0
    %568 = vmatpush1.msra.mxu0 0.0
    %569 = vmatprep.subr.mxu0 0.0
    %570 = vmatpush1.msra.mxu0 0.0
    %571 = vmatprep.subr.mxu0 0.0
    %572 = vmatpush1.msra.mxu0 0.0
    %573 = vmatprep.subr.mxu0 0.0
    %574 = vmatpush1.msra.mxu0 0.0
    %575 = vmatprep.subr.mxu0 0.0
    %576 = vmatpush1.msra.mxu0 0.0
    %577 = vmatprep.subr.mxu0 0.0
    %578 = vmatpush1.msra.mxu0 0.0
    %579 = vmatprep.subr.mxu0 0.0
    %580 = vmatpush1.msra.mxu0 0.0
    %581 = vmatprep.subr.mxu0 0.0
    %582 = vmatpush1.msra.mxu0 0.0
    %583 = vmatprep.subr.mxu0 0.0
    %584 = vmatpush1.msra.mxu0 0.0
    %585 = vmatprep.subr.mxu0 0.0
    %586 = vmatpush1.msra.mxu0 0.0
    %587 = vmatprep.subr.mxu0 0.0
    %588 = vmatpush1.msra.mxu0 0.0
    %589 = vmatprep.subr.mxu0 0.0
    %590 = vmatpush1.msra.mxu0 0.0
    %591 = vmatprep.subr.mxu0 0.0
    %592 = vmatpush1.msra.mxu0 0.0
    %593 = vmatprep.subr.mxu0 0.0
    %594 = vmatpush1.msra.mxu0 0.0
    %595 = vmatprep.subr.mxu0 0.0
    %596 = vmatpush1.msra.mxu0 0.0
    %597 = vmatprep.subr.mxu0 0.0
    %598 = vmatpush1.msra.mxu0 0.0
    %599 = vmatprep.subr.mxu0 0.0
    %600 = vmatpush1.msra.mxu0 0.0
    %601 = vmatprep.subr.mxu0 0.0
    %602 = vmatpush1.msra.mxu0 0.0
    %603 = vmatprep.subr.mxu0 0.0
    %604 = vmatpush1.msra.mxu0 0.0
    %605 = vmatprep.subr.mxu0 0.0
    %606 = vmatpush1.msra.mxu0 0.0
    %607 = vmatprep.mubr.f32.mxu0 0.0
    %608 = vmatmul.mubr.f32.gmra.mrb[0].mxu0 %v538
    %v609 = vpop.f32.mrb[0].mxu0
    %v610 = vadd.f32 0.0, %v609
    %v611 = vpop.f32.mrb[0].mxu0
    %612 = vmatprep.mubr.f32.mxu0 0.0
    %613 = vmatmul.mubr.f32.gmra.mrb[0].mxu0 %v541
    %v614 = vpop.f32.mrb[0].mxu0
    %v615 = vadd.f32 0.0, %v614
    %v616 = vpop.f32.mrb[0].mxu0
    %617 = vdwg.mxu0
    %v618 = vlaneseq
    %v619 = vshrl.u32 %v618, 7
    %v620 = vsub.s32 1, %v619
    %v621 = vrot.slane %v97, %v620
    %v622 = vadd.f32 %v621, %v610
    %v623 = vadd.f32 %v621, %v615
    %624 = vrot.lane.b32.xlu0 %v187, 112
    %v625 = vpop.permute.xlu0 %624
    %626 = vrot.lane.b32.xlu0 %v179, 80
    %v627 = vpop.permute.xlu0 %626
    %v628 = vsel %vm208, %v625, 0
    %v630 = vsel %vm208, %v627, 0
    %632 = vmatprep.subr.mxu0 0.0
    %633 = vmatpush1.xpose.msra.mxu0 %v630
    %634 = vmatprep.subr.mxu0 0.0
    %635 = vmatpush1.xpose.msra.mxu0 0.0
    %636 = vmatprep.subr.mxu0 0.0
    %637 = vmatpush1.xpose.msra.mxu0 0.0
    %638 = vmatprep.subr.mxu0 0.0
    %639 = vmatpush1.xpose.msra.mxu0 0.0
    %640 = vmatprep.subr.mxu0 0.0
    %641 = vmatpush1.xpose.msra.mxu0 0.0
    %642 = vmatprep.subr.mxu0 0.0
    %643 = vmatpush1.xpose.msra.mxu0 0.0
    %644 = vmatprep.subr.mxu0 0.0
    %645 = vmatpush1.xpose.msra.mxu0 0.0
    %646 = vmatprep.subr.mxu0 0.0
    %647 = vmatpush1.xpose.msra.mxu0 0.0
    %648 = vmatprep.subr.mxu0 0.0
    %649 = vmatpush1.xpose.msra.mxu0 0.0
    %650 = vmatprep.subr.mxu0 0.0
    %651 = vmatpush1.xpose.msra.mxu0 0.0
    %652 = vmatprep.subr.mxu0 0.0
    %653 = vmatpush1.xpose.msra.mxu0 0.0
    %654 = vmatprep.subr.mxu0 0.0
    %655 = vmatpush1.xpose.msra.mxu0 0.0
    %656 = vmatprep.subr.mxu0 0.0
    %657 = vmatpush1.xpose.msra.mxu0 0.0
    %658 = vmatprep.subr.mxu0 0.0
    %659 = vmatpush1.xpose.msra.mxu0 0.0
    %660 = vmatprep.subr.mxu0 0.0
    %661 = vmatpush1.xpose.msra.mxu0 0.0
    %662 = vmatprep.subr.mxu0 0.0
    %663 = vmatpush1.xpose.msra.mxu0 0.0
    %664 = vmatprep.subr.mxu0 0.0
    %665 = vmatpush1.xpose.msra.mxu0 0.0
    %666 = vmatprep.subr.mxu0 0.0
    %667 = vmatpush1.xpose.msra.mxu0 0.0
    %668 = vmatprep.subr.mxu0 0.0
    %669 = vmatpush1.xpose.msra.mxu0 0.0
    %670 = vmatprep.subr.mxu0 0.0
    %671 = vmatpush1.xpose.msra.mxu0 0.0
    %672 = vmatprep.subr.mxu0 0.0
    %673 = vmatpush1.xpose.msra.mxu0 0.0
    %674 = vmatprep.subr.mxu0 0.0
    %675 = vmatpush1.xpose.msra.mxu0 0.0
    %676 = vmatprep.subr.mxu0 0.0
    %677 = vmatpush1.xpose.msra.mxu0 0.0
    %678 = vmatprep.subr.mxu0 0.0
    %679 = vmatpush1.xpose.msra.mxu0 0.0
    %680 = vmatprep.subr.mxu0 0.0
    %681 = vmatpush1.xpose.msra.mxu0 0.0
    %682 = vmatprep.subr.mxu0 0.0
    %683 = vmatpush1.xpose.msra.mxu0 0.0
    %684 = vmatprep.subr.mxu0 0.0
    %685 = vmatpush1.xpose.msra.mxu0 0.0
    %686 = vmatprep.subr.mxu0 0.0
    %687 = vmatpush1.xpose.msra.mxu0 0.0
    %688 = vmatprep.subr.mxu0 0.0
    %689 = vmatpush1.xpose.msra.mxu0 0.0
    %690 = vmatprep.subr.mxu0 0.0
    %691 = vmatpush1.xpose.msra.mxu0 0.0
    %692 = vmatprep.subr.mxu0 0.0
    %693 = vmatpush1.xpose.msra.mxu0 0.0
    %694 = vmatprep.subr.mxu0 0.0
    %695 = vmatpush1.xpose.msra.mxu0 0.0
    %696 = vmatprep.mubr.f32.mxu0 0.0
    %697 = vmatmul.mubr.f32.gmra.mrb[0].mxu0 %v628
    %v698 = vpop.f32.mrb[0].mxu0
    %v699 = vadd.f32 %v198, %v698
    %v700 = vpop.f32.mrb[0].mxu0
    %701 = vdwg.mxu0
    %702 = vrot.lane.b32.xlu0 %v188, 112
    %v703 = vpop.permute.xlu0 %702
    %704 = vrot.lane.b32.xlu0 %v184, 80
    %v705 = vpop.permute.xlu0 %704
    %v706 = vsel %vm208, %v703, 0
    %v708 = vsel %vm208, %v705, 0
    %710 = vmatprep.subr.mxu0 0.0
    %711 = vmatpush1.xpose.msra.mxu0 %v708
    %712 = vmatprep.subr.mxu0 0.0
    %713 = vmatpush1.xpose.msra.mxu0 0.0
    %714 = vmatprep.subr.mxu0 0.0
    %715 = vmatpush1.xpose.msra.mxu0 0.0
    %716 = vmatprep.subr.mxu0 0.0
    %717 = vmatpush1.xpose.msra.mxu0 0.0
    %718 = vmatprep.subr.mxu0 0.0
    %719 = vmatpush1.xpose.msra.mxu0 0.0
    %720 = vmatprep.subr.mxu0 0.0
    %721 = vmatpush1.xpose.msra.mxu0 0.0
    %722 = vmatprep.subr.mxu0 0.0
    %723 = vmatpush1.xpose.msra.mxu0 0.0
    %724 = vmatprep.subr.mxu0 0.0
    %725 = vmatpush1.xpose.msra.mxu0 0.0
    %726 = vmatprep.subr.mxu0 0.0
    %727 = vmatpush1.xpose.msra.mxu0 0.0
    %728 = vmatprep.subr.mxu0 0.0
    %729 = vmatpush1.xpose.msra.mxu0 0.0
    %730 = vmatprep.subr.mxu0 0.0
    %731 = vmatpush1.xpose.msra.mxu0 0.0
    %732 = vmatprep.subr.mxu0 0.0
    %733 = vmatpush1.xpose.msra.mxu0 0.0
    %734 = vmatprep.subr.mxu0 0.0
    %735 = vmatpush1.xpose.msra.mxu0 0.0
    %736 = vmatprep.subr.mxu0 0.0
    %737 = vmatpush1.xpose.msra.mxu0 0.0
    %738 = vmatprep.subr.mxu0 0.0
    %739 = vmatpush1.xpose.msra.mxu0 0.0
    %740 = vmatprep.subr.mxu0 0.0
    %741 = vmatpush1.xpose.msra.mxu0 0.0
    %742 = vmatprep.subr.mxu0 0.0
    %743 = vmatpush1.xpose.msra.mxu0 0.0
    %744 = vmatprep.subr.mxu0 0.0
    %745 = vmatpush1.xpose.msra.mxu0 0.0
    %746 = vmatprep.subr.mxu0 0.0
    %747 = vmatpush1.xpose.msra.mxu0 0.0
    %748 = vmatprep.subr.mxu0 0.0
    %749 = vmatpush1.xpose.msra.mxu0 0.0
    %750 = vmatprep.subr.mxu0 0.0
    %751 = vmatpush1.xpose.msra.mxu0 0.0
    %752 = vmatprep.subr.mxu0 0.0
    %753 = vmatpush1.xpose.msra.mxu0 0.0
    %754 = vmatprep.subr.mxu0 0.0
    %755 = vmatpush1.xpose.msra.mxu0 0.0
    %756 = vmatprep.subr.mxu0 0.0
    %757 = vmatpush1.xpose.msra.mxu0 0.0
    %758 = vmatprep.subr.mxu0 0.0
    %759 = vmatpush1.xpose.msra.mxu0 0.0
    %760 = vmatprep.subr.mxu0 0.0
    %761 = vmatpush1.xpose.msra.mxu0 0.0
    %762 = vmatprep.subr.mxu0 0.0
    %763 = vmatpush1.xpose.msra.mxu0 0.0
    %764 = vmatprep.subr.mxu0 0.0
    %765 = vmatpush1.xpose.msra.mxu0 0.0
    %766 = vmatprep.subr.mxu0 0.0
    %767 = vmatpush1.xpose.msra.mxu0 0.0
    %768 = vmatprep.subr.mxu0 0.0
    %769 = vmatpush1.xpose.msra.mxu0 0.0
    %770 = vmatprep.subr.mxu0 0.0
    %771 = vmatpush1.xpose.msra.mxu0 0.0
    %772 = vmatprep.subr.mxu0 0.0
    %773 = vmatpush1.xpose.msra.mxu0 0.0
    %774 = vmatprep.mubr.f32.mxu0 0.0
    %775 = vmatmul.mubr.f32.gmra.mrb[0].mxu0 %v706
    %v776 = vpop.f32.mrb[0].mxu0
    %v777 = vadd.f32 %v202, %v776
    %v778 = vpop.f32.mrb[0].mxu0
    %779 = vdwg.mxu0
    %v780 = vsel %vm362, %v699, -inf
    %781 = vmax.xlane.f32.xlu0 %v780
    %v782 = vpop.xlane.xlu0 %781
    %v783 = vsel %vm362, %v777, -inf
    %784 = vmax.xlane.f32.xlu0 %v783
    %v785 = vpop.xlane.xlu0 %784
    %v786 = vsub.f32 %v699, %v782
    %v787 = vsub.f32 %v777, %v785
    %v788 = vmul.f32 %v786, 1.442695
    %v789 = vpow.pop %v788
    %v790 = vmul.f32 %v787, 1.442695
    %v791 = vpow.pop %v790
    %v792 = vsel %vm362, %v789, 0.0
    %793 = vadd.xlane.f32.xlu0 %v792
    %v794 = vpop.xlane.xlu0 %793
    %v795 = vsel %vm362, %v791, 0.0
    %796 = vadd.xlane.f32.xlu0 %v795
    %v797 = vpop.xlane.xlu0 %796
    %v798 = vrcp.pop %v794
    %v799 = vrcp.pop %v797
    %v800 = vmul.f32 %v789, %v798
    %v801 = vmul.f32 %v791, %v799
    %802 = vrot.lane.b32.xlu0 %v179, 48
    %v803 = vpop.permute.xlu0 %802
    %v806 = vsel %vm362, %v800, 0
    %808 = vmatprep.subr.mxu0 0.0
    %809 = vmatpush1.msra.mxu0 %v803
    %810 = vmatprep.subr.mxu0 0.0
    %811 = vmatpush1.msra.mxu0 0.0
    %812 = vmatprep.subr.mxu0 0.0
    %813 = vmatpush1.msra.mxu0 0.0
    %814 = vmatprep.subr.mxu0 0.0
    %815 = vmatpush1.msra.mxu0 0.0
    %816 = vmatprep.subr.mxu0 0.0
    %817 = vmatpush1.msra.mxu0 0.0
    %818 = vmatprep.subr.mxu0 0.0
    %819 = vmatpush1.msra.mxu0 0.0
    %820 = vmatprep.subr.mxu0 0.0
    %821 = vmatpush1.msra.mxu0 0.0
    %822 = vmatprep.subr.mxu0 0.0
    %823 = vmatpush1.msra.mxu0 0.0
    %824 = vmatprep.subr.mxu0 0.0
    %825 = vmatpush1.msra.mxu0 0.0
    %826 = vmatprep.subr.mxu0 0.0
    %827 = vmatpush1.msra.mxu0 0.0
    %828 = vmatprep.subr.mxu0 0.0
    %829 = vmatpush1.msra.mxu0 0.0
    %830 = vmatprep.subr.mxu0 0.0
    %831 = vmatpush1.msra.mxu0 0.0
    %832 = vmatprep.subr.mxu0 0.0
    %833 = vmatpush1.msra.mxu0 0.0
    %834 = vmatprep.subr.mxu0 0.0
    %835 = vmatpush1.msra.mxu0 0.0
    %836 = vmatprep.subr.mxu0 0.0
    %837 = vmatpush1.msra.mxu0 0.0
    %838 = vmatprep.subr.mxu0 0.0
    %839 = vmatpush1.msra.mxu0 0.0
    %840 = vmatprep.subr.mxu0 0.0
    %841 = vmatpush1.msra.mxu0 0.0
    %842 = vmatprep.subr.mxu0 0.0
    %843 = vmatpush1.msra.mxu0 0.0
    %844 = vmatprep.subr.mxu0 0.0
    %845 = vmatpush1.msra.mxu0 0.0
    %846 = vmatprep.subr.mxu0 0.0
    %847 = vmatpush1.msra.mxu0 0.0
    %848 = vmatprep.subr.mxu0 0.0
    %849 = vmatpush1.msra.mxu0 0.0
    %850 = vmatprep.subr.mxu0 0.0
    %851 = vmatpush1.msra.mxu0 0.0
    %852 = vmatprep.subr.mxu0 0.0
    %853 = vmatpush1.msra.mxu0 0.0
    %854 = vmatprep.subr.mxu0 0.0
    %855 = vmatpush1.msra.mxu0 0.0
    %856 = vmatprep.subr.mxu0 0.0
    %857 = vmatpush1.msra.mxu0 0.0
    %858 = vmatprep.subr.mxu0 0.0
    %859 = vmatpush1.msra.mxu0 0.0
    %860 = vmatprep.subr.mxu0 0.0
    %861 = vmatpush1.msra.mxu0 0.0
    %862 = vmatprep.subr.mxu0 0.0
    %863 = vmatpush1.msra.mxu0 0.0
    %864 = vmatprep.subr.mxu0 0.0
    %865 = vmatpush1.msra.mxu0 0.0
    %866 = vmatprep.subr.mxu0 0.0
    %867 = vmatpush1.msra.mxu0 0.0
    %868 = vmatprep.subr.mxu0 0.0
    %869 = vmatpush1.msra.mxu0 0.0
    %870 = vmatprep.subr.mxu0 0.0
    %871 = vmatpush1.msra.mxu0 0.0
    %872 = vmatprep.mubr.f32.mxu0 0.0
    %873 = vmatmul.mubr.f32.gmra.mrb[0].mxu0 %v806
    %v874 = vpop.f32.mrb[0].mxu0
    %v875 = vadd.f32 0.0, %v874
    %v876 = vpop.f32.mrb[0].mxu0
    %877 = vdwg.mxu0
    %878 = vrot.lane.b32.xlu0 %v184, 48
    %v879 = vpop.permute.xlu0 %878
    %v882 = vsel %vm362, %v801, 0
    %884 = vmatprep.subr.mxu0 0.0
    %885 = vmatpush1.msra.mxu0 %v879
    %886 = vmatprep.subr.mxu0 0.0
    %887 = vmatpush1.msra.mxu0 0.0
    %888 = vmatprep.subr.mxu0 0.0
    %889 = vmatpush1.msra.mxu0 0.0
    %890 = vmatprep.subr.mxu0 0.0
    %891 = vmatpush1.msra.mxu0 0.0
    %892 = vmatprep.subr.mxu0 0.0
    %893 = vmatpush1.msra.mxu0 0.0
    %894 = vmatprep.subr.mxu0 0.0
    %895 = vmatpush1.msra.mxu0 0.0
    %896 = vmatprep.subr.mxu0 0.0
    %897 = vmatpush1.msra.mxu0 0.0
    %898 = vmatprep.subr.mxu0 0.0
    %899 = vmatpush1.msra.mxu0 0.0
    %900 = vmatprep.subr.mxu0 0.0
    %901 = vmatpush1.msra.mxu0 0.0
    %902 = vmatprep.subr.mxu0 0.0
    %903 = vmatpush1.msra.mxu0 0.0
    %904 = vmatprep.subr.mxu0 0.0
    %905 = vmatpush1.msra.mxu0 0.0
    %906 = vmatprep.subr.mxu0 0.0
    %907 = vmatpush1.msra.mxu0 0.0
    %908 = vmatprep.subr.mxu0 0.0
    %909 = vmatpush1.msra.mxu0 0.0
    %910 = vmatprep.subr.mxu0 0.0
    %911 = vmatpush1.msra.mxu0 0.0
    %912 = vmatprep.subr.mxu0 0.0
    %913 = vmatpush1.msra.mxu0 0.0
    %914 = vmatprep.subr.mxu0 0.0
    %915 = vmatpush1.msra.mxu0 0.0
    %916 = vmatprep.subr.mxu0 0.0
    %917 = vmatpush1.msra.mxu0 0.0
    %918 = vmatprep.subr.mxu0 0.0
    %919 = vmatpush1.msra.mxu0 0.0
    %920 = vmatprep.subr.mxu0 0.0
    %921 = vmatpush1.msra.mxu0 0.0
    %922 = vmatprep.subr.mxu0 0.0
    %923 = vmatpush1.msra.mxu0 0.0
    %924 = vmatprep.subr.mxu0 0.0
    %925 = vmatpush1.msra.mxu0 0.0
    %926 = vmatprep.subr.mxu0 0.0
    %927 = vmatpush1.msra.mxu0 0.0
    %928 = vmatprep.subr.mxu0 0.0
    %929 = vmatpush1.msra.mxu0 0.0
    %930 = vmatprep.subr.mxu0 0.0
    %931 = vmatpush1.msra.mxu0 0.0
    %932 = vmatprep.subr.mxu0 0.0
    %933 = vmatpush1.msra.mxu0 0.0
    %934 = vmatprep.subr.mxu0 0.0
    %935 = vmatpush1.msra.mxu0 0.0
    %936 = vmatprep.subr.mxu0 0.0
    %937 = vmatpush1.msra.mxu0 0.0
    %938 = vmatprep.subr.mxu0 0.0
    %939 = vmatpush1.msra.mxu0 0.0
    %940 = vmatprep.subr.mxu0 0.0
    %941 = vmatpush1.msra.mxu0 0.0
    %942 = vmatprep.subr.mxu0 0.0
    %943 = vmatpush1.msra.mxu0 0.0
    %944 = vmatprep.subr.mxu0 0.0
    %945 = vmatpush1.msra.mxu0 0.0
    %946 = vmatprep.subr.mxu0 0.0
    %947 = vmatpush1.msra.mxu0 0.0
    %948 = vmatprep.mubr.f32.mxu0 0.0
    %949 = vmatmul.mubr.f32.gmra.mrb[0].mxu0 %v882
    %v950 = vpop.f32.mrb[0].mxu0
    %v951 = vadd.f32 0.0, %v950
    %v952 = vpop.f32.mrb[0].mxu0
    %953 = vdwg.mxu0
    %v955 = vsel %vm208, %v875, 0
    %v958 = vsel %vm208, %v951, 0
    %960 = vmatprep.subr.mxu0 0.0
    %961 = vmatpush1.msra.mxu0 %v191
    %962 = vmatprep.subr.mxu0 0.0
    %963 = vmatpush1.msra.mxu0 %v192
    %964 = vmatprep.subr.mxu0 0.0
    %965 = vmatpush1.msra.mxu0 0.0
    %966 = vmatprep.subr.mxu0 0.0
    %967 = vmatpush1.msra.mxu0 0.0
    %968 = vmatprep.subr.mxu0 0.0
    %969 = vmatpush1.msra.mxu0 0.0
    %970 = vmatprep.subr.mxu0 0.0
    %971 = vmatpush1.msra.mxu0 0.0
    %972 = vmatprep.subr.mxu0 0.0
    %973 = vmatpush1.msra.mxu0 0.0
    %974 = vmatprep.subr.mxu0 0.0
    %975 = vmatpush1.msra.mxu0 0.0
    %976 = vmatprep.subr.mxu0 0.0
    %977 = vmatpush1.msra.mxu0 0.0
    %978 = vmatprep.subr.mxu0 0.0
    %979 = vmatpush1.msra.mxu0 0.0
    %980 = vmatprep.subr.mxu0 0.0
    %981 = vmatpush1.msra.mxu0 0.0
    %982 = vmatprep.subr.mxu0 0.0
    %983 = vmatpush1.msra.mxu0 0.0
    %984 = vmatprep.subr.mxu0 0.0
    %985 = vmatpush1.msra.mxu0 0.0
    %986 = vmatprep.subr.mxu0 0.0
    %987 = vmatpush1.msra.mxu0 0.0
    %988 = vmatprep.subr.mxu0 0.0
    %989 = vmatpush1.msra.mxu0 0.0
    %990 = vmatprep.subr.mxu0 0.0
    %991 = vmatpush1.msra.mxu0 0.0
    %992 = vmatprep.subr.mxu0 0.0
    %993 = vmatpush1.msra.mxu0 0.0
    %994 = vmatprep.subr.mxu0 0.0
    %995 = vmatpush1.msra.mxu0 0.0
    %996 = vmatprep.subr.mxu0 0.0
    %997 = vmatpush1.msra.mxu0 0.0
    %998 = vmatprep.subr.mxu0 0.0
    %999 = vmatpush1.msra.mxu0 0.0
    %1000 = vmatprep.subr.mxu0 0.0
    %1001 = vmatpush1.msra.mxu0 0.0
    %1002 = vmatprep.subr.mxu0 0.0
    %1003 = vmatpush1.msra.mxu0 0.0
    %1004 = vmatprep.subr.mxu0 0.0
    %1005 = vmatpush1.msra.mxu0 0.0
    %1006 = vmatprep.subr.mxu0 0.0
    %1007 = vmatpush1.msra.mxu0 0.0
    %1008 = vmatprep.subr.mxu0 0.0
    %1009 = vmatpush1.msra.mxu0 0.0
    %1010 = vmatprep.subr.mxu0 0.0
    %1011 = vmatpush1.msra.mxu0 0.0
    %1012 = vmatprep.subr.mxu0 0.0
    %1013 = vmatpush1.msra.mxu0 0.0
    %1014 = vmatprep.subr.mxu0 0.0
    %1015 = vmatpush1.msra.mxu0 0.0
    %1016 = vmatprep.subr.mxu0 0.0
    %1017 = vmatpush1.msra.mxu0 0.0
    %1018 = vmatprep.subr.mxu0 0.0
    %1019 = vmatpush1.msra.mxu0 0.0
    %1020 = vmatprep.subr.mxu0 0.0
    %1021 = vmatpush1.msra.mxu0 0.0
    %1022 = vmatprep.subr.mxu0 0.0
    %1023 = vmatpush1.msra.mxu0 0.0
    %1024 = vmatprep.mubr.f32.mxu0 0.0
    %1025 = vmatmul.mubr.f32.gmra.mrb[0].mxu0 %v955
    %v1026 = vpop.f32.mrb[0].mxu0
    %v1027 = vadd.f32 0.0, %v1026
    %v1028 = vpop.f32.mrb[0].mxu0
    %1029 = vmatprep.mubr.f32.mxu0 0.0
    %1030 = vmatmul.mubr.f32.gmra.mrb[0].mxu0 %v958
    %v1031 = vpop.f32.mrb[0].mxu0
    %v1032 = vadd.f32 0.0, %v1031
    %v1033 = vpop.f32.mrb[0].mxu0
    %1034 = vdwg.mxu0
    %v1035 = vadd.f32 %v622, %v1027
    %v1036 = vadd.f32 %v623, %v1032
    %v1037 = vadd.f32 %v1035, %v93
    %v1038 = vadd.f32 %v1036, %v94
    %v1039 = vsel %vm55, %v1037, 0.0
    %1040 = vadd.xlane.f32.xlu0 %v1039
    %v1041 = vpop.xlane.xlu0 %1040
    %v1042 = vsel %vm55, %v1038, 0.0
    %1043 = vadd.xlane.f32.xlu0 %v1042
    %v1044 = vpop.xlane.xlu0 %1043
    %v1045 = vmul.f32 %v1041, %v62
    %v1046 = vmul.f32 %v1044, %v62
    %v1047 = vsub.f32 %v1037, %v1045
    %v1048 = vsub.f32 %v1038, %v1046
    %v1049 = vmul.f32 %v1047, %v1047
    %v1050 = vmul.f32 %v1048, %v1048
    %v1051 = vsel %vm55, %v1049, 0.0
    %1052 = vadd.xlane.f32.xlu0 %v1051
    %v1053 = vpop.xlane.xlu0 %1052
    %v1054 = vsel %vm55, %v1050, 0.0
    %1055 = vadd.xlane.f32.xlu0 %v1054
    %v1056 = vpop.xlane.xlu0 %1055
    %v1057 = vmul.f32 %v1053, %v62
    %v1058 = vmul.f32 %v1056, %v62
    %v1059 = vadd.f32 %v1057, 1e-12
    %v1060 = vadd.f32 %v1058, 1e-12
    %v1061 = vrsqrt.pop %v1059
    %v1062 = vrsqrt.pop %v1060
    %v1063 = vmul.f32 %v1047, %v1061
    %v1064 = vmul.f32 %v1048, %v1062
    %v1065 = vlaneseq
    %v1066 = vshrl.u32 %v1065, 7
    %v1067 = vsub.s32 2, %v1066
    %v1068 = vrot.slane %v97, %v1067
    %v1069 = vmul.f32 %v1063, %v1068
    %v1070 = vmul.f32 %v1064, %v1068
    %v1071 = vlaneseq
    %v1072 = vshrl.u32 %v1071, 7
    %v1073 = vsub.s32 3, %v1072
    %v1074 = vrot.slane %v97, %v1073
    %v1075 = vadd.f32 %v1069, %v1074
    %v1076 = vadd.f32 %v1070, %v1074
    %v1077 = vld [vmem:[%s5] sm:$0xff]
    %v1078 = vld [vmem:[%s5 + $0x8] sm:$0xff]
    %v1079 = vld [vmem:[%s5 + $0x10] sm:$0xff]
    %v1080 = vld [vmem:[%s5 + $0x18] sm:$0xff]
    %v1081 = vlaneseq
    %v1082 = vshrl.u32 %v1081, 7
    %v1083 = vsub.s32 4, %v1082
    %v1084 = vrot.slane %v97, %v1083
    %v1086 = vsel %vm55, %v1075, 0
    %v1089 = vsel %vm55, %v1076, 0
    %1091 = vmatprep.subr.mxu0 0.0
    %1092 = vmatpush1.msra.mxu0 %v1077
    %1093 = vmatprep.subr.mxu0 0.0
    %1094 = vmatpush1.msra.mxu0 %v1078
    %1095 = vmatprep.subr.mxu0 0.0
    %1096 = vmatpush1.msra.mxu0 %v1079
    %1097 = vmatprep.subr.mxu0 0.0
    %1098 = vmatpush1.msra.mxu0 %v1080
    %1099 = vmatprep.subr.mxu0 0.0
    %1100 = vmatpush1.msra.mxu0 0.0
    %1101 = vmatprep.subr.mxu0 0.0
    %1102 = vmatpush1.msra.mxu0 0.0
    %1103 = vmatprep.subr.mxu0 0.0
    %1104 = vmatpush1.msra.mxu0 0.0
    %1105 = vmatprep.subr.mxu0 0.0
    %1106 = vmatpush1.msra.mxu0 0.0
    %1107 = vmatprep.subr.mxu0 0.0
    %1108 = vmatpush1.msra.mxu0 0.0
    %1109 = vmatprep.subr.mxu0 0.0
    %1110 = vmatpush1.msra.mxu0 0.0
    %1111 = vmatprep.subr.mxu0 0.0
    %1112 = vmatpush1.msra.mxu0 0.0
    %1113 = vmatprep.subr.mxu0 0.0
    %1114 = vmatpush1.msra.mxu0 0.0
    %1115 = vmatprep.subr.mxu0 0.0
    %1116 = vmatpush1.msra.mxu0 0.0
    %1117 = vmatprep.subr.mxu0 0.0
    %1118 = vmatpush1.msra.mxu0 0.0
    %1119 = vmatprep.subr.mxu0 0.0
    %1120 = vmatpush1.msra.mxu0 0.0
    %1121 = vmatprep.subr.mxu0 0.0
    %1122 = vmatpush1.msra.mxu0 0.0
    %1123 = vmatprep.subr.mxu0 0.0
    %1124 = vmatpush1.msra.mxu0 0.0
    %1125 = vmatprep.subr.mxu0 0.0
    %1126 = vmatpush1.msra.mxu0 0.0
    %1127 = vmatprep.subr.mxu0 0.0
    %1128 = vmatpush1.msra.mxu0 0.0
    %1129 = vmatprep.subr.mxu0 0.0
    %1130 = vmatpush1.msra.mxu0 0.0
    %1131 = vmatprep.subr.mxu0 0.0
    %1132 = vmatpush1.msra.mxu0 0.0
    %1133 = vmatprep.subr.mxu0 0.0
    %1134 = vmatpush1.msra.mxu0 0.0
    %1135 = vmatprep.subr.mxu0 0.0
    %1136 = vmatpush1.msra.mxu0 0.0
    %1137 = vmatprep.subr.mxu0 0.0
    %1138 = vmatpush1.msra.mxu0 0.0
    %1139 = vmatprep.subr.mxu0 0.0
    %1140 = vmatpush1.msra.mxu0 0.0
    %1141 = vmatprep.subr.mxu0 0.0
    %1142 = vmatpush1.msra.mxu0 0.0
    %1143 = vmatprep.subr.mxu0 0.0
    %1144 = vmatpush1.msra.mxu0 0.0
    %1145 = vmatprep.subr.mxu0 0.0
    %1146 = vmatpush1.msra.mxu0 0.0
    %1147 = vmatprep.subr.mxu0 0.0
    %1148 = vmatpush1.msra.mxu0 0.0
    %1149 = vmatprep.subr.mxu0 0.0
    %1150 = vmatpush1.msra.mxu0 0.0
    %1151 = vmatprep.subr.mxu0 0.0
    %1152 = vmatpush1.msra.mxu0 0.0
    %1153 = vmatprep.subr.mxu0 0.0
    %1154 = vmatpush1.msra.mxu0 0.0
    %1155 = vmatprep.mubr.f32.mxu0 0.0
    %1156 = vmatmul.mubr.f32.gmra.mrb[0].mxu0 %v1086
    %v1157 = vpop.f32.mrb[0].mxu0
    %v1158 = vadd.f32 %v1084, %v1157
    %v1159 = vpop.f32.mrb[0].mxu0
    %1160 = vmatprep.mubr.f32.mxu0 0.0
    %1161 = vmatmul.mubr.f32.gmra.mrb[0].mxu0 %v1089
    %v1162 = vpop.f32.mrb[0].mxu0
    %v1163 = vadd.f32 %v1084, %v1162
    %v1164 = vpop.f32.mrb[0].mxu0
    %1165 = vdwg.mxu0
    %v1166 = vmul.f32 %v1158, 0.5
    %v1167 = vmul.f32 %v1163, 0.5
    %v1168 = vmul.f32 %v1158, 0.70710677
    %v1169 = vmul.f32 %v1163, 0.70710677
    %v1170 = verf.f32.pop %v1168
    %v1171 = verf.f32.pop %v1169
    %v1172 = vadd.f32 %v1170, 1.0
    %v1173 = vadd.f32 %v1171, 1.0
    %v1174 = vmul.f32 %v1166, %v1172
    %v1175 = vmul.f32 %v1167, %v1173
    %v1176 = vld [vmem:[%s6] sm:$0xff]
    %v1177 = vld [vmem:[%s6 + $0x8] sm:$0xff]
    %v1178 = vld [vmem:[%s6 + $0x10] sm:$0xff]
    %v1179 = vld [vmem:[%s6 + $0x18] sm:$0xff]
    %v1180 = vld [vmem:[%s6 + $0x20] sm:$0xff]
    %v1181 = vld [vmem:[%s6 + $0x28] sm:$0xff]
    %v1182 = vld [vmem:[%s6 + $0x30] sm:$0xff]
    %v1183 = vld [vmem:[%s6 + $0x38] sm:$0xff]
    %v1184 = vlaneseq
    %v1185 = vshrl.u32 %v1184, 7
    %v1186 = vsub.s32 5, %v1185
    %v1187 = vrot.slane %v97, %v1186
    %vm1188 = vcmask 523264
    %v1190 = vsel %vm1188, %v1174, 0
    %v1193 = vsel %vm1188, %v1175, 0
    %1195 = vmatprep.subr.mxu0 0.0
    %1196 = vmatpush1.msra.mxu0 %v1176
    %1197 = vmatprep.subr.mxu0 0.0
    %1198 = vmatpush1.msra.mxu0 %v1177
    %1199 = vmatprep.subr.mxu0 0.0
    %1200 = vmatpush1.msra.mxu0 %v1178
    %1201 = vmatprep.subr.mxu0 0.0
    %1202 = vmatpush1.msra.mxu0 %v1179
    %1203 = vmatprep.subr.mxu0 0.0
    %1204 = vmatpush1.msra.mxu0 %v1180
    %1205 = vmatprep.subr.mxu0 0.0
    %1206 = vmatpush1.msra.mxu0 %v1181
    %1207 = vmatprep.subr.mxu0 0.0
    %1208 = vmatpush1.msra.mxu0 %v1182
    %1209 = vmatprep.subr.mxu0 0.0
    %1210 = vmatpush1.msra.mxu0 %v1183
    %1211 = vmatprep.subr.mxu0 0.0
    %1212 = vmatpush1.msra.mxu0 0.0
    %1213 = vmatprep.subr.mxu0 0.0
    %1214 = vmatpush1.msra.mxu0 0.0
    %1215 = vmatprep.subr.mxu0 0.0
    %1216 = vmatpush1.msra.mxu0 0.0
    %1217 = vmatprep.subr.mxu0 0.0
    %1218 = vmatpush1.msra.mxu0 0.0
    %1219 = vmatprep.subr.mxu0 0.0
    %1220 = vmatpush1.msra.mxu0 0.0
    %1221 = vmatprep.subr.mxu0 0.0
    %1222 = vmatpush1.msra.mxu0 0.0
    %1223 = vmatprep.subr.mxu0 0.0
    %1224 = vmatpush1.msra.mxu0 0.0
    %1225 = vmatprep.subr.mxu0 0.0
    %1226 = vmatpush1.msra.mxu0 0.0
    %1227 = vmatprep.subr.mxu0 0.0
    %1228 = vmatpush1.msra.mxu0 0.0
    %1229 = vmatprep.subr.mxu0 0.0
    %1230 = vmatpush1.msra.mxu0 0.0
    %1231 = vmatprep.subr.mxu0 0.0
    %1232 = vmatpush1.msra.mxu0 0.0
    %1233 = vmatprep.subr.mxu0 0.0
    %1234 = vmatpush1.msra.mxu0 0.0
    %1235 = vmatprep.subr.mxu0 0.0
    %1236 = vmatpush1.msra.mxu0 0.0
    %1237 = vmatprep.subr.mxu0 0.0
    %1238 = vmatpush1.msra.mxu0 0.0
    %1239 = vmatprep.subr.mxu0 0.0
    %1240 = vmatpush1.msra.mxu0 0.0
    %1241 = vmatprep.subr.mxu0 0.0
    %1242 = vmatpush1.msra.mxu0 0.0
    %1243 = vmatprep.subr.mxu0 0.0
    %1244 = vmatpush1.msra.mxu0 0.0
    %1245 = vmatprep.subr.mxu0 0.0
    %1246 = vmatpush1.msra.mxu0 0.0
    %1247 = vmatprep.subr.mxu0 0.0
    %1248 = vmatpush1.msra.mxu0 0.0
    %1249 = vmatprep.subr.mxu0 0.0
    %1250 = vmatpush1.msra.mxu0 0.0
    %1251 = vmatprep.subr.mxu0 0.0
    %1252 = vmatpush1.msra.mxu0 0.0
    %1253 = vmatprep.subr.mxu0 0.0
    %1254 = vmatpush1.msra.mxu0 0.0
    %1255 = vmatprep.subr.mxu0 0.0
    %1256 = vmatpush1.msra.mxu0 0.0
    %1257 = vmatprep.subr.mxu0 0.0
    %1258 = vmatpush1.msra.mxu0 0.0
    %1259 = vmatprep.mubr.f32.mxu0 0.0
    %1260 = vmatmul.mubr.f32.gmra.mrb[0].mxu0 %v1190
    %v1261 = vpop.f32.mrb[0].mxu0
    %v1262 = vadd.f32 %v1187, %v1261
    %v1263 = vpop.f32.mrb[0].mxu0
    %1264 = vmatprep.mubr.f32.mxu0 0.0
    %1265 = vmatmul.mubr.f32.gmra.mrb[0].mxu0 %v1193
    %v1266 = vpop.f32.mrb[0].mxu0
    %v1267 = vadd.f32 %v1187, %v1266
    %v1268 = vpop.f32.mrb[0].mxu0
    %1269 = vdwg.mxu0
    %v1270 = vadd.f32 %v1262, %v1075
    %v1271 = vadd.f32 %v1267, %v1076
    %v1272 = vsel %vm55, %v1270, 0.0
    %1273 = vadd.xlane.f32.xlu0 %v1272
    %v1274 = vpop.xlane.xlu0 %1273
    %v1275 = vsel %vm55, %v1271, 0.0
    %1276 = vadd.xlane.f32.xlu0 %v1275
    %v1277 = vpop.xlane.xlu0 %1276
    %v1278 = vmul.f32 %v1274, %v62
    %v1279 = vmul.f32 %v1277, %v62
    %v1280 = vsub.f32 %v1270, %v1278
    %v1281 = vsub.f32 %v1271, %v1279
    %v1282 = vmul.f32 %v1280, %v1280
    %v1283 = vmul.f32 %v1281, %v1281
    %v1284 = vsel %vm55, %v1282, 0.0
    %1285 = vadd.xlane.f32.xlu0 %v1284
    %v1286 = vpop.xlane.xlu0 %1285
    %v1287 = vsel %vm55, %v1283, 0.0
    %1288 = vadd.xlane.f32.xlu0 %v1287
    %v1289 = vpop.xlane.xlu0 %1288
    %v1290 = vmul.f32 %v1286, %v62
    %v1291 = vmul.f32 %v1289, %v62
    %v1292 = vadd.f32 %v1290, 1e-12
    %v1293 = vadd.f32 %v1291, 1e-12
    %v1294 = vrsqrt.pop %v1292
    %v1295 = vrsqrt.pop %v1293
    %v1296 = vmul.f32 %v1280, %v1294
    %v1297 = vmul.f32 %v1281, %v1295
    %v1298 = vlaneseq
    %v1299 = vshrl.u32 %v1298, 7
    %v1300 = vsub.s32 6, %v1299
    %v1301 = vrot.slane %v97, %v1300
    %v1302 = vmul.f32 %v1296, %v1301
    %v1303 = vmul.f32 %v1297, %v1301
    %v1304 = vlaneseq
    %v1305 = vshrl.u32 %v1304, 7
    %v1306 = vsub.s32 7, %v1305
    %v1307 = vrot.slane %v97, %v1306
    %v1308 = vadd.f32 %v1302, %v1307
    %v1309 = vadd.f32 %v1303, %v1307
    %s1310 = scalar_lea.vmem %s7, 8
    %v1311 = vld [vmem:[%s1310] sm:$0xff]
    %s1312 = scalar_lea.vmem %s3, 32
    %v1313 = vld [vmem:[%s1312] sm:$0xff]
    %v1314 = vld [vmem:[%s1312 + $0x8] sm:$0xff]
    %v1315 = vld [vmem:[%s1312 + $0x10] sm:$0xff]
    %v1316 = vld [vmem:[%s1312 + $0x18] sm:$0xff]
    %v1317 = vlaneseq
    %v1318 = vshrl.u32 %v1317, 7
    %v1319 = vsub.s32 0, %v1318
    %v1320 = vrot.slane %v1311, %v1319
    %v1322 = vsel %vm55, %v1308, 0
    %v1325 = vsel %vm55, %v1309, 0
    %1327 = vmatprep.subr.mxu0 0.0
    %1328 = vmatpush1.msra.mxu0 %v1313
    %1329 = vmatprep.subr.mxu0 0.0
    %1330 = vmatpush1.msra.mxu0 %v1314
    %1331 = vmatprep.subr.mxu0 0.0
    %1332 = vmatpush1.msra.mxu0 %v1315
    %1333 = vmatprep.subr.mxu0 0.0
    %1334 = vmatpush1.msra.mxu0 %v1316
    %1335 = vmatprep.subr.mxu0 0.0
    %1336 = vmatpush1.msra.mxu0 0.0
    %1337 = vmatprep.subr.mxu0 0.0
    %1338 = vmatpush1.msra.mxu0 0.0
    %1339 = vmatprep.subr.mxu0 0.0
    %1340 = vmatpush1.msra.mxu0 0.0
    %1341 = vmatprep.subr.mxu0 0.0
    %1342 = vmatpush1.msra.mxu0 0.0
    %1343 = vmatprep.subr.mxu0 0.0
    %1344 = vmatpush1.msra.mxu0 0.0
    %1345 = vmatprep.subr.mxu0 0.0
    %1346 = vmatpush1.msra.mxu0 0.0
    %1347 = vmatprep.subr.mxu0 0.0
    %1348 = vmatpush1.msra.mxu0 0.0
    %1349 = vmatprep.subr.mxu0 0.0
    %1350 = vmatpush1.msra.mxu0 0.0
    %1351 = vmatprep.subr.mxu0 0.0
    %1352 = vmatpush1.msra.mxu0 0.0
    %1353 = vmatprep.subr.mxu0 0.0
    %1354 = vmatpush1.msra.mxu0 0.0
    %1355 = vmatprep.subr.mxu0 0.0
    %1356 = vmatpush1.msra.mxu0 0.0
    %1357 = vmatprep.subr.mxu0 0.0
    %1358 = vmatpush1.msra.mxu0 0.0
    %1359 = vmatprep.subr.mxu0 0.0
    %1360 = vmatpush1.msra.mxu0 0.0
    %1361 = vmatprep.subr.mxu0 0.0
    %1362 = vmatpush1.msra.mxu0 0.0
    %1363 = vmatprep.subr.mxu0 0.0
    %1364 = vmatpush1.msra.mxu0 0.0
    %1365 = vmatprep.subr.mxu0 0.0
    %1366 = vmatpush1.msra.mxu0 0.0
    %1367 = vmatprep.subr.mxu0 0.0
    %1368 = vmatpush1.msra.mxu0 0.0
    %1369 = vmatprep.subr.mxu0 0.0
    %1370 = vmatpush1.msra.mxu0 0.0
    %1371 = vmatprep.subr.mxu0 0.0
    %1372 = vmatpush1.msra.mxu0 0.0
    %1373 = vmatprep.subr.mxu0 0.0
    %1374 = vmatpush1.msra.mxu0 0.0
    %1375 = vmatprep.subr.mxu0 0.0
    %1376 = vmatpush1.msra.mxu0 0.0
    %1377 = vmatprep.subr.mxu0 0.0
    %1378 = vmatpush1.msra.mxu0 0.0
    %1379 = vmatprep.subr.mxu0 0.0
    %1380 = vmatpush1.msra.mxu0 0.0
    %1381 = vmatprep.subr.mxu0 0.0
    %1382 = vmatpush1.msra.mxu0 0.0
    %1383 = vmatprep.subr.mxu0 0.0
    %1384 = vmatpush1.msra.mxu0 0.0
    %1385 = vmatprep.subr.mxu0 0.0
    %1386 = vmatpush1.msra.mxu0 0.0
    %1387 = vmatprep.subr.mxu0 0.0
    %1388 = vmatpush1.msra.mxu0 0.0
    %1389 = vmatprep.subr.mxu0 0.0
    %1390 = vmatpush1.msra.mxu0 0.0
    %1391 = vmatprep.mubr.f32.mxu0 0.0
    %1392 = vmatmul.mubr.f32.gmra.mrb[0].mxu0 %v1322
    %v1393 = vpop.f32.mrb[0].mxu0
    %v1394 = vadd.f32 %v1320, %v1393
    %v1395 = vpop.f32.mrb[0].mxu0
    %1396 = vmatprep.mubr.f32.mxu0 0.0
    %1397 = vmatmul.mubr.f32.gmra.mrb[0].mxu0 %v1325
    %v1398 = vpop.f32.mrb[0].mxu0
    %v1399 = vadd.f32 %v1320, %v1398
    %v1400 = vpop.f32.mrb[0].mxu0
    %1401 = vdwg.mxu0
    %v1402 = vmul.f32 %v1394, 0.25
    %v1403 = vmul.f32 %v1399, 0.25
    %s1404 = scalar_lea.vmem %s4, 32
    %v1405 = vld [vmem:[%s1404] sm:$0xff]
    %v1406 = vld [vmem:[%s1404 + $0x8] sm:$0xff]
    %v1407 = vld [vmem:[%s1404 + $0x10] sm:$0xff]
    %v1408 = vld [vmem:[%s1404 + $0x18] sm:$0xff]
    %1410 = vrot.lane.b32.xlu0 %v1394, 96
    %v1411 = vpop.permute.xlu0 %1410
    %v1413 = vsel %vm208, %v1402, 0
    %v1415 = vsel %vm208, %v1411, 0
    %1417 = vmatprep.subr.mxu0 0.0
    %1418 = vmatpush1.xpose.msra.mxu0 %v1415
    %1419 = vmatprep.subr.mxu0 0.0
    %1420 = vmatpush1.xpose.msra.mxu0 0.0
    %1421 = vmatprep.subr.mxu0 0.0
    %1422 = vmatpush1.xpose.msra.mxu0 0.0
    %1423 = vmatprep.subr.mxu0 0.0
    %1424 = vmatpush1.xpose.msra.mxu0 0.0
    %1425 = vmatprep.subr.mxu0 0.0
    %1426 = vmatpush1.xpose.msra.mxu0 0.0
    %1427 = vmatprep.subr.mxu0 0.0
    %1428 = vmatpush1.xpose.msra.mxu0 0.0
    %1429 = vmatprep.subr.mxu0 0.0
    %1430 = vmatpush1.xpose.msra.mxu0 0.0
    %1431 = vmatprep.subr.mxu0 0.0
    %1432 = vmatpush1.xpose.msra.mxu0 0.0
    %1433 = vmatprep.subr.mxu0 0.0
    %1434 = vmatpush1.xpose.msra.mxu0 0.0
    %1435 = vmatprep.subr.mxu0 0.0
    %1436 = vmatpush1.xpose.msra.mxu0 0.0
    %1437 = vmatprep.subr.mxu0 0.0
    %1438 = vmatpush1.xpose.msra.mxu0 0.0
    %1439 = vmatprep.subr.mxu0 0.0
    %1440 = vmatpush1.xpose.msra.mxu0 0.0
    %1441 = vmatprep.subr.mxu0 0.0
    %1442 = vmatpush1.xpose.msra.mxu0 0.0
    %1443 = vmatprep.subr.mxu0 0.0
    %1444 = vmatpush1.xpose.msra.mxu0 0.0
    %1445 = vmatprep.subr.mxu0 0.0
    %1446 = vmatpush1.xpose.msra.mxu0 0.0
    %1447 = vmatprep.subr.mxu0 0.0
    %1448 = vmatpush1.xpose.msra.mxu0 0.0
    %1449 = vmatprep.subr.mxu0 0.0
    %1450 = vmatpush1.xpose.msra.mxu0 0.0
    %1451 = vmatprep.subr.mxu0 0.0
    %1452 = vmatpush1.xpose.msra.mxu0 0.0
    %1453 = vmatprep.subr.mxu0 0.0
    %1454 = vmatpush1.xpose.msra.mxu0 0.0
    %1455 = vmatprep.subr.mxu0 0.0
    %1456 = vmatpush1.xpose.msra.mxu0 0.0
    %1457 = vmatprep.subr.mxu0 0.0
    %1458 = vmatpush1.xpose.msra.mxu0 0.0
    %1459 = vmatprep.subr.mxu0 0.0
    %1460 = vmatpush1.xpose.msra.mxu0 0.0
    %1461 = vmatprep.subr.mxu0 0.0
    %1462 = vmatpush1.xpose.msra.mxu0 0.0
    %1463 = vmatprep.subr.mxu0 0.0
    %1464 = vmatpush1.xpose.msra.mxu0 0.0
    %1465 = vmatprep.subr.mxu0 0.0
    %1466 = vmatpush1.xpose.msra.mxu0 0.0
    %1467 = vmatprep.subr.mxu0 0.0
    %1468 = vmatpush1.xpose.msra.mxu0 0.0
    %1469 = vmatprep.subr.mxu0 0.0
    %1470 = vmatpush1.xpose.msra.mxu0 0.0
    %1471 = vmatprep.subr.mxu0 0.0
    %1472 = vmatpush1.xpose.msra.mxu0 0.0
    %1473 = vmatprep.subr.mxu0 0.0
    %1474 = vmatpush1.xpose.msra.mxu0 0.0
    %1475 = vmatprep.subr.mxu0 0.0
    %1476 = vmatpush1.xpose.msra.mxu0 0.0
    %1477 = vmatprep.subr.mxu0 0.0
    %1478 = vmatpush1.xpose.msra.mxu0 0.0
    %1479 = vmatprep.subr.mxu0 0.0
    %1480 = vmatpush1.xpose.msra.mxu0 0.0
    %1481 = vmatprep.mubr.f32.mxu0 0.0
    %1482 = vmatmul.mubr.f32.gmra.mrb[0].mxu0 %v1413
    %v1483 = vpop.f32.mrb[0].mxu0
    %v1484 = vadd.f32 %v198, %v1483
    %v1485 = vpop.f32.mrb[0].mxu0
    %1486 = vdwg.mxu0
    %1488 = vrot.lane.b32.xlu0 %v1399, 96
    %v1489 = vpop.permute.xlu0 %1488
    %v1491 = vsel %vm208, %v1403, 0
    %v1493 = vsel %vm208, %v1489, 0
    %1495 = vmatprep.subr.mxu0 0.0
    %1496 = vmatpush1.xpose.msra.mxu0 %v1493
    %1497 = vmatprep.subr.mxu0 0.0
    %1498 = vmatpush1.xpose.msra.mxu0 0.0
    %1499 = vmatprep.subr.mxu0 0.0
    %1500 = vmatpush1.xpose.msra.mxu0 0.0
    %1501 = vmatprep.subr.mxu0 0.0
    %1502 = vmatpush1.xpose.msra.mxu0 0.0
    %1503 = vmatprep.subr.mxu0 0.0
    %1504 = vmatpush1.xpose.msra.mxu0 0.0
    %1505 = vmatprep.subr.mxu0 0.0
    %1506 = vmatpush1.xpose.msra.mxu0 0.0
    %1507 = vmatprep.subr.mxu0 0.0
    %1508 = vmatpush1.xpose.msra.mxu0 0.0
    %1509 = vmatprep.subr.mxu0 0.0
    %1510 = vmatpush1.xpose.msra.mxu0 0.0
    %1511 = vmatprep.subr.mxu0 0.0
    %1512 = vmatpush1.xpose.msra.mxu0 0.0
    %1513 = vmatprep.subr.mxu0 0.0
    %1514 = vmatpush1.xpose.msra.mxu0 0.0
    %1515 = vmatprep.subr.mxu0 0.0
    %1516 = vmatpush1.xpose.msra.mxu0 0.0
    %1517 = vmatprep.subr.mxu0 0.0
    %1518 = vmatpush1.xpose.msra.mxu0 0.0
    %1519 = vmatprep.subr.mxu0 0.0
    %1520 = vmatpush1.xpose.msra.mxu0 0.0
    %1521 = vmatprep.subr.mxu0 0.0
    %1522 = vmatpush1.xpose.msra.mxu0 0.0
    %1523 = vmatprep.subr.mxu0 0.0
    %1524 = vmatpush1.xpose.msra.mxu0 0.0
    %1525 = vmatprep.subr.mxu0 0.0
    %1526 = vmatpush1.xpose.msra.mxu0 0.0
    %1527 = vmatprep.subr.mxu0 0.0
    %1528 = vmatpush1.xpose.msra.mxu0 0.0
    %1529 = vmatprep.subr.mxu0 0.0
    %1530 = vmatpush1.xpose.msra.mxu0 0.0
    %1531 = vmatprep.subr.mxu0 0.0
    %1532 = vmatpush1.xpose.msra.mxu0 0.0
    %1533 = vmatprep.subr.mxu0 0.0
    %1534 = vmatpush1.xpose.msra.mxu0 0.0
    %1535 = vmatprep.subr.mxu0 0.0
    %1536 = vmatpush1.xpose.msra.mxu0 0.0
    %1537 = vmatprep.subr.mxu0 0.0
    %1538 = vmatpush1.xpose.msra.mxu0 0.0
    %1539 = vmatprep.subr.mxu0 0.0
    %1540 = vmatpush1.xpose.msra.mxu0 0.0
    %1541 = vmatprep.subr.mxu0 0.0
    %1542 = vmatpush1.xpose.msra.mxu0 0.0
    %1543 = vmatprep.subr.mxu0 0.0
    %1544 = vmatpush1.xpose.msra.mxu0 0.0
    %1545 = vmatprep.subr.mxu0 0.0
    %1546 = vmatpush1.xpose.msra.mxu0 0.0
    %1547 = vmatprep.subr.mxu0 0.0
    %1548 = vmatpush1.xpose.msra.mxu0 0.0
    %1549 = vmatprep.subr.mxu0 0.0
    %1550 = vmatpush1.xpose.msra.mxu0 0.0
    %1551 = vmatprep.subr.mxu0 0.0
    %1552 = vmatpush1.xpose.msra.mxu0 0.0
    %1553 = vmatprep.subr.mxu0 0.0
    %1554 = vmatpush1.xpose.msra.mxu0 0.0
    %1555 = vmatprep.subr.mxu0 0.0
    %1556 = vmatpush1.xpose.msra.mxu0 0.0
    %1557 = vmatprep.subr.mxu0 0.0
    %1558 = vmatpush1.xpose.msra.mxu0 0.0
    %1559 = vmatprep.mubr.f32.mxu0 0.0
    %1560 = vmatmul.mubr.f32.gmra.mrb[0].mxu0 %v1491
    %v1561 = vpop.f32.mrb[0].mxu0
    %v1562 = vadd.f32 %v202, %v1561
    %v1563 = vpop.f32.mrb[0].mxu0
    %1564 = vdwg.mxu0
    %v1565 = vsel %vm362, %v1484, -inf
    %1566 = vmax.xlane.f32.xlu0 %v1565
    %v1567 = vpop.xlane.xlu0 %1566
    %v1568 = vsel %vm362, %v1562, -inf
    %1569 = vmax.xlane.f32.xlu0 %v1568
    %v1570 = vpop.xlane.xlu0 %1569
    %v1571 = vsub.f32 %v1484, %v1567
    %v1572 = vsub.f32 %v1562, %v1570
    %v1573 = vmul.f32 %v1571, 1.442695
    %v1574 = vpow.pop %v1573
    %v1575 = vmul.f32 %v1572, 1.442695
    %v1576 = vpow.pop %v1575
    %v1577 = vsel %vm362, %v1574, 0.0
    %1578 = vadd.xlane.f32.xlu0 %v1577
    %v1579 = vpop.xlane.xlu0 %1578
    %v1580 = vsel %vm362, %v1576, 0.0
    %1581 = vadd.xlane.f32.xlu0 %v1580
    %v1582 = vpop.xlane.xlu0 %1581
    %v1583 = vrcp.pop %v1579
    %v1584 = vrcp.pop %v1582
    %v1585 = vmul.f32 %v1574, %v1583
    %v1586 = vmul.f32 %v1576, %v1584
    %1587 = vrot.lane.b32.xlu0 %v1394, 64
    %v1588 = vpop.permute.xlu0 %1587
    %v1591 = vsel %vm362, %v1585, 0
    %1593 = vmatprep.subr.mxu0 0.0
    %1594 = vmatpush1.msra.mxu0 %v1588
    %1595 = vmatprep.subr.mxu0 0.0
    %1596 = vmatpush1.msra.mxu0 0.0
    %1597 = vmatprep.subr.mxu0 0.0
    %1598 = vmatpush1.msra.mxu0 0.0
    %1599 = vmatprep.subr.mxu0 0.0
    %1600 = vmatpush1.msra.mxu0 0.0
    %1601 = vmatprep.subr.mxu0 0.0
    %1602 = vmatpush1.msra.mxu0 0.0
    %1603 = vmatprep.subr.mxu0 0.0
    %1604 = vmatpush1.msra.mxu0 0.0
    %1605 = vmatprep.subr.mxu0 0.0
    %1606 = vmatpush1.msra.mxu0 0.0
    %1607 = vmatprep.subr.mxu0 0.0
    %1608 = vmatpush1.msra.mxu0 0.0
    %1609 = vmatprep.subr.mxu0 0.0
    %1610 = vmatpush1.msra.mxu0 0.0
    %1611 = vmatprep.subr.mxu0 0.0
    %1612 = vmatpush1.msra.mxu0 0.0
    %1613 = vmatprep.subr.mxu0 0.0
    %1614 = vmatpush1.msra.mxu0 0.0
    %1615 = vmatprep.subr.mxu0 0.0
    %1616 = vmatpush1.msra.mxu0 0.0
    %1617 = vmatprep.subr.mxu0 0.0
    %1618 = vmatpush1.msra.mxu0 0.0
    %1619 = vmatprep.subr.mxu0 0.0
    %1620 = vmatpush1.msra.mxu0 0.0
    %1621 = vmatprep.subr.mxu0 0.0
    %1622 = vmatpush1.msra.mxu0 0.0
    %1623 = vmatprep.subr.mxu0 0.0
    %1624 = vmatpush1.msra.mxu0 0.0
    %1625 = vmatprep.subr.mxu0 0.0
    %1626 = vmatpush1.msra.mxu0 0.0
    %1627 = vmatprep.subr.mxu0 0.0
    %1628 = vmatpush1.msra.mxu0 0.0
    %1629 = vmatprep.subr.mxu0 0.0
    %1630 = vmatpush1.msra.mxu0 0.0
    %1631 = vmatprep.subr.mxu0 0.0
    %1632 = vmatpush1.msra.mxu0 0.0
    %1633 = vmatprep.subr.mxu0 0.0
    %1634 = vmatpush1.msra.mxu0 0.0
    %1635 = vmatprep.subr.mxu0 0.0
    %1636 = vmatpush1.msra.mxu0 0.0
    %1637 = vmatprep.subr.mxu0 0.0
    %1638 = vmatpush1.msra.mxu0 0.0
    %1639 = vmatprep.subr.mxu0 0.0
    %1640 = vmatpush1.msra.mxu0 0.0
    %1641 = vmatprep.subr.mxu0 0.0
    %1642 = vmatpush1.msra.mxu0 0.0
    %1643 = vmatprep.subr.mxu0 0.0
    %1644 = vmatpush1.msra.mxu0 0.0
    %1645 = vmatprep.subr.mxu0 0.0
    %1646 = vmatpush1.msra.mxu0 0.0
    %1647 = vmatprep.subr.mxu0 0.0
    %1648 = vmatpush1.msra.mxu0 0.0
    %1649 = vmatprep.subr.mxu0 0.0
    %1650 = vmatpush1.msra.mxu0 0.0
    %1651 = vmatprep.subr.mxu0 0.0
    %1652 = vmatpush1.msra.mxu0 0.0
    %1653 = vmatprep.subr.mxu0 0.0
    %1654 = vmatpush1.msra.mxu0 0.0
    %1655 = vmatprep.subr.mxu0 0.0
    %1656 = vmatpush1.msra.mxu0 0.0
    %1657 = vmatprep.mubr.f32.mxu0 0.0
    %1658 = vmatmul.mubr.f32.gmra.mrb[0].mxu0 %v1591
    %v1659 = vpop.f32.mrb[0].mxu0
    %v1660 = vadd.f32 0.0, %v1659
    %v1661 = vpop.f32.mrb[0].mxu0
    %1662 = vdwg.mxu0
    %1663 = vrot.lane.b32.xlu0 %v1399, 64
    %v1664 = vpop.permute.xlu0 %1663
    %v1667 = vsel %vm362, %v1586, 0
    %1669 = vmatprep.subr.mxu0 0.0
    %1670 = vmatpush1.msra.mxu0 %v1664
    %1671 = vmatprep.subr.mxu0 0.0
    %1672 = vmatpush1.msra.mxu0 0.0
    %1673 = vmatprep.subr.mxu0 0.0
    %1674 = vmatpush1.msra.mxu0 0.0
    %1675 = vmatprep.subr.mxu0 0.0
    %1676 = vmatpush1.msra.mxu0 0.0
    %1677 = vmatprep.subr.mxu0 0.0
    %1678 = vmatpush1.msra.mxu0 0.0
    %1679 = vmatprep.subr.mxu0 0.0
    %1680 = vmatpush1.msra.mxu0 0.0
    %1681 = vmatprep.subr.mxu0 0.0
    %1682 = vmatpush1.msra.mxu0 0.0
    %1683 = vmatprep.subr.mxu0 0.0
    %1684 = vmatpush1.msra.mxu0 0.0
    %1685 = vmatprep.subr.mxu0 0.0
    %1686 = vmatpush1.msra.mxu0 0.0
    %1687 = vmatprep.subr.mxu0 0.0
    %1688 = vmatpush1.msra.mxu0 0.0
    %1689 = vmatprep.subr.mxu0 0.0
    %1690 = vmatpush1.msra.mxu0 0.0
    %1691 = vmatprep.subr.mxu0 0.0
    %1692 = vmatpush1.msra.mxu0 0.0
    %1693 = vmatprep.subr.mxu0 0.0
    %1694 = vmatpush1.msra.mxu0 0.0
    %1695 = vmatprep.subr.mxu0 0.0
    %1696 = vmatpush1.msra.mxu0 0.0
    %1697 = vmatprep.subr.mxu0 0.0
    %1698 = vmatpush1.msra.mxu0 0.0
    %1699 = vmatprep.subr.mxu0 0.0
    %1700 = vmatpush1.msra.mxu0 0.0
    %1701 = vmatprep.subr.mxu0 0.0
    %1702 = vmatpush1.msra.mxu0 0.0
    %1703 = vmatprep.subr.mxu0 0.0
    %1704 = vmatpush1.msra.mxu0 0.0
    %1705 = vmatprep.subr.mxu0 0.0
    %1706 = vmatpush1.msra.mxu0 0.0
    %1707 = vmatprep.subr.mxu0 0.0
    %1708 = vmatpush1.msra.mxu0 0.0
    %1709 = vmatprep.subr.mxu0 0.0
    %1710 = vmatpush1.msra.mxu0 0.0
    %1711 = vmatprep.subr.mxu0 0.0
    %1712 = vmatpush1.msra.mxu0 0.0
    %1713 = vmatprep.subr.mxu0 0.0
    %1714 = vmatpush1.msra.mxu0 0.0
    %1715 = vmatprep.subr.mxu0 0.0
    %1716 = vmatpush1.msra.mxu0 0.0
    %1717 = vmatprep.subr.mxu0 0.0
    %1718 = vmatpush1.msra.mxu0 0.0
    %1719 = vmatprep.subr.mxu0 0.0
    %1720 = vmatpush1.msra.mxu0 0.0
    %1721 = vmatprep.subr.mxu0 0.0
    %1722 = vmatpush1.msra.mxu0 0.0
    %1723 = vmatprep.subr.mxu0 0.0
    %1724 = vmatpush1.msra.mxu0 0.0
    %1725 = vmatprep.subr.mxu0 0.0
    %1726 = vmatpush1.msra.mxu0 0.0
    %1727 = vmatprep.subr.mxu0 0.0
    %1728 = vmatpush1.msra.mxu0 0.0
    %1729 = vmatprep.subr.mxu0 0.0
    %1730 = vmatpush1.msra.mxu0 0.0
    %1731 = vmatprep.subr.mxu0 0.0
    %1732 = vmatpush1.msra.mxu0 0.0
    %1733 = vmatprep.mubr.f32.mxu0 0.0
    %1734 = vmatmul.mubr.f32.gmra.mrb[0].mxu0 %v1667
    %v1735 = vpop.f32.mrb[0].mxu0
    %v1736 = vadd.f32 0.0, %v1735
    %v1737 = vpop.f32.mrb[0].mxu0
    %1738 = vdwg.mxu0
    %v1740 = vsel %vm208, %v1660, 0
    %v1743 = vsel %vm208, %v1736, 0
    %1745 = vmatprep.subr.mxu0 0.0
    %1746 = vmatpush1.msra.mxu0 %v1405
    %1747 = vmatprep.subr.mxu0 0.0
    %1748 = vmatpush1.msra.mxu0 %v1406
    %1749 = vmatprep.subr.mxu0 0.0
    %1750 = vmatpush1.msra.mxu0 0.0
    %1751 = vmatprep.subr.mxu0 0.0
    %1752 = vmatpush1.msra.mxu0 0.0
    %1753 = vmatprep.subr.mxu0 0.0
    %1754 = vmatpush1.msra.mxu0 0.0
    %1755 = vmatprep.subr.mxu0 0.0
    %1756 = vmatpush1.msra.mxu0 0.0
    %1757 = vmatprep.subr.mxu0 0.0
    %1758 = vmatpush1.msra.mxu0 0.0
    %1759 = vmatprep.subr.mxu0 0.0
    %1760 = vmatpush1.msra.mxu0 0.0
    %1761 = vmatprep.subr.mxu0 0.0
    %1762 = vmatpush1.msra.mxu0 0.0
    %1763 = vmatprep.subr.mxu0 0.0
    %1764 = vmatpush1.msra.mxu0 0.0
    %1765 = vmatprep.subr.mxu0 0.0
    %1766 = vmatpush1.msra.mxu0 0.0
    %1767 = vmatprep.subr.mxu0 0.0
    %1768 = vmatpush1.msra.mxu0 0.0
    %1769 = vmatprep.subr.mxu0 0.0
    %1770 = vmatpush1.msra.mxu0 0.0
    %1771 = vmatprep.subr.mxu0 0.0
    %1772 = vmatpush1.msra.mxu0 0.0
    %1773 = vmatprep.subr.mxu0 0.0
    %1774 = vmatpush1.msra.mxu0 0.0
    %1775 = vmatprep.subr.mxu0 0.0
    %1776 = vmatpush1.msra.mxu0 0.0
    %1777 = vmatprep.subr.mxu0 0.0
    %1778 = vmatpush1.msra.mxu0 0.0
    %1779 = vmatprep.subr.mxu0 0.0
    %1780 = vmatpush1.msra.mxu0 0.0
    %1781 = vmatprep.subr.mxu0 0.0
    %1782 = vmatpush1.msra.mxu0 0.0
    %1783 = vmatprep.subr.mxu0 0.0
    %1784 = vmatpush1.msra.mxu0 0.0
    %1785 = vmatprep.subr.mxu0 0.0
    %1786 = vmatpush1.msra.mxu0 0.0
    %1787 = vmatprep.subr.mxu0 0.0
    %1788 = vmatpush1.msra.mxu0 0.0
    %1789 = vmatprep.subr.mxu0 0.0
    %1790 = vmatpush1.msra.mxu0 0.0
    %1791 = vmatprep.subr.mxu0 0.0
    %1792 = vmatpush1.msra.mxu0 0.0
    %1793 = vmatprep.subr.mxu0 0.0
    %1794 = vmatpush1.msra.mxu0 0.0
    %1795 = vmatprep.subr.mxu0 0.0
    %1796 = vmatpush1.msra.mxu0 0.0
    %1797 = vmatprep.subr.mxu0 0.0
    %1798 = vmatpush1.msra.mxu0 0.0
    %1799 = vmatprep.subr.mxu0 0.0
    %1800 = vmatpush1.msra.mxu0 0.0
    %1801 = vmatprep.subr.mxu0 0.0
    %1802 = vmatpush1.msra.mxu0 0.0
    %1803 = vmatprep.subr.mxu0 0.0
    %1804 = vmatpush1.msra.mxu0 0.0
    %1805 = vmatprep.subr.mxu0 0.0
    %1806 = vmatpush1.msra.mxu0 0.0
    %1807 = vmatprep.subr.mxu0 0.0
    %1808 = vmatpush1.msra.mxu0 0.0
    %1809 = vmatprep.mubr.f32.mxu0 0.0
    %1810 = vmatmul.mubr.f32.gmra.mrb[0].mxu0 %v1740
    %v1811 = vpop.f32.mrb[0].mxu0
    %v1812 = vadd.f32 0.0, %v1811
    %v1813 = vpop.f32.mrb[0].mxu0
    %1814 = vmatprep.mubr.f32.mxu0 0.0
    %1815 = vmatmul.mubr.f32.gmra.mrb[0].mxu0 %v1743
    %v1816 = vpop.f32.mrb[0].mxu0
    %v1817 = vadd.f32 0.0, %v1816
    %v1818 = vpop.f32.mrb[0].mxu0
    %1819 = vdwg.mxu0
    %v1820 = vlaneseq
    %v1821 = vshrl.u32 %v1820, 7
    %v1822 = vsub.s32 1, %v1821
    %v1823 = vrot.slane %v1311, %v1822
    %v1824 = vadd.f32 %v1823, %v1812
    %v1825 = vadd.f32 %v1823, %v1817
    %1826 = vrot.lane.b32.xlu0 %v1402, 112
    %v1827 = vpop.permute.xlu0 %1826
    %1828 = vrot.lane.b32.xlu0 %v1394, 80
    %v1829 = vpop.permute.xlu0 %1828
    %v1830 = vsel %vm208, %v1827, 0
    %v1832 = vsel %vm208, %v1829, 0
    %1834 = vmatprep.subr.mxu0 0.0
    %1835 = vmatpush1.xpose.msra.mxu0 %v1832
    %1836 = vmatprep.subr.mxu0 0.0
    %1837 = vmatpush1.xpose.msra.mxu0 0.0
    %1838 = vmatprep.subr.mxu0 0.0
    %1839 = vmatpush1.xpose.msra.mxu0 0.0
    %1840 = vmatprep.subr.mxu0 0.0
    %1841 = vmatpush1.xpose.msra.mxu0 0.0
    %1842 = vmatprep.subr.mxu0 0.0
    %1843 = vmatpush1.xpose.msra.mxu0 0.0
    %1844 = vmatprep.subr.mxu0 0.0
    %1845 = vmatpush1.xpose.msra.mxu0 0.0
    %1846 = vmatprep.subr.mxu0 0.0
    %1847 = vmatpush1.xpose.msra.mxu0 0.0
    %1848 = vmatprep.subr.mxu0 0.0
    %1849 = vmatpush1.xpose.msra.mxu0 0.0
    %1850 = vmatprep.subr.mxu0 0.0
    %1851 = vmatpush1.xpose.msra.mxu0 0.0
    %1852 = vmatprep.subr.mxu0 0.0
    %1853 = vmatpush1.xpose.msra.mxu0 0.0
    %1854 = vmatprep.subr.mxu0 0.0
    %1855 = vmatpush1.xpose.msra.mxu0 0.0
    %1856 = vmatprep.subr.mxu0 0.0
    %1857 = vmatpush1.xpose.msra.mxu0 0.0
    %1858 = vmatprep.subr.mxu0 0.0
    %1859 = vmatpush1.xpose.msra.mxu0 0.0
    %1860 = vmatprep.subr.mxu0 0.0
    %1861 = vmatpush1.xpose.msra.mxu0 0.0
    %1862 = vmatprep.subr.mxu0 0.0
    %1863 = vmatpush1.xpose.msra.mxu0 0.0
    %1864 = vmatprep.subr.mxu0 0.0
    %1865 = vmatpush1.xpose.msra.mxu0 0.0
    %1866 = vmatprep.subr.mxu0 0.0
    %1867 = vmatpush1.xpose.msra.mxu0 0.0
    %1868 = vmatprep.subr.mxu0 0.0
    %1869 = vmatpush1.xpose.msra.mxu0 0.0
    %1870 = vmatprep.subr.mxu0 0.0
    %1871 = vmatpush1.xpose.msra.mxu0 0.0
    %1872 = vmatprep.subr.mxu0 0.0
    %1873 = vmatpush1.xpose.msra.mxu0 0.0
    %1874 = vmatprep.subr.mxu0 0.0
    %1875 = vmatpush1.xpose.msra.mxu0 0.0
    %1876 = vmatprep.subr.mxu0 0.0
    %1877 = vmatpush1.xpose.msra.mxu0 0.0
    %1878 = vmatprep.subr.mxu0 0.0
    %1879 = vmatpush1.xpose.msra.mxu0 0.0
    %1880 = vmatprep.subr.mxu0 0.0
    %1881 = vmatpush1.xpose.msra.mxu0 0.0
    %1882 = vmatprep.subr.mxu0 0.0
    %1883 = vmatpush1.xpose.msra.mxu0 0.0
    %1884 = vmatprep.subr.mxu0 0.0
    %1885 = vmatpush1.xpose.msra.mxu0 0.0
    %1886 = vmatprep.subr.mxu0 0.0
    %1887 = vmatpush1.xpose.msra.mxu0 0.0
    %1888 = vmatprep.subr.mxu0 0.0
    %1889 = vmatpush1.xpose.msra.mxu0 0.0
    %1890 = vmatprep.subr.mxu0 0.0
    %1891 = vmatpush1.xpose.msra.mxu0 0.0
    %1892 = vmatprep.subr.mxu0 0.0
    %1893 = vmatpush1.xpose.msra.mxu0 0.0
    %1894 = vmatprep.subr.mxu0 0.0
    %1895 = vmatpush1.xpose.msra.mxu0 0.0
    %1896 = vmatprep.subr.mxu0 0.0
    %1897 = vmatpush1.xpose.msra.mxu0 0.0
    %1898 = vmatprep.mubr.f32.mxu0 0.0
    %1899 = vmatmul.mubr.f32.gmra.mrb[0].mxu0 %v1830
    %v1900 = vpop.f32.mrb[0].mxu0
    %v1901 = vadd.f32 %v198, %v1900
    %v1902 = vpop.f32.mrb[0].mxu0
    %1903 = vdwg.mxu0
    %1904 = vrot.lane.b32.xlu0 %v1403, 112
    %v1905 = vpop.permute.xlu0 %1904
    %1906 = vrot.lane.b32.xlu0 %v1399, 80
    %v1907 = vpop.permute.xlu0 %1906
    %v1908 = vsel %vm208, %v1905, 0
    %v1910 = vsel %vm208, %v1907, 0
    %1912 = vmatprep.subr.mxu0 0.0
    %1913 = vmatpush1.xpose.msra.mxu0 %v1910
    %1914 = vmatprep.subr.mxu0 0.0
    %1915 = vmatpush1.xpose.msra.mxu0 0.0
    %1916 = vmatprep.subr.mxu0 0.0
    %1917 = vmatpush1.xpose.msra.mxu0 0.0
    %1918 = vmatprep.subr.mxu0 0.0
    %1919 = vmatpush1.xpose.msra.mxu0 0.0
    %1920 = vmatprep.subr.mxu0 0.0
    %1921 = vmatpush1.xpose.msra.mxu0 0.0
    %1922 = vmatprep.subr.mxu0 0.0
    %1923 = vmatpush1.xpose.msra.mxu0 0.0
    %1924 = vmatprep.subr.mxu0 0.0
    %1925 = vmatpush1.xpose.msra.mxu0 0.0
    %1926 = vmatprep.subr.mxu0 0.0
    %1927 = vmatpush1.xpose.msra.mxu0 0.0
    %1928 = vmatprep.subr.mxu0 0.0
    %1929 = vmatpush1.xpose.msra.mxu0 0.0
    %1930 = vmatprep.subr.mxu0 0.0
    %1931 = vmatpush1.xpose.msra.mxu0 0.0
    %1932 = vmatprep.subr.mxu0 0.0
    %1933 = vmatpush1.xpose.msra.mxu0 0.0
    %1934 = vmatprep.subr.mxu0 0.0
    %1935 = vmatpush1.xpose.msra.mxu0 0.0
    %1936 = vmatprep.subr.mxu0 0.0
    %1937 = vmatpush1.xpose.msra.mxu0 0.0
    %1938 = vmatprep.subr.mxu0 0.0
    %1939 = vmatpush1.xpose.msra.mxu0 0.0
    %1940 = vmatprep.subr.mxu0 0.0
    %1941 = vmatpush1.xpose.msra.mxu0 0.0
    %1942 = vmatprep.subr.mxu0 0.0
    %1943 = vmatpush1.xpose.msra.mxu0 0.0
    %1944 = vmatprep.subr.mxu0 0.0
    %1945 = vmatpush1.xpose.msra.mxu0 0.0
    %1946 = vmatprep.subr.mxu0 0.0
    %1947 = vmatpush1.xpose.msra.mxu0 0.0
    %1948 = vmatprep.subr.mxu0 0.0
    %1949 = vmatpush1.xpose.msra.mxu0 0.0
    %1950 = vmatprep.subr.mxu0 0.0
    %1951 = vmatpush1.xpose.msra.mxu0 0.0
    %1952 = vmatprep.subr.mxu0 0.0
    %1953 = vmatpush1.xpose.msra.mxu0 0.0
    %1954 = vmatprep.subr.mxu0 0.0
    %1955 = vmatpush1.xpose.msra.mxu0 0.0
    %1956 = vmatprep.subr.mxu0 0.0
    %1957 = vmatpush1.xpose.msra.mxu0 0.0
    %1958 = vmatprep.subr.mxu0 0.0
    %1959 = vmatpush1.xpose.msra.mxu0 0.0
    %1960 = vmatprep.subr.mxu0 0.0
    %1961 = vmatpush1.xpose.msra.mxu0 0.0
    %1962 = vmatprep.subr.mxu0 0.0
    %1963 = vmatpush1.xpose.msra.mxu0 0.0
    %1964 = vmatprep.subr.mxu0 0.0
    %1965 = vmatpush1.xpose.msra.mxu0 0.0
    %1966 = vmatprep.subr.mxu0 0.0
    %1967 = vmatpush1.xpose.msra.mxu0 0.0
    %1968 = vmatprep.subr.mxu0 0.0
    %1969 = vmatpush1.xpose.msra.mxu0 0.0
    %1970 = vmatprep.subr.mxu0 0.0
    %1971 = vmatpush1.xpose.msra.mxu0 0.0
    %1972 = vmatprep.subr.mxu0 0.0
    %1973 = vmatpush1.xpose.msra.mxu0 0.0
    %1974 = vmatprep.subr.mxu0 0.0
    %1975 = vmatpush1.xpose.msra.mxu0 0.0
    %1976 = vmatprep.mubr.f32.mxu0 0.0
    %1977 = vmatmul.mubr.f32.gmra.mrb[0].mxu0 %v1908
    %v1978 = vpop.f32.mrb[0].mxu0
    %v1979 = vadd.f32 %v202, %v1978
    %v1980 = vpop.f32.mrb[0].mxu0
    %1981 = vdwg.mxu0
    %v1982 = vsel %vm362, %v1901, -inf
    %1983 = vmax.xlane.f32.xlu0 %v1982
    %v1984 = vpop.xlane.xlu0 %1983
    %v1985 = vsel %vm362, %v1979, -inf
    %1986 = vmax.xlane.f32.xlu0 %v1985
    %v1987 = vpop.xlane.xlu0 %1986
    %v1988 = vsub.f32 %v1901, %v1984
    %v1989 = vsub.f32 %v1979, %v1987
    %v1990 = vmul.f32 %v1988, 1.442695
    %v1991 = vpow.pop %v1990
    %v1992 = vmul.f32 %v1989, 1.442695
    %v1993 = vpow.pop %v1992
    %v1994 = vsel %vm362, %v1991, 0.0
    %1995 = vadd.xlane.f32.xlu0 %v1994
    %v1996 = vpop.xlane.xlu0 %1995
    %v1997 = vsel %vm362, %v1993, 0.0
    %1998 = vadd.xlane.f32.xlu0 %v1997
    %v1999 = vpop.xlane.xlu0 %1998
    %v2000 = vrcp.pop %v1996
    %v2001 = vrcp.pop %v1999
    %v2002 = vmul.f32 %v1991, %v2000
    %v2003 = vmul.f32 %v1993, %v2001
    %2004 = vrot.lane.b32.xlu0 %v1394, 48
    %v2005 = vpop.permute.xlu0 %2004
    %v2008 = vsel %vm362, %v2002, 0
    %2010 = vmatprep.subr.mxu0 0.0
    %2011 = vmatpush1.msra.mxu0 %v2005
    %2012 = vmatprep.subr.mxu0 0.0
    %2013 = vmatpush1.msra.mxu0 0.0
    %2014 = vmatprep.subr.mxu0 0.0
    %2015 = vmatpush1.msra.mxu0 0.0
    %2016 = vmatprep.subr.mxu0 0.0
    %2017 = vmatpush1.msra.mxu0 0.0
    %2018 = vmatprep.subr.mxu0 0.0
    %2019 = vmatpush1.msra.mxu0 0.0
    %2020 = vmatprep.subr.mxu0 0.0
    %2021 = vmatpush1.msra.mxu0 0.0
    %2022 = vmatprep.subr.mxu0 0.0
    %2023 = vmatpush1.msra.mxu0 0.0
    %2024 = vmatprep.subr.mxu0 0.0
    %2025 = vmatpush1.msra.mxu0 0.0
    %2026 = vmatprep.subr.mxu0 0.0
    %2027 = vmatpush1.msra.mxu0 0.0
    %2028 = vmatprep.subr.mxu0 0.0
    %2029 = vmatpush1.msra.mxu0 0.0
    %2030 = vmatprep.subr.mxu0 0.0
    %2031 = vmatpush1.msra.mxu0 0.0
    %2032 = vmatprep.subr.mxu0 0.0
    %2033 = vmatpush1.msra.mxu0 0.0
    %2034 = vmatprep.subr.mxu0 0.0
    %2035 = vmatpush1.msra.mxu0 0.0
    %2036 = vmatprep.subr.mxu0 0.0
    %2037 = vmatpush1.msra.mxu0 0.0
    %2038 = vmatprep.subr.mxu0 0.0
    %2039 = vmatpush1.msra.mxu0 0.0
    %2040 = vmatprep.subr.mxu0 0.0
    %2041 = vmatpush1.msra.mxu0 0.0
    %2042 = vmatprep.subr.mxu0 0.0
    %2043 = vmatpush1.msra.mxu0 0.0
    %2044 = vmatprep.subr.mxu0 0.0
    %2045 = vmatpush1.msra.mxu0 0.0
    %2046 = vmatprep.subr.mxu0 0.0
    %2047 = vmatpush1.msra.mxu0 0.0
    %2048 = vmatprep.subr.mxu0 0.0
    %2049 = vmatpush1.msra.mxu0 0.0
    %2050 = vmatprep.subr.mxu0 0.0
    %2051 = vmatpush1.msra.mxu0 0.0
    %2052 = vmatprep.subr.mxu0 0.0
    %2053 = vmatpush1.msra.mxu0 0.0
    %2054 = vmatprep.subr.mxu0 0.0
    %2055 = vmatpush1.msra.mxu0 0.0
    %2056 = vmatprep.subr.mxu0 0.0
    %2057 = vmatpush1.msra.mxu0 0.0
    %2058 = vmatprep.subr.mxu0 0.0
    %2059 = vmatpush1.msra.mxu0 0.0
    %2060 = vmatprep.subr.mxu0 0.0
    %2061 = vmatpush1.msra.mxu0 0.0
    %2062 = vmatprep.subr.mxu0 0.0
    %2063 = vmatpush1.msra.mxu0 0.0
    %2064 = vmatprep.subr.mxu0 0.0
    %2065 = vmatpush1.msra.mxu0 0.0
    %2066 = vmatprep.subr.mxu0 0.0
    %2067 = vmatpush1.msra.mxu0 0.0
    %2068 = vmatprep.subr.mxu0 0.0
    %2069 = vmatpush1.msra.mxu0 0.0
    %2070 = vmatprep.subr.mxu0 0.0
    %2071 = vmatpush1.msra.mxu0 0.0
    %2072 = vmatprep.subr.mxu0 0.0
    %2073 = vmatpush1.msra.mxu0 0.0
    %2074 = vmatprep.mubr.f32.mxu0 0.0
    %2075 = vmatmul.mubr.f32.gmra.mrb[0].mxu0 %v2008
    %v2076 = vpop.f32.mrb[0].mxu0
    %v2077 = vadd.f32 0.0, %v2076
    %v2078 = vpop.f32.mrb[0].mxu0
    %2079 = vdwg.mxu0
    %2080 = vrot.lane.b32.xlu0 %v1399, 48
    %v2081 = vpop.permute.xlu0 %2080
    %v2084 = vsel %vm362, %v2003, 0
    %2086 = vmatprep.subr.mxu0 0.0
    %2087 = vmatpush1.msra.mxu0 %v2081
    %2088 = vmatprep.subr.mxu0 0.0
    %2089 = vmatpush1.msra.mxu0 0.0
    %2090 = vmatprep.subr.mxu0 0.0
    %2091 = vmatpush1.msra.mxu0 0.0
    %2092 = vmatprep.subr.mxu0 0.0
    %2093 = vmatpush1.msra.mxu0 0.0
    %2094 = vmatprep.subr.mxu0 0.0
    %2095 = vmatpush1.msra.mxu0 0.0
    %2096 = vmatprep.subr.mxu0 0.0
    %2097 = vmatpush1.msra.mxu0 0.0
    %2098 = vmatprep.subr.mxu0 0.0
    %2099 = vmatpush1.msra.mxu0 0.0
    %2100 = vmatprep.subr.mxu0 0.0
    %2101 = vmatpush1.msra.mxu0 0.0
    %2102 = vmatprep.subr.mxu0 0.0
    %2103 = vmatpush1.msra.mxu0 0.0
    %2104 = vmatprep.subr.mxu0 0.0
    %2105 = vmatpush1.msra.mxu0 0.0
    %2106 = vmatprep.subr.mxu0 0.0
    %2107 = vmatpush1.msra.mxu0 0.0
    %2108 = vmatprep.subr.mxu0 0.0
    %2109 = vmatpush1.msra.mxu0 0.0
    %2110 = vmatprep.subr.mxu0 0.0
    %2111 = vmatpush1.msra.mxu0 0.0
    %2112 = vmatprep.subr.mxu0 0.0
    %2113 = vmatpush1.msra.mxu0 0.0
    %2114 = vmatprep.subr.mxu0 0.0
    %2115 = vmatpush1.msra.mxu0 0.0
    %2116 = vmatprep.subr.mxu0 0.0
    %2117 = vmatpush1.msra.mxu0 0.0
    %2118 = vmatprep.subr.mxu0 0.0
    %2119 = vmatpush1.msra.mxu0 0.0
    %2120 = vmatprep.subr.mxu0 0.0
    %2121 = vmatpush1.msra.mxu0 0.0
    %2122 = vmatprep.subr.mxu0 0.0
    %2123 = vmatpush1.msra.mxu0 0.0
    %2124 = vmatprep.subr.mxu0 0.0
    %2125 = vmatpush1.msra.mxu0 0.0
    %2126 = vmatprep.subr.mxu0 0.0
    %2127 = vmatpush1.msra.mxu0 0.0
    %2128 = vmatprep.subr.mxu0 0.0
    %2129 = vmatpush1.msra.mxu0 0.0
    %2130 = vmatprep.subr.mxu0 0.0
    %2131 = vmatpush1.msra.mxu0 0.0
    %2132 = vmatprep.subr.mxu0 0.0
    %2133 = vmatpush1.msra.mxu0 0.0
    %2134 = vmatprep.subr.mxu0 0.0
    %2135 = vmatpush1.msra.mxu0 0.0
    %2136 = vmatprep.subr.mxu0 0.0
    %2137 = vmatpush1.msra.mxu0 0.0
    %2138 = vmatprep.subr.mxu0 0.0
    %2139 = vmatpush1.msra.mxu0 0.0
    %2140 = vmatprep.subr.mxu0 0.0
    %2141 = vmatpush1.msra.mxu0 0.0
    %2142 = vmatprep.subr.mxu0 0.0
    %2143 = vmatpush1.msra.mxu0 0.0
    %2144 = vmatprep.subr.mxu0 0.0
    %2145 = vmatpush1.msra.mxu0 0.0
    %2146 = vmatprep.subr.mxu0 0.0
    %2147 = vmatpush1.msra.mxu0 0.0
    %2148 = vmatprep.subr.mxu0 0.0
    %2149 = vmatpush1.msra.mxu0 0.0
    %2150 = vmatprep.mubr.f32.mxu0 0.0
    %2151 = vmatmul.mubr.f32.gmra.mrb[0].mxu0 %v2084
    %v2152 = vpop.f32.mrb[0].mxu0
    %v2153 = vadd.f32 0.0, %v2152
    %v2154 = vpop.f32.mrb[0].mxu0
    %2155 = vdwg.mxu0
    %v2157 = vsel %vm208, %v2077, 0
    %v2160 = vsel %vm208, %v2153, 0
    %2162 = vmatprep.subr.mxu0 0.0
    %2163 = vmatpush1.msra.mxu0 %v1407
    %2164 = vmatprep.subr.mxu0 0.0
    %2165 = vmatpush1.msra.mxu0 %v1408
    %2166 = vmatprep.subr.mxu0 0.0
    %2167 = vmatpush1.msra.mxu0 0.0
    %2168 = vmatprep.subr.mxu0 0.0
    %2169 = vmatpush1.msra.mxu0 0.0
    %2170 = vmatprep.subr.mxu0 0.0
    %2171 = vmatpush1.msra.mxu0 0.0
    %2172 = vmatprep.subr.mxu0 0.0
    %2173 = vmatpush1.msra.mxu0 0.0
    %2174 = vmatprep.subr.mxu0 0.0
    %2175 = vmatpush1.msra.mxu0 0.0
    %2176 = vmatprep.subr.mxu0 0.0
    %2177 = vmatpush1.msra.mxu0 0.0
    %2178 = vmatprep.subr.mxu0 0.0
    %2179 = vmatpush1.msra.mxu0 0.0
    %2180 = vmatprep.subr.mxu0 0.0
    %2181 = vmatpush1.msra.mxu0 0.0
    %2182 = vmatprep.subr.mxu0 0.0
    %2183 = vmatpush1.msra.mxu0 0.0
    %2184 = vmatprep.subr.mxu0 0.0
    %2185 = vmatpush1.msra.mxu0 0.0
    %2186 = vmatprep.subr.mxu0 0.0
    %2187 = vmatpush1.msra.mxu0 0.0
    %2188 = vmatprep.subr.mxu0 0.0
    %2189 = vmatpush1.msra.mxu0 0.0
    %2190 = vmatprep.subr.mxu0 0.0
    %2191 = vmatpush1.msra.mxu0 0.0
    %2192 = vmatprep.subr.mxu0 0.0
    %2193 = vmatpush1.msra.mxu0 0.0
    %2194 = vmatprep.subr.mxu0 0.0
    %2195 = vmatpush1.msra.mxu0 0.0
    %2196 = vmatprep.subr.mxu0 0.0
    %2197 = vmatpush1.msra.mxu0 0.0
    %2198 = vmatprep.subr.mxu0 0.0
    %2199 = vmatpush1.msra.mxu0 0.0
    %2200 = vmatprep.subr.mxu0 0.0
    %2201 = vmatpush1.msra.mxu0 0.0
    %2202 = vmatprep.subr.mxu0 0.0
    %2203 = vmatpush1.msra.mxu0 0.0
    %2204 = vmatprep.subr.mxu0 0.0
    %2205 = vmatpush1.msra.mxu0 0.0
    %2206 = vmatprep.subr.mxu0 0.0
    %2207 = vmatpush1.msra.mxu0 0.0
    %2208 = vmatprep.subr.mxu0 0.0
    %2209 = vmatpush1.msra.mxu0 0.0
    %2210 = vmatprep.subr.mxu0 0.0
    %2211 = vmatpush1.msra.mxu0 0.0
    %2212 = vmatprep.subr.mxu0 0.0
    %2213 = vmatpush1.msra.mxu0 0.0
    %2214 = vmatprep.subr.mxu0 0.0
    %2215 = vmatpush1.msra.mxu0 0.0
    %2216 = vmatprep.subr.mxu0 0.0
    %2217 = vmatpush1.msra.mxu0 0.0
    %2218 = vmatprep.subr.mxu0 0.0
    %2219 = vmatpush1.msra.mxu0 0.0
    %2220 = vmatprep.subr.mxu0 0.0
    %2221 = vmatpush1.msra.mxu0 0.0
    %2222 = vmatprep.subr.mxu0 0.0
    %2223 = vmatpush1.msra.mxu0 0.0
    %2224 = vmatprep.subr.mxu0 0.0
    %2225 = vmatpush1.msra.mxu0 0.0
    %2226 = vmatprep.mubr.f32.mxu0 0.0
    %2227 = vmatmul.mubr.f32.gmra.mrb[0].mxu0 %v2157
    %v2228 = vpop.f32.mrb[0].mxu0
    %v2229 = vadd.f32 0.0, %v2228
    %v2230 = vpop.f32.mrb[0].mxu0
    %2231 = vmatprep.mubr.f32.mxu0 0.0
    %2232 = vmatmul.mubr.f32.gmra.mrb[0].mxu0 %v2160
    %v2233 = vpop.f32.mrb[0].mxu0
    %v2234 = vadd.f32 0.0, %v2233
    %v2235 = vpop.f32.mrb[0].mxu0
    %2236 = vdwg.mxu0
    %v2237 = vadd.f32 %v1824, %v2229
    %v2238 = vadd.f32 %v1825, %v2234
    %v2239 = vadd.f32 %v2237, %v1308
    %v2240 = vadd.f32 %v2238, %v1309
    %v2241 = vsel %vm55, %v2239, 0.0
    %2242 = vadd.xlane.f32.xlu0 %v2241
    %v2243 = vpop.xlane.xlu0 %2242
    %v2244 = vsel %vm55, %v2240, 0.0
    %2245 = vadd.xlane.f32.xlu0 %v2244
    %v2246 = vpop.xlane.xlu0 %2245
    %v2247 = vmul.f32 %v2243, %v62
    %v2248 = vmul.f32 %v2246, %v62
    %v2249 = vsub.f32 %v2239, %v2247
    %v2250 = vsub.f32 %v2240, %v2248
    %v2251 = vmul.f32 %v2249, %v2249
    %v2252 = vmul.f32 %v2250, %v2250
    %v2253 = vsel %vm55, %v2251, 0.0
    %2254 = vadd.xlane.f32.xlu0 %v2253
    %v2255 = vpop.xlane.xlu0 %2254
    %v2256 = vsel %vm55, %v2252, 0.0
    %2257 = vadd.xlane.f32.xlu0 %v2256
    %v2258 = vpop.xlane.xlu0 %2257
    %v2259 = vmul.f32 %v2255, %v62
    %v2260 = vmul.f32 %v2258, %v62
    %v2261 = vadd.f32 %v2259, 1e-12
    %v2262 = vadd.f32 %v2260, 1e-12
    %v2263 = vrsqrt.pop %v2261
    %v2264 = vrsqrt.pop %v2262
    %v2265 = vmul.f32 %v2249, %v2263
    %v2266 = vmul.f32 %v2250, %v2264
    %v2267 = vlaneseq
    %v2268 = vshrl.u32 %v2267, 7
    %v2269 = vsub.s32 2, %v2268
    %v2270 = vrot.slane %v1311, %v2269
    %v2271 = vmul.f32 %v2265, %v2270
    %v2272 = vmul.f32 %v2266, %v2270
    %v2273 = vlaneseq
    %v2274 = vshrl.u32 %v2273, 7
    %v2275 = vsub.s32 3, %v2274
    %v2276 = vrot.slane %v1311, %v2275
    %v2277 = vadd.f32 %v2271, %v2276
    %v2278 = vadd.f32 %v2272, %v2276
    %s2279 = scalar_lea.vmem %s5, 32
    %v2280 = vld [vmem:[%s2279] sm:$0xff]
    %v2281 = vld [vmem:[%s2279 + $0x8] sm:$0xff]
    %v2282 = vld [vmem:[%s2279 + $0x10] sm:$0xff]
    %v2283 = vld [vmem:[%s2279 + $0x18] sm:$0xff]
    %v2284 = vlaneseq
    %v2285 = vshrl.u32 %v2284, 7
    %v2286 = vsub.s32 4, %v2285
    %v2287 = vrot.slane %v1311, %v2286
    %v2289 = vsel %vm55, %v2277, 0
    %v2292 = vsel %vm55, %v2278, 0
    %2294 = vmatprep.subr.mxu0 0.0
    %2295 = vmatpush1.msra.mxu0 %v2280
    %2296 = vmatprep.subr.mxu0 0.0
    %2297 = vmatpush1.msra.mxu0 %v2281
    %2298 = vmatprep.subr.mxu0 0.0
    %2299 = vmatpush1.msra.mxu0 %v2282
    %2300 = vmatprep.subr.mxu0 0.0
    %2301 = vmatpush1.msra.mxu0 %v2283
    %2302 = vmatprep.subr.mxu0 0.0
    %2303 = vmatpush1.msra.mxu0 0.0
    %2304 = vmatprep.subr.mxu0 0.0
    %2305 = vmatpush1.msra.mxu0 0.0
    %2306 = vmatprep.subr.mxu0 0.0
    %2307 = vmatpush1.msra.mxu0 0.0
    %2308 = vmatprep.subr.mxu0 0.0
    %2309 = vmatpush1.msra.mxu0 0.0
    %2310 = vmatprep.subr.mxu0 0.0
    %2311 = vmatpush1.msra.mxu0 0.0
    %2312 = vmatprep.subr.mxu0 0.0
    %2313 = vmatpush1.msra.mxu0 0.0
    %2314 = vmatprep.subr.mxu0 0.0
    %2315 = vmatpush1.msra.mxu0 0.0
    %2316 = vmatprep.subr.mxu0 0.0
    %2317 = vmatpush1.msra.mxu0 0.0
    %2318 = vmatprep.subr.mxu0 0.0
    %2319 = vmatpush1.msra.mxu0 0.0
    %2320 = vmatprep.subr.mxu0 0.0
    %2321 = vmatpush1.msra.mxu0 0.0
    %2322 = vmatprep.subr.mxu0 0.0
    %2323 = vmatpush1.msra.mxu0 0.0
    %2324 = vmatprep.subr.mxu0 0.0
    %2325 = vmatpush1.msra.mxu0 0.0
    %2326 = vmatprep.subr.mxu0 0.0
    %2327 = vmatpush1.msra.mxu0 0.0
    %2328 = vmatprep.subr.mxu0 0.0
    %2329 = vmatpush1.msra.mxu0 0.0
    %2330 = vmatprep.subr.mxu0 0.0
    %2331 = vmatpush1.msra.mxu0 0.0
    %2332 = vmatprep.subr.mxu0 0.0
    %2333 = vmatpush1.msra.mxu0 0.0
    %2334 = vmatprep.subr.mxu0 0.0
    %2335 = vmatpush1.msra.mxu0 0.0
    %2336 = vmatprep.subr.mxu0 0.0
    %2337 = vmatpush1.msra.mxu0 0.0
    %2338 = vmatprep.subr.mxu0 0.0
    %2339 = vmatpush1.msra.mxu0 0.0
    %2340 = vmatprep.subr.mxu0 0.0
    %2341 = vmatpush1.msra.mxu0 0.0
    %2342 = vmatprep.subr.mxu0 0.0
    %2343 = vmatpush1.msra.mxu0 0.0
    %2344 = vmatprep.subr.mxu0 0.0
    %2345 = vmatpush1.msra.mxu0 0.0
    %2346 = vmatprep.subr.mxu0 0.0
    %2347 = vmatpush1.msra.mxu0 0.0
    %2348 = vmatprep.subr.mxu0 0.0
    %2349 = vmatpush1.msra.mxu0 0.0
    %2350 = vmatprep.subr.mxu0 0.0
    %2351 = vmatpush1.msra.mxu0 0.0
    %2352 = vmatprep.subr.mxu0 0.0
    %2353 = vmatpush1.msra.mxu0 0.0
    %2354 = vmatprep.subr.mxu0 0.0
    %2355 = vmatpush1.msra.mxu0 0.0
    %2356 = vmatprep.subr.mxu0 0.0
    %2357 = vmatpush1.msra.mxu0 0.0
    %2358 = vmatprep.mubr.f32.mxu0 0.0
    %2359 = vmatmul.mubr.f32.gmra.mrb[0].mxu0 %v2289
    %v2360 = vpop.f32.mrb[0].mxu0
    %v2361 = vadd.f32 %v2287, %v2360
    %v2362 = vpop.f32.mrb[0].mxu0
    %2363 = vmatprep.mubr.f32.mxu0 0.0
    %2364 = vmatmul.mubr.f32.gmra.mrb[0].mxu0 %v2292
    %v2365 = vpop.f32.mrb[0].mxu0
    %v2366 = vadd.f32 %v2287, %v2365
    %v2367 = vpop.f32.mrb[0].mxu0
    %2368 = vdwg.mxu0
    %v2369 = vmul.f32 %v2361, 0.5
    %v2370 = vmul.f32 %v2366, 0.5
    %v2371 = vmul.f32 %v2361, 0.70710677
    %v2372 = vmul.f32 %v2366, 0.70710677
    %v2373 = verf.f32.pop %v2371
    %v2374 = verf.f32.pop %v2372
    %v2375 = vadd.f32 %v2373, 1.0
    %v2376 = vadd.f32 %v2374, 1.0
    %v2377 = vmul.f32 %v2369, %v2375
    %v2378 = vmul.f32 %v2370, %v2376
    %s2379 = scalar_lea.vmem %s6, 64
    %v2380 = vld [vmem:[%s2379] sm:$0xff]
    %v2381 = vld [vmem:[%s2379 + $0x8] sm:$0xff]
    %v2382 = vld [vmem:[%s2379 + $0x10] sm:$0xff]
    %v2383 = vld [vmem:[%s2379 + $0x18] sm:$0xff]
    %v2384 = vld [vmem:[%s2379 + $0x20] sm:$0xff]
    %v2385 = vld [vmem:[%s2379 + $0x28] sm:$0xff]
    %v2386 = vld [vmem:[%s2379 + $0x30] sm:$0xff]
    %v2387 = vld [vmem:[%s2379 + $0x38] sm:$0xff]
    %v2388 = vlaneseq
    %v2389 = vshrl.u32 %v2388, 7
    %v2390 = vsub.s32 5, %v2389
    %v2391 = vrot.slane %v1311, %v2390
    %v2393 = vsel %vm1188, %v2377, 0
    %v2396 = vsel %vm1188, %v2378, 0
    %2398 = vmatprep.subr.mxu0 0.0
    %2399 = vmatpush1.msra.mxu0 %v2380
    %2400 = vmatprep.subr.mxu0 0.0
    %2401 = vmatpush1.msra.mxu0 %v2381
    %2402 = vmatprep.subr.mxu0 0.0
    %2403 = vmatpush1.msra.mxu0 %v2382
    %2404 = vmatprep.subr.mxu0 0.0
    %2405 = vmatpush1.msra.mxu0 %v2383
    %2406 = vmatprep.subr.mxu0 0.0
    %2407 = vmatpush1.msra.mxu0 %v2384
    %2408 = vmatprep.subr.mxu0 0.0
    %2409 = vmatpush1.msra.mxu0 %v2385
    %2410 = vmatprep.subr.mxu0 0.0
    %2411 = vmatpush1.msra.mxu0 %v2386
    %2412 = vmatprep.subr.mxu0 0.0
    %2413 = vmatpush1.msra.mxu0 %v2387
    %2414 = vmatprep.subr.mxu0 0.0
    %2415 = vmatpush1.msra.mxu0 0.0
    %2416 = vmatprep.subr.mxu0 0.0
    %2417 = vmatpush1.msra.mxu0 0.0
    %2418 = vmatprep.subr.mxu0 0.0
    %2419 = vmatpush1.msra.mxu0 0.0
    %2420 = vmatprep.subr.mxu0 0.0
    %2421 = vmatpush1.msra.mxu0 0.0
    %2422 = vmatprep.subr.mxu0 0.0
    %2423 = vmatpush1.msra.mxu0 0.0
    %2424 = vmatprep.subr.mxu0 0.0
    %2425 = vmatpush1.msra.mxu0 0.0
    %2426 = vmatprep.subr.mxu0 0.0
    %2427 = vmatpush1.msra.mxu0 0.0
    %2428 = vmatprep.subr.mxu0 0.0
    %2429 = vmatpush1.msra.mxu0 0.0
    %2430 = vmatprep.subr.mxu0 0.0
    %2431 = vmatpush1.msra.mxu0 0.0
    %2432 = vmatprep.subr.mxu0 0.0
    %2433 = vmatpush1.msra.mxu0 0.0
    %2434 = vmatprep.subr.mxu0 0.0
    %2435 = vmatpush1.msra.mxu0 0.0
    %2436 = vmatprep.subr.mxu0 0.0
    %2437 = vmatpush1.msra.mxu0 0.0
    %2438 = vmatprep.subr.mxu0 0.0
    %2439 = vmatpush1.msra.mxu0 0.0
    %2440 = vmatprep.subr.mxu0 0.0
    %2441 = vmatpush1.msra.mxu0 0.0
    %2442 = vmatprep.subr.mxu0 0.0
    %2443 = vmatpush1.msra.mxu0 0.0
    %2444 = vmatprep.subr.mxu0 0.0
    %2445 = vmatpush1.msra.mxu0 0.0
    %2446 = vmatprep.subr.mxu0 0.0
    %2447 = vmatpush1.msra.mxu0 0.0
    %2448 = vmatprep.subr.mxu0 0.0
    %2449 = vmatpush1.msra.mxu0 0.0
    %2450 = vmatprep.subr.mxu0 0.0
    %2451 = vmatpush1.msra.mxu0 0.0
    %2452 = vmatprep.subr.mxu0 0.0
    %2453 = vmatpush1.msra.mxu0 0.0
    %2454 = vmatprep.subr.mxu0 0.0
    %2455 = vmatpush1.msra.mxu0 0.0
    %2456 = vmatprep.subr.mxu0 0.0
    %2457 = vmatpush1.msra.mxu0 0.0
    %2458 = vmatprep.subr.mxu0 0.0
    %2459 = vmatpush1.msra.mxu0 0.0
    %2460 = vmatprep.subr.mxu0 0.0
    %2461 = vmatpush1.msra.mxu0 0.0
    %2462 = vmatprep.mubr.f32.mxu0 0.0
    %2463 = vmatmul.mubr.f32.gmra.mrb[0].mxu0 %v2393
    %v2464 = vpop.f32.mrb[0].mxu0
    %v2465 = vadd.f32 %v2391, %v2464
    %v2466 = vpop.f32.mrb[0].mxu0
    %2467 = vmatprep.mubr.f32.mxu0 0.0
    %2468 = vmatmul.mubr.f32.gmra.mrb[0].mxu0 %v2396
    %v2469 = vpop.f32.mrb[0].mxu0
    %v2470 = vadd.f32 %v2391, %v2469
    %v2471 = vpop.f32.mrb[0].mxu0
    %2472 = vdwg.mxu0
    %v2473 = vadd.f32 %v2465, %v2277
    %v2474 = vadd.f32 %v2470, %v2278
    %v2475 = vsel %vm55, %v2473, 0.0
    %2476 = vadd.xlane.f32.xlu0 %v2475
    %v2477 = vpop.xlane.xlu0 %2476
    %v2478 = vsel %vm55, %v2474, 0.0
    %2479 = vadd.xlane.f32.xlu0 %v2478
    %v2480 = vpop.xlane.xlu0 %2479
    %v2481 = vmul.f32 %v2477, %v62
    %v2482 = vmul.f32 %v2480, %v62
    %v2483 = vsub.f32 %v2473, %v2481
    %v2484 = vsub.f32 %v2474, %v2482
    %v2485 = vmul.f32 %v2483, %v2483
    %v2486 = vmul.f32 %v2484, %v2484
    %v2487 = vsel %vm55, %v2485, 0.0
    %2488 = vadd.xlane.f32.xlu0 %v2487
    %v2489 = vpop.xlane.xlu0 %2488
    %v2490 = vsel %vm55, %v2486, 0.0
    %2491 = vadd.xlane.f32.xlu0 %v2490
    %v2492 = vpop.xlane.xlu0 %2491
    %v2493 = vmul.f32 %v2489, %v62
    %v2494 = vmul.f32 %v2492, %v62
    %v2495 = vadd.f32 %v2493, 1e-12
    %v2496 = vadd.f32 %v2494, 1e-12
    %v2497 = vrsqrt.pop %v2495
    %v2498 = vrsqrt.pop %v2496
    %v2499 = vmul.f32 %v2483, %v2497
    %v2500 = vmul.f32 %v2484, %v2498
    %v2501 = vlaneseq
    %v2502 = vshrl.u32 %v2501, 7
    %v2503 = vsub.s32 6, %v2502
    %v2504 = vrot.slane %v1311, %v2503
    %v2505 = vmul.f32 %v2499, %v2504
    %v2506 = vmul.f32 %v2500, %v2504
    %v2507 = vlaneseq
    %v2508 = vshrl.u32 %v2507, 7
    %v2509 = vsub.s32 7, %v2508
    %v2510 = vrot.slane %v1311, %v2509
    %v2511 = vadd.f32 %v2505, %v2510
    %v2512 = vadd.f32 %v2506, %v2510
    %v2513 = vld [vmem:[%s8] sm:$0xff]
    %v2514 = vld [vmem:[%s8 + $0x8] sm:$0xff]
    %v2515 = vld [vmem:[%s8 + $0x10] sm:$0xff]
    %v2516 = vld [vmem:[%s8 + $0x18] sm:$0xff]
    %v2517 = vld [vmem:[%s9] sm:$0x1]
    %v2519 = vlaneseq
    %v2520 = vshrl.u32 %v2519, 7
    %v2521 = vsub.s32 0, %v2520
    %v2522 = vrot.slane %v2517, %v2521
    %v2526 = vrot.slane %v2512, 7
    %vm2527 = vcmask 1041409
    %v2528 = vsel %vm2527, %v2526, %v2511
    %v2529 = vsel %vm55, %v2528, 0
    %2531 = vmatprep.subr.mxu0 0.0
    %2532 = vmatpush1.msra.mxu0 %v2513
    %2533 = vmatprep.subr.mxu0 0.0
    %2534 = vmatpush1.msra.mxu0 %v2514
    %2535 = vmatprep.subr.mxu0 0.0
    %2536 = vmatpush1.msra.mxu0 %v2515
    %2537 = vmatprep.subr.mxu0 0.0
    %2538 = vmatpush1.msra.mxu0 %v2516
    %2539 = vmatprep.subr.mxu0 0.0
    %2540 = vmatpush1.msra.mxu0 0.0
    %2541 = vmatprep.subr.mxu0 0.0
    %2542 = vmatpush1.msra.mxu0 0.0
    %2543 = vmatprep.subr.mxu0 0.0
    %2544 = vmatpush1.msra.mxu0 0.0
    %2545 = vmatprep.subr.mxu0 0.0
    %2546 = vmatpush1.msra.mxu0 0.0
    %2547 = vmatprep.subr.mxu0 0.0
    %2548 = vmatpush1.msra.mxu0 0.0
    %2549 = vmatprep.subr.mxu0 0.0
    %2550 = vmatpush1.msra.mxu0 0.0
    %2551 = vmatprep.subr.mxu0 0.0
    %2552 = vmatpush1.msra.mxu0 0.0
    %2553 = vmatprep.subr.mxu0 0.0
    %2554 = vmatpush1.msra.mxu0 0.0
    %2555 = vmatprep.subr.mxu0 0.0
    %2556 = vmatpush1.msra.mxu0 0.0
    %2557 = vmatprep.subr.mxu0 0.0
    %2558 = vmatpush1.msra.mxu0 0.0
    %2559 = vmatprep.subr.mxu0 0.0
    %2560 = vmatpush1.msra.mxu0 0.0
    %2561 = vmatprep.subr.mxu0 0.0
    %2562 = vmatpush1.msra.mxu0 0.0
    %2563 = vmatprep.subr.mxu0 0.0
    %2564 = vmatpush1.msra.mxu0 0.0
    %2565 = vmatprep.subr.mxu0 0.0
    %2566 = vmatpush1.msra.mxu0 0.0
    %2567 = vmatprep.subr.mxu0 0.0
    %2568 = vmatpush1.msra.mxu0 0.0
    %2569 = vmatprep.subr.mxu0 0.0
    %2570 = vmatpush1.msra.mxu0 0.0
    %2571 = vmatprep.subr.mxu0 0.0
    %2572 = vmatpush1.msra.mxu0 0.0
    %2573 = vmatprep.subr.mxu0 0.0
    %2574 = vmatpush1.msra.mxu0 0.0
    %2575 = vmatprep.subr.mxu0 0.0
    %2576 = vmatpush1.msra.mxu0 0.0
    %2577 = vmatprep.subr.mxu0 0.0
    %2578 = vmatpush1.msra.mxu0 0.0
    %2579 = vmatprep.subr.mxu0 0.0
    %2580 = vmatpush1.msra.mxu0 0.0
    %2581 = vmatprep.subr.mxu0 0.0
    %2582 = vmatpush1.msra.mxu0 0.0
    %2583 = vmatprep.subr.mxu0 0.0
    %2584 = vmatpush1.msra.mxu0 0.0
    %2585 = vmatprep.subr.mxu0 0.0
    %2586 = vmatpush1.msra.mxu0 0.0
    %2587 = vmatprep.subr.mxu0 0.0
    %2588 = vmatpush1.msra.mxu0 0.0
    %2589 = vmatprep.subr.mxu0 0.0
    %2590 = vmatpush1.msra.mxu0 0.0
    %2591 = vmatprep.subr.mxu0 0.0
    %2592 = vmatpush1.msra.mxu0 0.0
    %2593 = vmatprep.subr.mxu0 0.0
    %2594 = vmatpush1.msra.mxu0 0.0
    %2595 = vmatprep.mubr.f32.mxu0 0.0
    %2596 = vmatmul.mubr.f32.gmra.mrb[0].mxu0 %v2529
    %v2597 = vpop.f32.mrb[0].mxu0
    %v2598 = vadd.f32 %v2522, %v2597
    %v2599 = vpop.f32.mrb[0].mxu0
    %2600 = vdwg.mxu0
    %v2601 = vtanh.pop %v2598
    %v2603 = vsel %vm55, %v2601, 0
    %2605 = vmatprep.subr.mxu0 0.0
    %2606 = vmatpush1.msra.mxu0 %v42
    %2607 = vmatprep.subr.mxu0 0.0
    %2608 = vmatpush1.msra.mxu0 %v43
    %2609 = vmatprep.subr.mxu0 0.0
    %2610 = vmatpush1.msra.mxu0 %v44
    %2611 = vmatprep.subr.mxu0 0.0
    %2612 = vmatpush1.msra.mxu0 %v45
    %2613 = vmatprep.subr.mxu0 0.0
    %2614 = vmatpush1.msra.mxu0 0.0
    %2615 = vmatprep.subr.mxu0 0.0
    %2616 = vmatpush1.msra.mxu0 0.0
    %2617 = vmatprep.subr.mxu0 0.0
    %2618 = vmatpush1.msra.mxu0 0.0
    %2619 = vmatprep.subr.mxu0 0.0
    %2620 = vmatpush1.msra.mxu0 0.0
    %2621 = vmatprep.subr.mxu0 0.0
    %2622 = vmatpush1.msra.mxu0 0.0
    %2623 = vmatprep.subr.mxu0 0.0
    %2624 = vmatpush1.msra.mxu0 0.0
    %2625 = vmatprep.subr.mxu0 0.0
    %2626 = vmatpush1.msra.mxu0 0.0
    %2627 = vmatprep.subr.mxu0 0.0
    %2628 = vmatpush1.msra.mxu0 0.0
    %2629 = vmatprep.subr.mxu0 0.0
    %2630 = vmatpush1.msra.mxu0 0.0
    %2631 = vmatprep.subr.mxu0 0.0
    %2632 = vmatpush1.msra.mxu0 0.0
    %2633 = vmatprep.subr.mxu0 0.0
    %2634 = vmatpush1.msra.mxu0 0.0
    %2635 = vmatprep.subr.mxu0 0.0
    %2636 = vmatpush1.msra.mxu0 0.0
    %2637 = vmatprep.subr.mxu0 0.0
    %2638 = vmatpush1.msra.mxu0 0.0
    %2639 = vmatprep.subr.mxu0 0.0
    %2640 = vmatpush1.msra.mxu0 0.0
    %2641 = vmatprep.subr.mxu0 0.0
    %2642 = vmatpush1.msra.mxu0 0.0
    %2643 = vmatprep.subr.mxu0 0.0
    %2644 = vmatpush1.msra.mxu0 0.0
    %2645 = vmatprep.subr.mxu0 0.0
    %2646 = vmatpush1.msra.mxu0 0.0
    %2647 = vmatprep.subr.mxu0 0.0
    %2648 = vmatpush1.msra.mxu0 0.0
    %2649 = vmatprep.subr.mxu0 0.0
    %2650 = vmatpush1.msra.mxu0 0.0
    %2651 = vmatprep.subr.mxu0 0.0
    %2652 = vmatpush1.msra.mxu0 0.0
    %2653 = vmatprep.subr.mxu0 0.0
    %2654 = vmatpush1.msra.mxu0 0.0
    %2655 = vmatprep.subr.mxu0 0.0
    %2656 = vmatpush1.msra.mxu0 0.0
    %2657 = vmatprep.subr.mxu0 0.0
    %2658 = vmatpush1.msra.mxu0 0.0
    %2659 = vmatprep.subr.mxu0 0.0
    %2660 = vmatpush1.msra.mxu0 0.0
    %2661 = vmatprep.subr.mxu0 0.0
    %2662 = vmatpush1.msra.mxu0 0.0
    %2663 = vmatprep.subr.mxu0 0.0
    %2664 = vmatpush1.msra.mxu0 0.0
    %2665 = vmatprep.subr.mxu0 0.0
    %2666 = vmatpush1.msra.mxu0 0.0
    %2667 = vmatprep.subr.mxu0 0.0
    %2668 = vmatpush1.msra.mxu0 0.0
    %2669 = vmatprep.mubr.f32.mxu0 0.0
    %2670 = vmatmul.mubr.f32.gmra.mrb[0].mxu0 %v2603
    %v2671 = vpop.f32.mrb[0].mxu0
    %v2672 = vadd.f32 0.0, %v2671
    %v2673 = vpop.f32.mrb[0].mxu0
    %2674 = vdwg.mxu0
    %v2676 = vlaneseq
    %v2677 = vshrl.u32 %v2676, 7
    %v2678 = vsub.s32 0, %v2677
    %v2679 = vrot.slane %v50, %v2678
    %v2681 = vadd.f32 %v2679, %v2672
    %s2682 = scalar_lea.vmem %s0, 16
    %v2683 = vld [vmem:[%s2682] sm:$0xff]
    %v2684 = vld [vmem:[%s2682 + $0x8] sm:$0xff]
    %s2685 = scalar_lea.vmem %s2, 2
    %v2686 = vld [vmem:[%s2685] sm:$0x1]
    %v2687 = vld [vmem:[%s2685 + $0x1] sm:$0x1]
    %v2688 = vsel %vm55, %v2683, 0.0
    %2689 = vadd.xlane.f32.xlu0 %v2688
    %v2690 = vpop.xlane.xlu0 %2689
    %v2691 = vsel %vm55, %v2684, 0.0
    %2692 = vadd.xlane.f32.xlu0 %v2691
    %v2693 = vpop.xlane.xlu0 %2692
    %v2694 = vmul.f32 %v2690, %v62
    %v2695 = vmul.f32 %v2693, %v62
    %v2696 = vsub.f32 %v2683, %v2694
    %v2697 = vsub.f32 %v2684, %v2695
    %v2698 = vmul.f32 %v2696, %v2696
    %v2699 = vmul.f32 %v2697, %v2697
    %v2700 = vsel %vm55, %v2698, 0.0
    %2701 = vadd.xlane.f32.xlu0 %v2700
    %v2702 = vpop.xlane.xlu0 %2701
    %v2703 = vsel %vm55, %v2699, 0.0
    %2704 = vadd.xlane.f32.xlu0 %v2703
    %v2705 = vpop.xlane.xlu0 %2704
    %v2706 = vmul.f32 %v2702, %v62
    %v2707 = vmul.f32 %v2705, %v62
    %v2708 = vadd.f32 %v2706, 1e-12
    %v2709 = vadd.f32 %v2707, 1e-12
    %v2710 = vrsqrt.pop %v2708
    %v2711 = vrsqrt.pop %v2709
    %v2712 = vmul.f32 %v2696, %v2710
    %v2713 = vmul.f32 %v2697, %v2711
    %v2714 = vlaneseq
    %v2715 = vshrl.u32 %v2714, 7
    %v2716 = vsub.s32 0, %v2715
    %v2717 = vrot.slane %v2686, %v2716
    %v2718 = vmul.f32 %v2712, %v2717
    %v2719 = vmul.f32 %v2713, %v2717
    %v2720 = vlaneseq
    %v2721 = vshrl.u32 %v2720, 7
    %v2722 = vsub.s32 0, %v2721
    %v2723 = vrot.slane %v2687, %v2722
    %v2724 = vadd.f32 %v2718, %v2723
    %v2725 = vadd.f32 %v2719, %v2723
    %s2726 = scalar_lea.vmem %s1, 2
    %v2727 = vld [vmem:[%s2726] sm:$0x1]
    %v2728 = vld [vmem:[%s2726 + $0x1] sm:$0x1]
    %s2729 = scalar_lea.vmem %s7, 16
    %v2730 = vld [vmem:[%s2729] sm:$0xff]
    %s2731 = scalar_lea.vmem %s3, 64
    %v2732 = vld [vmem:[%s2731] sm:$0xff]
    %v2733 = vld [vmem:[%s2731 + $0x8] sm:$0xff]
    %v2734 = vld [vmem:[%s2731 + $0x10] sm:$0xff]
    %v2735 = vld [vmem:[%s2731 + $0x18] sm:$0xff]
    %v2736 = vlaneseq
    %v2737 = vshrl.u32 %v2736, 7
    %v2738 = vsub.s32 0, %v2737
    %v2739 = vrot.slane %v2730, %v2738
    %v2741 = vsel %vm55, %v2724, 0
    %v2744 = vsel %vm55, %v2725, 0
    %2746 = vmatprep.subr.mxu0 0.0
    %2747 = vmatpush1.msra.mxu0 %v2732
    %2748 = vmatprep.subr.mxu0 0.0
    %2749 = vmatpush1.msra.mxu0 %v2733
    %2750 = vmatprep.subr.mxu0 0.0
    %2751 = vmatpush1.msra.mxu0 %v2734
    %2752 = vmatprep.subr.mxu0 0.0
    %2753 = vmatpush1.msra.mxu0 %v2735
    %2754 = vmatprep.subr.mxu0 0.0
    %2755 = vmatpush1.msra.mxu0 0.0
    %2756 = vmatprep.subr.mxu0 0.0
    %2757 = vmatpush1.msra.mxu0 0.0
    %2758 = vmatprep.subr.mxu0 0.0
    %2759 = vmatpush1.msra.mxu0 0.0
    %2760 = vmatprep.subr.mxu0 0.0
    %2761 = vmatpush1.msra.mxu0 0.0
    %2762 = vmatprep.subr.mxu0 0.0
    %2763 = vmatpush1.msra.mxu0 0.0
    %2764 = vmatprep.subr.mxu0 0.0
    %2765 = vmatpush1.msra.mxu0 0.0
    %2766 = vmatprep.subr.mxu0 0.0
    %2767 = vmatpush1.msra.mxu0 0.0
    %2768 = vmatprep.subr.mxu0 0.0
    %2769 = vmatpush1.msra.mxu0 0.0
    %2770 = vmatprep.subr.mxu0 0.0
    %2771 = vmatpush1.msra.mxu0 0.0
    %2772 = vmatprep.subr.mxu0 0.0
    %2773 = vmatpush1.msra.mxu0 0.0
    %2774 = vmatprep.subr.mxu0 0.0
    %2775 = vmatpush1.msra.mxu0 0.0
    %2776 = vmatprep.subr.mxu0 0.0
    %2777 = vmatpush1.msra.mxu0 0.0
    %2778 = vmatprep.subr.mxu0 0.0
    %2779 = vmatpush1.msra.mxu0 0.0
    %2780 = vmatprep.subr.mxu0 0.0
    %2781 = vmatpush1.msra.mxu0 0.0
    %2782 = vmatprep.subr.mxu0 0.0
    %2783 = vmatpush1.msra.mxu0 0.0
    %2784 = vmatprep.subr.mxu0 0.0
    %2785 = vmatpush1.msra.mxu0 0.0
    %2786 = vmatprep.subr.mxu0 0.0
    %2787 = vmatpush1.msra.mxu0 0.0
    %2788 = vmatprep.subr.mxu0 0.0
    %2789 = vmatpush1.msra.mxu0 0.0
    %2790 = vmatprep.subr.mxu0 0.0
    %2791 = vmatpush1.msra.mxu0 0.0
    %2792 = vmatprep.subr.mxu0 0.0
    %2793 = vmatpush1.msra.mxu0 0.0
    %2794 = vmatprep.subr.mxu0 0.0
    %2795 = vmatpush1.msra.mxu0 0.0
    %2796 = vmatprep.subr.mxu0 0.0
    %2797 = vmatpush1.msra.mxu0 0.0
    %2798 = vmatprep.subr.mxu0 0.0
    %2799 = vmatpush1.msra.mxu0 0.0
    %2800 = vmatprep.subr.mxu0 0.0
    %2801 = vmatpush1.msra.mxu0 0.0
    %2802 = vmatprep.subr.mxu0 0.0
    %2803 = vmatpush1.msra.mxu0 0.0
    %2804 = vmatprep.subr.mxu0 0.0
    %2805 = vmatpush1.msra.mxu0 0.0
    %2806 = vmatprep.subr.mxu0 0.0
    %2807 = vmatpush1.msra.mxu0 0.0
    %2808 = vmatprep.subr.mxu0 0.0
    %2809 = vmatpush1.msra.mxu0 0.0
    %2810 = vmatprep.mubr.f32.mxu0 0.0
    %2811 = vmatmul.mubr.f32.gmra.mrb[0].mxu0 %v2741
    %v2812 = vpop.f32.mrb[0].mxu0
    %v2813 = vadd.f32 %v2739, %v2812
    %v2814 = vpop.f32.mrb[0].mxu0
    %2815 = vmatprep.mubr.f32.mxu0 0.0
    %2816 = vmatmul.mubr.f32.gmra.mrb[0].mxu0 %v2744
    %v2817 = vpop.f32.mrb[0].mxu0
    %v2818 = vadd.f32 %v2739, %v2817
    %v2819 = vpop.f32.mrb[0].mxu0
    %2820 = vdwg.mxu0
    %v2821 = vmul.f32 %v2813, 0.25
    %v2822 = vmul.f32 %v2818, 0.25
    %s2823 = scalar_lea.vmem %s4, 64
    %v2824 = vld [vmem:[%s2823] sm:$0xff]
    %v2825 = vld [vmem:[%s2823 + $0x8] sm:$0xff]
    %v2826 = vld [vmem:[%s2823 + $0x10] sm:$0xff]
    %v2827 = vld [vmem:[%s2823 + $0x18] sm:$0xff]
    %v2830 = vlaneseq
    %v2831 = vshrl.u32 %v2830, 7
    %v2832 = vsub.s32 0, %v2831
    %v2833 = vrot.slane %v2727, %v2832
    %v2834 = vlaneseq
    %v2835 = vshrl.u32 %v2834, 7
    %v2836 = vsub.s32 0, %v2835
    %v2837 = vrot.slane %v2728, %v2836
    %2841 = vrot.lane.b32.xlu0 %v2813, 96
    %v2842 = vpop.permute.xlu0 %2841
    %v2844 = vsel %vm208, %v2821, 0
    %v2846 = vsel %vm208, %v2842, 0
    %2848 = vmatprep.subr.mxu0 0.0
    %2849 = vmatpush1.xpose.msra.mxu0 %v2846
    %2850 = vmatprep.subr.mxu0 0.0
    %2851 = vmatpush1.xpose.msra.mxu0 0.0
    %2852 = vmatprep.subr.mxu0 0.0
    %2853 = vmatpush1.xpose.msra.mxu0 0.0
    %2854 = vmatprep.subr.mxu0 0.0
    %2855 = vmatpush1.xpose.msra.mxu0 0.0
    %2856 = vmatprep.subr.mxu0 0.0
    %2857 = vmatpush1.xpose.msra.mxu0 0.0
    %2858 = vmatprep.subr.mxu0 0.0
    %2859 = vmatpush1.xpose.msra.mxu0 0.0
    %2860 = vmatprep.subr.mxu0 0.0
    %2861 = vmatpush1.xpose.msra.mxu0 0.0
    %2862 = vmatprep.subr.mxu0 0.0
    %2863 = vmatpush1.xpose.msra.mxu0 0.0
    %2864 = vmatprep.subr.mxu0 0.0
    %2865 = vmatpush1.xpose.msra.mxu0 0.0
    %2866 = vmatprep.subr.mxu0 0.0
    %2867 = vmatpush1.xpose.msra.mxu0 0.0
    %2868 = vmatprep.subr.mxu0 0.0
    %2869 = vmatpush1.xpose.msra.mxu0 0.0
    %2870 = vmatprep.subr.mxu0 0.0
    %2871 = vmatpush1.xpose.msra.mxu0 0.0
    %2872 = vmatprep.subr.mxu0 0.0
    %2873 = vmatpush1.xpose.msra.mxu0 0.0
    %2874 = vmatprep.subr.mxu0 0.0
    %2875 = vmatpush1.xpose.msra.mxu0 0.0
    %2876 = vmatprep.subr.mxu0 0.0
    %2877 = vmatpush1.xpose.msra.mxu0 0.0
    %2878 = vmatprep.subr.mxu0 0.0
    %2879 = vmatpush1.xpose.msra.mxu0 0.0
    %2880 = vmatprep.subr.mxu0 0.0
    %2881 = vmatpush1.xpose.msra.mxu0 0.0
    %2882 = vmatprep.subr.mxu0 0.0
    %2883 = vmatpush1.xpose.msra.mxu0 0.0
    %2884 = vmatprep.subr.mxu0 0.0
    %2885 = vmatpush1.xpose.msra.mxu0 0.0
    %2886 = vmatprep.subr.mxu0 0.0
    %2887 = vmatpush1.xpose.msra.mxu0 0.0
    %2888 = vmatprep.subr.mxu0 0.0
    %2889 = vmatpush1.xpose.msra.mxu0 0.0
    %2890 = vmatprep.subr.mxu0 0.0
    %2891 = vmatpush1.xpose.msra.mxu0 0.0
    %2892 = vmatprep.subr.mxu0 0.0
    %2893 = vmatpush1.xpose.msra.mxu0 0.0
    %2894 = vmatprep.subr.mxu0 0.0
    %2895 = vmatpush1.xpose.msra.mxu0 0.0
    %2896 = vmatprep.subr.mxu0 0.0
    %2897 = vmatpush1.xpose.msra.mxu0 0.0
    %2898 = vmatprep.subr.mxu0 0.0
    %2899 = vmatpush1.xpose.msra.mxu0 0.0
    %2900 = vmatprep.subr.mxu0 0.0
    %2901 = vmatpush1.xpose.msra.mxu0 0.0
    %2902 = vmatprep.subr.mxu0 0.0
    %2903 = vmatpush1.xpose.msra.mxu0 0.0
    %2904 = vmatprep.subr.mxu0 0.0
    %2905 = vmatpush1.xpose.msra.mxu0 0.0
    %2906 = vmatprep.subr.mxu0 0.0
    %2907 = vmatpush1.xpose.msra.mxu0 0.0
    %2908 = vmatprep.subr.mxu0 0.0
    %2909 = vmatpush1.xpose.msra.mxu0 0.0
    %2910 = vmatprep.subr.mxu0 0.0
    %2911 = vmatpush1.xpose.msra.mxu0 0.0
    %2912 = vmatprep.mubr.f32.mxu0 0.0
    %2913 = vmatmul.mubr.f32.gmra.mrb[0].mxu0 %v2844
    %v2914 = vpop.f32.mrb[0].mxu0
    %v2915 = vadd.f32 %v2833, %v2914
    %v2916 = vpop.f32.mrb[0].mxu0
    %2917 = vdwg.mxu0
    %2919 = vrot.lane.b32.xlu0 %v2818, 96
    %v2920 = vpop.permute.xlu0 %2919
    %v2922 = vsel %vm208, %v2822, 0
    %v2924 = vsel %vm208, %v2920, 0
    %2926 = vmatprep.subr.mxu0 0.0
    %2927 = vmatpush1.xpose.msra.mxu0 %v2924
    %2928 = vmatprep.subr.mxu0 0.0
    %2929 = vmatpush1.xpose.msra.mxu0 0.0
    %2930 = vmatprep.subr.mxu0 0.0
    %2931 = vmatpush1.xpose.msra.mxu0 0.0
    %2932 = vmatprep.subr.mxu0 0.0
    %2933 = vmatpush1.xpose.msra.mxu0 0.0
    %2934 = vmatprep.subr.mxu0 0.0
    %2935 = vmatpush1.xpose.msra.mxu0 0.0
    %2936 = vmatprep.subr.mxu0 0.0
    %2937 = vmatpush1.xpose.msra.mxu0 0.0
    %2938 = vmatprep.subr.mxu0 0.0
    %2939 = vmatpush1.xpose.msra.mxu0 0.0
    %2940 = vmatprep.subr.mxu0 0.0
    %2941 = vmatpush1.xpose.msra.mxu0 0.0
    %2942 = vmatprep.subr.mxu0 0.0
    %2943 = vmatpush1.xpose.msra.mxu0 0.0
    %2944 = vmatprep.subr.mxu0 0.0
    %2945 = vmatpush1.xpose.msra.mxu0 0.0
    %2946 = vmatprep.subr.mxu0 0.0
    %2947 = vmatpush1.xpose.msra.mxu0 0.0
    %2948 = vmatprep.subr.mxu0 0.0
    %2949 = vmatpush1.xpose.msra.mxu0 0.0
    %2950 = vmatprep.subr.mxu0 0.0
    %2951 = vmatpush1.xpose.msra.mxu0 0.0
    %2952 = vmatprep.subr.mxu0 0.0
    %2953 = vmatpush1.xpose.msra.mxu0 0.0
    %2954 = vmatprep.subr.mxu0 0.0
    %2955 = vmatpush1.xpose.msra.mxu0 0.0
    %2956 = vmatprep.subr.mxu0 0.0
    %2957 = vmatpush1.xpose.msra.mxu0 0.0
    %2958 = vmatprep.subr.mxu0 0.0
    %2959 = vmatpush1.xpose.msra.mxu0 0.0
    %2960 = vmatprep.subr.mxu0 0.0
    %2961 = vmatpush1.xpose.msra.mxu0 0.0
    %2962 = vmatprep.subr.mxu0 0.0
    %2963 = vmatpush1.xpose.msra.mxu0 0.0
    %2964 = vmatprep.subr.mxu0 0.0
    %2965 = vmatpush1.xpose.msra.mxu0 0.0
    %2966 = vmatprep.subr.mxu0 0.0
    %2967 = vmatpush1.xpose.msra.mxu0 0.0
    %2968 = vmatprep.subr.mxu0 0.0
    %2969 = vmatpush1.xpose.msra.mxu0 0.0
    %2970 = vmatprep.subr.mxu0 0.0
    %2971 = vmatpush1.xpose.msra.mxu0 0.0
    %2972 = vmatprep.subr.mxu0 0.0
    %2973 = vmatpush1.xpose.msra.mxu0 0.0
    %2974 = vmatprep.subr.mxu0 0.0
    %2975 = vmatpush1.xpose.msra.mxu0 0.0
    %2976 = vmatprep.subr.mxu0 0.0
    %2977 = vmatpush1.xpose.msra.mxu0 0.0
    %2978 = vmatprep.subr.mxu0 0.0
    %2979 = vmatpush1.xpose.msra.mxu0 0.0
    %2980 = vmatprep.subr.mxu0 0.0
    %2981 = vmatpush1.xpose.msra.mxu0 0.0
    %2982 = vmatprep.subr.mxu0 0.0
    %2983 = vmatpush1.xpose.msra.mxu0 0.0
    %2984 = vmatprep.subr.mxu0 0.0
    %2985 = vmatpush1.xpose.msra.mxu0 0.0
    %2986 = vmatprep.subr.mxu0 0.0
    %2987 = vmatpush1.xpose.msra.mxu0 0.0
    %2988 = vmatprep.subr.mxu0 0.0
    %2989 = vmatpush1.xpose.msra.mxu0 0.0
    %2990 = vmatprep.mubr.f32.mxu0 0.0
    %2991 = vmatmul.mubr.f32.gmra.mrb[0].mxu0 %v2922
    %v2992 = vpop.f32.mrb[0].mxu0
    %v2993 = vadd.f32 %v2837, %v2992
    %v2994 = vpop.f32.mrb[0].mxu0
    %2995 = vdwg.mxu0
    %v2996 = vsel %vm362, %v2915, -inf
    %2997 = vmax.xlane.f32.xlu0 %v2996
    %v2998 = vpop.xlane.xlu0 %2997
    %v2999 = vsel %vm362, %v2993, -inf
    %3000 = vmax.xlane.f32.xlu0 %v2999
    %v3001 = vpop.xlane.xlu0 %3000
    %v3002 = vsub.f32 %v2915, %v2998
    %v3003 = vsub.f32 %v2993, %v3001
    %v3004 = vmul.f32 %v3002, 1.442695
    %v3005 = vpow.pop %v3004
    %v3006 = vmul.f32 %v3003, 1.442695
    %v3007 = vpow.pop %v3006
    %v3008 = vsel %vm362, %v3005, 0.0
    %3009 = vadd.xlane.f32.xlu0 %v3008
    %v3010 = vpop.xlane.xlu0 %3009
    %v3011 = vsel %vm362, %v3007, 0.0
    %3012 = vadd.xlane.f32.xlu0 %v3011
    %v3013 = vpop.xlane.xlu0 %3012
    %v3014 = vrcp.pop %v3010
    %v3015 = vrcp.pop %v3013
    %v3016 = vmul.f32 %v3005, %v3014
    %v3017 = vmul.f32 %v3007, %v3015
    %3018 = vrot.lane.b32.xlu0 %v2813, 64
    %v3019 = vpop.permute.xlu0 %3018
    %v3022 = vsel %vm362, %v3016, 0
    %3024 = vmatprep.subr.mxu0 0.0
    %3025 = vmatpush1.msra.mxu0 %v3019
    %3026 = vmatprep.subr.mxu0 0.0
    %3027 = vmatpush1.msra.mxu0 0.0
    %3028 = vmatprep.subr.mxu0 0.0
    %3029 = vmatpush1.msra.mxu0 0.0
    %3030 = vmatprep.subr.mxu0 0.0
    %3031 = vmatpush1.msra.mxu0 0.0
    %3032 = vmatprep.subr.mxu0 0.0
    %3033 = vmatpush1.msra.mxu0 0.0
    %3034 = vmatprep.subr.mxu0 0.0
    %3035 = vmatpush1.msra.mxu0 0.0
    %3036 = vmatprep.subr.mxu0 0.0
    %3037 = vmatpush1.msra.mxu0 0.0
    %3038 = vmatprep.subr.mxu0 0.0
    %3039 = vmatpush1.msra.mxu0 0.0
    %3040 = vmatprep.subr.mxu0 0.0
    %3041 = vmatpush1.msra.mxu0 0.0
    %3042 = vmatprep.subr.mxu0 0.0
    %3043 = vmatpush1.msra.mxu0 0.0
    %3044 = vmatprep.subr.mxu0 0.0
    %3045 = vmatpush1.msra.mxu0 0.0
    %3046 = vmatprep.subr.mxu0 0.0
    %3047 = vmatpush1.msra.mxu0 0.0
    %3048 = vmatprep.subr.mxu0 0.0
    %3049 = vmatpush1.msra.mxu0 0.0
    %3050 = vmatprep.subr.mxu0 0.0
    %3051 = vmatpush1.msra.mxu0 0.0
    %3052 = vmatprep.subr.mxu0 0.0
    %3053 = vmatpush1.msra.mxu0 0.0
    %3054 = vmatprep.subr.mxu0 0.0
    %3055 = vmatpush1.msra.mxu0 0.0
    %3056 = vmatprep.subr.mxu0 0.0
    %3057 = vmatpush1.msra.mxu0 0.0
    %3058 = vmatprep.subr.mxu0 0.0
    %3059 = vmatpush1.msra.mxu0 0.0
    %3060 = vmatprep.subr.mxu0 0.0
    %3061 = vmatpush1.msra.mxu0 0.0
    %3062 = vmatprep.subr.mxu0 0.0
    %3063 = vmatpush1.msra.mxu0 0.0
    %3064 = vmatprep.subr.mxu0 0.0
    %3065 = vmatpush1.msra.mxu0 0.0
    %3066 = vmatprep.subr.mxu0 0.0
    %3067 = vmatpush1.msra.mxu0 0.0
    %3068 = vmatprep.subr.mxu0 0.0
    %3069 = vmatpush1.msra.mxu0 0.0
    %3070 = vmatprep.subr.mxu0 0.0
    %3071 = vmatpush1.msra.mxu0 0.0
    %3072 = vmatprep.subr.mxu0 0.0
    %3073 = vmatpush1.msra.mxu0 0.0
    %3074 = vmatprep.subr.mxu0 0.0
    %3075 = vmatpush1.msra.mxu0 0.0
    %3076 = vmatprep.subr.mxu0 0.0
    %3077 = vmatpush1.msra.mxu0 0.0
    %3078 = vmatprep.subr.mxu0 0.0
    %3079 = vmatpush1.msra.mxu0 0.0
    %3080 = vmatprep.subr.mxu0 0.0
    %3081 = vmatpush1.msra.mxu0 0.0
    %3082 = vmatprep.subr.mxu0 0.0
    %3083 = vmatpush1.msra.mxu0 0.0
    %3084 = vmatprep.subr.mxu0 0.0
    %3085 = vmatpush1.msra.mxu0 0.0
    %3086 = vmatprep.subr.mxu0 0.0
    %3087 = vmatpush1.msra.mxu0 0.0
    %3088 = vmatprep.mubr.f32.mxu0 0.0
    %3089 = vmatmul.mubr.f32.gmra.mrb[0].mxu0 %v3022
    %v3090 = vpop.f32.mrb[0].mxu0
    %v3091 = vadd.f32 0.0, %v3090
    %v3092 = vpop.f32.mrb[0].mxu0
    %3093 = vdwg.mxu0
    %3094 = vrot.lane.b32.xlu0 %v2818, 64
    %v3095 = vpop.permute.xlu0 %3094
    %v3098 = vsel %vm362, %v3017, 0
    %3100 = vmatprep.subr.mxu0 0.0
    %3101 = vmatpush1.msra.mxu0 %v3095
    %3102 = vmatprep.subr.mxu0 0.0
    %3103 = vmatpush1.msra.mxu0 0.0
    %3104 = vmatprep.subr.mxu0 0.0
    %3105 = vmatpush1.msra.mxu0 0.0
    %3106 = vmatprep.subr.mxu0 0.0
    %3107 = vmatpush1.msra.mxu0 0.0
    %3108 = vmatprep.subr.mxu0 0.0
    %3109 = vmatpush1.msra.mxu0 0.0
    %3110 = vmatprep.subr.mxu0 0.0
    %3111 = vmatpush1.msra.mxu0 0.0
    %3112 = vmatprep.subr.mxu0 0.0
    %3113 = vmatpush1.msra.mxu0 0.0
    %3114 = vmatprep.subr.mxu0 0.0
    %3115 = vmatpush1.msra.mxu0 0.0
    %3116 = vmatprep.subr.mxu0 0.0
    %3117 = vmatpush1.msra.mxu0 0.0
    %3118 = vmatprep.subr.mxu0 0.0
    %3119 = vmatpush1.msra.mxu0 0.0
    %3120 = vmatprep.subr.mxu0 0.0
    %3121 = vmatpush1.msra.mxu0 0.0
    %3122 = vmatprep.subr.mxu0 0.0
    %3123 = vmatpush1.msra.mxu0 0.0
    %3124 = vmatprep.subr.mxu0 0.0
    %3125 = vmatpush1.msra.mxu0 0.0
    %3126 = vmatprep.subr.mxu0 0.0
    %3127 = vmatpush1.msra.mxu0 0.0
    %3128 = vmatprep.subr.mxu0 0.0
    %3129 = vmatpush1.msra.mxu0 0.0
    %3130 = vmatprep.subr.mxu0 0.0
    %3131 = vmatpush1.msra.mxu0 0.0
    %3132 = vmatprep.subr.mxu0 0.0
    %3133 = vmatpush1.msra.mxu0 0.0
    %3134 = vmatprep.subr.mxu0 0.0
    %3135 = vmatpush1.msra.mxu0 0.0
    %3136 = vmatprep.subr.mxu0 0.0
    %3137 = vmatpush1.msra.mxu0 0.0
    %3138 = vmatprep.subr.mxu0 0.0
    %3139 = vmatpush1.msra.mxu0 0.0
    %3140 = vmatprep.subr.mxu0 0.0
    %3141 = vmatpush1.msra.mxu0 0.0
    %3142 = vmatprep.subr.mxu0 0.0
    %3143 = vmatpush1.msra.mxu0 0.0
    %3144 = vmatprep.subr.mxu0 0.0
    %3145 = vmatpush1.msra.mxu0 0.0
    %3146 = vmatprep.subr.mxu0 0.0
    %3147 = vmatpush1.msra.mxu0 0.0
    %3148 = vmatprep.subr.mxu0 0.0
    %3149 = vmatpush1.msra.mxu0 0.0
    %3150 = vmatprep.subr.mxu0 0.0
    %3151 = vmatpush1.msra.mxu0 0.0
    %3152 = vmatprep.subr.mxu0 0.0
    %3153 = vmatpush1.msra.mxu0 0.0
    %3154 = vmatprep.subr.mxu0 0.0
    %3155 = vmatpush1.msra.mxu0 0.0
    %3156 = vmatprep.subr.mxu0 0.0
    %3157 = vmatpush1.msra.mxu0 0.0
    %3158 = vmatprep.subr.mxu0 0.0
    %3159 = vmatpush1.msra.mxu0 0.0
    %3160 = vmatprep.subr.mxu0 0.0
    %3161 = vmatpush1.msra.mxu0 0.0
    %3162 = vmatprep.subr.mxu0 0.0
    %3163 = vmatpush1.msra.mxu0 0.0
    %3164 = vmatprep.mubr.f32.mxu0 0.0
    %3165 = vmatmul.mubr.f32.gmra.mrb[0].mxu0 %v3098
    %v3166 = vpop.f32.mrb[0].mxu0
    %v3167 = vadd.f32 0.0, %v3166
    %v3168 = vpop.f32.mrb[0].mxu0
    %3169 = vdwg.mxu0
    %v3171 = vsel %vm208, %v3091, 0
    %v3174 = vsel %vm208, %v3167, 0
    %3176 = vmatprep.subr.mxu0 0.0
    %3177 = vmatpush1.msra.mxu0 %v2824
    %3178 = vmatprep.subr.mxu0 0.0
    %3179 = vmatpush1.msra.mxu0 %v2825
    %3180 = vmatprep.subr.mxu0 0.0
    %3181 = vmatpush1.msra.mxu0 0.0
    %3182 = vmatprep.subr.mxu0 0.0
    %3183 = vmatpush1.msra.mxu0 0.0
    %3184 = vmatprep.subr.mxu0 0.0
    %3185 = vmatpush1.msra.mxu0 0.0
    %3186 = vmatprep.subr.mxu0 0.0
    %3187 = vmatpush1.msra.mxu0 0.0
    %3188 = vmatprep.subr.mxu0 0.0
    %3189 = vmatpush1.msra.mxu0 0.0
    %3190 = vmatprep.subr.mxu0 0.0
    %3191 = vmatpush1.msra.mxu0 0.0
    %3192 = vmatprep.subr.mxu0 0.0
    %3193 = vmatpush1.msra.mxu0 0.0
    %3194 = vmatprep.subr.mxu0 0.0
    %3195 = vmatpush1.msra.mxu0 0.0
    %3196 = vmatprep.subr.mxu0 0.0
    %3197 = vmatpush1.msra.mxu0 0.0
    %3198 = vmatprep.subr.mxu0 0.0
    %3199 = vmatpush1.msra.mxu0 0.0
    %3200 = vmatprep.subr.mxu0 0.0
    %3201 = vmatpush1.msra.mxu0 0.0
    %3202 = vmatprep.subr.mxu0 0.0
    %3203 = vmatpush1.msra.mxu0 0.0
    %3204 = vmatprep.subr.mxu0 0.0
    %3205 = vmatpush1.msra.mxu0 0.0
    %3206 = vmatprep.subr.mxu0 0.0
    %3207 = vmatpush1.msra.mxu0 0.0
    %3208 = vmatprep.subr.mxu0 0.0
    %3209 = vmatpush1.msra.mxu0 0.0
    %3210 = vmatprep.subr.mxu0 0.0
    %3211 = vmatpush1.msra.mxu0 0.0
    %3212 = vmatprep.subr.mxu0 0.0
    %3213 = vmatpush1.msra.mxu0 0.0
    %3214 = vmatprep.subr.mxu0 0.0
    %3215 = vmatpush1.msra.mxu0 0.0
    %3216 = vmatprep.subr.mxu0 0.0
    %3217 = vmatpush1.msra.mxu0 0.0
    %3218 = vmatprep.subr.mxu0 0.0
    %3219 = vmatpush1.msra.mxu0 0.0
    %3220 = vmatprep.subr.mxu0 0.0
    %3221 = vmatpush1.msra.mxu0 0.0
    %3222 = vmatprep.subr.mxu0 0.0
    %3223 = vmatpush1.msra.mxu0 0.0
    %3224 = vmatprep.subr.mxu0 0.0
    %3225 = vmatpush1.msra.mxu0 0.0
    %3226 = vmatprep.subr.mxu0 0.0
    %3227 = vmatpush1.msra.mxu0 0.0
    %3228 = vmatprep.subr.mxu0 0.0
    %3229 = vmatpush1.msra.mxu0 0.0
    %3230 = vmatprep.subr.mxu0 0.0
    %3231 = vmatpush1.msra.mxu0 0.0
    %3232 = vmatprep.subr.mxu0 0.0
    %3233 = vmatpush1.msra.mxu0 0.0
    %3234 = vmatprep.subr.mxu0 0.0
    %3235 = vmatpush1.msra.mxu0 0.0
    %3236 = vmatprep.subr.mxu0 0.0
    %3237 = vmatpush1.msra.mxu0 0.0
    %3238 = vmatprep.subr.mxu0 0.0
    %3239 = vmatpush1.msra.mxu0 0.0
    %3240 = vmatprep.mubr.f32.mxu0 0.0
    %3241 = vmatmul.mubr.f32.gmra.mrb[0].mxu0 %v3171
    %v3242 = vpop.f32.mrb[0].mxu0
    %v3243 = vadd.f32 0.0, %v3242
    %v3244 = vpop.f32.mrb[0].mxu0
    %3245 = vmatprep.mubr.f32.mxu0 0.0
    %3246 = vmatmul.mubr.f32.gmra.mrb[0].mxu0 %v3174
    %v3247 = vpop.f32.mrb[0].mxu0
    %v3248 = vadd.f32 0.0, %v3247
    %v3249 = vpop.f32.mrb[0].mxu0
    %3250 = vdwg.mxu0
    %v3251 = vlaneseq
    %v3252 = vshrl.u32 %v3251, 7
    %v3253 = vsub.s32 1, %v3252
    %v3254 = vrot.slane %v2730, %v3253
    %v3255 = vadd.f32 %v3254, %v3243
    %v3256 = vadd.f32 %v3254, %v3248
    %3257 = vrot.lane.b32.xlu0 %v2821, 112
    %v3258 = vpop.permute.xlu0 %3257
    %3259 = vrot.lane.b32.xlu0 %v2813, 80
    %v3260 = vpop.permute.xlu0 %3259
    %v3261 = vsel %vm208, %v3258, 0
    %v3263 = vsel %vm208, %v3260, 0
    %3265 = vmatprep.subr.mxu0 0.0
    %3266 = vmatpush1.xpose.msra.mxu0 %v3263
    %3267 = vmatprep.subr.mxu0 0.0
    %3268 = vmatpush1.xpose.msra.mxu0 0.0
    %3269 = vmatprep.subr.mxu0 0.0
    %3270 = vmatpush1.xpose.msra.mxu0 0.0
    %3271 = vmatprep.subr.mxu0 0.0
    %3272 = vmatpush1.xpose.msra.mxu0 0.0
    %3273 = vmatprep.subr.mxu0 0.0
    %3274 = vmatpush1.xpose.msra.mxu0 0.0
    %3275 = vmatprep.subr.mxu0 0.0
    %3276 = vmatpush1.xpose.msra.mxu0 0.0
    %3277 = vmatprep.subr.mxu0 0.0
    %3278 = vmatpush1.xpose.msra.mxu0 0.0
    %3279 = vmatprep.subr.mxu0 0.0
    %3280 = vmatpush1.xpose.msra.mxu0 0.0
    %3281 = vmatprep.subr.mxu0 0.0
    %3282 = vmatpush1.xpose.msra.mxu0 0.0
    %3283 = vmatprep.subr.mxu0 0.0
    %3284 = vmatpush1.xpose.msra.mxu0 0.0
    %3285 = vmatprep.subr.mxu0 0.0
    %3286 = vmatpush1.xpose.msra.mxu0 0.0
    %3287 = vmatprep.subr.mxu0 0.0
    %3288 = vmatpush1.xpose.msra.mxu0 0.0
    %3289 = vmatprep.subr.mxu0 0.0
    %3290 = vmatpush1.xpose.msra.mxu0 0.0
    %3291 = vmatprep.subr.mxu0 0.0
    %3292 = vmatpush1.xpose.msra.mxu0 0.0
    %3293 = vmatprep.subr.mxu0 0.0
    %3294 = vmatpush1.xpose.msra.mxu0 0.0
    %3295 = vmatprep.subr.mxu0 0.0
    %3296 = vmatpush1.xpose.msra.mxu0 0.0
    %3297 = vmatprep.subr.mxu0 0.0
    %3298 = vmatpush1.xpose.msra.mxu0 0.0
    %3299 = vmatprep.subr.mxu0 0.0
    %3300 = vmatpush1.xpose.msra.mxu0 0.0
    %3301 = vmatprep.subr.mxu0 0.0
    %3302 = vmatpush1.xpose.msra.mxu0 0.0
    %3303 = vmatprep.subr.mxu0 0.0
    %3304 = vmatpush1.xpose.msra.mxu0 0.0
    %3305 = vmatprep.subr.mxu0 0.0
    %3306 = vmatpush1.xpose.msra.mxu0 0.0
    %3307 = vmatprep.subr.mxu0 0.0
    %3308 = vmatpush1.xpose.msra.mxu0 0.0
    %3309 = vmatprep.subr.mxu0 0.0
    %3310 = vmatpush1.xpose.msra.mxu0 0.0
    %3311 = vmatprep.subr.mxu0 0.0
    %3312 = vmatpush1.xpose.msra.mxu0 0.0
    %3313 = vmatprep.subr.mxu0 0.0
    %3314 = vmatpush1.xpose.msra.mxu0 0.0
    %3315 = vmatprep.subr.mxu0 0.0
    %3316 = vmatpush1.xpose.msra.mxu0 0.0
    %3317 = vmatprep.subr.mxu0 0.0
    %3318 = vmatpush1.xpose.msra.mxu0 0.0
    %3319 = vmatprep.subr.mxu0 0.0
    %3320 = vmatpush1.xpose.msra.mxu0 0.0
    %3321 = vmatprep.subr.mxu0 0.0
    %3322 = vmatpush1.xpose.msra.mxu0 0.0
    %3323 = vmatprep.subr.mxu0 0.0
    %3324 = vmatpush1.xpose.msra.mxu0 0.0
    %3325 = vmatprep.subr.mxu0 0.0
    %3326 = vmatpush1.xpose.msra.mxu0 0.0
    %3327 = vmatprep.subr.mxu0 0.0
    %3328 = vmatpush1.xpose.msra.mxu0 0.0
    %3329 = vmatprep.mubr.f32.mxu0 0.0
    %3330 = vmatmul.mubr.f32.gmra.mrb[0].mxu0 %v3261
    %v3331 = vpop.f32.mrb[0].mxu0
    %v3332 = vadd.f32 %v2833, %v3331
    %v3333 = vpop.f32.mrb[0].mxu0
    %3334 = vdwg.mxu0
    %3335 = vrot.lane.b32.xlu0 %v2822, 112
    %v3336 = vpop.permute.xlu0 %3335
    %3337 = vrot.lane.b32.xlu0 %v2818, 80
    %v3338 = vpop.permute.xlu0 %3337
    %v3339 = vsel %vm208, %v3336, 0
    %v3341 = vsel %vm208, %v3338, 0
    %3343 = vmatprep.subr.mxu0 0.0
    %3344 = vmatpush1.xpose.msra.mxu0 %v3341
    %3345 = vmatprep.subr.mxu0 0.0
    %3346 = vmatpush1.xpose.msra.mxu0 0.0
    %3347 = vmatprep.subr.mxu0 0.0
    %3348 = vmatpush1.xpose.msra.mxu0 0.0
    %3349 = vmatprep.subr.mxu0 0.0
    %3350 = vmatpush1.xpose.msra.mxu0 0.0
    %3351 = vmatprep.subr.mxu0 0.0
    %3352 = vmatpush1.xpose.msra.mxu0 0.0
    %3353 = vmatprep.subr.mxu0 0.0
    %3354 = vmatpush1.xpose.msra.mxu0 0.0
    %3355 = vmatprep.subr.mxu0 0.0
    %3356 = vmatpush1.xpose.msra.mxu0 0.0
    %3357 = vmatprep.subr.mxu0 0.0
    %3358 = vmatpush1.xpose.msra.mxu0 0.0
    %3359 = vmatprep.subr.mxu0 0.0
    %3360 = vmatpush1.xpose.msra.mxu0 0.0
    %3361 = vmatprep.subr.mxu0 0.0
    %3362 = vmatpush1.xpose.msra.mxu0 0.0
    %3363 = vmatprep.subr.mxu0 0.0
    %3364 = vmatpush1.xpose.msra.mxu0 0.0
    %3365 = vmatprep.subr.mxu0 0.0
    %3366 = vmatpush1.xpose.msra.mxu0 0.0
    %3367 = vmatprep.subr.mxu0 0.0
    %3368 = vmatpush1.xpose.msra.mxu0 0.0
    %3369 = vmatprep.subr.mxu0 0.0
    %3370 = vmatpush1.xpose.msra.mxu0 0.0
    %3371 = vmatprep.subr.mxu0 0.0
    %3372 = vmatpush1.xpose.msra.mxu0 0.0
    %3373 = vmatprep.subr.mxu0 0.0
    %3374 = vmatpush1.xpose.msra.mxu0 0.0
    %3375 = vmatprep.subr.mxu0 0.0
    %3376 = vmatpush1.xpose.msra.mxu0 0.0
    %3377 = vmatprep.subr.mxu0 0.0
    %3378 = vmatpush1.xpose.msra.mxu0 0.0
    %3379 = vmatprep.subr.mxu0 0.0
    %3380 = vmatpush1.xpose.msra.mxu0 0.0
    %3381 = vmatprep.subr.mxu0 0.0
    %3382 = vmatpush1.xpose.msra.mxu0 0.0
    %3383 = vmatprep.subr.mxu0 0.0
    %3384 = vmatpush1.xpose.msra.mxu0 0.0
    %3385 = vmatprep.subr.mxu0 0.0
    %3386 = vmatpush1.xpose.msra.mxu0 0.0
    %3387 = vmatprep.subr.mxu0 0.0
    %3388 = vmatpush1.xpose.msra.mxu0 0.0
    %3389 = vmatprep.subr.mxu0 0.0
    %3390 = vmatpush1.xpose.msra.mxu0 0.0
    %3391 = vmatprep.subr.mxu0 0.0
    %3392 = vmatpush1.xpose.msra.mxu0 0.0
    %3393 = vmatprep.subr.mxu0 0.0
    %3394 = vmatpush1.xpose.msra.mxu0 0.0
    %3395 = vmatprep.subr.mxu0 0.0
    %3396 = vmatpush1.xpose.msra.mxu0 0.0
    %3397 = vmatprep.subr.mxu0 0.0
    %3398 = vmatpush1.xpose.msra.mxu0 0.0
    %3399 = vmatprep.subr.mxu0 0.0
    %3400 = vmatpush1.xpose.msra.mxu0 0.0
    %3401 = vmatprep.subr.mxu0 0.0
    %3402 = vmatpush1.xpose.msra.mxu0 0.0
    %3403 = vmatprep.subr.mxu0 0.0
    %3404 = vmatpush1.xpose.msra.mxu0 0.0
    %3405 = vmatprep.subr.mxu0 0.0
    %3406 = vmatpush1.xpose.msra.mxu0 0.0
    %3407 = vmatprep.mubr.f32.mxu0 0.0
    %3408 = vmatmul.mubr.f32.gmra.mrb[0].mxu0 %v3339
    %v3409 = vpop.f32.mrb[0].mxu0
    %v3410 = vadd.f32 %v2837, %v3409
    %v3411 = vpop.f32.mrb[0].mxu0
    %3412 = vdwg.mxu0
    %v3413 = vsel %vm362, %v3332, -inf
    %3414 = vmax.xlane.f32.xlu0 %v3413
    %v3415 = vpop.xlane.xlu0 %3414
    %v3416 = vsel %vm362, %v3410, -inf
    %3417 = vmax.xlane.f32.xlu0 %v3416
    %v3418 = vpop.xlane.xlu0 %3417
    %v3419 = vsub.f32 %v3332, %v3415
    %v3420 = vsub.f32 %v3410, %v3418
    %v3421 = vmul.f32 %v3419, 1.442695
    %v3422 = vpow.pop %v3421
    %v3423 = vmul.f32 %v3420, 1.442695
    %v3424 = vpow.pop %v3423
    %v3425 = vsel %vm362, %v3422, 0.0
    %3426 = vadd.xlane.f32.xlu0 %v3425
    %v3427 = vpop.xlane.xlu0 %3426
    %v3428 = vsel %vm362, %v3424, 0.0
    %3429 = vadd.xlane.f32.xlu0 %v3428
    %v3430 = vpop.xlane.xlu0 %3429
    %v3431 = vrcp.pop %v3427
    %v3432 = vrcp.pop %v3430
    %v3433 = vmul.f32 %v3422, %v3431
    %v3434 = vmul.f32 %v3424, %v3432
    %3435 = vrot.lane.b32.xlu0 %v2813, 48
    %v3436 = vpop.permute.xlu0 %3435
    %v3439 = vsel %vm362, %v3433, 0
    %3441 = vmatprep.subr.mxu0 0.0
    %3442 = vmatpush1.msra.mxu0 %v3436
    %3443 = vmatprep.subr.mxu0 0.0
    %3444 = vmatpush1.msra.mxu0 0.0
    %3445 = vmatprep.subr.mxu0 0.0
    %3446 = vmatpush1.msra.mxu0 0.0
    %3447 = vmatprep.subr.mxu0 0.0
    %3448 = vmatpush1.msra.mxu0 0.0
    %3449 = vmatprep.subr.mxu0 0.0
    %3450 = vmatpush1.msra.mxu0 0.0
    %3451 = vmatprep.subr.mxu0 0.0
    %3452 = vmatpush1.msra.mxu0 0.0
    %3453 = vmatprep.subr.mxu0 0.0
    %3454 = vmatpush1.msra.mxu0 0.0
    %3455 = vmatprep.subr.mxu0 0.0
    %3456 = vmatpush1.msra.mxu0 0.0
    %3457 = vmatprep.subr.mxu0 0.0
    %3458 = vmatpush1.msra.mxu0 0.0
    %3459 = vmatprep.subr.mxu0 0.0
    %3460 = vmatpush1.msra.mxu0 0.0
    %3461 = vmatprep.subr.mxu0 0.0
    %3462 = vmatpush1.msra.mxu0 0.0
    %3463 = vmatprep.subr.mxu0 0.0
    %3464 = vmatpush1.msra.mxu0 0.0
    %3465 = vmatprep.subr.mxu0 0.0
    %3466 = vmatpush1.msra.mxu0 0.0
    %3467 = vmatprep.subr.mxu0 0.0
    %3468 = vmatpush1.msra.mxu0 0.0
    %3469 = vmatprep.subr.mxu0 0.0
    %3470 = vmatpush1.msra.mxu0 0.0
    %3471 = vmatprep.subr.mxu0 0.0
    %3472 = vmatpush1.msra.mxu0 0.0
    %3473 = vmatprep.subr.mxu0 0.0
    %3474 = vmatpush1.msra.mxu0 0.0
    %3475 = vmatprep.subr.mxu0 0.0
    %3476 = vmatpush1.msra.mxu0 0.0
    %3477 = vmatprep.subr.mxu0 0.0
    %3478 = vmatpush1.msra.mxu0 0.0
    %3479 = vmatprep.subr.mxu0 0.0
    %3480 = vmatpush1.msra.mxu0 0.0
    %3481 = vmatprep.subr.mxu0 0.0
    %3482 = vmatpush1.msra.mxu0 0.0
    %3483 = vmatprep.subr.mxu0 0.0
    %3484 = vmatpush1.msra.mxu0 0.0
    %3485 = vmatprep.subr.mxu0 0.0
    %3486 = vmatpush1.msra.mxu0 0.0
    %3487 = vmatprep.subr.mxu0 0.0
    %3488 = vmatpush1.msra.mxu0 0.0
    %3489 = vmatprep.subr.mxu0 0.0
    %3490 = vmatpush1.msra.mxu0 0.0
    %3491 = vmatprep.subr.mxu0 0.0
    %3492 = vmatpush1.msra.mxu0 0.0
    %3493 = vmatprep.subr.mxu0 0.0
    %3494 = vmatpush1.msra.mxu0 0.0
    %3495 = vmatprep.subr.mxu0 0.0
    %3496 = vmatpush1.msra.mxu0 0.0
    %3497 = vmatprep.subr.mxu0 0.0
    %3498 = vmatpush1.msra.mxu0 0.0
    %3499 = vmatprep.subr.mxu0 0.0
    %3500 = vmatpush1.msra.mxu0 0.0
    %3501 = vmatprep.subr.mxu0 0.0
    %3502 = vmatpush1.msra.mxu0 0.0
    %3503 = vmatprep.subr.mxu0 0.0
    %3504 = vmatpush1.msra.mxu0 0.0
    %3505 = vmatprep.mubr.f32.mxu0 0.0
    %3506 = vmatmul.mubr.f32.gmra.mrb[0].mxu0 %v3439
    %v3507 = vpop.f32.mrb[0].mxu0
    %v3508 = vadd.f32 0.0, %v3507
    %v3509 = vpop.f32.mrb[0].mxu0
    %3510 = vdwg.mxu0
    %3511 = vrot.lane.b32.xlu0 %v2818, 48
    %v3512 = vpop.permute.xlu0 %3511
    %v3515 = vsel %vm362, %v3434, 0
    %3517 = vmatprep.subr.mxu0 0.0
    %3518 = vmatpush1.msra.mxu0 %v3512
    %3519 = vmatprep.subr.mxu0 0.0
    %3520 = vmatpush1.msra.mxu0 0.0
    %3521 = vmatprep.subr.mxu0 0.0
    %3522 = vmatpush1.msra.mxu0 0.0
    %3523 = vmatprep.subr.mxu0 0.0
    %3524 = vmatpush1.msra.mxu0 0.0
    %3525 = vmatprep.subr.mxu0 0.0
    %3526 = vmatpush1.msra.mxu0 0.0
    %3527 = vmatprep.subr.mxu0 0.0
    %3528 = vmatpush1.msra.mxu0 0.0
    %3529 = vmatprep.subr.mxu0 0.0
    %3530 = vmatpush1.msra.mxu0 0.0
    %3531 = vmatprep.subr.mxu0 0.0
    %3532 = vmatpush1.msra.mxu0 0.0
    %3533 = vmatprep.subr.mxu0 0.0
    %3534 = vmatpush1.msra.mxu0 0.0
    %3535 = vmatprep.subr.mxu0 0.0
    %3536 = vmatpush1.msra.mxu0 0.0
    %3537 = vmatprep.subr.mxu0 0.0
    %3538 = vmatpush1.msra.mxu0 0.0
    %3539 = vmatprep.subr.mxu0 0.0
    %3540 = vmatpush1.msra.mxu0 0.0
    %3541 = vmatprep.subr.mxu0 0.0
    %3542 = vmatpush1.msra.mxu0 0.0
    %3543 = vmatprep.subr.mxu0 0.0
    %3544 = vmatpush1.msra.mxu0 0.0
    %3545 = vmatprep.subr.mxu0 0.0
    %3546 = vmatpush1.msra.mxu0 0.0
    %3547 = vmatprep.subr.mxu0 0.0
    %3548 = vmatpush1.msra.mxu0 0.0
    %3549 = vmatprep.subr.mxu0 0.0
    %3550 = vmatpush1.msra.mxu0 0.0
    %3551 = vmatprep.subr.mxu0 0.0
    %3552 = vmatpush1.msra.mxu0 0.0
    %3553 = vmatprep.subr.mxu0 0.0
    %3554 = vmatpush1.msra.mxu0 0.0
    %3555 = vmatprep.subr.mxu0 0.0
    %3556 = vmatpush1.msra.mxu0 0.0
    %3557 = vmatprep.subr.mxu0 0.0
    %3558 = vmatpush1.msra.mxu0 0.0
    %3559 = vmatprep.subr.mxu0 0.0
    %3560 = vmatpush1.msra.mxu0 0.0
    %3561 = vmatprep.subr.mxu0 0.0
    %3562 = vmatpush1.msra.mxu0 0.0
    %3563 = vmatprep.subr.mxu0 0.0
    %3564 = vmatpush1.msra.mxu0 0.0
    %3565 = vmatprep.subr.mxu0 0.0
    %3566 = vmatpush1.msra.mxu0 0.0
    %3567 = vmatprep.subr.mxu0 0.0
    %3568 = vmatpush1.msra.mxu0 0.0
    %3569 = vmatprep.subr.mxu0 0.0
    %3570 = vmatpush1.msra.mxu0 0.0
    %3571 = vmatprep.subr.mxu0 0.0
    %3572 = vmatpush1.msra.mxu0 0.0
    %3573 = vmatprep.subr.mxu0 0.0
    %3574 = vmatpush1.msra.mxu0 0.0
    %3575 = vmatprep.subr.mxu0 0.0
    %3576 = vmatpush1.msra.mxu0 0.0
    %3577 = vmatprep.subr.mxu0 0.0
    %3578 = vmatpush1.msra.mxu0 0.0
    %3579 = vmatprep.subr.mxu0 0.0
    %3580 = vmatpush1.msra.mxu0 0.0
    %3581 = vmatprep.mubr.f32.mxu0 0.0
    %3582 = vmatmul.mubr.f32.gmra.mrb[0].mxu0 %v3515
    %v3583 = vpop.f32.mrb[0].mxu0
    %v3584 = vadd.f32 0.0, %v3583
    %v3585 = vpop.f32.mrb[0].mxu0
    %3586 = vdwg.mxu0
    %v3588 = vsel %vm208, %v3508, 0
    %v3591 = vsel %vm208, %v3584, 0
    %3593 = vmatprep.subr.mxu0 0.0
    %3594 = vmatpush1.msra.mxu0 %v2826
    %3595 = vmatprep.subr.mxu0 0.0
    %3596 = vmatpush1.msra.mxu0 %v2827
    %3597 = vmatprep.subr.mxu0 0.0
    %3598 = vmatpush1.msra.mxu0 0.0
    %3599 = vmatprep.subr.mxu0 0.0
    %3600 = vmatpush1.msra.mxu0 0.0
    %3601 = vmatprep.subr.mxu0 0.0
    %3602 = vmatpush1.msra.mxu0 0.0
    %3603 = vmatprep.subr.mxu0 0.0
    %3604 = vmatpush1.msra.mxu0 0.0
    %3605 = vmatprep.subr.mxu0 0.0
    %3606 = vmatpush1.msra.mxu0 0.0
    %3607 = vmatprep.subr.mxu0 0.0
    %3608 = vmatpush1.msra.mxu0 0.0
    %3609 = vmatprep.subr.mxu0 0.0
    %3610 = vmatpush1.msra.mxu0 0.0
    %3611 = vmatprep.subr.mxu0 0.0
    %3612 = vmatpush1.msra.mxu0 0.0
    %3613 = vmatprep.subr.mxu0 0.0
    %3614 = vmatpush1.msra.mxu0 0.0
    %3615 = vmatprep.subr.mxu0 0.0
    %3616 = vmatpush1.msra.mxu0 0.0
    %3617 = vmatprep.subr.mxu0 0.0
    %3618 = vmatpush1.msra.mxu0 0.0
    %3619 = vmatprep.subr.mxu0 0.0
    %3620 = vmatpush1.msra.mxu0 0.0
    %3621 = vmatprep.subr.mxu0 0.0
    %3622 = vmatpush1.msra.mxu0 0.0
    %3623 = vmatprep.subr.mxu0 0.0
    %3624 = vmatpush1.msra.mxu0 0.0
    %3625 = vmatprep.subr.mxu0 0.0
    %3626 = vmatpush1.msra.mxu0 0.0
    %3627 = vmatprep.subr.mxu0 0.0
    %3628 = vmatpush1.msra.mxu0 0.0
    %3629 = vmatprep.subr.mxu0 0.0
    %3630 = vmatpush1.msra.mxu0 0.0
    %3631 = vmatprep.subr.mxu0 0.0
    %3632 = vmatpush1.msra.mxu0 0.0
    %3633 = vmatprep.subr.mxu0 0.0
    %3634 = vmatpush1.msra.mxu0 0.0
    %3635 = vmatprep.subr.mxu0 0.0
    %3636 = vmatpush1.msra.mxu0 0.0
    %3637 = vmatprep.subr.mxu0 0.0
    %3638 = vmatpush1.msra.mxu0 0.0
    %3639 = vmatprep.subr.mxu0 0.0
    %3640 = vmatpush1.msra.mxu0 0.0
    %3641 = vmatprep.subr.mxu0 0.0
    %3642 = vmatpush1.msra.mxu0 0.0
    %3643 = vmatprep.subr.mxu0 0.0
    %3644 = vmatpush1.msra.mxu0 0.0
    %3645 = vmatprep.subr.mxu0 0.0
    %3646 = vmatpush1.msra.mxu0 0.0
    %3647 = vmatprep.subr.mxu0 0.0
    %3648 = vmatpush1.msra.mxu0 0.0
    %3649 = vmatprep.subr.mxu0 0.0
    %3650 = vmatpush1.msra.mxu0 0.0
    %3651 = vmatprep.subr.mxu0 0.0
    %3652 = vmatpush1.msra.mxu0 0.0
    %3653 = vmatprep.subr.mxu0 0.0
    %3654 = vmatpush1.msra.mxu0 0.0
    %3655 = vmatprep.subr.mxu0 0.0
    %3656 = vmatpush1.msra.mxu0 0.0
    %3657 = vmatprep.mubr.f32.mxu0 0.0
    %3658 = vmatmul.mubr.f32.gmra.mrb[0].mxu0 %v3588
    %v3659 = vpop.f32.mrb[0].mxu0
    %v3660 = vadd.f32 0.0, %v3659
    %v3661 = vpop.f32.mrb[0].mxu0
    %3662 = vmatprep.mubr.f32.mxu0 0.0
    %3663 = vmatmul.mubr.f32.gmra.mrb[0].mxu0 %v3591
    %v3664 = vpop.f32.mrb[0].mxu0
    %v3665 = vadd.f32 0.0, %v3664
    %v3666 = vpop.f32.mrb[0].mxu0
    %3667 = vdwg.mxu0
    %v3668 = vadd.f32 %v3255, %v3660
    %v3669 = vadd.f32 %v3256, %v3665
    %v3670 = vadd.f32 %v3668, %v2724
    %v3671 = vadd.f32 %v3669, %v2725
    %v3672 = vsel %vm55, %v3670, 0.0
    %3673 = vadd.xlane.f32.xlu0 %v3672
    %v3674 = vpop.xlane.xlu0 %3673
    %v3675 = vsel %vm55, %v3671, 0.0
    %3676 = vadd.xlane.f32.xlu0 %v3675
    %v3677 = vpop.xlane.xlu0 %3676
    %v3678 = vmul.f32 %v3674, %v62
    %v3679 = vmul.f32 %v3677, %v62
    %v3680 = vsub.f32 %v3670, %v3678
    %v3681 = vsub.f32 %v3671, %v3679
    %v3682 = vmul.f32 %v3680, %v3680
    %v3683 = vmul.f32 %v3681, %v3681
    %v3684 = vsel %vm55, %v3682, 0.0
    %3685 = vadd.xlane.f32.xlu0 %v3684
    %v3686 = vpop.xlane.xlu0 %3685
    %v3687 = vsel %vm55, %v3683, 0.0
    %3688 = vadd.xlane.f32.xlu0 %v3687
    %v3689 = vpop.xlane.xlu0 %3688
    %v3690 = vmul.f32 %v3686, %v62
    %v3691 = vmul.f32 %v3689, %v62
    %v3692 = vadd.f32 %v3690, 1e-12
    %v3693 = vadd.f32 %v3691, 1e-12
    %v3694 = vrsqrt.pop %v3692
    %v3695 = vrsqrt.pop %v3693
    %v3696 = vmul.f32 %v3680, %v3694
    %v3697 = vmul.f32 %v3681, %v3695
    %v3698 = vlaneseq
    %v3699 = vshrl.u32 %v3698, 7
    %v3700 = vsub.s32 2, %v3699
    %v3701 = vrot.slane %v2730, %v3700
    %v3702 = vmul.f32 %v3696, %v3701
    %v3703 = vmul.f32 %v3697, %v3701
    %v3704 = vlaneseq
    %v3705 = vshrl.u32 %v3704, 7
    %v3706 = vsub.s32 3, %v3705
    %v3707 = vrot.slane %v2730, %v3706
    %v3708 = vadd.f32 %v3702, %v3707
    %v3709 = vadd.f32 %v3703, %v3707
    %s3710 = scalar_lea.vmem %s5, 64
    %v3711 = vld [vmem:[%s3710] sm:$0xff]
    %v3712 = vld [vmem:[%s3710 + $0x8] sm:$0xff]
    %v3713 = vld [vmem:[%s3710 + $0x10] sm:$0xff]
    %v3714 = vld [vmem:[%s3710 + $0x18] sm:$0xff]
    %v3715 = vlaneseq
    %v3716 = vshrl.u32 %v3715, 7
    %v3717 = vsub.s32 4, %v3716
    %v3718 = vrot.slane %v2730, %v3717
    %v3720 = vsel %vm55, %v3708, 0
    %v3723 = vsel %vm55, %v3709, 0
    %3725 = vmatprep.subr.mxu0 0.0
    %3726 = vmatpush1.msra.mxu0 %v3711
    %3727 = vmatprep.subr.mxu0 0.0
    %3728 = vmatpush1.msra.mxu0 %v3712
    %3729 = vmatprep.subr.mxu0 0.0
    %3730 = vmatpush1.msra.mxu0 %v3713
    %3731 = vmatprep.subr.mxu0 0.0
    %3732 = vmatpush1.msra.mxu0 %v3714
    %3733 = vmatprep.subr.mxu0 0.0
    %3734 = vmatpush1.msra.mxu0 0.0
    %3735 = vmatprep.subr.mxu0 0.0
    %3736 = vmatpush1.msra.mxu0 0.0
    %3737 = vmatprep.subr.mxu0 0.0
    %3738 = vmatpush1.msra.mxu0 0.0
    %3739 = vmatprep.subr.mxu0 0.0
    %3740 = vmatpush1.msra.mxu0 0.0
    %3741 = vmatprep.subr.mxu0 0.0
    %3742 = vmatpush1.msra.mxu0 0.0
    %3743 = vmatprep.subr.mxu0 0.0
    %3744 = vmatpush1.msra.mxu0 0.0
    %3745 = vmatprep.subr.mxu0 0.0
    %3746 = vmatpush1.msra.mxu0 0.0
    %3747 = vmatprep.subr.mxu0 0.0
    %3748 = vmatpush1.msra.mxu0 0.0
    %3749 = vmatprep.subr.mxu0 0.0
    %3750 = vmatpush1.msra.mxu0 0.0
    %3751 = vmatprep.subr.mxu0 0.0
    %3752 = vmatpush1.msra.mxu0 0.0
    %3753 = vmatprep.subr.mxu0 0.0
    %3754 = vmatpush1.msra.mxu0 0.0
    %3755 = vmatprep.subr.mxu0 0.0
    %3756 = vmatpush1.msra.mxu0 0.0
    %3757 = vmatprep.subr.mxu0 0.0
    %3758 = vmatpush1.msra.mxu0 0.0
    %3759 = vmatprep.subr.mxu0 0.0
    %3760 = vmatpush1.msra.mxu0 0.0
    %3761 = vmatprep.subr.mxu0 0.0
    %3762 = vmatpush1.msra.mxu0 0.0
    %3763 = vmatprep.subr.mxu0 0.0
    %3764 = vmatpush1.msra.mxu0 0.0
    %3765 = vmatprep.subr.mxu0 0.0
    %3766 = vmatpush1.msra.mxu0 0.0
    %3767 = vmatprep.subr.mxu0 0.0
    %3768 = vmatpush1.msra.mxu0 0.0
    %3769 = vmatprep.subr.mxu0 0.0
    %3770 = vmatpush1.msra.mxu0 0.0
    %3771 = vmatprep.subr.mxu0 0.0
    %3772 = vmatpush1.msra.mxu0 0.0
    %3773 = vmatprep.subr.mxu0 0.0
    %3774 = vmatpush1.msra.mxu0 0.0
    %3775 = vmatprep.subr.mxu0 0.0
    %3776 = vmatpush1.msra.mxu0 0.0
    %3777 = vmatprep.subr.mxu0 0.0
    %3778 = vmatpush1.msra.mxu0 0.0
    %3779 = vmatprep.subr.mxu0 0.0
    %3780 = vmatpush1.msra.mxu0 0.0
    %3781 = vmatprep.subr.mxu0 0.0
    %3782 = vmatpush1.msra.mxu0 0.0
    %3783 = vmatprep.subr.mxu0 0.0
    %3784 = vmatpush1.msra.mxu0 0.0
    %3785 = vmatprep.subr.mxu0 0.0
    %3786 = vmatpush1.msra.mxu0 0.0
    %3787 = vmatprep.subr.mxu0 0.0
    %3788 = vmatpush1.msra.mxu0 0.0
    %3789 = vmatprep.mubr.f32.mxu0 0.0
    %3790 = vmatmul.mubr.f32.gmra.mrb[0].mxu0 %v3720
    %v3791 = vpop.f32.mrb[0].mxu0
    %v3792 = vadd.f32 %v3718, %v3791
    %v3793 = vpop.f32.mrb[0].mxu0
    %3794 = vmatprep.mubr.f32.mxu0 0.0
    %3795 = vmatmul.mubr.f32.gmra.mrb[0].mxu0 %v3723
    %v3796 = vpop.f32.mrb[0].mxu0
    %v3797 = vadd.f32 %v3718, %v3796
    %v3798 = vpop.f32.mrb[0].mxu0
    %3799 = vdwg.mxu0
    %v3800 = vmul.f32 %v3792, 0.5
    %v3801 = vmul.f32 %v3797, 0.5
    %v3802 = vmul.f32 %v3792, 0.70710677
    %v3803 = vmul.f32 %v3797, 0.70710677
    %v3804 = verf.f32.pop %v3802
    %v3805 = verf.f32.pop %v3803
    %v3806 = vadd.f32 %v3804, 1.0
    %v3807 = vadd.f32 %v3805, 1.0
    %v3808 = vmul.f32 %v3800, %v3806
    %v3809 = vmul.f32 %v3801, %v3807
    %s3810 = scalar_lea.vmem %s6, 128
    %v3811 = vld [vmem:[%s3810] sm:$0xff]
    %v3812 = vld [vmem:[%s3810 + $0x8] sm:$0xff]
    %v3813 = vld [vmem:[%s3810 + $0x10] sm:$0xff]
    %v3814 = vld [vmem:[%s3810 + $0x18] sm:$0xff]
    %v3815 = vld [vmem:[%s3810 + $0x20] sm:$0xff]
    %v3816 = vld [vmem:[%s3810 + $0x28] sm:$0xff]
    %v3817 = vld [vmem:[%s3810 + $0x30] sm:$0xff]
    %v3818 = vld [vmem:[%s3810 + $0x38] sm:$0xff]
    %v3819 = vlaneseq
    %v3820 = vshrl.u32 %v3819, 7
    %v3821 = vsub.s32 5, %v3820
    %v3822 = vrot.slane %v2730, %v3821
    %v3824 = vsel %vm1188, %v3808, 0
    %v3827 = vsel %vm1188, %v3809, 0
    %3829 = vmatprep.subr.mxu0 0.0
    %3830 = vmatpush1.msra.mxu0 %v3811
    %3831 = vmatprep.subr.mxu0 0.0
    %3832 = vmatpush1.msra.mxu0 %v3812
    %3833 = vmatprep.subr.mxu0 0.0
    %3834 = vmatpush1.msra.mxu0 %v3813
    %3835 = vmatprep.subr.mxu0 0.0
    %3836 = vmatpush1.msra.mxu0 %v3814
    %3837 = vmatprep.subr.mxu0 0.0
    %3838 = vmatpush1.msra.mxu0 %v3815
    %3839 = vmatprep.subr.mxu0 0.0
    %3840 = vmatpush1.msra.mxu0 %v3816
    %3841 = vmatprep.subr.mxu0 0.0
    %3842 = vmatpush1.msra.mxu0 %v3817
    %3843 = vmatprep.subr.mxu0 0.0
    %3844 = vmatpush1.msra.mxu0 %v3818
    %3845 = vmatprep.subr.mxu0 0.0
    %3846 = vmatpush1.msra.mxu0 0.0
    %3847 = vmatprep.subr.mxu0 0.0
    %3848 = vmatpush1.msra.mxu0 0.0
    %3849 = vmatprep.subr.mxu0 0.0
    %3850 = vmatpush1.msra.mxu0 0.0
    %3851 = vmatprep.subr.mxu0 0.0
    %3852 = vmatpush1.msra.mxu0 0.0
    %3853 = vmatprep.subr.mxu0 0.0
    %3854 = vmatpush1.msra.mxu0 0.0
    %3855 = vmatprep.subr.mxu0 0.0
    %3856 = vmatpush1.msra.mxu0 0.0
    %3857 = vmatprep.subr.mxu0 0.0
    %3858 = vmatpush1.msra.mxu0 0.0
    %3859 = vmatprep.subr.mxu0 0.0
    %3860 = vmatpush1.msra.mxu0 0.0
    %3861 = vmatprep.subr.mxu0 0.0
    %3862 = vmatpush1.msra.mxu0 0.0
    %3863 = vmatprep.subr.mxu0 0.0
    %3864 = vmatpush1.msra.mxu0 0.0
    %3865 = vmatprep.subr.mxu0 0.0
    %3866 = vmatpush1.msra.mxu0 0.0
    %3867 = vmatprep.subr.mxu0 0.0
    %3868 = vmatpush1.msra.mxu0 0.0
    %3869 = vmatprep.subr.mxu0 0.0
    %3870 = vmatpush1.msra.mxu0 0.0
    %3871 = vmatprep.subr.mxu0 0.0
    %3872 = vmatpush1.msra.mxu0 0.0
    %3873 = vmatprep.subr.mxu0 0.0
    %3874 = vmatpush1.msra.mxu0 0.0
    %3875 = vmatprep.subr.mxu0 0.0
    %3876 = vmatpush1.msra.mxu0 0.0
    %3877 = vmatprep.subr.mxu0 0.0
    %3878 = vmatpush1.msra.mxu0 0.0
    %3879 = vmatprep.subr.mxu0 0.0
    %3880 = vmatpush1.msra.mxu0 0.0
    %3881 = vmatprep.subr.mxu0 0.0
    %3882 = vmatpush1.msra.mxu0 0.0
    %3883 = vmatprep.subr.mxu0 0.0
    %3884 = vmatpush1.msra.mxu0 0.0
    %3885 = vmatprep.subr.mxu0 0.0
    %3886 = vmatpush1.msra.mxu0 0.0
    %3887 = vmatprep.subr.mxu0 0.0
    %3888 = vmatpush1.msra.mxu0 0.0
    %3889 = vmatprep.subr.mxu0 0.0
    %3890 = vmatpush1.msra.mxu0 0.0
    %3891 = vmatprep.subr.mxu0 0.0
    %3892 = vmatpush1.msra.mxu0 0.0
    %3893 = vmatprep.mubr.f32.mxu0 0.0
    %3894 = vmatmul.mubr.f32.gmra.mrb[0].mxu0 %v3824
    %v3895 = vpop.f32.mrb[0].mxu0
    %v3896 = vadd.f32 %v3822, %v3895
    %v3897 = vpop.f32.mrb[0].mxu0
    %3898 = vmatprep.mubr.f32.mxu0 0.0
    %3899 = vmatmul.mubr.f32.gmra.mrb[0].mxu0 %v3827
    %v3900 = vpop.f32.mrb[0].mxu0
    %v3901 = vadd.f32 %v3822, %v3900
    %v3902 = vpop.f32.mrb[0].mxu0
    %3903 = vdwg.mxu0
    %v3904 = vadd.f32 %v3896, %v3708
    %v3905 = vadd.f32 %v3901, %v3709
    %v3906 = vsel %vm55, %v3904, 0.0
    %3907 = vadd.xlane.f32.xlu0 %v3906
    %v3908 = vpop.xlane.xlu0 %3907
    %v3909 = vsel %vm55, %v3905, 0.0
    %3910 = vadd.xlane.f32.xlu0 %v3909
    %v3911 = vpop.xlane.xlu0 %3910
    %v3912 = vmul.f32 %v3908, %v62
    %v3913 = vmul.f32 %v3911, %v62
    %v3914 = vsub.f32 %v3904, %v3912
    %v3915 = vsub.f32 %v3905, %v3913
    %v3916 = vmul.f32 %v3914, %v3914
    %v3917 = vmul.f32 %v3915, %v3915
    %v3918 = vsel %vm55, %v3916, 0.0
    %3919 = vadd.xlane.f32.xlu0 %v3918
    %v3920 = vpop.xlane.xlu0 %3919
    %v3921 = vsel %vm55, %v3917, 0.0
    %3922 = vadd.xlane.f32.xlu0 %v3921
    %v3923 = vpop.xlane.xlu0 %3922
    %v3924 = vmul.f32 %v3920, %v62
    %v3925 = vmul.f32 %v3923, %v62
    %v3926 = vadd.f32 %v3924, 1e-12
    %v3927 = vadd.f32 %v3925, 1e-12
    %v3928 = vrsqrt.pop %v3926
    %v3929 = vrsqrt.pop %v3927
    %v3930 = vmul.f32 %v3914, %v3928
    %v3931 = vmul.f32 %v3915, %v3929
    %v3932 = vlaneseq
    %v3933 = vshrl.u32 %v3932, 7
    %v3934 = vsub.s32 6, %v3933
    %v3935 = vrot.slane %v2730, %v3934
    %v3936 = vmul.f32 %v3930, %v3935
    %v3937 = vmul.f32 %v3931, %v3935
    %v3938 = vlaneseq
    %v3939 = vshrl.u32 %v3938, 7
    %v3940 = vsub.s32 7, %v3939
    %v3941 = vrot.slane %v2730, %v3940
    %v3942 = vadd.f32 %v3936, %v3941
    %v3943 = vadd.f32 %v3937, %v3941
    %s3944 = scalar_lea.vmem %s7, 24
    %v3945 = vld [vmem:[%s3944] sm:$0xff]
    %s3946 = scalar_lea.vmem %s3, 96
    %v3947 = vld [vmem:[%s3946] sm:$0xff]
    %v3948 = vld [vmem:[%s3946 + $0x8] sm:$0xff]
    %v3949 = vld [vmem:[%s3946 + $0x10] sm:$0xff]
    %v3950 = vld [vmem:[%s3946 + $0x18] sm:$0xff]
    %v3951 = vlaneseq
    %v3952 = vshrl.u32 %v3951, 7
    %v3953 = vsub.s32 0, %v3952
    %v3954 = vrot.slane %v3945, %v3953
    %v3956 = vsel %vm55, %v3942, 0
    %v3959 = vsel %vm55, %v3943, 0
    %3961 = vmatprep.subr.mxu0 0.0
    %3962 = vmatpush1.msra.mxu0 %v3947
    %3963 = vmatprep.subr.mxu0 0.0
    %3964 = vmatpush1.msra.mxu0 %v3948
    %3965 = vmatprep.subr.mxu0 0.0
    %3966 = vmatpush1.msra.mxu0 %v3949
    %3967 = vmatprep.subr.mxu0 0.0
    %3968 = vmatpush1.msra.mxu0 %v3950
    %3969 = vmatprep.subr.mxu0 0.0
    %3970 = vmatpush1.msra.mxu0 0.0
    %3971 = vmatprep.subr.mxu0 0.0
    %3972 = vmatpush1.msra.mxu0 0.0
    %3973 = vmatprep.subr.mxu0 0.0
    %3974 = vmatpush1.msra.mxu0 0.0
    %3975 = vmatprep.subr.mxu0 0.0
    %3976 = vmatpush1.msra.mxu0 0.0
    %3977 = vmatprep.subr.mxu0 0.0
    %3978 = vmatpush1.msra.mxu0 0.0
    %3979 = vmatprep.subr.mxu0 0.0
    %3980 = vmatpush1.msra.mxu0 0.0
    %3981 = vmatprep.subr.mxu0 0.0
    %3982 = vmatpush1.msra.mxu0 0.0
    %3983 = vmatprep.subr.mxu0 0.0
    %3984 = vmatpush1.msra.mxu0 0.0
    %3985 = vmatprep.subr.mxu0 0.0
    %3986 = vmatpush1.msra.mxu0 0.0
    %3987 = vmatprep.subr.mxu0 0.0
    %3988 = vmatpush1.msra.mxu0 0.0
    %3989 = vmatprep.subr.mxu0 0.0
    %3990 = vmatpush1.msra.mxu0 0.0
    %3991 = vmatprep.subr.mxu0 0.0
    %3992 = vmatpush1.msra.mxu0 0.0
    %3993 = vmatprep.subr.mxu0 0.0
    %3994 = vmatpush1.msra.mxu0 0.0
    %3995 = vmatprep.subr.mxu0 0.0
    %3996 = vmatpush1.msra.mxu0 0.0
    %3997 = vmatprep.subr.mxu0 0.0
    %3998 = vmatpush1.msra.mxu0 0.0
    %3999 = vmatprep.subr.mxu0 0.0
    %4000 = vmatpush1.msra.mxu0 0.0
    %4001 = vmatprep.subr.mxu0 0.0
    %4002 = vmatpush1.msra.mxu0 0.0
    %4003 = vmatprep.subr.mxu0 0.0
    %4004 = vmatpush1.msra.mxu0 0.0
    %4005 = vmatprep.subr.mxu0 0.0
    %4006 = vmatpush1.msra.mxu0 0.0
    %4007 = vmatprep.subr.mxu0 0.0
    %4008 = vmatpush1.msra.mxu0 0.0
    %4009 = vmatprep.subr.mxu0 0.0
    %4010 = vmatpush1.msra.mxu0 0.0
    %4011 = vmatprep.subr.mxu0 0.0
    %4012 = vmatpush1.msra.mxu0 0.0
    %4013 = vmatprep.subr.mxu0 0.0
    %4014 = vmatpush1.msra.mxu0 0.0
    %4015 = vmatprep.subr.mxu0 0.0
    %4016 = vmatpush1.msra.mxu0 0.0
    %4017 = vmatprep.subr.mxu0 0.0
    %4018 = vmatpush1.msra.mxu0 0.0
    %4019 = vmatprep.subr.mxu0 0.0
    %4020 = vmatpush1.msra.mxu0 0.0
    %4021 = vmatprep.subr.mxu0 0.0
    %4022 = vmatpush1.msra.mxu0 0.0
    %4023 = vmatprep.subr.mxu0 0.0
    %4024 = vmatpush1.msra.mxu0 0.0
    %4025 = vmatprep.mubr.f32.mxu0 0.0
    %4026 = vmatmul.mubr.f32.gmra.mrb[0].mxu0 %v3956
    %v4027 = vpop.f32.mrb[0].mxu0
    %v4028 = vadd.f32 %v3954, %v4027
    %v4029 = vpop.f32.mrb[0].mxu0
    %4030 = vmatprep.mubr.f32.mxu0 0.0
    %4031 = vmatmul.mubr.f32.gmra.mrb[0].mxu0 %v3959
    %v4032 = vpop.f32.mrb[0].mxu0
    %v4033 = vadd.f32 %v3954, %v4032
    %v4034 = vpop.f32.mrb[0].mxu0
    %4035 = vdwg.mxu0
    %v4036 = vmul.f32 %v4028, 0.25
    %v4037 = vmul.f32 %v4033, 0.25
    %s4038 = scalar_lea.vmem %s4, 96
    %v4039 = vld [vmem:[%s4038] sm:$0xff]
    %v4040 = vld [vmem:[%s4038 + $0x8] sm:$0xff]
    %v4041 = vld [vmem:[%s4038 + $0x10] sm:$0xff]
    %v4042 = vld [vmem:[%s4038 + $0x18] sm:$0xff]
    %4044 = vrot.lane.b32.xlu0 %v4028, 96
    %v4045 = vpop.permute.xlu0 %4044
    %v4047 = vsel %vm208, %v4036, 0
    %v4049 = vsel %vm208, %v4045, 0
    %4051 = vmatprep.subr.mxu0 0.0
    %4052 = vmatpush1.xpose.msra.mxu0 %v4049
    %4053 = vmatprep.subr.mxu0 0.0
    %4054 = vmatpush1.xpose.msra.mxu0 0.0
    %4055 = vmatprep.subr.mxu0 0.0
    %4056 = vmatpush1.xpose.msra.mxu0 0.0
    %4057 = vmatprep.subr.mxu0 0.0
    %4058 = vmatpush1.xpose.msra.mxu0 0.0
    %4059 = vmatprep.subr.mxu0 0.0
    %4060 = vmatpush1.xpose.msra.mxu0 0.0
    %4061 = vmatprep.subr.mxu0 0.0
    %4062 = vmatpush1.xpose.msra.mxu0 0.0
    %4063 = vmatprep.subr.mxu0 0.0
    %4064 = vmatpush1.xpose.msra.mxu0 0.0
    %4065 = vmatprep.subr.mxu0 0.0
    %4066 = vmatpush1.xpose.msra.mxu0 0.0
    %4067 = vmatprep.subr.mxu0 0.0
    %4068 = vmatpush1.xpose.msra.mxu0 0.0
    %4069 = vmatprep.subr.mxu0 0.0
    %4070 = vmatpush1.xpose.msra.mxu0 0.0
    %4071 = vmatprep.subr.mxu0 0.0
    %4072 = vmatpush1.xpose.msra.mxu0 0.0
    %4073 = vmatprep.subr.mxu0 0.0
    %4074 = vmatpush1.xpose.msra.mxu0 0.0
    %4075 = vmatprep.subr.mxu0 0.0
    %4076 = vmatpush1.xpose.msra.mxu0 0.0
    %4077 = vmatprep.subr.mxu0 0.0
    %4078 = vmatpush1.xpose.msra.mxu0 0.0
    %4079 = vmatprep.subr.mxu0 0.0
    %4080 = vmatpush1.xpose.msra.mxu0 0.0
    %4081 = vmatprep.subr.mxu0 0.0
    %4082 = vmatpush1.xpose.msra.mxu0 0.0
    %4083 = vmatprep.subr.mxu0 0.0
    %4084 = vmatpush1.xpose.msra.mxu0 0.0
    %4085 = vmatprep.subr.mxu0 0.0
    %4086 = vmatpush1.xpose.msra.mxu0 0.0
    %4087 = vmatprep.subr.mxu0 0.0
    %4088 = vmatpush1.xpose.msra.mxu0 0.0
    %4089 = vmatprep.subr.mxu0 0.0
    %4090 = vmatpush1.xpose.msra.mxu0 0.0
    %4091 = vmatprep.subr.mxu0 0.0
    %4092 = vmatpush1.xpose.msra.mxu0 0.0
    %4093 = vmatprep.subr.mxu0 0.0
    %4094 = vmatpush1.xpose.msra.mxu0 0.0
    %4095 = vmatprep.subr.mxu0 0.0
    %4096 = vmatpush1.xpose.msra.mxu0 0.0
    %4097 = vmatprep.subr.mxu0 0.0
    %4098 = vmatpush1.xpose.msra.mxu0 0.0
    %4099 = vmatprep.subr.mxu0 0.0
    %4100 = vmatpush1.xpose.msra.mxu0 0.0
    %4101 = vmatprep.subr.mxu0 0.0
    %4102 = vmatpush1.xpose.msra.mxu0 0.0
    %4103 = vmatprep.subr.mxu0 0.0
    %4104 = vmatpush1.xpose.msra.mxu0 0.0
    %4105 = vmatprep.subr.mxu0 0.0
    %4106 = vmatpush1.xpose.msra.mxu0 0.0
    %4107 = vmatprep.subr.mxu0 0.0
    %4108 = vmatpush1.xpose.msra.mxu0 0.0
    %4109 = vmatprep.subr.mxu0 0.0
    %4110 = vmatpush1.xpose.msra.mxu0 0.0
    %4111 = vmatprep.subr.mxu0 0.0
    %4112 = vmatpush1.xpose.msra.mxu0 0.0
    %4113 = vmatprep.subr.mxu0 0.0
    %4114 = vmatpush1.xpose.msra.mxu0 0.0
    %4115 = vmatprep.mubr.f32.mxu0 0.0
    %4116 = vmatmul.mubr.f32.gmra.mrb[0].mxu0 %v4047
    %v4117 = vpop.f32.mrb[0].mxu0
    %v4118 = vadd.f32 %v2833, %v4117
    %v4119 = vpop.f32.mrb[0].mxu0
    %4120 = vdwg.mxu0
    %4122 = vrot.lane.b32.xlu0 %v4033, 96
    %v4123 = vpop.permute.xlu0 %4122
    %v4125 = vsel %vm208, %v4037, 0
    %v4127 = vsel %vm208, %v4123, 0
    %4129 = vmatprep.subr.mxu0 0.0
    %4130 = vmatpush1.xpose.msra.mxu0 %v4127
    %4131 = vmatprep.subr.mxu0 0.0
    %4132 = vmatpush1.xpose.msra.mxu0 0.0
    %4133 = vmatprep.subr.mxu0 0.0
    %4134 = vmatpush1.xpose.msra.mxu0 0.0
    %4135 = vmatprep.subr.mxu0 0.0
    %4136 = vmatpush1.xpose.msra.mxu0 0.0
    %4137 = vmatprep.subr.mxu0 0.0
    %4138 = vmatpush1.xpose.msra.mxu0 0.0
    %4139 = vmatprep.subr.mxu0 0.0
    %4140 = vmatpush1.xpose.msra.mxu0 0.0
    %4141 = vmatprep.subr.mxu0 0.0
    %4142 = vmatpush1.xpose.msra.mxu0 0.0
    %4143 = vmatprep.subr.mxu0 0.0
    %4144 = vmatpush1.xpose.msra.mxu0 0.0
    %4145 = vmatprep.subr.mxu0 0.0
    %4146 = vmatpush1.xpose.msra.mxu0 0.0
    %4147 = vmatprep.subr.mxu0 0.0
    %4148 = vmatpush1.xpose.msra.mxu0 0.0
    %4149 = vmatprep.subr.mxu0 0.0
    %4150 = vmatpush1.xpose.msra.mxu0 0.0
    %4151 = vmatprep.subr.mxu0 0.0
    %4152 = vmatpush1.xpose.msra.mxu0 0.0
    %4153 = vmatprep.subr.mxu0 0.0
    %4154 = vmatpush1.xpose.msra.mxu0 0.0
    %4155 = vmatprep.subr.mxu0 0.0
    %4156 = vmatpush1.xpose.msra.mxu0 0.0
    %4157 = vmatprep.subr.mxu0 0.0
    %4158 = vmatpush1.xpose.msra.mxu0 0.0
    %4159 = vmatprep.subr.mxu0 0.0
    %4160 = vmatpush1.xpose.msra.mxu0 0.0
    %4161 = vmatprep.subr.mxu0 0.0
    %4162 = vmatpush1.xpose.msra.mxu0 0.0
    %4163 = vmatprep.subr.mxu0 0.0
    %4164 = vmatpush1.xpose.msra.mxu0 0.0
    %4165 = vmatprep.subr.mxu0 0.0
    %4166 = vmatpush1.xpose.msra.mxu0 0.0
    %4167 = vmatprep.subr.mxu0 0.0
    %4168 = vmatpush1.xpose.msra.mxu0 0.0
    %4169 = vmatprep.subr.mxu0 0.0
    %4170 = vmatpush1.xpose.msra.mxu0 0.0
    %4171 = vmatprep.subr.mxu0 0.0
    %4172 = vmatpush1.xpose.msra.mxu0 0.0
    %4173 = vmatprep.subr.mxu0 0.0
    %4174 = vmatpush1.xpose.msra.mxu0 0.0
    %4175 = vmatprep.subr.mxu0 0.0
    %4176 = vmatpush1.xpose.msra.mxu0 0.0
    %4177 = vmatprep.subr.mxu0 0.0
    %4178 = vmatpush1.xpose.msra.mxu0 0.0
    %4179 = vmatprep.subr.mxu0 0.0
    %4180 = vmatpush1.xpose.msra.mxu0 0.0
    %4181 = vmatprep.subr.mxu0 0.0
    %4182 = vmatpush1.xpose.msra.mxu0 0.0
    %4183 = vmatprep.subr.mxu0 0.0
    %4184 = vmatpush1.xpose.msra.mxu0 0.0
    %4185 = vmatprep.subr.mxu0 0.0
    %4186 = vmatpush1.xpose.msra.mxu0 0.0
    %4187 = vmatprep.subr.mxu0 0.0
    %4188 = vmatpush1.xpose.msra.mxu0 0.0
    %4189 = vmatprep.subr.mxu0 0.0
    %4190 = vmatpush1.xpose.msra.mxu0 0.0
    %4191 = vmatprep.subr.mxu0 0.0
    %4192 = vmatpush1.xpose.msra.mxu0 0.0
    %4193 = vmatprep.mubr.f32.mxu0 0.0
    %4194 = vmatmul.mubr.f32.gmra.mrb[0].mxu0 %v4125
    %v4195 = vpop.f32.mrb[0].mxu0
    %v4196 = vadd.f32 %v2837, %v4195
    %v4197 = vpop.f32.mrb[0].mxu0
    %4198 = vdwg.mxu0
    %v4199 = vsel %vm362, %v4118, -inf
    %4200 = vmax.xlane.f32.xlu0 %v4199
    %v4201 = vpop.xlane.xlu0 %4200
    %v4202 = vsel %vm362, %v4196, -inf
    %4203 = vmax.xlane.f32.xlu0 %v4202
    %v4204 = vpop.xlane.xlu0 %4203
    %v4205 = vsub.f32 %v4118, %v4201
    %v4206 = vsub.f32 %v4196, %v4204
    %v4207 = vmul.f32 %v4205, 1.442695
    %v4208 = vpow.pop %v4207
    %v4209 = vmul.f32 %v4206, 1.442695
    %v4210 = vpow.pop %v4209
    %v4211 = vsel %vm362, %v4208, 0.0
    %4212 = vadd.xlane.f32.xlu0 %v4211
    %v4213 = vpop.xlane.xlu0 %4212
    %v4214 = vsel %vm362, %v4210, 0.0
    %4215 = vadd.xlane.f32.xlu0 %v4214
    %v4216 = vpop.xlane.xlu0 %4215
    %v4217 = vrcp.pop %v4213
    %v4218 = vrcp.pop %v4216
    %v4219 = vmul.f32 %v4208, %v4217
    %v4220 = vmul.f32 %v4210, %v4218
    %4221 = vrot.lane.b32.xlu0 %v4028, 64
    %v4222 = vpop.permute.xlu0 %4221
    %v4225 = vsel %vm362, %v4219, 0
    %4227 = vmatprep.subr.mxu0 0.0
    %4228 = vmatpush1.msra.mxu0 %v4222
    %4229 = vmatprep.subr.mxu0 0.0
    %4230 = vmatpush1.msra.mxu0 0.0
    %4231 = vmatprep.subr.mxu0 0.0
    %4232 = vmatpush1.msra.mxu0 0.0
    %4233 = vmatprep.subr.mxu0 0.0
    %4234 = vmatpush1.msra.mxu0 0.0
    %4235 = vmatprep.subr.mxu0 0.0
    %4236 = vmatpush1.msra.mxu0 0.0
    %4237 = vmatprep.subr.mxu0 0.0
    %4238 = vmatpush1.msra.mxu0 0.0
    %4239 = vmatprep.subr.mxu0 0.0
    %4240 = vmatpush1.msra.mxu0 0.0
    %4241 = vmatprep.subr.mxu0 0.0
    %4242 = vmatpush1.msra.mxu0 0.0
    %4243 = vmatprep.subr.mxu0 0.0
    %4244 = vmatpush1.msra.mxu0 0.0
    %4245 = vmatprep.subr.mxu0 0.0
    %4246 = vmatpush1.msra.mxu0 0.0
    %4247 = vmatprep.subr.mxu0 0.0
    %4248 = vmatpush1.msra.mxu0 0.0
    %4249 = vmatprep.subr.mxu0 0.0
    %4250 = vmatpush1.msra.mxu0 0.0
    %4251 = vmatprep.subr.mxu0 0.0
    %4252 = vmatpush1.msra.mxu0 0.0
    %4253 = vmatprep.subr.mxu0 0.0
    %4254 = vmatpush1.msra.mxu0 0.0
    %4255 = vmatprep.subr.mxu0 0.0
    %4256 = vmatpush1.msra.mxu0 0.0
    %4257 = vmatprep.subr.mxu0 0.0
    %4258 = vmatpush1.msra.mxu0 0.0
    %4259 = vmatprep.subr.mxu0 0.0
    %4260 = vmatpush1.msra.mxu0 0.0
    %4261 = vmatprep.subr.mxu0 0.0
    %4262 = vmatpush1.msra.mxu0 0.0
    %4263 = vmatprep.subr.mxu0 0.0
    %4264 = vmatpush1.msra.mxu0 0.0
    %4265 = vmatprep.subr.mxu0 0.0
    %4266 = vmatpush1.msra.mxu0 0.0
    %4267 = vmatprep.subr.mxu0 0.0
    %4268 = vmatpush1.msra.mxu0 0.0
    %4269 = vmatprep.subr.mxu0 0.0
    %4270 = vmatpush1.msra.mxu0 0.0
    %4271 = vmatprep.subr.mxu0 0.0
    %4272 = vmatpush1.msra.mxu0 0.0
    %4273 = vmatprep.subr.mxu0 0.0
    %4274 = vmatpush1.msra.mxu0 0.0
    %4275 = vmatprep.subr.mxu0 0.0
    %4276 = vmatpush1.msra.mxu0 0.0
    %4277 = vmatprep.subr.mxu0 0.0
    %4278 = vmatpush1.msra.mxu0 0.0
    %4279 = vmatprep.subr.mxu0 0.0
    %4280 = vmatpush1.msra.mxu0 0.0
    %4281 = vmatprep.subr.mxu0 0.0
    %4282 = vmatpush1.msra.mxu0 0.0
    %4283 = vmatprep.subr.mxu0 0.0
    %4284 = vmatpush1.msra.mxu0 0.0
    %4285 = vmatprep.subr.mxu0 0.0
    %4286 = vmatpush1.msra.mxu0 0.0
    %4287 = vmatprep.subr.mxu0 0.0
    %4288 = vmatpush1.msra.mxu0 0.0
    %4289 = vmatprep.subr.mxu0 0.0
    %4290 = vmatpush1.msra.mxu0 0.0
    %4291 = vmatprep.mubr.f32.mxu0 0.0
    %4292 = vmatmul.mubr.f32.gmra.mrb[0].mxu0 %v4225
    %v4293 = vpop.f32.mrb[0].mxu0
    %v4294 = vadd.f32 0.0, %v4293
    %v4295 = vpop.f32.mrb[0].mxu0
    %4296 = vdwg.mxu0
    %4297 = vrot.lane.b32.xlu0 %v4033, 64
    %v4298 = vpop.permute.xlu0 %4297
    %v4301 = vsel %vm362, %v4220, 0
    %4303 = vmatprep.subr.mxu0 0.0
    %4304 = vmatpush1.msra.mxu0 %v4298
    %4305 = vmatprep.subr.mxu0 0.0
    %4306 = vmatpush1.msra.mxu0 0.0
    %4307 = vmatprep.subr.mxu0 0.0
    %4308 = vmatpush1.msra.mxu0 0.0
    %4309 = vmatprep.subr.mxu0 0.0
    %4310 = vmatpush1.msra.mxu0 0.0
    %4311 = vmatprep.subr.mxu0 0.0
    %4312 = vmatpush1.msra.mxu0 0.0
    %4313 = vmatprep.subr.mxu0 0.0
    %4314 = vmatpush1.msra.mxu0 0.0
    %4315 = vmatprep.subr.mxu0 0.0
    %4316 = vmatpush1.msra.mxu0 0.0
    %4317 = vmatprep.subr.mxu0 0.0
    %4318 = vmatpush1.msra.mxu0 0.0
    %4319 = vmatprep.subr.mxu0 0.0
    %4320 = vmatpush1.msra.mxu0 0.0
    %4321 = vmatprep.subr.mxu0 0.0
    %4322 = vmatpush1.msra.mxu0 0.0
    %4323 = vmatprep.subr.mxu0 0.0
    %4324 = vmatpush1.msra.mxu0 0.0
    %4325 = vmatprep.subr.mxu0 0.0
    %4326 = vmatpush1.msra.mxu0 0.0
    %4327 = vmatprep.subr.mxu0 0.0
    %4328 = vmatpush1.msra.mxu0 0.0
    %4329 = vmatprep.subr.mxu0 0.0
    %4330 = vmatpush1.msra.mxu0 0.0
    %4331 = vmatprep.subr.mxu0 0.0
    %4332 = vmatpush1.msra.mxu0 0.0
    %4333 = vmatprep.subr.mxu0 0.0
    %4334 = vmatpush1.msra.mxu0 0.0
    %4335 = vmatprep.subr.mxu0 0.0
    %4336 = vmatpush1.msra.mxu0 0.0
    %4337 = vmatprep.subr.mxu0 0.0
    %4338 = vmatpush1.msra.mxu0 0.0
    %4339 = vmatprep.subr.mxu0 0.0
    %4340 = vmatpush1.msra.mxu0 0.0
    %4341 = vmatprep.subr.mxu0 0.0
    %4342 = vmatpush1.msra.mxu0 0.0
    %4343 = vmatprep.subr.mxu0 0.0
    %4344 = vmatpush1.msra.mxu0 0.0
    %4345 = vmatprep.subr.mxu0 0.0
    %4346 = vmatpush1.msra.mxu0 0.0
    %4347 = vmatprep.subr.mxu0 0.0
    %4348 = vmatpush1.msra.mxu0 0.0
    %4349 = vmatprep.subr.mxu0 0.0
    %4350 = vmatpush1.msra.mxu0 0.0
    %4351 = vmatprep.subr.mxu0 0.0
    %4352 = vmatpush1.msra.mxu0 0.0
    %4353 = vmatprep.subr.mxu0 0.0
    %4354 = vmatpush1.msra.mxu0 0.0
    %4355 = vmatprep.subr.mxu0 0.0
    %4356 = vmatpush1.msra.mxu0 0.0
    %4357 = vmatprep.subr.mxu0 0.0
    %4358 = vmatpush1.msra.mxu0 0.0
    %4359 = vmatprep.subr.mxu0 0.0
    %4360 = vmatpush1.msra.mxu0 0.0
    %4361 = vmatprep.subr.mxu0 0.0
    %4362 = vmatpush1.msra.mxu0 0.0
    %4363 = vmatprep.subr.mxu0 0.0
    %4364 = vmatpush1.msra.mxu0 0.0
    %4365 = vmatprep.subr.mxu0 0.0
    %4366 = vmatpush1.msra.mxu0 0.0
    %4367 = vmatprep.mubr.f32.mxu0 0.0
    %4368 = vmatmul.mubr.f32.gmra.mrb[0].mxu0 %v4301
    %v4369 = vpop.f32.mrb[0].mxu0
    %v4370 = vadd.f32 0.0, %v4369
    %v4371 = vpop.f32.mrb[0].mxu0
    %4372 = vdwg.mxu0
    %v4374 = vsel %vm208, %v4294, 0
    %v4377 = vsel %vm208, %v4370, 0
    %4379 = vmatprep.subr.mxu0 0.0
    %4380 = vmatpush1.msra.mxu0 %v4039
    %4381 = vmatprep.subr.mxu0 0.0
    %4382 = vmatpush1.msra.mxu0 %v4040
    %4383 = vmatprep.subr.mxu0 0.0
    %4384 = vmatpush1.msra.mxu0 0.0
    %4385 = vmatprep.subr.mxu0 0.0
    %4386 = vmatpush1.msra.mxu0 0.0
    %4387 = vmatprep.subr.mxu0 0.0
    %4388 = vmatpush1.msra.mxu0 0.0
    %4389 = vmatprep.subr.mxu0 0.0
    %4390 = vmatpush1.msra.mxu0 0.0
    %4391 = vmatprep.subr.mxu0 0.0
    %4392 = vmatpush1.msra.mxu0 0.0
    %4393 = vmatprep.subr.mxu0 0.0
    %4394 = vmatpush1.msra.mxu0 0.0
    %4395 = vmatprep.subr.mxu0 0.0
    %4396 = vmatpush1.msra.mxu0 0.0
    %4397 = vmatprep.subr.mxu0 0.0
    %4398 = vmatpush1.msra.mxu0 0.0
    %4399 = vmatprep.subr.mxu0 0.0
    %4400 = vmatpush1.msra.mxu0 0.0
    %4401 = vmatprep.subr.mxu0 0.0
    %4402 = vmatpush1.msra.mxu0 0.0
    %4403 = vmatprep.subr.mxu0 0.0
    %4404 = vmatpush1.msra.mxu0 0.0
    %4405 = vmatprep.subr.mxu0 0.0
    %4406 = vmatpush1.msra.mxu0 0.0
    %4407 = vmatprep.subr.mxu0 0.0
    %4408 = vmatpush1.msra.mxu0 0.0
    %4409 = vmatprep.subr.mxu0 0.0
    %4410 = vmatpush1.msra.mxu0 0.0
    %4411 = vmatprep.subr.mxu0 0.0
    %4412 = vmatpush1.msra.mxu0 0.0
    %4413 = vmatprep.subr.mxu0 0.0
    %4414 = vmatpush1.msra.mxu0 0.0
    %4415 = vmatprep.subr.mxu0 0.0
    %4416 = vmatpush1.msra.mxu0 0.0
    %4417 = vmatprep.subr.mxu0 0.0
    %4418 = vmatpush1.msra.mxu0 0.0
    %4419 = vmatprep.subr.mxu0 0.0
    %4420 = vmatpush1.msra.mxu0 0.0
    %4421 = vmatprep.subr.mxu0 0.0
    %4422 = vmatpush1.msra.mxu0 0.0
    %4423 = vmatprep.subr.mxu0 0.0
    %4424 = vmatpush1.msra.mxu0 0.0
    %4425 = vmatprep.subr.mxu0 0.0
    %4426 = vmatpush1.msra.mxu0 0.0
    %4427 = vmatprep.subr.mxu0 0.0
    %4428 = vmatpush1.msra.mxu0 0.0
    %4429 = vmatprep.subr.mxu0 0.0
    %4430 = vmatpush1.msra.mxu0 0.0
    %4431 = vmatprep.subr.mxu0 0.0
    %4432 = vmatpush1.msra.mxu0 0.0
    %4433 = vmatprep.subr.mxu0 0.0
    %4434 = vmatpush1.msra.mxu0 0.0
    %4435 = vmatprep.subr.mxu0 0.0
    %4436 = vmatpush1.msra.mxu0 0.0
    %4437 = vmatprep.subr.mxu0 0.0
    %4438 = vmatpush1.msra.mxu0 0.0
    %4439 = vmatprep.subr.mxu0 0.0
    %4440 = vmatpush1.msra.mxu0 0.0
    %4441 = vmatprep.subr.mxu0 0.0
    %4442 = vmatpush1.msra.mxu0 0.0
    %4443 = vmatprep.mubr.f32.mxu0 0.0
    %4444 = vmatmul.mubr.f32.gmra.mrb[0].mxu0 %v4374
    %v4445 = vpop.f32.mrb[0].mxu0
    %v4446 = vadd.f32 0.0, %v4445
    %v4447 = vpop.f32.mrb[0].mxu0
    %4448 = vmatprep.mubr.f32.mxu0 0.0
    %4449 = vmatmul.mubr.f32.gmra.mrb[0].mxu0 %v4377
    %v4450 = vpop.f32.mrb[0].mxu0
    %v4451 = vadd.f32 0.0, %v4450
    %v4452 = vpop.f32.mrb[0].mxu0
    %4453 = vdwg.mxu0
    %v4454 = vlaneseq
    %v4455 = vshrl.u32 %v4454, 7
    %v4456 = vsub.s32 1, %v4455
    %v4457 = vrot.slane %v3945, %v4456
    %v4458 = vadd.f32 %v4457, %v4446
    %v4459 = vadd.f32 %v4457, %v4451
    %4460 = vrot.lane.b32.xlu0 %v4036, 112
    %v4461 = vpop.permute.xlu0 %4460
    %4462 = vrot.lane.b32.xlu0 %v4028, 80
    %v4463 = vpop.permute.xlu0 %4462
    %v4464 = vsel %vm208, %v4461, 0
    %v4466 = vsel %vm208, %v4463, 0
    %4468 = vmatprep.subr.mxu0 0.0
    %4469 = vmatpush1.xpose.msra.mxu0 %v4466
    %4470 = vmatprep.subr.mxu0 0.0
    %4471 = vmatpush1.xpose.msra.mxu0 0.0
    %4472 = vmatprep.subr.mxu0 0.0
    %4473 = vmatpush1.xpose.msra.mxu0 0.0
    %4474 = vmatprep.subr.mxu0 0.0
    %4475 = vmatpush1.xpose.msra.mxu0 0.0
    %4476 = vmatprep.subr.mxu0 0.0
    %4477 = vmatpush1.xpose.msra.mxu0 0.0
    %4478 = vmatprep.subr.mxu0 0.0
    %4479 = vmatpush1.xpose.msra.mxu0 0.0
    %4480 = vmatprep.subr.mxu0 0.0
    %4481 = vmatpush1.xpose.msra.mxu0 0.0
    %4482 = vmatprep.subr.mxu0 0.0
    %4483 = vmatpush1.xpose.msra.mxu0 0.0
    %4484 = vmatprep.subr.mxu0 0.0
    %4485 = vmatpush1.xpose.msra.mxu0 0.0
    %4486 = vmatprep.subr.mxu0 0.0
    %4487 = vmatpush1.xpose.msra.mxu0 0.0
    %4488 = vmatprep.subr.mxu0 0.0
    %4489 = vmatpush1.xpose.msra.mxu0 0.0
    %4490 = vmatprep.subr.mxu0 0.0
    %4491 = vmatpush1.xpose.msra.mxu0 0.0
    %4492 = vmatprep.subr.mxu0 0.0
    %4493 = vmatpush1.xpose.msra.mxu0 0.0
    %4494 = vmatprep.subr.mxu0 0.0
    %4495 = vmatpush1.xpose.msra.mxu0 0.0
    %4496 = vmatprep.subr.mxu0 0.0
    %4497 = vmatpush1.xpose.msra.mxu0 0.0
    %4498 = vmatprep.subr.mxu0 0.0
    %4499 = vmatpush1.xpose.msra.mxu0 0.0
    %4500 = vmatprep.subr.mxu0 0.0
    %4501 = vmatpush1.xpose.msra.mxu0 0.0
    %4502 = vmatprep.subr.mxu0 0.0
    %4503 = vmatpush1.xpose.msra.mxu0 0.0
    %4504 = vmatprep.subr.mxu0 0.0
    %4505 = vmatpush1.xpose.msra.mxu0 0.0
    %4506 = vmatprep.subr.mxu0 0.0
    %4507 = vmatpush1.xpose.msra.mxu0 0.0
    %4508 = vmatprep.subr.mxu0 0.0
    %4509 = vmatpush1.xpose.msra.mxu0 0.0
    %4510 = vmatprep.subr.mxu0 0.0
    %4511 = vmatpush1.xpose.msra.mxu0 0.0
    %4512 = vmatprep.subr.mxu0 0.0
    %4513 = vmatpush1.xpose.msra.mxu0 0.0
    %4514 = vmatprep.subr.mxu0 0.0
    %4515 = vmatpush1.xpose.msra.mxu0 0.0
    %4516 = vmatprep.subr.mxu0 0.0
    %4517 = vmatpush1.xpose.msra.mxu0 0.0
    %4518 = vmatprep.subr.mxu0 0.0
    %4519 = vmatpush1.xpose.msra.mxu0 0.0
    %4520 = vmatprep.subr.mxu0 0.0
    %4521 = vmatpush1.xpose.msra.mxu0 0.0
    %4522 = vmatprep.subr.mxu0 0.0
    %4523 = vmatpush1.xpose.msra.mxu0 0.0
    %4524 = vmatprep.subr.mxu0 0.0
    %4525 = vmatpush1.xpose.msra.mxu0 0.0
    %4526 = vmatprep.subr.mxu0 0.0
    %4527 = vmatpush1.xpose.msra.mxu0 0.0
    %4528 = vmatprep.subr.mxu0 0.0
    %4529 = vmatpush1.xpose.msra.mxu0 0.0
    %4530 = vmatprep.subr.mxu0 0.0
    %4531 = vmatpush1.xpose.msra.mxu0 0.0
    %4532 = vmatprep.mubr.f32.mxu0 0.0
    %4533 = vmatmul.mubr.f32.gmra.mrb[0].mxu0 %v4464
    %v4534 = vpop.f32.mrb[0].mxu0
    %v4535 = vadd.f32 %v2833, %v4534
    %v4536 = vpop.f32.mrb[0].mxu0
    %4537 = vdwg.mxu0
    %4538 = vrot.lane.b32.xlu0 %v4037, 112
    %v4539 = vpop.permute.xlu0 %4538
    %4540 = vrot.lane.b32.xlu0 %v4033, 80
    %v4541 = vpop.permute.xlu0 %4540
    %v4542 = vsel %vm208, %v4539, 0
    %v4544 = vsel %vm208, %v4541, 0
    %4546 = vmatprep.subr.mxu0 0.0
    %4547 = vmatpush1.xpose.msra.mxu0 %v4544
    %4548 = vmatprep.subr.mxu0 0.0
    %4549 = vmatpush1.xpose.msra.mxu0 0.0
    %4550 = vmatprep.subr.mxu0 0.0
    %4551 = vmatpush1.xpose.msra.mxu0 0.0
    %4552 = vmatprep.subr.mxu0 0.0
    %4553 = vmatpush1.xpose.msra.mxu0 0.0
    %4554 = vmatprep.subr.mxu0 0.0
    %4555 = vmatpush1.xpose.msra.mxu0 0.0
    %4556 = vmatprep.subr.mxu0 0.0
    %4557 = vmatpush1.xpose.msra.mxu0 0.0
    %4558 = vmatprep.subr.mxu0 0.0
    %4559 = vmatpush1.xpose.msra.mxu0 0.0
    %4560 = vmatprep.subr.mxu0 0.0
    %4561 = vmatpush1.xpose.msra.mxu0 0.0
    %4562 = vmatprep.subr.mxu0 0.0
    %4563 = vmatpush1.xpose.msra.mxu0 0.0
    %4564 = vmatprep.subr.mxu0 0.0
    %4565 = vmatpush1.xpose.msra.mxu0 0.0
    %4566 = vmatprep.subr.mxu0 0.0
    %4567 = vmatpush1.xpose.msra.mxu0 0.0
    %4568 = vmatprep.subr.mxu0 0.0
    %4569 = vmatpush1.xpose.msra.mxu0 0.0
    %4570 = vmatprep.subr.mxu0 0.0
    %4571 = vmatpush1.xpose.msra.mxu0 0.0
    %4572 = vmatprep.subr.mxu0 0.0
    %4573 = vmatpush1.xpose.msra.mxu0 0.0
    %4574 = vmatprep.subr.mxu0 0.0
    %4575 = vmatpush1.xpose.msra.mxu0 0.0
    %4576 = vmatprep.subr.mxu0 0.0
    %4577 = vmatpush1.xpose.msra.mxu0 0.0
    %4578 = vmatprep.subr.mxu0 0.0
    %4579 = vmatpush1.xpose.msra.mxu0 0.0
    %4580 = vmatprep.subr.mxu0 0.0
    %4581 = vmatpush1.xpose.msra.mxu0 0.0
    %4582 = vmatprep.subr.mxu0 0.0
    %4583 = vmatpush1.xpose.msra.mxu0 0.0
    %4584 = vmatprep.subr.mxu0 0.0
    %4585 = vmatpush1.xpose.msra.mxu0 0.0
    %4586 = vmatprep.subr.mxu0 0.0
    %4587 = vmatpush1.xpose.msra.mxu0 0.0
    %4588 = vmatprep.subr.mxu0 0.0
    %4589 = vmatpush1.xpose.msra.mxu0 0.0
    %4590 = vmatprep.subr.mxu0 0.0
    %4591 = vmatpush1.xpose.msra.mxu0 0.0
    %4592 = vmatprep.subr.mxu0 0.0
    %4593 = vmatpush1.xpose.msra.mxu0 0.0
    %4594 = vmatprep.subr.mxu0 0.0
    %4595 = vmatpush1.xpose.msra.mxu0 0.0
    %4596 = vmatprep.subr.mxu0 0.0
    %4597 = vmatpush1.xpose.msra.mxu0 0.0
    %4598 = vmatprep.subr.mxu0 0.0
    %4599 = vmatpush1.xpose.msra.mxu0 0.0
    %4600 = vmatprep.subr.mxu0 0.0
    %4601 = vmatpush1.xpose.msra.mxu0 0.0
    %4602 = vmatprep.subr.mxu0 0.0
    %4603 = vmatpush1.xpose.msra.mxu0 0.0
    %4604 = vmatprep.subr.mxu0 0.0
    %4605 = vmatpush1.xpose.msra.mxu0 0.0
    %4606 = vmatprep.subr.mxu0 0.0
    %4607 = vmatpush1.xpose.msra.mxu0 0.0
    %4608 = vmatprep.subr.mxu0 0.0
    %4609 = vmatpush1.xpose.msra.mxu0 0.0
    %4610 = vmatprep.mubr.f32.mxu0 0.0
    %4611 = vmatmul.mubr.f32.gmra.mrb[0].mxu0 %v4542
    %v4612 = vpop.f32.mrb[0].mxu0
    %v4613 = vadd.f32 %v2837, %v4612
    %v4614 = vpop.f32.mrb[0].mxu0
    %4615 = vdwg.mxu0
    %v4616 = vsel %vm362, %v4535, -inf
    %4617 = vmax.xlane.f32.xlu0 %v4616
    %v4618 = vpop.xlane.xlu0 %4617
    %v4619 = vsel %vm362, %v4613, -inf
    %4620 = vmax.xlane.f32.xlu0 %v4619
    %v4621 = vpop.xlane.xlu0 %4620
    %v4622 = vsub.f32 %v4535, %v4618
    %v4623 = vsub.f32 %v4613, %v4621
    %v4624 = vmul.f32 %v4622, 1.442695
    %v4625 = vpow.pop %v4624
    %v4626 = vmul.f32 %v4623, 1.442695
    %v4627 = vpow.pop %v4626
    %v4628 = vsel %vm362, %v4625, 0.0
    %4629 = vadd.xlane.f32.xlu0 %v4628
    %v4630 = vpop.xlane.xlu0 %4629
    %v4631 = vsel %vm362, %v4627, 0.0
    %4632 = vadd.xlane.f32.xlu0 %v4631
    %v4633 = vpop.xlane.xlu0 %4632
    %v4634 = vrcp.pop %v4630
    %v4635 = vrcp.pop %v4633
    %v4636 = vmul.f32 %v4625, %v4634
    %v4637 = vmul.f32 %v4627, %v4635
    %4638 = vrot.lane.b32.xlu0 %v4028, 48
    %v4639 = vpop.permute.xlu0 %4638
    %v4642 = vsel %vm362, %v4636, 0
    %4644 = vmatprep.subr.mxu0 0.0
    %4645 = vmatpush1.msra.mxu0 %v4639
    %4646 = vmatprep.subr.mxu0 0.0
    %4647 = vmatpush1.msra.mxu0 0.0
    %4648 = vmatprep.subr.mxu0 0.0
    %4649 = vmatpush1.msra.mxu0 0.0
    %4650 = vmatprep.subr.mxu0 0.0
    %4651 = vmatpush1.msra.mxu0 0.0
    %4652 = vmatprep.subr.mxu0 0.0
    %4653 = vmatpush1.msra.mxu0 0.0
    %4654 = vmatprep.subr.mxu0 0.0
    %4655 = vmatpush1.msra.mxu0 0.0
    %4656 = vmatprep.subr.mxu0 0.0
    %4657 = vmatpush1.msra.mxu0 0.0
    %4658 = vmatprep.subr.mxu0 0.0
    %4659 = vmatpush1.msra.mxu0 0.0
    %4660 = vmatprep.subr.mxu0 0.0
    %4661 = vmatpush1.msra.mxu0 0.0
    %4662 = vmatprep.subr.mxu0 0.0
    %4663 = vmatpush1.msra.mxu0 0.0
    %4664 = vmatprep.subr.mxu0 0.0
    %4665 = vmatpush1.msra.mxu0 0.0
    %4666 = vmatprep.subr.mxu0 0.0
    %4667 = vmatpush1.msra.mxu0 0.0
    %4668 = vmatprep.subr.mxu0 0.0
    %4669 = vmatpush1.msra.mxu0 0.0
    %4670 = vmatprep.subr.mxu0 0.0
    %4671 = vmatpush1.msra.mxu0 0.0
    %4672 = vmatprep.subr.mxu0 0.0
    %4673 = vmatpush1.msra.mxu0 0.0
    %4674 = vmatprep.subr.mxu0 0.0
    %4675 = vmatpush1.msra.mxu0 0.0
    %4676 = vmatprep.subr.mxu0 0.0
    %4677 = vmatpush1.msra.mxu0 0.0
    %4678 = vmatprep.subr.mxu0 0.0
    %4679 = vmatpush1.msra.mxu0 0.0
    %4680 = vmatprep.subr.mxu0 0.0
    %4681 = vmatpush1.msra.mxu0 0.0
    %4682 = vmatprep.subr.mxu0 0.0
    %4683 = vmatpush1.msra.mxu0 0.0
    %4684 = vmatprep.subr.mxu0 0.0
    %4685 = vmatpush1.msra.mxu0 0.0
    %4686 = vmatprep.subr.mxu0 0.0
    %4687 = vmatpush1.msra.mxu0 0.0
    %4688 = vmatprep.subr.mxu0 0.0
    %4689 = vmatpush1.msra.mxu0 0.0
    %4690 = vmatprep.subr.mxu0 0.0
    %4691 = vmatpush1.msra.mxu0 0.0
    %4692 = vmatprep.subr.mxu0 0.0
    %4693 = vmatpush1.msra.mxu0 0.0
    %4694 = vmatprep.subr.mxu0 0.0
    %4695 = vmatpush1.msra.mxu0 0.0
    %4696 = vmatprep.subr.mxu0 0.0
    %4697 = vmatpush1.msra.mxu0 0.0
    %4698 = vmatprep.subr.mxu0 0.0
    %4699 = vmatpush1.msra.mxu0 0.0
    %4700 = vmatprep.subr.mxu0 0.0
    %4701 = vmatpush1.msra.mxu0 0.0
    %4702 = vmatprep.subr.mxu0 0.0
    %4703 = vmatpush1.msra.mxu0 0.0
    %4704 = vmatprep.subr.mxu0 0.0
    %4705 = vmatpush1.msra.mxu0 0.0
    %4706 = vmatprep.subr.mxu0 0.0
    %4707 = vmatpush1.msra.mxu0 0.0
    %4708 = vmatprep.mubr.f32.mxu0 0.0
    %4709 = vmatmul.mubr.f32.gmra.mrb[0].mxu0 %v4642
    %v4710 = vpop.f32.mrb[0].mxu0
    %v4711 = vadd.f32 0.0, %v4710
    %v4712 = vpop.f32.mrb[0].mxu0
    %4713 = vdwg.mxu0
    %4714 = vrot.lane.b32.xlu0 %v4033, 48
    %v4715 = vpop.permute.xlu0 %4714
    %v4718 = vsel %vm362, %v4637, 0
    %4720 = vmatprep.subr.mxu0 0.0
    %4721 = vmatpush1.msra.mxu0 %v4715
    %4722 = vmatprep.subr.mxu0 0.0
    %4723 = vmatpush1.msra.mxu0 0.0
    %4724 = vmatprep.subr.mxu0 0.0
    %4725 = vmatpush1.msra.mxu0 0.0
    %4726 = vmatprep.subr.mxu0 0.0
    %4727 = vmatpush1.msra.mxu0 0.0
    %4728 = vmatprep.subr.mxu0 0.0
    %4729 = vmatpush1.msra.mxu0 0.0
    %4730 = vmatprep.subr.mxu0 0.0
    %4731 = vmatpush1.msra.mxu0 0.0
    %4732 = vmatprep.subr.mxu0 0.0
    %4733 = vmatpush1.msra.mxu0 0.0
    %4734 = vmatprep.subr.mxu0 0.0
    %4735 = vmatpush1.msra.mxu0 0.0
    %4736 = vmatprep.subr.mxu0 0.0
    %4737 = vmatpush1.msra.mxu0 0.0
    %4738 = vmatprep.subr.mxu0 0.0
    %4739 = vmatpush1.msra.mxu0 0.0
    %4740 = vmatprep.subr.mxu0 0.0
    %4741 = vmatpush1.msra.mxu0 0.0
    %4742 = vmatprep.subr.mxu0 0.0
    %4743 = vmatpush1.msra.mxu0 0.0
    %4744 = vmatprep.subr.mxu0 0.0
    %4745 = vmatpush1.msra.mxu0 0.0
    %4746 = vmatprep.subr.mxu0 0.0
    %4747 = vmatpush1.msra.mxu0 0.0
    %4748 = vmatprep.subr.mxu0 0.0
    %4749 = vmatpush1.msra.mxu0 0.0
    %4750 = vmatprep.subr.mxu0 0.0
    %4751 = vmatpush1.msra.mxu0 0.0
    %4752 = vmatprep.subr.mxu0 0.0
    %4753 = vmatpush1.msra.mxu0 0.0
    %4754 = vmatprep.subr.mxu0 0.0
    %4755 = vmatpush1.msra.mxu0 0.0
    %4756 = vmatprep.subr.mxu0 0.0
    %4757 = vmatpush1.msra.mxu0 0.0
    %4758 = vmatprep.subr.mxu0 0.0
    %4759 = vmatpush1.msra.mxu0 0.0
    %4760 = vmatprep.subr.mxu0 0.0
    %4761 = vmatpush1.msra.mxu0 0.0
    %4762 = vmatprep.subr.mxu0 0.0
    %4763 = vmatpush1.msra.mxu0 0.0
    %4764 = vmatprep.subr.mxu0 0.0
    %4765 = vmatpush1.msra.mxu0 0.0
    %4766 = vmatprep.subr.mxu0 0.0
    %4767 = vmatpush1.msra.mxu0 0.0
    %4768 = vmatprep.subr.mxu0 0.0
    %4769 = vmatpush1.msra.mxu0 0.0
    %4770 = vmatprep.subr.mxu0 0.0
    %4771 = vmatpush1.msra.mxu0 0.0
    %4772 = vmatprep.subr.mxu0 0.0
    %4773 = vmatpush1.msra.mxu0 0.0
    %4774 = vmatprep.subr.mxu0 0.0
    %4775 = vmatpush1.msra.mxu0 0.0
    %4776 = vmatprep.subr.mxu0 0.0
    %4777 = vmatpush1.msra.mxu0 0.0
    %4778 = vmatprep.subr.mxu0 0.0
    %4779 = vmatpush1.msra.mxu0 0.0
    %4780 = vmatprep.subr.mxu0 0.0
    %4781 = vmatpush1.msra.mxu0 0.0
    %4782 = vmatprep.subr.mxu0 0.0
    %4783 = vmatpush1.msra.mxu0 0.0
    %4784 = vmatprep.mubr.f32.mxu0 0.0
    %4785 = vmatmul.mubr.f32.gmra.mrb[0].mxu0 %v4718
    %v4786 = vpop.f32.mrb[0].mxu0
    %v4787 = vadd.f32 0.0, %v4786
    %v4788 = vpop.f32.mrb[0].mxu0
    %4789 = vdwg.mxu0
    %v4791 = vsel %vm208, %v4711, 0
    %v4794 = vsel %vm208, %v4787, 0
    %4796 = vmatprep.subr.mxu0 0.0
    %4797 = vmatpush1.msra.mxu0 %v4041
    %4798 = vmatprep.subr.mxu0 0.0
    %4799 = vmatpush1.msra.mxu0 %v4042
    %4800 = vmatprep.subr.mxu0 0.0
    %4801 = vmatpush1.msra.mxu0 0.0
    %4802 = vmatprep.subr.mxu0 0.0
    %4803 = vmatpush1.msra.mxu0 0.0
    %4804 = vmatprep.subr.mxu0 0.0
    %4805 = vmatpush1.msra.mxu0 0.0
    %4806 = vmatprep.subr.mxu0 0.0
    %4807 = vmatpush1.msra.mxu0 0.0
    %4808 = vmatprep.subr.mxu0 0.0
    %4809 = vmatpush1.msra.mxu0 0.0
    %4810 = vmatprep.subr.mxu0 0.0
    %4811 = vmatpush1.msra.mxu0 0.0
    %4812 = vmatprep.subr.mxu0 0.0
    %4813 = vmatpush1.msra.mxu0 0.0
    %4814 = vmatprep.subr.mxu0 0.0
    %4815 = vmatpush1.msra.mxu0 0.0
    %4816 = vmatprep.subr.mxu0 0.0
    %4817 = vmatpush1.msra.mxu0 0.0
    %4818 = vmatprep.subr.mxu0 0.0
    %4819 = vmatpush1.msra.mxu0 0.0
    %4820 = vmatprep.subr.mxu0 0.0
    %4821 = vmatpush1.msra.mxu0 0.0
    %4822 = vmatprep.subr.mxu0 0.0
    %4823 = vmatpush1.msra.mxu0 0.0
    %4824 = vmatprep.subr.mxu0 0.0
    %4825 = vmatpush1.msra.mxu0 0.0
    %4826 = vmatprep.subr.mxu0 0.0
    %4827 = vmatpush1.msra.mxu0 0.0
    %4828 = vmatprep.subr.mxu0 0.0
    %4829 = vmatpush1.msra.mxu0 0.0
    %4830 = vmatprep.subr.mxu0 0.0
    %4831 = vmatpush1.msra.mxu0 0.0
    %4832 = vmatprep.subr.mxu0 0.0
    %4833 = vmatpush1.msra.mxu0 0.0
    %4834 = vmatprep.subr.mxu0 0.0
    %4835 = vmatpush1.msra.mxu0 0.0
    %4836 = vmatprep.subr.mxu0 0.0
    %4837 = vmatpush1.msra.mxu0 0.0
    %4838 = vmatprep.subr.mxu0 0.0
    %4839 = vmatpush1.msra.mxu0 0.0
    %4840 = vmatprep.subr.mxu0 0.0
    %4841 = vmatpush1.msra.mxu0 0.0
    %4842 = vmatprep.subr.mxu0 0.0
    %4843 = vmatpush1.msra.mxu0 0.0
    %4844 = vmatprep.subr.mxu0 0.0
    %4845 = vmatpush1.msra.mxu0 0.0
    %4846 = vmatprep.subr.mxu0 0.0
    %4847 = vmatpush1.msra.mxu0 0.0
    %4848 = vmatprep.subr.mxu0 0.0
    %4849 = vmatpush1.msra.mxu0 0.0
    %4850 = vmatprep.subr.mxu0 0.0
    %4851 = vmatpush1.msra.mxu0 0.0
    %4852 = vmatprep.subr.mxu0 0.0
    %4853 = vmatpush1.msra.mxu0 0.0
    %4854 = vmatprep.subr.mxu0 0.0
    %4855 = vmatpush1.msra.mxu0 0.0
    %4856 = vmatprep.subr.mxu0 0.0
    %4857 = vmatpush1.msra.mxu0 0.0
    %4858 = vmatprep.subr.mxu0 0.0
    %4859 = vmatpush1.msra.mxu0 0.0
    %4860 = vmatprep.mubr.f32.mxu0 0.0
    %4861 = vmatmul.mubr.f32.gmra.mrb[0].mxu0 %v4791
    %v4862 = vpop.f32.mrb[0].mxu0
    %v4863 = vadd.f32 0.0, %v4862
    %v4864 = vpop.f32.mrb[0].mxu0
    %4865 = vmatprep.mubr.f32.mxu0 0.0
    %4866 = vmatmul.mubr.f32.gmra.mrb[0].mxu0 %v4794
    %v4867 = vpop.f32.mrb[0].mxu0
    %v4868 = vadd.f32 0.0, %v4867
    %v4869 = vpop.f32.mrb[0].mxu0
    %4870 = vdwg.mxu0
    %v4871 = vadd.f32 %v4458, %v4863
    %v4872 = vadd.f32 %v4459, %v4868
    %v4873 = vadd.f32 %v4871, %v3942
    %v4874 = vadd.f32 %v4872, %v3943
    %v4875 = vsel %vm55, %v4873, 0.0
    %4876 = vadd.xlane.f32.xlu0 %v4875
    %v4877 = vpop.xlane.xlu0 %4876
    %v4878 = vsel %vm55, %v4874, 0.0
    %4879 = vadd.xlane.f32.xlu0 %v4878
    %v4880 = vpop.xlane.xlu0 %4879
    %v4881 = vmul.f32 %v4877, %v62
    %v4882 = vmul.f32 %v4880, %v62
    %v4883 = vsub.f32 %v4873, %v4881
    %v4884 = vsub.f32 %v4874, %v4882
    %v4885 = vmul.f32 %v4883, %v4883
    %v4886 = vmul.f32 %v4884, %v4884
    %v4887 = vsel %vm55, %v4885, 0.0
    %4888 = vadd.xlane.f32.xlu0 %v4887
    %v4889 = vpop.xlane.xlu0 %4888
    %v4890 = vsel %vm55, %v4886, 0.0
    %4891 = vadd.xlane.f32.xlu0 %v4890
    %v4892 = vpop.xlane.xlu0 %4891
    %v4893 = vmul.f32 %v4889, %v62
    %v4894 = vmul.f32 %v4892, %v62
    %v4895 = vadd.f32 %v4893, 1e-12
    %v4896 = vadd.f32 %v4894, 1e-12
    %v4897 = vrsqrt.pop %v4895
    %v4898 = vrsqrt.pop %v4896
    %v4899 = vmul.f32 %v4883, %v4897
    %v4900 = vmul.f32 %v4884, %v4898
    %v4901 = vlaneseq
    %v4902 = vshrl.u32 %v4901, 7
    %v4903 = vsub.s32 2, %v4902
    %v4904 = vrot.slane %v3945, %v4903
    %v4905 = vmul.f32 %v4899, %v4904
    %v4906 = vmul.f32 %v4900, %v4904
    %v4907 = vlaneseq
    %v4908 = vshrl.u32 %v4907, 7
    %v4909 = vsub.s32 3, %v4908
    %v4910 = vrot.slane %v3945, %v4909
    %v4911 = vadd.f32 %v4905, %v4910
    %v4912 = vadd.f32 %v4906, %v4910
    %s4913 = scalar_lea.vmem %s5, 96
    %v4914 = vld [vmem:[%s4913] sm:$0xff]
    %v4915 = vld [vmem:[%s4913 + $0x8] sm:$0xff]
    %v4916 = vld [vmem:[%s4913 + $0x10] sm:$0xff]
    %v4917 = vld [vmem:[%s4913 + $0x18] sm:$0xff]
    %v4918 = vlaneseq
    %v4919 = vshrl.u32 %v4918, 7
    %v4920 = vsub.s32 4, %v4919
    %v4921 = vrot.slane %v3945, %v4920
    %v4923 = vsel %vm55, %v4911, 0
    %v4926 = vsel %vm55, %v4912, 0
    %4928 = vmatprep.subr.mxu0 0.0
    %4929 = vmatpush1.msra.mxu0 %v4914
    %4930 = vmatprep.subr.mxu0 0.0
    %4931 = vmatpush1.msra.mxu0 %v4915
    %4932 = vmatprep.subr.mxu0 0.0
    %4933 = vmatpush1.msra.mxu0 %v4916
    %4934 = vmatprep.subr.mxu0 0.0
    %4935 = vmatpush1.msra.mxu0 %v4917
    %4936 = vmatprep.subr.mxu0 0.0
    %4937 = vmatpush1.msra.mxu0 0.0
    %4938 = vmatprep.subr.mxu0 0.0
    %4939 = vmatpush1.msra.mxu0 0.0
    %4940 = vmatprep.subr.mxu0 0.0
    %4941 = vmatpush1.msra.mxu0 0.0
    %4942 = vmatprep.subr.mxu0 0.0
    %4943 = vmatpush1.msra.mxu0 0.0
    %4944 = vmatprep.subr.mxu0 0.0
    %4945 = vmatpush1.msra.mxu0 0.0
    %4946 = vmatprep.subr.mxu0 0.0
    %4947 = vmatpush1.msra.mxu0 0.0
    %4948 = vmatprep.subr.mxu0 0.0
    %4949 = vmatpush1.msra.mxu0 0.0
    %4950 = vmatprep.subr.mxu0 0.0
    %4951 = vmatpush1.msra.mxu0 0.0
    %4952 = vmatprep.subr.mxu0 0.0
    %4953 = vmatpush1.msra.mxu0 0.0
    %4954 = vmatprep.subr.mxu0 0.0
    %4955 = vmatpush1.msra.mxu0 0.0
    %4956 = vmatprep.subr.mxu0 0.0
    %4957 = vmatpush1.msra.mxu0 0.0
    %4958 = vmatprep.subr.mxu0 0.0
    %4959 = vmatpush1.msra.mxu0 0.0
    %4960 = vmatprep.subr.mxu0 0.0
    %4961 = vmatpush1.msra.mxu0 0.0
    %4962 = vmatprep.subr.mxu0 0.0
    %4963 = vmatpush1.msra.mxu0 0.0
    %4964 = vmatprep.subr.mxu0 0.0
    %4965 = vmatpush1.msra.mxu0 0.0
    %4966 = vmatprep.subr.mxu0 0.0
    %4967 = vmatpush1.msra.mxu0 0.0
    %4968 = vmatprep.subr.mxu0 0.0
    %4969 = vmatpush1.msra.mxu0 0.0
    %4970 = vmatprep.subr.mxu0 0.0
    %4971 = vmatpush1.msra.mxu0 0.0
    %4972 = vmatprep.subr.mxu0 0.0
    %4973 = vmatpush1.msra.mxu0 0.0
    %4974 = vmatprep.subr.mxu0 0.0
    %4975 = vmatpush1.msra.mxu0 0.0
    %4976 = vmatprep.subr.mxu0 0.0
    %4977 = vmatpush1.msra.mxu0 0.0
    %4978 = vmatprep.subr.mxu0 0.0
    %4979 = vmatpush1.msra.mxu0 0.0
    %4980 = vmatprep.subr.mxu0 0.0
    %4981 = vmatpush1.msra.mxu0 0.0
    %4982 = vmatprep.subr.mxu0 0.0
    %4983 = vmatpush1.msra.mxu0 0.0
    %4984 = vmatprep.subr.mxu0 0.0
    %4985 = vmatpush1.msra.mxu0 0.0
    %4986 = vmatprep.subr.mxu0 0.0
    %4987 = vmatpush1.msra.mxu0 0.0
    %4988 = vmatprep.subr.mxu0 0.0
    %4989 = vmatpush1.msra.mxu0 0.0
    %4990 = vmatprep.subr.mxu0 0.0
    %4991 = vmatpush1.msra.mxu0 0.0
    %4992 = vmatprep.mubr.f32.mxu0 0.0
    %4993 = vmatmul.mubr.f32.gmra.mrb[0].mxu0 %v4923
    %v4994 = vpop.f32.mrb[0].mxu0
    %v4995 = vadd.f32 %v4921, %v4994
    %v4996 = vpop.f32.mrb[0].mxu0
    %4997 = vmatprep.mubr.f32.mxu0 0.0
    %4998 = vmatmul.mubr.f32.gmra.mrb[0].mxu0 %v4926
    %v4999 = vpop.f32.mrb[0].mxu0
    %v5000 = vadd.f32 %v4921, %v4999
    %v5001 = vpop.f32.mrb[0].mxu0
    %5002 = vdwg.mxu0
    %v5003 = vmul.f32 %v4995, 0.5
    %v5004 = vmul.f32 %v5000, 0.5
    %v5005 = vmul.f32 %v4995, 0.70710677
    %v5006 = vmul.f32 %v5000, 0.70710677
    %v5007 = verf.f32.pop %v5005
    %v5008 = verf.f32.pop %v5006
    %v5009 = vadd.f32 %v5007, 1.0
    %v5010 = vadd.f32 %v5008, 1.0
    %v5011 = vmul.f32 %v5003, %v5009
    %v5012 = vmul.f32 %v5004, %v5010
    %s5013 = scalar_lea.vmem %s6, 192
    %v5014 = vld [vmem:[%s5013] sm:$0xff]
    %v5015 = vld [vmem:[%s5013 + $0x8] sm:$0xff]
    %v5016 = vld [vmem:[%s5013 + $0x10] sm:$0xff]
    %v5017 = vld [vmem:[%s5013 + $0x18] sm:$0xff]
    %v5018 = vld [vmem:[%s5013 + $0x20] sm:$0xff]
    %v5019 = vld [vmem:[%s5013 + $0x28] sm:$0xff]
    %v5020 = vld [vmem:[%s5013 + $0x30] sm:$0xff]
    %v5021 = vld [vmem:[%s5013 + $0x38] sm:$0xff]
    %v5022 = vlaneseq
    %v5023 = vshrl.u32 %v5022, 7
    %v5024 = vsub.s32 5, %v5023
    %v5025 = vrot.slane %v3945, %v5024
    %v5027 = vsel %vm1188, %v5011, 0
    %v5030 = vsel %vm1188, %v5012, 0
    %5032 = vmatprep.subr.mxu0 0.0
    %5033 = vmatpush1.msra.mxu0 %v5014
    %5034 = vmatprep.subr.mxu0 0.0
    %5035 = vmatpush1.msra.mxu0 %v5015
    %5036 = vmatprep.subr.mxu0 0.0
    %5037 = vmatpush1.msra.mxu0 %v5016
    %5038 = vmatprep.subr.mxu0 0.0
    %5039 = vmatpush1.msra.mxu0 %v5017
    %5040 = vmatprep.subr.mxu0 0.0
    %5041 = vmatpush1.msra.mxu0 %v5018
    %5042 = vmatprep.subr.mxu0 0.0
    %5043 = vmatpush1.msra.mxu0 %v5019
    %5044 = vmatprep.subr.mxu0 0.0
    %5045 = vmatpush1.msra.mxu0 %v5020
    %5046 = vmatprep.subr.mxu0 0.0
    %5047 = vmatpush1.msra.mxu0 %v5021
    %5048 = vmatprep.subr.mxu0 0.0
    %5049 = vmatpush1.msra.mxu0 0.0
    %5050 = vmatprep.subr.mxu0 0.0
    %5051 = vmatpush1.msra.mxu0 0.0
    %5052 = vmatprep.subr.mxu0 0.0
    %5053 = vmatpush1.msra.mxu0 0.0
    %5054 = vmatprep.subr.mxu0 0.0
    %5055 = vmatpush1.msra.mxu0 0.0
    %5056 = vmatprep.subr.mxu0 0.0
    %5057 = vmatpush1.msra.mxu0 0.0
    %5058 = vmatprep.subr.mxu0 0.0
    %5059 = vmatpush1.msra.mxu0 0.0
    %5060 = vmatprep.subr.mxu0 0.0
    %5061 = vmatpush1.msra.mxu0 0.0
    %5062 = vmatprep.subr.mxu0 0.0
    %5063 = vmatpush1.msra.mxu0 0.0
    %5064 = vmatprep.subr.mxu0 0.0
    %5065 = vmatpush1.msra.mxu0 0.0
    %5066 = vmatprep.subr.mxu0 0.0
    %5067 = vmatpush1.msra.mxu0 0.0
    %5068 = vmatprep.subr.mxu0 0.0
    %5069 = vmatpush1.msra.mxu0 0.0
    %5070 = vmatprep.subr.mxu0 0.0
    %5071 = vmatpush1.msra.mxu0 0.0
    %5072 = vmatprep.subr.mxu0 0.0
    %5073 = vmatpush1.msra.mxu0 0.0
    %5074 = vmatprep.subr.mxu0 0.0
    %5075 = vmatpush1.msra.mxu0 0.0
    %5076 = vmatprep.subr.mxu0 0.0
    %5077 = vmatpush1.msra.mxu0 0.0
    %5078 = vmatprep.subr.mxu0 0.0
    %5079 = vmatpush1.msra.mxu0 0.0
    %5080 = vmatprep.subr.mxu0 0.0
    %5081 = vmatpush1.msra.mxu0 0.0
    %5082 = vmatprep.subr.mxu0 0.0
    %5083 = vmatpush1.msra.mxu0 0.0
    %5084 = vmatprep.subr.mxu0 0.0
    %5085 = vmatpush1.msra.mxu0 0.0
    %5086 = vmatprep.subr.mxu0 0.0
    %5087 = vmatpush1.msra.mxu0 0.0
    %5088 = vmatprep.subr.mxu0 0.0
    %5089 = vmatpush1.msra.mxu0 0.0
    %5090 = vmatprep.subr.mxu0 0.0
    %5091 = vmatpush1.msra.mxu0 0.0
    %5092 = vmatprep.subr.mxu0 0.0
    %5093 = vmatpush1.msra.mxu0 0.0
    %5094 = vmatprep.subr.mxu0 0.0
    %5095 = vmatpush1.msra.mxu0 0.0
    %5096 = vmatprep.mubr.f32.mxu0 0.0
    %5097 = vmatmul.mubr.f32.gmra.mrb[0].mxu0 %v5027
    %v5098 = vpop.f32.mrb[0].mxu0
    %v5099 = vadd.f32 %v5025, %v5098
    %v5100 = vpop.f32.mrb[0].mxu0
    %5101 = vmatprep.mubr.f32.mxu0 0.0
    %5102 = vmatmul.mubr.f32.gmra.mrb[0].mxu0 %v5030
    %v5103 = vpop.f32.mrb[0].mxu0
    %v5104 = vadd.f32 %v5025, %v5103
    %v5105 = vpop.f32.mrb[0].mxu0
    %5106 = vdwg.mxu0
    %v5107 = vadd.f32 %v5099, %v4911
    %v5108 = vadd.f32 %v5104, %v4912
    %v5109 = vsel %vm55, %v5107, 0.0
    %5110 = vadd.xlane.f32.xlu0 %v5109
    %v5111 = vpop.xlane.xlu0 %5110
    %v5112 = vsel %vm55, %v5108, 0.0
    %5113 = vadd.xlane.f32.xlu0 %v5112
    %v5114 = vpop.xlane.xlu0 %5113
    %v5115 = vmul.f32 %v5111, %v62
    %v5116 = vmul.f32 %v5114, %v62
    %v5117 = vsub.f32 %v5107, %v5115
    %v5118 = vsub.f32 %v5108, %v5116
    %v5119 = vmul.f32 %v5117, %v5117
    %v5120 = vmul.f32 %v5118, %v5118
    %v5121 = vsel %vm55, %v5119, 0.0
    %5122 = vadd.xlane.f32.xlu0 %v5121
    %v5123 = vpop.xlane.xlu0 %5122
    %v5124 = vsel %vm55, %v5120, 0.0
    %5125 = vadd.xlane.f32.xlu0 %v5124
    %v5126 = vpop.xlane.xlu0 %5125
    %v5127 = vmul.f32 %v5123, %v62
    %v5128 = vmul.f32 %v5126, %v62
    %v5129 = vadd.f32 %v5127, 1e-12
    %v5130 = vadd.f32 %v5128, 1e-12
    %v5131 = vrsqrt.pop %v5129
    %v5132 = vrsqrt.pop %v5130
    %v5133 = vmul.f32 %v5117, %v5131
    %v5134 = vmul.f32 %v5118, %v5132
    %v5135 = vlaneseq
    %v5136 = vshrl.u32 %v5135, 7
    %v5137 = vsub.s32 6, %v5136
    %v5138 = vrot.slane %v3945, %v5137
    %v5139 = vmul.f32 %v5133, %v5138
    %v5140 = vmul.f32 %v5134, %v5138
    %v5141 = vlaneseq
    %v5142 = vshrl.u32 %v5141, 7
    %v5143 = vsub.s32 7, %v5142
    %v5144 = vrot.slane %v3945, %v5143
    %v5145 = vadd.f32 %v5139, %v5144
    %v5146 = vadd.f32 %v5140, %v5144
    %s5147 = scalar_lea.vmem %s8, 32
    %v5148 = vld [vmem:[%s5147] sm:$0xff]
    %v5149 = vld [vmem:[%s5147 + $0x8] sm:$0xff]
    %v5150 = vld [vmem:[%s5147 + $0x10] sm:$0xff]
    %v5151 = vld [vmem:[%s5147 + $0x18] sm:$0xff]
    %s5152 = scalar_lea.vmem %s9, 1
    %v5153 = vld [vmem:[%s5152] sm:$0x1]
    %v5155 = vlaneseq
    %v5156 = vshrl.u32 %v5155, 7
    %v5157 = vsub.s32 0, %v5156
    %v5158 = vrot.slane %v5153, %v5157
    %v5162 = vrot.slane %v5146, 7
    %v5163 = vsel %vm2527, %v5162, %v5145
    %v5164 = vsel %vm55, %v5163, 0
    %5166 = vmatprep.subr.mxu0 0.0
    %5167 = vmatpush1.msra.mxu0 %v5148
    %5168 = vmatprep.subr.mxu0 0.0
    %5169 = vmatpush1.msra.mxu0 %v5149
    %5170 = vmatprep.subr.mxu0 0.0
    %5171 = vmatpush1.msra.mxu0 %v5150
    %5172 = vmatprep.subr.mxu0 0.0
    %5173 = vmatpush1.msra.mxu0 %v5151
    %5174 = vmatprep.subr.mxu0 0.0
    %5175 = vmatpush1.msra.mxu0 0.0
    %5176 = vmatprep.subr.mxu0 0.0
    %5177 = vmatpush1.msra.mxu0 0.0
    %5178 = vmatprep.subr.mxu0 0.0
    %5179 = vmatpush1.msra.mxu0 0.0
    %5180 = vmatprep.subr.mxu0 0.0
    %5181 = vmatpush1.msra.mxu0 0.0
    %5182 = vmatprep.subr.mxu0 0.0
    %5183 = vmatpush1.msra.mxu0 0.0
    %5184 = vmatprep.subr.mxu0 0.0
    %5185 = vmatpush1.msra.mxu0 0.0
    %5186 = vmatprep.subr.mxu0 0.0
    %5187 = vmatpush1.msra.mxu0 0.0
    %5188 = vmatprep.subr.mxu0 0.0
    %5189 = vmatpush1.msra.mxu0 0.0
    %5190 = vmatprep.subr.mxu0 0.0
    %5191 = vmatpush1.msra.mxu0 0.0
    %5192 = vmatprep.subr.mxu0 0.0
    %5193 = vmatpush1.msra.mxu0 0.0
    %5194 = vmatprep.subr.mxu0 0.0
    %5195 = vmatpush1.msra.mxu0 0.0
    %5196 = vmatprep.subr.mxu0 0.0
    %5197 = vmatpush1.msra.mxu0 0.0
    %5198 = vmatprep.subr.mxu0 0.0
    %5199 = vmatpush1.msra.mxu0 0.0
    %5200 = vmatprep.subr.mxu0 0.0
    %5201 = vmatpush1.msra.mxu0 0.0
    %5202 = vmatprep.subr.mxu0 0.0
    %5203 = vmatpush1.msra.mxu0 0.0
    %5204 = vmatprep.subr.mxu0 0.0
    %5205 = vmatpush1.msra.mxu0 0.0
    %5206 = vmatprep.subr.mxu0 0.0
    %5207 = vmatpush1.msra.mxu0 0.0
    %5208 = vmatprep.subr.mxu0 0.0
    %5209 = vmatpush1.msra.mxu0 0.0
    %5210 = vmatprep.subr.mxu0 0.0
    %5211 = vmatpush1.msra.mxu0 0.0
    %5212 = vmatprep.subr.mxu0 0.0
    %5213 = vmatpush1.msra.mxu0 0.0
    %5214 = vmatprep.subr.mxu0 0.0
    %5215 = vmatpush1.msra.mxu0 0.0
    %5216 = vmatprep.subr.mxu0 0.0
    %5217 = vmatpush1.msra.mxu0 0.0
    %5218 = vmatprep.subr.mxu0 0.0
    %5219 = vmatpush1.msra.mxu0 0.0
    %5220 = vmatprep.subr.mxu0 0.0
    %5221 = vmatpush1.msra.mxu0 0.0
    %5222 = vmatprep.subr.mxu0 0.0
    %5223 = vmatpush1.msra.mxu0 0.0
    %5224 = vmatprep.subr.mxu0 0.0
    %5225 = vmatpush1.msra.mxu0 0.0
    %5226 = vmatprep.subr.mxu0 0.0
    %5227 = vmatpush1.msra.mxu0 0.0
    %5228 = vmatprep.subr.mxu0 0.0
    %5229 = vmatpush1.msra.mxu0 0.0
    %5230 = vmatprep.mubr.f32.mxu0 0.0
    %5231 = vmatmul.mubr.f32.gmra.mrb[0].mxu0 %v5164
    %v5232 = vpop.f32.mrb[0].mxu0
    %v5233 = vadd.f32 %v5158, %v5232
    %v5234 = vpop.f32.mrb[0].mxu0
    %5235 = vdwg.mxu0
    %v5236 = vtanh.pop %v5233
    %v5238 = vsel %vm55, %v5236, 0
    %5240 = vmatprep.subr.mxu0 0.0
    %5241 = vmatpush1.msra.mxu0 %v46
    %5242 = vmatprep.subr.mxu0 0.0
    %5243 = vmatpush1.msra.mxu0 %v47
    %5244 = vmatprep.subr.mxu0 0.0
    %5245 = vmatpush1.msra.mxu0 %v48
    %5246 = vmatprep.subr.mxu0 0.0
    %5247 = vmatpush1.msra.mxu0 %v49
    %5248 = vmatprep.subr.mxu0 0.0
    %5249 = vmatpush1.msra.mxu0 0.0
    %5250 = vmatprep.subr.mxu0 0.0
    %5251 = vmatpush1.msra.mxu0 0.0
    %5252 = vmatprep.subr.mxu0 0.0
    %5253 = vmatpush1.msra.mxu0 0.0
    %5254 = vmatprep.subr.mxu0 0.0
    %5255 = vmatpush1.msra.mxu0 0.0
    %5256 = vmatprep.subr.mxu0 0.0
    %5257 = vmatpush1.msra.mxu0 0.0
    %5258 = vmatprep.subr.mxu0 0.0
    %5259 = vmatpush1.msra.mxu0 0.0
    %5260 = vmatprep.subr.mxu0 0.0
    %5261 = vmatpush1.msra.mxu0 0.0
    %5262 = vmatprep.subr.mxu0 0.0
    %5263 = vmatpush1.msra.mxu0 0.0
    %5264 = vmatprep.subr.mxu0 0.0
    %5265 = vmatpush1.msra.mxu0 0.0
    %5266 = vmatprep.subr.mxu0 0.0
    %5267 = vmatpush1.msra.mxu0 0.0
    %5268 = vmatprep.subr.mxu0 0.0
    %5269 = vmatpush1.msra.mxu0 0.0
    %5270 = vmatprep.subr.mxu0 0.0
    %5271 = vmatpush1.msra.mxu0 0.0
    %5272 = vmatprep.subr.mxu0 0.0
    %5273 = vmatpush1.msra.mxu0 0.0
    %5274 = vmatprep.subr.mxu0 0.0
    %5275 = vmatpush1.msra.mxu0 0.0
    %5276 = vmatprep.subr.mxu0 0.0
    %5277 = vmatpush1.msra.mxu0 0.0
    %5278 = vmatprep.subr.mxu0 0.0
    %5279 = vmatpush1.msra.mxu0 0.0
    %5280 = vmatprep.subr.mxu0 0.0
    %5281 = vmatpush1.msra.mxu0 0.0
    %5282 = vmatprep.subr.mxu0 0.0
    %5283 = vmatpush1.msra.mxu0 0.0
    %5284 = vmatprep.subr.mxu0 0.0
    %5285 = vmatpush1.msra.mxu0 0.0
    %5286 = vmatprep.subr.mxu0 0.0
    %5287 = vmatpush1.msra.mxu0 0.0
    %5288 = vmatprep.subr.mxu0 0.0
    %5289 = vmatpush1.msra.mxu0 0.0
    %5290 = vmatprep.subr.mxu0 0.0
    %5291 = vmatpush1.msra.mxu0 0.0
    %5292 = vmatprep.subr.mxu0 0.0
    %5293 = vmatpush1.msra.mxu0 0.0
    %5294 = vmatprep.subr.mxu0 0.0
    %5295 = vmatpush1.msra.mxu0 0.0
    %5296 = vmatprep.subr.mxu0 0.0
    %5297 = vmatpush1.msra.mxu0 0.0
    %5298 = vmatprep.subr.mxu0 0.0
    %5299 = vmatpush1.msra.mxu0 0.0
    %5300 = vmatprep.subr.mxu0 0.0
    %5301 = vmatpush1.msra.mxu0 0.0
    %5302 = vmatprep.subr.mxu0 0.0
    %5303 = vmatpush1.msra.mxu0 0.0
    %5304 = vmatprep.mubr.f32.mxu0 0.0
    %5305 = vmatmul.mubr.f32.gmra.mrb[0].mxu0 %v5238
    %v5306 = vpop.f32.mrb[0].mxu0
    %v5307 = vadd.f32 0.0, %v5306
    %v5308 = vpop.f32.mrb[0].mxu0
    %5309 = vdwg.mxu0
    %v5310 = vadd.f32 %v2681, %v5307
    %vm5311 = vcmask 9216
    %5312 = vst.msk [vmem:[#allocation2] sm:$0x3] %vm5311, %v5310
    // Predicated region
    $region50: #{bert_concat_forward.1} parent=1 // pred_check
      _
    $region51: #{bert_concat_forward.1} parent=1 // pred_check_branch
      %5314 = sbr.rel (0) target = $region53
    $region52: #{bert_concat_forward.1} parent=1 // pred_region
      %s5316 = ssub.s32 32, 32
      %5317 = vsyncadd [#allocation3], %s5316
      %s5319 = sshll.u32 [#allocation2], 4
      %s5320 = int_to_ptr.vmem [resolvable:$true] %s5319
      %5322 = dma.vmem_to_hbm [thread:$0]  %s5320, 32, %s12, [#allocation3]
    $region53: #{bert_concat_forward.1} parent=1 // pred_fallthru
      _
    // Predicated region
    $region54: #{bert_concat_forward.1} parent=1 // pred_check
      _
    $region55: #{bert_concat_forward.1} parent=1 // pred_check_branch
      %5324 = sbr.rel (0) target = $region57
    $region56: #{bert_concat_forward.1} parent=1 // pred_region
      %5325 = dma.done [#allocation3], 32
    $region57: #{bert_concat_forward.1} parent=1 // pred_fallthru
      _
    %5326 = vsyncpa [#allocation3], 1

</llo_original>
